<compile_context>
chip_gen: v5e
topology: v5e:2x2
jax: 0.10.0
libtpu: 0.0.40
codegen_flags: <defaults>
</compile_context>

<pallas_src>
import jax
import jax.numpy as jnp
from jax.experimental import pallas as pl
from jax.experimental.pallas import tpu as pltpu

BN_EPS = 1e-5


# ---------------------------------------------------------------------------
# Fused kernel: 5x (matmul [+ bias] [+ BN + ReLU]) + temperature scale
# ---------------------------------------------------------------------------
def _fnn_fused_kernel(
    x_ref,                                            # f32 activations [M, Fin]
    w1_hbm, w2_hbm, w3_hbm, w4_hbm, w5_hbm,           # bf16 weights, left in HBM
    g1_ref, be1_ref, g2_ref, be2_ref,
    g3_ref, be3_ref, g4_ref, be4_ref,                 # BN gamma/beta (f32, VMEM)
    b5_ref,                                           # last-layer bias (f32, VMEM)
    inv_t_ref,                                        # 1/temperature (f32, SMEM)
    o_ref,                                            # output logits (f32)
    w1_v, w2_v, w3_v, w4_v, w5_v,                     # per-layer VMEM weight buffers
    dma_sem,                                          # DMA semaphores, shape (5,)
):
    hbm_refs = (w1_hbm, w2_hbm, w3_hbm, w4_hbm, w5_hbm)
    vmem_bufs = (w1_v, w2_v, w3_v, w4_v, w5_v)

    # Kick off ALL weight DMAs now; wait just-in-time per layer so later
    # layers' weight loads stream in behind earlier layers' compute.
    copies = []
    for i in range(5):
        cp = pltpu.make_async_copy(hbm_refs[i], vmem_bufs[i], dma_sem.at[i])
        cp.start()
        copies.append(cp)

    gammas = (g1_ref, g2_ref, g3_ref, g4_ref)
    betas = (be1_ref, be2_ref, be3_ref, be4_ref)

    h = x_ref[...].astype(jnp.bfloat16)               # bf16 into the MXU
    for li in range(4):
        copies[li].wait()
        # bf16 x bf16 MXU matmul, f32 accumulation.  Linear bias omitted:
        # it is exactly cancelled by the following BatchNorm.
        y = jnp.dot(h, vmem_bufs[li][...], preferred_element_type=jnp.float32)

        # BatchNorm1d (train mode, biased batch stats) folded into one
        # per-feature scale/shift, then ReLU; emit bf16 for the next matmul.
        mean = jnp.mean(y, axis=0, keepdims=True)                       # [1,F]
        diff = y - mean
        var = jnp.mean(diff * diff, axis=0, keepdims=True)              # [1,F]
        scale = gammas[li][...] * jax.lax.rsqrt(var + BN_EPS)           # [1,F]
        shift = betas[li][...] - mean * scale                           # [1,F]
        h = jnp.maximum(y * scale + shift, 0.0).astype(jnp.bfloat16)    # [M,F]

    copies[4].wait()
    logits = jnp.dot(h, w5_v[...], preferred_element_type=jnp.float32) + b5_ref[...]
    # NOTE: output last dim (output_size=8) produces masked vst.msk stores;
    # negligible at this size but keep logits lane-dense if it ever grows.
    o_ref[...] = (logits * inv_t_ref[0]).astype(o_ref.dtype)


# ---------------------------------------------------------------------------
# Wrapper
# ---------------------------------------------------------------------------
def fnn_forward(params, temperature, x):
    n, fin = x.shape
    ws = [p["w"] for p in params]          # bf16, shape [in, out]
    w_shapes = [w.shape for w in ws]
    fout = w_shapes[-1][1]
    max_f = max(s[1] for s in w_shapes)

    def full_spec(shape):
        return pl.BlockSpec(shape, lambda i, _s=shape: (0,) * len(_s))

    in_specs = [full_spec((n, fin))]                               # x
    in_specs += [pl.BlockSpec(memory_space=pl.ANY)] * 5            # weights (HBM)
    for li in range(4):                                            # BN gamma/beta
        f = w_shapes[li][1]
        in_specs += [full_spec((1, f)), full_spec((1, f))]
    in_specs += [full_spec((1, fout))]                             # b5
    in_specs += [pl.BlockSpec(memory_space=pltpu.MemorySpace.SMEM)]  # 1/temperature

    scratch_shapes = [pltpu.VMEM(s, jnp.bfloat16) for s in w_shapes]
    scratch_shapes += [pltpu.SemaphoreType.DMA((5,))]

    # Explicit VMEM budget (v7x has half the VMEM of v5e/v6e): weight scratch
    # + double-buffered small blocks + headroom for f32 intermediates.
    weight_bytes = sum(a * b * 2 for a, b in w_shapes)
    small_bytes = 2 * (n * fin * 4 + n * fout * 4
                       + sum(2 * s[1] * 4 for s in w_shapes[:4]) + fout * 4)
    act_bytes = 4 * n * max_f * 4
    vmem_limit = min(weight_bytes + small_bytes + act_bytes + (4 << 20), 32 << 20)

    inv_t = (1.0 / temperature).astype(jnp.float32).reshape((1,))

    args = [x, *ws]
    for li in range(4):
        args += [params[li]["gamma"], params[li]["beta"]]
    args += [params[4]["b"], inv_t]

    return pl.pallas_call(
        _fnn_fused_kernel,
        out_shape=jax.ShapeDtypeStruct((n, fout), jnp.float32),
        grid_spec=pltpu.PrefetchScalarGridSpec(
            num_scalar_prefetch=0,
            grid=(1,),
            in_specs=in_specs,
            out_specs=full_spec((n, fout)),
            scratch_shapes=scratch_shapes,
        ),
        compiler_params=pltpu.CompilerParams(
            dimension_semantics=("arbitrary",),
            vmem_limit_bytes=int(vmem_limit),
        ),
    )(*args)


# ---------------------------------------------------------------------------
# Parameter construction (deterministic, synthetic)
# ---------------------------------------------------------------------------
def init_fnn_params(key, input_size, output_size,
                    h1=512, h2=1024, h3=512, h4=256):
    sizes = [input_size, h1, h2, h3, h4, output_size]
    params = []
    for li in range(5):
        fin, fout = sizes[li], sizes[li + 1]
        key, kw, kb = jax.random.split(key, 3)
        bound = 1.0 / jnp.sqrt(fin)
        # stored as [in, out] (transposed vs. PyTorch's [out, in]); bf16 weights.
        w = jax.random.uniform(kw, (fin, fout), jnp.float32, -bound, bound)
        b = jax.random.uniform(kb, (1, fout), jnp.float32, -bound, bound)
        layer = {"w": w.astype(jnp.bfloat16), "b": b}
        if li < 4:  # layers followed by BatchNorm1d + ReLU
            layer["gamma"] = jnp.ones((1, fout), jnp.float32)
            layer["beta"] = jnp.zeros((1, fout), jnp.float32)
        params.append(layer)
    temperature = jnp.ones((1,), jnp.float32)
    return params, temperature


def fnn_forward_ref(params, temperature, x):
    """Pure-JAX reference: PyTorch train-mode math (including the biases of the
    BN-followed layers, which the kernel legitimately drops), with matmul
    inputs quantized to bf16 at the same points as the kernel and f32
    accumulation / f32 BatchNorm."""
    h = x
    for li in range(4):
        p = params[li]
        y = jnp.dot(h.astype(jnp.bfloat16), p["w"],
                    preferred_element_type=jnp.float32) + p["b"]
        mean = jnp.mean(y, axis=0, keepdims=True)
        var = jnp.mean((y - mean) ** 2, axis=0, keepdims=True)
        y = (y - mean) / jnp.sqrt(var + BN_EPS) * p["gamma"] + p["beta"]
        h = jnp.maximum(y, 0.0)
    p = params[4]
    logits = jnp.dot(h.astype(jnp.bfloat16), p["w"],
                     preferred_element_type=jnp.float32) + p["b"]
    return logits / temperature[0]


# ---------------------------------------------------------------------------
if __name__ == "__main__":
    input_size = 32
    output_size = 8
    batch = 128          # >= 128 rows so the MXU is not <6% row-utilized

    key = jax.random.PRNGKey(0)
    key, kx = jax.random.split(key)
    x = jax.random.normal(kx, (batch, input_size), jnp.float32)

    params, temperature = init_fnn_params(key, input_size, output_size)

    out = fnn_forward(params, temperature, x)
    out = jax.block_until_ready(out)

    ref = fnn_forward_ref(params, temperature, x)
    assert out.shape == (batch, output_size)
    # Residual difference comes only from accumulation ordering and the exact
    # (mathematically cancelled) bias-vs-no-bias reassociation; bf16
    # quantization points are identical between kernel and reference.
    assert jnp.allclose(out, ref, atol=3e-2, rtol=3e-2), "mismatch vs reference"

    print("KERNEL_OK")
</pallas_src>

<mosaic_0001>
module attributes {stable_mosaic.version = 11 : i64} {
  func.func @_fnn_fused_kernel(%arg0: i32, %arg1: memref<128x32xf32, #tpu.memory_space<vmem>>, %arg2: memref<32x512xbf16, #tpu.memory_space<any>>, %arg3: memref<512x1024xbf16, #tpu.memory_space<any>>, %arg4: memref<1024x512xbf16, #tpu.memory_space<any>>, %arg5: memref<512x256xbf16, #tpu.memory_space<any>>, %arg6: memref<256x8xbf16, #tpu.memory_space<any>>, %arg7: memref<1x512xf32, #tpu.memory_space<vmem>>, %arg8: memref<1x512xf32, #tpu.memory_space<vmem>>, %arg9: memref<1x1024xf32, #tpu.memory_space<vmem>>, %arg10: memref<1x1024xf32, #tpu.memory_space<vmem>>, %arg11: memref<1x512xf32, #tpu.memory_space<vmem>>, %arg12: memref<1x512xf32, #tpu.memory_space<vmem>>, %arg13: memref<1x256xf32, #tpu.memory_space<vmem>>, %arg14: memref<1x256xf32, #tpu.memory_space<vmem>>, %arg15: memref<1x8xf32, #tpu.memory_space<vmem>>, %arg16: memref<1xf32, #tpu.memory_space<smem>>, %arg17: memref<128x8xf32, #tpu.memory_space<vmem>>, %arg18: memref<32x512xbf16, #tpu.memory_space<vmem>>, %arg19: memref<512x1024xbf16, #tpu.memory_space<vmem>>, %arg20: memref<1024x512xbf16, #tpu.memory_space<vmem>>, %arg21: memref<512x256xbf16, #tpu.memory_space<vmem>>, %arg22: memref<256x8xbf16, #tpu.memory_space<vmem>>, %arg23: memref<5x!tpu.dma_semaphore, #tpu.memory_space<semaphore_mem>>) attributes {dimension_semantics = [#tpu.dimension_semantics<arbitrary>], iteration_bounds = array<i64: 1>, scalar_prefetch = 0 : i64, scratch_operands = 6 : i64, tpu.core_type = #tpu.core_type<tc>, window_params = [{pipeline_mode = #tpu.pipeline_mode<synchronous>, transform_indices = @transform_0, window_bounds = array<i64: 128, 32>}, {}, {}, {}, {}, {}, {pipeline_mode = #tpu.pipeline_mode<synchronous>, transform_indices = @transform_6, window_bounds = array<i64: 1, 512>}, {pipeline_mode = #tpu.pipeline_mode<synchronous>, transform_indices = @transform_7, window_bounds = array<i64: 1, 512>}, {pipeline_mode = #tpu.pipeline_mode<synchronous>, transform_indices = @transform_8, window_bounds = array<i64: 1, 1024>}, {pipeline_mode = #tpu.pipeline_mode<synchronous>, transform_indices = @transform_9, window_bounds = array<i64: 1, 1024>}, {pipeline_mode = #tpu.pipeline_mode<synchronous>, transform_indices = @transform_10, window_bounds = array<i64: 1, 512>}, {pipeline_mode = #tpu.pipeline_mode<synchronous>, transform_indices = @transform_11, window_bounds = array<i64: 1, 512>}, {pipeline_mode = #tpu.pipeline_mode<synchronous>, transform_indices = @transform_12, window_bounds = array<i64: 1, 256>}, {pipeline_mode = #tpu.pipeline_mode<synchronous>, transform_indices = @transform_13, window_bounds = array<i64: 1, 256>}, {pipeline_mode = #tpu.pipeline_mode<synchronous>, transform_indices = @transform_14, window_bounds = array<i64: 1, 8>}, {transform_indices = @transform_15, window_bounds = array<i64: 1>}, {pipeline_mode = #tpu.pipeline_mode<synchronous>, transform_indices = @transform_16, window_bounds = array<i64: 128, 8>}]} {
    %c0_i32 = arith.constant 0 : i32
    %0 = tpu.memref_slice %arg23[%c0_i32] : memref<5x!tpu.dma_semaphore, #tpu.memory_space<semaphore_mem>> -> memref<1x!tpu.dma_semaphore, #tpu.memory_space<semaphore_mem>>
    %1 = tpu.memref_squeeze %0 : memref<1x!tpu.dma_semaphore, #tpu.memory_space<semaphore_mem>> -> memref<!tpu.dma_semaphore, #tpu.memory_space<semaphore_mem>>
    tpu.enqueue_dma source(%arg2 : memref<32x512xbf16, #tpu.memory_space<any>>) target(%arg18 : memref<32x512xbf16, #tpu.memory_space<vmem>>) target_semaphore(%1 : memref<!tpu.dma_semaphore, #tpu.memory_space<semaphore_mem>>)
    %c1_i32 = arith.constant 1 : i32
    %2 = tpu.memref_slice %arg23[%c1_i32] : memref<5x!tpu.dma_semaphore, #tpu.memory_space<semaphore_mem>> -> memref<1x!tpu.dma_semaphore, #tpu.memory_space<semaphore_mem>>
    %3 = tpu.memref_squeeze %2 : memref<1x!tpu.dma_semaphore, #tpu.memory_space<semaphore_mem>> -> memref<!tpu.dma_semaphore, #tpu.memory_space<semaphore_mem>>
    tpu.enqueue_dma source(%arg3 : memref<512x1024xbf16, #tpu.memory_space<any>>) target(%arg19 : memref<512x1024xbf16, #tpu.memory_space<vmem>>) target_semaphore(%3 : memref<!tpu.dma_semaphore, #tpu.memory_space<semaphore_mem>>)
    %c2_i32 = arith.constant 2 : i32
    %4 = tpu.memref_slice %arg23[%c2_i32] : memref<5x!tpu.dma_semaphore, #tpu.memory_space<semaphore_mem>> -> memref<1x!tpu.dma_semaphore, #tpu.memory_space<semaphore_mem>>
    %5 = tpu.memref_squeeze %4 : memref<1x!tpu.dma_semaphore, #tpu.memory_space<semaphore_mem>> -> memref<!tpu.dma_semaphore, #tpu.memory_space<semaphore_mem>>
    tpu.enqueue_dma source(%arg4 : memref<1024x512xbf16, #tpu.memory_space<any>>) target(%arg20 : memref<1024x512xbf16, #tpu.memory_space<vmem>>) target_semaphore(%5 : memref<!tpu.dma_semaphore, #tpu.memory_space<semaphore_mem>>)
    %c3_i32 = arith.constant 3 : i32
    %6 = tpu.memref_slice %arg23[%c3_i32] : memref<5x!tpu.dma_semaphore, #tpu.memory_space<semaphore_mem>> -> memref<1x!tpu.dma_semaphore, #tpu.memory_space<semaphore_mem>>
    %7 = tpu.memref_squeeze %6 : memref<1x!tpu.dma_semaphore, #tpu.memory_space<semaphore_mem>> -> memref<!tpu.dma_semaphore, #tpu.memory_space<semaphore_mem>>
    tpu.enqueue_dma source(%arg5 : memref<512x256xbf16, #tpu.memory_space<any>>) target(%arg21 : memref<512x256xbf16, #tpu.memory_space<vmem>>) target_semaphore(%7 : memref<!tpu.dma_semaphore, #tpu.memory_space<semaphore_mem>>)
    %c4_i32 = arith.constant 4 : i32
    %8 = tpu.memref_slice %arg23[%c4_i32] : memref<5x!tpu.dma_semaphore, #tpu.memory_space<semaphore_mem>> -> memref<1x!tpu.dma_semaphore, #tpu.memory_space<semaphore_mem>>
    %9 = tpu.memref_squeeze %8 : memref<1x!tpu.dma_semaphore, #tpu.memory_space<semaphore_mem>> -> memref<!tpu.dma_semaphore, #tpu.memory_space<semaphore_mem>>
    tpu.enqueue_dma source(%arg6 : memref<256x8xbf16, #tpu.memory_space<any>>) target(%arg22 : memref<256x8xbf16, #tpu.memory_space<vmem>>) target_semaphore(%9 : memref<!tpu.dma_semaphore, #tpu.memory_space<semaphore_mem>>)
    %c0 = arith.constant 0 : index
    %c0_0 = arith.constant 0 : index
    %10 = vector.load %arg1[%c0, %c0_0] : memref<128x32xf32, #tpu.memory_space<vmem>>, vector<128x32xf32>
    %11 = arith.truncf %10 : vector<128x32xf32> to vector<128x32xbf16>
    %c0_i32_1 = arith.constant 0 : i32
    %12 = tpu.memref_slice %arg23[%c0_i32_1] : memref<5x!tpu.dma_semaphore, #tpu.memory_space<semaphore_mem>> -> memref<1x!tpu.dma_semaphore, #tpu.memory_space<semaphore_mem>>
    %13 = tpu.memref_squeeze %12 : memref<1x!tpu.dma_semaphore, #tpu.memory_space<semaphore_mem>> -> memref<!tpu.dma_semaphore, #tpu.memory_space<semaphore_mem>>
    tpu.wait_dma2 semaphore(%13 : memref<!tpu.dma_semaphore, #tpu.memory_space<semaphore_mem>>) src(%arg2 : memref<32x512xbf16, #tpu.memory_space<any>>) dst(%arg18 : memref<32x512xbf16, #tpu.memory_space<vmem>>)
    %c0_2 = arith.constant 0 : index
    %c0_3 = arith.constant 0 : index
    %14 = vector.load %arg18[%c0_2, %c0_3] : memref<32x512xbf16, #tpu.memory_space<vmem>>, vector<32x512xbf16>
    %cst = arith.constant dense<0.000000e+00> : vector<128x512xf32>
    %15 = tpu.matmul %11, %14, %cst {dimension_numbers = #tpu.dot_dimension_numbers<[1], [0], [0], [1], [0, 0, 1, 1], [], []>} : vector<128x32xbf16>, vector<32x512xbf16>, vector<128x512xf32> -> vector<128x512xf32>
    %cst_4 = arith.constant dense<0.000000e+00> : vector<512xf32>
    %16 = vector.multi_reduction <add>, %15, %cst_4 [0] : vector<128x512xf32> to vector<512xf32>
    %17 = vector.shape_cast %16 : vector<512xf32> to vector<1x512xf32>
    %cst_5 = arith.constant 1.280000e+02 : f32
    %18 = vector.broadcast %cst_5 : f32 to vector<1x512xf32>
    %19 = arith.divf %17, %18 : vector<1x512xf32>
    %20 = vector.broadcast %19 : vector<1x512xf32> to vector<128x512xf32>
    %21 = arith.subf %15, %20 : vector<128x512xf32>
    %22 = arith.mulf %21, %21 : vector<128x512xf32>
    %cst_6 = arith.constant dense<0.000000e+00> : vector<512xf32>
    %23 = vector.multi_reduction <add>, %22, %cst_6 [0] : vector<128x512xf32> to vector<512xf32>
    %24 = vector.shape_cast %23 : vector<512xf32> to vector<1x512xf32>
    %cst_7 = arith.constant 1.280000e+02 : f32
    %25 = vector.broadcast %cst_7 : f32 to vector<1x512xf32>
    %26 = arith.divf %24, %25 : vector<1x512xf32>
    %c0_8 = arith.constant 0 : index
    %c0_9 = arith.constant 0 : index
    %27 = vector.load %arg7[%c0_8, %c0_9] : memref<1x512xf32, #tpu.memory_space<vmem>>, vector<1x512xf32>
    %cst_10 = arith.constant 9.99999974E-6 : f32
    %28 = vector.broadcast %cst_10 : f32 to vector<1x512xf32>
    %29 = arith.addf %26, %28 : vector<1x512xf32>
    %30 = math.rsqrt %29 : vector<1x512xf32>
    %31 = arith.mulf %27, %30 : vector<1x512xf32>
    %c0_11 = arith.constant 0 : index
    %c0_12 = arith.constant 0 : index
    %32 = vector.load %arg8[%c0_11, %c0_12] : memref<1x512xf32, #tpu.memory_space<vmem>>, vector<1x512xf32>
    %33 = arith.mulf %19, %31 : vector<1x512xf32>
    %34 = arith.subf %32, %33 : vector<1x512xf32>
    %35 = vector.broadcast %31 : vector<1x512xf32> to vector<128x512xf32>
    %36 = arith.mulf %15, %35 : vector<128x512xf32>
    %37 = vector.broadcast %34 : vector<1x512xf32> to vector<128x512xf32>
    %38 = arith.addf %36, %37 : vector<128x512xf32>
    %cst_13 = arith.constant 0.000000e+00 : f32
    %39 = vector.broadcast %cst_13 : f32 to vector<128x512xf32>
    %40 = arith.maximumf %38, %39 : vector<128x512xf32>
    %41 = arith.truncf %40 : vector<128x512xf32> to vector<128x512xbf16>
    %c1_i32_14 = arith.constant 1 : i32
    %42 = tpu.memref_slice %arg23[%c1_i32_14] : memref<5x!tpu.dma_semaphore, #tpu.memory_space<semaphore_mem>> -> memref<1x!tpu.dma_semaphore, #tpu.memory_space<semaphore_mem>>
    %43 = tpu.memref_squeeze %42 : memref<1x!tpu.dma_semaphore, #tpu.memory_space<semaphore_mem>> -> memref<!tpu.dma_semaphore, #tpu.memory_space<semaphore_mem>>
    tpu.wait_dma2 semaphore(%43 : memref<!tpu.dma_semaphore, #tpu.memory_space<semaphore_mem>>) src(%arg3 : memref<512x1024xbf16, #tpu.memory_space<any>>) dst(%arg19 : memref<512x1024xbf16, #tpu.memory_space<vmem>>)
    %c0_15 = arith.constant 0 : index
    %c0_16 = arith.constant 0 : index
    %44 = vector.load %arg19[%c0_15, %c0_16] : memref<512x1024xbf16, #tpu.memory_space<vmem>>, vector<512x1024xbf16>
    %cst_17 = arith.constant dense<0.000000e+00> : vector<128x1024xf32>
    %45 = tpu.matmul %41, %44, %cst_17 {dimension_numbers = #tpu.dot_dimension_numbers<[1], [0], [0], [1], [0, 0, 1, 1], [], []>} : vector<128x512xbf16>, vector<512x1024xbf16>, vector<128x1024xf32> -> vector<128x1024xf32>
    %cst_18 = arith.constant dense<0.000000e+00> : vector<1024xf32>
    %46 = vector.multi_reduction <add>, %45, %cst_18 [0] : vector<128x1024xf32> to vector<1024xf32>
    %47 = vector.shape_cast %46 : vector<1024xf32> to vector<1x1024xf32>
    %cst_19 = arith.constant 1.280000e+02 : f32
    %48 = vector.broadcast %cst_19 : f32 to vector<1x1024xf32>
    %49 = arith.divf %47, %48 : vector<1x1024xf32>
    %50 = vector.broadcast %49 : vector<1x1024xf32> to vector<128x1024xf32>
    %51 = arith.subf %45, %50 : vector<128x1024xf32>
    %52 = arith.mulf %51, %51 : vector<128x1024xf32>
    %cst_20 = arith.constant dense<0.000000e+00> : vector<1024xf32>
    %53 = vector.multi_reduction <add>, %52, %cst_20 [0] : vector<128x1024xf32> to vector<1024xf32>
    %54 = vector.shape_cast %53 : vector<1024xf32> to vector<1x1024xf32>
    %cst_21 = arith.constant 1.280000e+02 : f32
    %55 = vector.broadcast %cst_21 : f32 to vector<1x1024xf32>
    %56 = arith.divf %54, %55 : vector<1x1024xf32>
    %c0_22 = arith.constant 0 : index
    %c0_23 = arith.constant 0 : index
    %57 = vector.load %arg9[%c0_22, %c0_23] : memref<1x1024xf32, #tpu.memory_space<vmem>>, vector<1x1024xf32>
    %cst_24 = arith.constant 9.99999974E-6 : f32
    %58 = vector.broadcast %cst_24 : f32 to vector<1x1024xf32>
    %59 = arith.addf %56, %58 : vector<1x1024xf32>
    %60 = math.rsqrt %59 : vector<1x1024xf32>
    %61 = arith.mulf %57, %60 : vector<1x1024xf32>
    %c0_25 = arith.constant 0 : index
    %c0_26 = arith.constant 0 : index
    %62 = vector.load %arg10[%c0_25, %c0_26] : memref<1x1024xf32, #tpu.memory_space<vmem>>, vector<1x1024xf32>
    %63 = arith.mulf %49, %61 : vector<1x1024xf32>
    %64 = arith.subf %62, %63 : vector<1x1024xf32>
    %65 = vector.broadcast %61 : vector<1x1024xf32> to vector<128x1024xf32>
    %66 = arith.mulf %45, %65 : vector<128x1024xf32>
    %67 = vector.broadcast %64 : vector<1x1024xf32> to vector<128x1024xf32>
    %68 = arith.addf %66, %67 : vector<128x1024xf32>
    %cst_27 = arith.constant 0.000000e+00 : f32
    %69 = vector.broadcast %cst_27 : f32 to vector<128x1024xf32>
    %70 = arith.maximumf %68, %69 : vector<128x1024xf32>
    %71 = arith.truncf %70 : vector<128x1024xf32> to vector<128x1024xbf16>
    %c2_i32_28 = arith.constant 2 : i32
    %72 = tpu.memref_slice %arg23[%c2_i32_28] : memref<5x!tpu.dma_semaphore, #tpu.memory_space<semaphore_mem>> -> memref<1x!tpu.dma_semaphore, #tpu.memory_space<semaphore_mem>>
    %73 = tpu.memref_squeeze %72 : memref<1x!tpu.dma_semaphore, #tpu.memory_space<semaphore_mem>> -> memref<!tpu.dma_semaphore, #tpu.memory_space<semaphore_mem>>
    tpu.wait_dma2 semaphore(%73 : memref<!tpu.dma_semaphore, #tpu.memory_space<semaphore_mem>>) src(%arg4 : memref<1024x512xbf16, #tpu.memory_space<any>>) dst(%arg20 : memref<1024x512xbf16, #tpu.memory_space<vmem>>)
    %c0_29 = arith.constant 0 : index
    %c0_30 = arith.constant 0 : index
    %74 = vector.load %arg20[%c0_29, %c0_30] : memref<1024x512xbf16, #tpu.memory_space<vmem>>, vector<1024x512xbf16>
    %cst_31 = arith.constant dense<0.000000e+00> : vector<128x512xf32>
    %75 = tpu.matmul %71, %74, %cst_31 {dimension_numbers = #tpu.dot_dimension_numbers<[1], [0], [0], [1], [0, 0, 1, 1], [], []>} : vector<128x1024xbf16>, vector<1024x512xbf16>, vector<128x512xf32> -> vector<128x512xf32>
    %cst_32 = arith.constant dense<0.000000e+00> : vector<512xf32>
    %76 = vector.multi_reduction <add>, %75, %cst_32 [0] : vector<128x512xf32> to vector<512xf32>
    %77 = vector.shape_cast %76 : vector<512xf32> to vector<1x512xf32>
    %cst_33 = arith.constant 1.280000e+02 : f32
    %78 = vector.broadcast %cst_33 : f32 to vector<1x512xf32>
    %79 = arith.divf %77, %78 : vector<1x512xf32>
    %80 = vector.broadcast %79 : vector<1x512xf32> to vector<128x512xf32>
    %81 = arith.subf %75, %80 : vector<128x512xf32>
    %82 = arith.mulf %81, %81 : vector<128x512xf32>
    %cst_34 = arith.constant dense<0.000000e+00> : vector<512xf32>
    %83 = vector.multi_reduction <add>, %82, %cst_34 [0] : vector<128x512xf32> to vector<512xf32>
    %84 = vector.shape_cast %83 : vector<512xf32> to vector<1x512xf32>
    %cst_35 = arith.constant 1.280000e+02 : f32
    %85 = vector.broadcast %cst_35 : f32 to vector<1x512xf32>
    %86 = arith.divf %84, %85 : vector<1x512xf32>
    %c0_36 = arith.constant 0 : index
    %c0_37 = arith.constant 0 : index
    %87 = vector.load %arg11[%c0_36, %c0_37] : memref<1x512xf32, #tpu.memory_space<vmem>>, vector<1x512xf32>
    %cst_38 = arith.constant 9.99999974E-6 : f32
    %88 = vector.broadcast %cst_38 : f32 to vector<1x512xf32>
    %89 = arith.addf %86, %88 : vector<1x512xf32>
    %90 = math.rsqrt %89 : vector<1x512xf32>
    %91 = arith.mulf %87, %90 : vector<1x512xf32>
    %c0_39 = arith.constant 0 : index
    %c0_40 = arith.constant 0 : index
    %92 = vector.load %arg12[%c0_39, %c0_40] : memref<1x512xf32, #tpu.memory_space<vmem>>, vector<1x512xf32>
    %93 = arith.mulf %79, %91 : vector<1x512xf32>
    %94 = arith.subf %92, %93 : vector<1x512xf32>
    %95 = vector.broadcast %91 : vector<1x512xf32> to vector<128x512xf32>
    %96 = arith.mulf %75, %95 : vector<128x512xf32>
    %97 = vector.broadcast %94 : vector<1x512xf32> to vector<128x512xf32>
    %98 = arith.addf %96, %97 : vector<128x512xf32>
    %cst_41 = arith.constant 0.000000e+00 : f32
    %99 = vector.broadcast %cst_41 : f32 to vector<128x512xf32>
    %100 = arith.maximumf %98, %99 : vector<128x512xf32>
    %101 = arith.truncf %100 : vector<128x512xf32> to vector<128x512xbf16>
    %c3_i32_42 = arith.constant 3 : i32
    %102 = tpu.memref_slice %arg23[%c3_i32_42] : memref<5x!tpu.dma_semaphore, #tpu.memory_space<semaphore_mem>> -> memref<1x!tpu.dma_semaphore, #tpu.memory_space<semaphore_mem>>
    %103 = tpu.memref_squeeze %102 : memref<1x!tpu.dma_semaphore, #tpu.memory_space<semaphore_mem>> -> memref<!tpu.dma_semaphore, #tpu.memory_space<semaphore_mem>>
    tpu.wait_dma2 semaphore(%103 : memref<!tpu.dma_semaphore, #tpu.memory_space<semaphore_mem>>) src(%arg5 : memref<512x256xbf16, #tpu.memory_space<any>>) dst(%arg21 : memref<512x256xbf16, #tpu.memory_space<vmem>>)
    %c0_43 = arith.constant 0 : index
    %c0_44 = arith.constant 0 : index
    %104 = vector.load %arg21[%c0_43, %c0_44] : memref<512x256xbf16, #tpu.memory_space<vmem>>, vector<512x256xbf16>
    %cst_45 = arith.constant dense<0.000000e+00> : vector<128x256xf32>
    %105 = tpu.matmul %101, %104, %cst_45 {dimension_numbers = #tpu.dot_dimension_numbers<[1], [0], [0], [1], [0, 0, 1, 1], [], []>} : vector<128x512xbf16>, vector<512x256xbf16>, vector<128x256xf32> -> vector<128x256xf32>
    %cst_46 = arith.constant dense<0.000000e+00> : vector<256xf32>
    %106 = vector.multi_reduction <add>, %105, %cst_46 [0] : vector<128x256xf32> to vector<256xf32>
    %107 = vector.shape_cast %106 : vector<256xf32> to vector<1x256xf32>
    %cst_47 = arith.constant 1.280000e+02 : f32
    %108 = vector.broadcast %cst_47 : f32 to vector<1x256xf32>
    %109 = arith.divf %107, %108 : vector<1x256xf32>
    %110 = vector.broadcast %109 : vector<1x256xf32> to vector<128x256xf32>
    %111 = arith.subf %105, %110 : vector<128x256xf32>
    %112 = arith.mulf %111, %111 : vector<128x256xf32>
    %cst_48 = arith.constant dense<0.000000e+00> : vector<256xf32>
    %113 = vector.multi_reduction <add>, %112, %cst_48 [0] : vector<128x256xf32> to vector<256xf32>
    %114 = vector.shape_cast %113 : vector<256xf32> to vector<1x256xf32>
    %cst_49 = arith.constant 1.280000e+02 : f32
    %115 = vector.broadcast %cst_49 : f32 to vector<1x256xf32>
    %116 = arith.divf %114, %115 : vector<1x256xf32>
    %c0_50 = arith.constant 0 : index
    %c0_51 = arith.constant 0 : index
    %117 = vector.load %arg13[%c0_50, %c0_51] : memref<1x256xf32, #tpu.memory_space<vmem>>, vector<1x256xf32>
    %cst_52 = arith.constant 9.99999974E-6 : f32
    %118 = vector.broadcast %cst_52 : f32 to vector<1x256xf32>
    %119 = arith.addf %116, %118 : vector<1x256xf32>
    %120 = math.rsqrt %119 : vector<1x256xf32>
    %121 = arith.mulf %117, %120 : vector<1x256xf32>
    %c0_53 = arith.constant 0 : index
    %c0_54 = arith.constant 0 : index
    %122 = vector.load %arg14[%c0_53, %c0_54] : memref<1x256xf32, #tpu.memory_space<vmem>>, vector<1x256xf32>
    %123 = arith.mulf %109, %121 : vector<1x256xf32>
    %124 = arith.subf %122, %123 : vector<1x256xf32>
    %125 = vector.broadcast %121 : vector<1x256xf32> to vector<128x256xf32>
    %126 = arith.mulf %105, %125 : vector<128x256xf32>
    %127 = vector.broadcast %124 : vector<1x256xf32> to vector<128x256xf32>
    %128 = arith.addf %126, %127 : vector<128x256xf32>
    %cst_55 = arith.constant 0.000000e+00 : f32
    %129 = vector.broadcast %cst_55 : f32 to vector<128x256xf32>
    %130 = arith.maximumf %128, %129 : vector<128x256xf32>
    %131 = arith.truncf %130 : vector<128x256xf32> to vector<128x256xbf16>
    %c4_i32_56 = arith.constant 4 : i32
    %132 = tpu.memref_slice %arg23[%c4_i32_56] : memref<5x!tpu.dma_semaphore, #tpu.memory_space<semaphore_mem>> -> memref<1x!tpu.dma_semaphore, #tpu.memory_space<semaphore_mem>>
    %133 = tpu.memref_squeeze %132 : memref<1x!tpu.dma_semaphore, #tpu.memory_space<semaphore_mem>> -> memref<!tpu.dma_semaphore, #tpu.memory_space<semaphore_mem>>
    tpu.wait_dma2 semaphore(%133 : memref<!tpu.dma_semaphore, #tpu.memory_space<semaphore_mem>>) src(%arg6 : memref<256x8xbf16, #tpu.memory_space<any>>) dst(%arg22 : memref<256x8xbf16, #tpu.memory_space<vmem>>)
    %c0_57 = arith.constant 0 : index
    %c0_58 = arith.constant 0 : index
    %134 = vector.load %arg22[%c0_57, %c0_58] : memref<256x8xbf16, #tpu.memory_space<vmem>>, vector<256x8xbf16>
    %cst_59 = arith.constant dense<0.000000e+00> : vector<128x8xf32>
    %135 = tpu.matmul %131, %134, %cst_59 {dimension_numbers = #tpu.dot_dimension_numbers<[1], [0], [0], [1], [0, 0, 1, 1], [], []>} : vector<128x256xbf16>, vector<256x8xbf16>, vector<128x8xf32> -> vector<128x8xf32>
    %c0_60 = arith.constant 0 : index
    %c0_61 = arith.constant 0 : index
    %136 = vector.load %arg15[%c0_60, %c0_61] : memref<1x8xf32, #tpu.memory_space<vmem>>, vector<1x8xf32>
    %137 = vector.broadcast %136 : vector<1x8xf32> to vector<128x8xf32>
    %138 = arith.addf %135, %137 : vector<128x8xf32>
    %c0_62 = arith.constant 0 : index
    %139 = memref.load %arg16[%c0_62] : memref<1xf32, #tpu.memory_space<smem>>
    %140 = vector.broadcast %139 : f32 to vector<128x8xf32>
    %141 = arith.mulf %138, %140 : vector<128x8xf32>
    %c0_63 = arith.constant 0 : index
    %c0_64 = arith.constant 0 : index
    %142 = vector.load %arg17[%c0_63, %c0_64] : memref<128x8xf32, #tpu.memory_space<vmem>>, vector<128x8xf32>
    tpu.vector_store %arg17[%c0_63, %c0_64], %141 {strides = array<i32>} : memref<128x8xf32, #tpu.memory_space<vmem>>, vector<128x8xf32>,
    return
  }
  func.func @transform_0(%arg0: i32) -> (i32, i32) {
    %c0_i32 = arith.constant 0 : i32
    %c0_i32_0 = arith.constant 0 : i32
    %c0_i32_1 = arith.constant 0 : i32
    return %c0_i32, %c0_i32_0 : i32, i32
  }
  func.func @transform_6(%arg0: i32) -> (i32, i32) {
    %c0_i32 = arith.constant 0 : i32
    %c0_i32_0 = arith.constant 0 : i32
    %c0_i32_1 = arith.constant 0 : i32
    return %c0_i32, %c0_i32_0 : i32, i32
  }
  func.func @transform_7(%arg0: i32) -> (i32, i32) {
    %c0_i32 = arith.constant 0 : i32
    %c0_i32_0 = arith.constant 0 : i32
    %c0_i32_1 = arith.constant 0 : i32
    return %c0_i32, %c0_i32_0 : i32, i32
  }
  func.func @transform_8(%arg0: i32) -> (i32, i32) {
    %c0_i32 = arith.constant 0 : i32
    %c0_i32_0 = arith.constant 0 : i32
    %c0_i32_1 = arith.constant 0 : i32
    return %c0_i32, %c0_i32_0 : i32, i32
  }
  func.func @transform_9(%arg0: i32) -> (i32, i32) {
    %c0_i32 = arith.constant 0 : i32
    %c0_i32_0 = arith.constant 0 : i32
    %c0_i32_1 = arith.constant 0 : i32
    return %c0_i32, %c0_i32_0 : i32, i32
  }
  func.func @transform_10(%arg0: i32) -> (i32, i32) {
    %c0_i32 = arith.constant 0 : i32
    %c0_i32_0 = arith.constant 0 : i32
    %c0_i32_1 = arith.constant 0 : i32
    return %c0_i32, %c0_i32_0 : i32, i32
  }
  func.func @transform_11(%arg0: i32) -> (i32, i32) {
    %c0_i32 = arith.constant 0 : i32
    %c0_i32_0 = arith.constant 0 : i32
    %c0_i32_1 = arith.constant 0 : i32
    return %c0_i32, %c0_i32_0 : i32, i32
  }
  func.func @transform_12(%arg0: i32) -> (i32, i32) {
    %c0_i32 = arith.constant 0 : i32
    %c0_i32_0 = arith.constant 0 : i32
    %c0_i32_1 = arith.constant 0 : i32
    return %c0_i32, %c0_i32_0 : i32, i32
  }
  func.func @transform_13(%arg0: i32) -> (i32, i32) {
    %c0_i32 = arith.constant 0 : i32
    %c0_i32_0 = arith.constant 0 : i32
    %c0_i32_1 = arith.constant 0 : i32
    return %c0_i32, %c0_i32_0 : i32, i32
  }
  func.func @transform_14(%arg0: i32) -> (i32, i32) {
    %c0_i32 = arith.constant 0 : i32
    %c0_i32_0 = arith.constant 0 : i32
    %c0_i32_1 = arith.constant 0 : i32
    return %c0_i32, %c0_i32_0 : i32, i32
  }
  func.func @transform_15(%arg0: i32) -> i32 {
    %c0_i32 = arith.constant 0 : i32
    %c0_i32_0 = arith.constant 0 : i32
    return %c0_i32 : i32
  }
  func.func @transform_16(%arg0: i32) -> (i32, i32) {
    %c0_i32 = arith.constant 0 : i32
    %c0_i32_0 = arith.constant 0 : i32
    %c0_i32_1 = arith.constant 0 : i32
    return %c0_i32, %c0_i32_0 : i32, i32
  }
}

</mosaic_0001>

<llo_original>
// kernel: tpu_custom_call.1
$region0: #{tpu_custom_call.1}
  #allocation0 [shape = 'u32[]', space=smem, size = 0x4, offset = 0x4, fixed_abs, tag = 'smem constant byte address 0x4 - core index']
  #allocation1 [shape = 'u32[72,128]{1,0:T(1,128)}', space=vmem, size = 0x9000, scoped, tag = 'internal scratch']
  #allocation2 [shape = 'bf16[32,512]{1,0:T(8,128)(2,1)}', space=vmem, size = 0x8000, scoped, tag = 'scratch operand']
  #allocation3 [shape = 'bf16[512,1024]{1,0:T(8,128)(2,1)}', space=vmem, size = 0x100000, scoped, tag = 'scratch operand']
  #allocation4 [shape = 'bf16[1024,512]{1,0:T(8,128)(2,1)}', space=vmem, size = 0x100000, scoped, tag = 'scratch operand']
  #allocation5 [shape = 'bf16[512,256]{1,0:T(8,128)(2,1)}', space=vmem, size = 0x40000, scoped, tag = 'scratch operand']
  #allocation6 [shape = 'bf16[256,8]{1,0:T(8,128)(2,1)}', space=vmem, size = 0x10000, scoped, tag = 'scratch operand']
  #allocation7 [shape = 's32[5]{0}', space=sflag, size = 0x14, scoped, tag = 'scratch operand']
  #allocation8 [shape = 'f32[1]{0:T(128)S(6)}', space=smem, size = 0x200, scoped, tag = 'scoped memory for tpu_custom_call.1']
  #allocation9 [shape = 's32[]', space=sflag, size = 0x4, offset = 0, fixed_abs, tag = 'sflag constant byte address 0x0 - dummy sync flag']
  #allocation10 [shape = 's32[]', space=sflag, size = 0x4, offset = 0, fixed_abs, tag = 'sflag constant byte address 0x0 - dummy sync flag']
  #allocation11 [shape = 's32[]', space=sflag, size = 0x4, offset = 0, fixed_abs, tag = 'sflag constant byte address 0x0 - dummy sync flag']
  #allocation12 [shape = 'u32[]', space=smem, size = 0x4, offset = 0x44, fixed_abs, tag = 'smem constant byte address 0x44 - assertion arg 0']
  #allocation13 [shape = 'u32[]', space=smem, size = 0x4, offset = 0x48, fixed_abs, tag = 'smem constant byte address 0x48 - assertion arg 1']
  #allocation14 [shape = 's32[]', space=sflag, size = 0x4, offset = 0, fixed_abs, tag = 'sflag constant byte address 0x0 - dummy sync flag']
  #allocation15 [shape = 's32[]', space=sflag, size = 0x4, offset = 0, fixed_abs, tag = 'sflag constant byte address 0x0 - dummy sync flag']
  #allocation16 [shape = 's32[]', space=sflag, size = 0x4, offset = 0, fixed_abs, tag = 'sflag constant byte address 0x0 - dummy sync flag']
  #allocation17 [shape = 's32[]', space=sflag, size = 0x4, offset = 0, fixed_abs, tag = 'sflag constant byte address 0x0 - dummy sync flag']
  #allocation18 [shape = 's32[]', space=sflag, size = 0x4, offset = 0, fixed_abs, tag = 'sflag constant byte address 0x0 - dummy sync flag']
  %s0 = inlined_call_operand.vmem [shape: f32[128,32], index: 0, kind: input, shape index: {}]
  %s1 = inlined_call_operand.vmem [shape: bf16[32,512], index: 1, kind: input, shape index: {}]
  %s2 = inlined_call_operand.hbm [shape: bf16[512,1024], index: 2, kind: input, shape index: {}]
  %s3 = inlined_call_operand.hbm [shape: bf16[1024,512], index: 3, kind: input, shape index: {}]
  %s4 = inlined_call_operand.hbm [shape: bf16[512,256], index: 4, kind: input, shape index: {}]
  %s5 = inlined_call_operand.vmem [shape: bf16[256,8], index: 5, kind: input, shape index: {}]
  %s6 = inlined_call_operand.vmem [shape: f32[1,512], index: 6, kind: input, shape index: {}]
  %s7 = inlined_call_operand.vmem [shape: f32[1,512], index: 7, kind: input, shape index: {}]
  %s8 = inlined_call_operand.vmem [shape: f32[1,1024], index: 8, kind: input, shape index: {}]
  %s9 = inlined_call_operand.vmem [shape: f32[1,1024], index: 9, kind: input, shape index: {}]
  %s10 = inlined_call_operand.vmem [shape: f32[1,512], index: 10, kind: input, shape index: {}]
  %s11 = inlined_call_operand.vmem [shape: f32[1,512], index: 11, kind: input, shape index: {}]
  %s12 = inlined_call_operand.vmem [shape: f32[1,256], index: 12, kind: input, shape index: {}]
  %s13 = inlined_call_operand.vmem [shape: f32[1,256], index: 13, kind: input, shape index: {}]
  %s14 = inlined_call_operand.vmem [shape: f32[1,8], index: 14, kind: input, shape index: {}]
  %s15 = inlined_call_operand.<no memory space> [shape: f32[1], index: 15, kind: input, shape index: {}]
  %s16 = inlined_call_operand.vmem [shape: f32[128,8], index: 16, kind: output, shape index: {}]
  %s17 = sld [smem:[#allocation0]]
  $region104: #{tpu_custom_call.1} parent=0
    _
  %s19 = ssub.s32 1, %s17
  %s20 = scalar_select 0, %s19, %s17
  %21 = sst [smem:[#allocation8]] %s15
  // Predicated region
  $region2: #{tpu_custom_call.1} parent=0 // pred_check
    _
  $region3: #{tpu_custom_call.1} parent=0 // pred_check_branch
    %23 = sbr.rel (0) target = $region5
  $region4: #{tpu_custom_call.1} parent=0 // pred_region
    _
  $region5: #{tpu_custom_call.1} parent=0 // pred_fallthru
    _
  // Predicated region
  $region6: #{tpu_custom_call.1} parent=0 // pred_check
    _
  $region7: #{tpu_custom_call.1} parent=0 // pred_check_branch
    %25 = sbr.rel (0) target = $region9
  $region8: #{tpu_custom_call.1} parent=0 // pred_region
    _
  $region9: #{tpu_custom_call.1} parent=0 // pred_fallthru
    _
  // Predicated region
  $region10: #{tpu_custom_call.1} parent=0 // pred_check
    _
  $region11: #{tpu_custom_call.1} parent=0 // pred_check_branch
    %27 = sbr.rel (0) target = $region13
  $region12: #{tpu_custom_call.1} parent=0 // pred_region
    _
  $region13: #{tpu_custom_call.1} parent=0 // pred_fallthru
    _
  // Predicated region
  $region14: #{tpu_custom_call.1} parent=0 // pred_check
    _
  $region15: #{tpu_custom_call.1} parent=0 // pred_check_branch
    %29 = sbr.rel (0) target = $region17
  $region16: #{tpu_custom_call.1} parent=0 // pred_region
    _
  $region17: #{tpu_custom_call.1} parent=0 // pred_fallthru
    _
  // Predicated region
  $region18: #{tpu_custom_call.1} parent=0 // pred_check
    _
  $region19: #{tpu_custom_call.1} parent=0 // pred_check_branch
    %31 = sbr.rel (0) target = $region21
  $region20: #{tpu_custom_call.1} parent=0 // pred_region
    _
  $region21: #{tpu_custom_call.1} parent=0 // pred_fallthru
    _
  // Predicated region
  $region22: #{tpu_custom_call.1} parent=0 // pred_check
    _
  $region23: #{tpu_custom_call.1} parent=0 // pred_check_branch
    %33 = sbr.rel (0) target = $region25
  $region24: #{tpu_custom_call.1} parent=0 // pred_region
    _
  $region25: #{tpu_custom_call.1} parent=0 // pred_fallthru
    _
  // Predicated region
  $region26: #{tpu_custom_call.1} parent=0 // pred_check
    _
  $region27: #{tpu_custom_call.1} parent=0 // pred_check_branch
    %35 = sbr.rel (0) target = $region29
  $region28: #{tpu_custom_call.1} parent=0 // pred_region
    _
  $region29: #{tpu_custom_call.1} parent=0 // pred_fallthru
    _
  // Predicated region
  $region30: #{tpu_custom_call.1} parent=0 // pred_check
    _
  $region31: #{tpu_custom_call.1} parent=0 // pred_check_branch
    %37 = sbr.rel (0) target = $region33
  $region32: #{tpu_custom_call.1} parent=0 // pred_region
    _
  $region33: #{tpu_custom_call.1} parent=0 // pred_fallthru
    _
  // Predicated region
  $region34: #{tpu_custom_call.1} parent=0 // pred_check
    _
  $region35: #{tpu_custom_call.1} parent=0 // pred_check_branch
    %39 = sbr.rel (0) target = $region37
  $region36: #{tpu_custom_call.1} parent=0 // pred_region
    _
  $region37: #{tpu_custom_call.1} parent=0 // pred_fallthru
    _
  // Predicated region
  $region38: #{tpu_custom_call.1} parent=0 // pred_check
    _
  $region39: #{tpu_custom_call.1} parent=0 // pred_check_branch
    %41 = sbr.rel (0) target = $region41
  $region40: #{tpu_custom_call.1} parent=0 // pred_region
    _
  $region41: #{tpu_custom_call.1} parent=0 // pred_fallthru
    _
  // Predicated region
  $region42: #{tpu_custom_call.1} parent=0 // pred_check
    _
  $region43: #{tpu_custom_call.1} parent=0 // pred_check_branch
    %43 = sbr.rel (0) target = $region45
  $region44: #{tpu_custom_call.1} parent=0 // pred_region
    _
  $region45: #{tpu_custom_call.1} parent=0 // pred_fallthru
    _
  // Predicated region
  $region46: #{tpu_custom_call.1} parent=0 // pred_check
    _
  $region47: #{tpu_custom_call.1} parent=0 // pred_check_branch
    %46 = sbr.rel (0) target = $region49
  $region48: #{tpu_custom_call.1} parent=0 // pred_region
    loop: start=0, step=1, limit=1
    $region50: #{tpu_custom_call.1} parent=48 // loop_pre_header
      _
    $region51: #{tpu_custom_call.1} parent=48 // loop_header
      %s48 = sphi 0, %s52
      %p49 = scmp.ge.s32.totalorder %s48, 1
      %s53 = sphi %s1, %s1
      %s54 = sphi [#allocation2], [#allocation2]
    $region52: #{tpu_custom_call.1} parent=48 // loop_header_branch
      %51 = sbr.rel (%p49) target = $region56
    $region53: #{tpu_custom_call.1} parent=48 // loop_body
      %v55 = vld [vmem:[%s53] sm:$0xff]
      %56 = vst [vmem:[%s54] sm:$0xff] %v55
      %v57 = vld [vmem:[%s53 + $0x8] sm:$0xff]
      %58 = vst [vmem:[%s54 + $0x8] sm:$0xff] %v57
      %v59 = vld [vmem:[%s53 + $0x10] sm:$0xff]
      %60 = vst [vmem:[%s54 + $0x10] sm:$0xff] %v59
      %v61 = vld [vmem:[%s53 + $0x18] sm:$0xff]
      %62 = vst [vmem:[%s54 + $0x18] sm:$0xff] %v61
      %v63 = vld [vmem:[%s53 + $0x20] sm:$0xff]
      %64 = vst [vmem:[%s54 + $0x20] sm:$0xff] %v63
      %v65 = vld [vmem:[%s53 + $0x28] sm:$0xff]
      %66 = vst [vmem:[%s54 + $0x28] sm:$0xff] %v65
      %v67 = vld [vmem:[%s53 + $0x30] sm:$0xff]
      %68 = vst [vmem:[%s54 + $0x30] sm:$0xff] %v67
      %v69 = vld [vmem:[%s53 + $0x38] sm:$0xff]
      %70 = vst [vmem:[%s54 + $0x38] sm:$0xff] %v69
    $region54: #{tpu_custom_call.1} parent=48 // loop_footer
      %s52 = sadd.s32 1, %s48
    $region55: #{tpu_custom_call.1} parent=48 // loop_footer_branch
      %47 = sbr.rel target = $region51
    $region56: #{tpu_custom_call.1} parent=48 // loop_exit
      _
  $region49: #{tpu_custom_call.1} parent=0 // pred_fallthru
    _
  // Predicated region
  $region57: #{tpu_custom_call.1} parent=0 // pred_check
    _
  $region58: #{tpu_custom_call.1} parent=0 // pred_check_branch
    %72 = sbr.rel target = $region60
  $region59: #{tpu_custom_call.1} parent=0 // pred_region
    _
  $region60: #{tpu_custom_call.1} parent=0 // pred_fallthru
    _
  // Predicated region
  $region61: #{tpu_custom_call.1} parent=0 // pred_check
    _
  $region62: #{tpu_custom_call.1} parent=0 // pred_check_branch
    %75 = sbr.rel (0) target = $region64
  $region63: #{tpu_custom_call.1} parent=0 // pred_region
    %76 = vsyncadd [#allocation7], 1024
  $region64: #{tpu_custom_call.1} parent=0 // pred_fallthru
    _
  %s77 = scalar_lea.sflag [#allocation7], 1
  // Predicated region
  $region65: #{tpu_custom_call.1} parent=0 // pred_check
    _
  $region66: #{tpu_custom_call.1} parent=0 // pred_check_branch
    %79 = sbr.rel target = $region68
  $region67: #{tpu_custom_call.1} parent=0 // pred_region
    %80 = sst [smem:[#allocation12]] [#allocation11]
    %81 = sst [smem:[#allocation13]] [#allocation10]
  $region68: #{tpu_custom_call.1} parent=0 // pred_fallthru
    _
  %83 = shalt.err (0)
  %s85 = sshll.u32 %s2, 4
  %s86 = int_to_ptr.hbm [resolvable:$true] %s85
  %s87 = sshll.u32 [#allocation3], 4
  %s88 = int_to_ptr.vmem [resolvable:$true] %s87
  %90 = dma.hbm_to_vmem [thread:$0]  %s86, 32768, %s88, %s77
  %s91 = scalar_lea.sflag [#allocation7], 2
  // Predicated region
  $region69: #{tpu_custom_call.1} parent=0 // pred_check
    _
  $region70: #{tpu_custom_call.1} parent=0 // pred_check_branch
    %93 = sbr.rel target = $region72
  $region71: #{tpu_custom_call.1} parent=0 // pred_region
    %94 = sst [smem:[#allocation12]] [#allocation15]
    %95 = sst [smem:[#allocation13]] [#allocation14]
  $region72: #{tpu_custom_call.1} parent=0 // pred_fallthru
    _
  %97 = shalt.err (0)
  %s99 = sshll.u32 %s3, 4
  %s100 = int_to_ptr.hbm [resolvable:$true] %s99
  %s101 = sshll.u32 [#allocation4], 4
  %s102 = int_to_ptr.vmem [resolvable:$true] %s101
  %104 = dma.hbm_to_vmem [thread:$0]  %s100, 32768, %s102, %s91
  %s105 = scalar_lea.sflag [#allocation7], 3
  // Predicated region
  $region73: #{tpu_custom_call.1} parent=0 // pred_check
    _
  $region74: #{tpu_custom_call.1} parent=0 // pred_check_branch
    %107 = sbr.rel target = $region76
  $region75: #{tpu_custom_call.1} parent=0 // pred_region
    %108 = sst [smem:[#allocation12]] [#allocation17]
    %109 = sst [smem:[#allocation13]] [#allocation16]
  $region76: #{tpu_custom_call.1} parent=0 // pred_fallthru
    _
  %111 = shalt.err (0)
  %s113 = sshll.u32 %s4, 4
  %s114 = int_to_ptr.hbm [resolvable:$true] %s113
  %s115 = sshll.u32 [#allocation5], 4
  %s116 = int_to_ptr.vmem [resolvable:$true] %s115
  %118 = dma.hbm_to_vmem [thread:$0]  %s114, 8192, %s116, %s105
  %s119 = scalar_lea.sflag [#allocation7], 4
  // Predicated region
  $region77: #{tpu_custom_call.1} parent=0 // pred_check
    _
  $region78: #{tpu_custom_call.1} parent=0 // pred_check_branch
    %121 = sbr.rel (0) target = $region80
  $region79: #{tpu_custom_call.1} parent=0 // pred_region
    loop: start=0, step=1, limit=1
    $region81: #{tpu_custom_call.1} parent=79 // loop_pre_header
      _
    $region82: #{tpu_custom_call.1} parent=79 // loop_header
      %s123 = sphi 0, %s127
      %p124 = scmp.ge.s32.totalorder %s123, 1
      %s128 = sphi %s5, %s5
      %s129 = sphi [#allocation6], [#allocation6]
    $region83: #{tpu_custom_call.1} parent=79 // loop_header_branch
      %126 = sbr.rel (%p124) target = $region87
    $region84: #{tpu_custom_call.1} parent=79 // loop_body
      %v130 = vld [vmem:[%s128] sm:$0xff]
      %131 = vst [vmem:[%s129] sm:$0xff] %v130
      %v132 = vld [vmem:[%s128 + $0x8] sm:$0xff]
      %133 = vst [vmem:[%s129 + $0x8] sm:$0xff] %v132
      %v134 = vld [vmem:[%s128 + $0x10] sm:$0xff]
      %135 = vst [vmem:[%s129 + $0x10] sm:$0xff] %v134
      %v136 = vld [vmem:[%s128 + $0x18] sm:$0xff]
      %137 = vst [vmem:[%s129 + $0x18] sm:$0xff] %v136
      %v138 = vld [vmem:[%s128 + $0x20] sm:$0xff]
      %139 = vst [vmem:[%s129 + $0x20] sm:$0xff] %v138
      %v140 = vld [vmem:[%s128 + $0x28] sm:$0xff]
      %141 = vst [vmem:[%s129 + $0x28] sm:$0xff] %v140
      %v142 = vld [vmem:[%s128 + $0x30] sm:$0xff]
      %143 = vst [vmem:[%s129 + $0x30] sm:$0xff] %v142
      %v144 = vld [vmem:[%s128 + $0x38] sm:$0xff]
      %145 = vst [vmem:[%s129 + $0x38] sm:$0xff] %v144
      %v146 = vld [vmem:[%s128 + $0x40] sm:$0xff]
      %147 = vst [vmem:[%s129 + $0x40] sm:$0xff] %v146
      %v148 = vld [vmem:[%s128 + $0x48] sm:$0xff]
      %149 = vst [vmem:[%s129 + $0x48] sm:$0xff] %v148
      %v150 = vld [vmem:[%s128 + $0x50] sm:$0xff]
      %151 = vst [vmem:[%s129 + $0x50] sm:$0xff] %v150
      %v152 = vld [vmem:[%s128 + $0x58] sm:$0xff]
      %153 = vst [vmem:[%s129 + $0x58] sm:$0xff] %v152
      %v154 = vld [vmem:[%s128 + $0x60] sm:$0xff]
      %155 = vst [vmem:[%s129 + $0x60] sm:$0xff] %v154
      %v156 = vld [vmem:[%s128 + $0x68] sm:$0xff]
      %157 = vst [vmem:[%s129 + $0x68] sm:$0xff] %v156
      %v158 = vld [vmem:[%s128 + $0x70] sm:$0xff]
      %159 = vst [vmem:[%s129 + $0x70] sm:$0xff] %v158
      %v160 = vld [vmem:[%s128 + $0x78] sm:$0xff]
      %161 = vst [vmem:[%s129 + $0x78] sm:$0xff] %v160
    $region85: #{tpu_custom_call.1} parent=79 // loop_footer
      %s127 = sadd.s32 1, %s123
    $region86: #{tpu_custom_call.1} parent=79 // loop_footer_branch
      %122 = sbr.rel target = $region82
    $region87: #{tpu_custom_call.1} parent=79 // loop_exit
      _
  $region80: #{tpu_custom_call.1} parent=0 // pred_fallthru
    _
  // Predicated region
  $region88: #{tpu_custom_call.1} parent=0 // pred_check
    _
  $region89: #{tpu_custom_call.1} parent=0 // pred_check_branch
    %163 = sbr.rel target = $region91
  $region90: #{tpu_custom_call.1} parent=0 // pred_region
    _
  $region91: #{tpu_custom_call.1} parent=0 // pred_fallthru
    _
  // Predicated region
  $region92: #{tpu_custom_call.1} parent=0 // pred_check
    _
  $region93: #{tpu_custom_call.1} parent=0 // pred_check_branch
    %166 = sbr.rel (0) target = $region95
  $region94: #{tpu_custom_call.1} parent=0 // pred_region
    %167 = vsyncadd %s119, 2048
  $region95: #{tpu_custom_call.1} parent=0 // pred_fallthru
    _
  %v168 = vld [vmem:[%s0] sm:$0xff]
  %v169 = vld [vmem:[%s0 + $0x8] sm:$0xff]
  %v170 = vld [vmem:[%s0 + $0x10] sm:$0xff]
  %v171 = vld [vmem:[%s0 + $0x18] sm:$0xff]
  %v172 = vld [vmem:[%s0 + $0x20] sm:$0xff]
  %v173 = vld [vmem:[%s0 + $0x28] sm:$0xff]
  %v174 = vld [vmem:[%s0 + $0x30] sm:$0xff]
  %v175 = vld [vmem:[%s0 + $0x38] sm:$0xff]
  %v176 = vld [vmem:[%s0 + $0x40] sm:$0xff]
  %v177 = vld [vmem:[%s0 + $0x48] sm:$0xff]
  %v178 = vld [vmem:[%s0 + $0x50] sm:$0xff]
  %v179 = vld [vmem:[%s0 + $0x58] sm:$0xff]
  %v180 = vld [vmem:[%s0 + $0x60] sm:$0xff]
  %v181 = vld [vmem:[%s0 + $0x68] sm:$0xff]
  %v182 = vld [vmem:[%s0 + $0x70] sm:$0xff]
  %v183 = vld [vmem:[%s0 + $0x78] sm:$0xff]
  %v184 = vpack.c.bf16 %v169, %v168
  %v185 = vpack.c.bf16 %v171, %v170
  %v186 = vpack.c.bf16 %v173, %v172
  %v187 = vpack.c.bf16 %v175, %v174
  %v188 = vpack.c.bf16 %v177, %v176
  %v189 = vpack.c.bf16 %v179, %v178
  %v190 = vpack.c.bf16 %v181, %v180
  %v191 = vpack.c.bf16 %v183, %v182
  %s192 = smul.u32 4, 4
  %s193 = smul.u32 %s192, 4
  %s194 = sshll.u32 %s193, 4
  %195 = dma.done [#allocation7], %s194
  %v196 = vld [vmem:[#allocation2] sm:$0xff]
  %v197 = vld [vmem:[#allocation2 + $0x8] sm:$0xff]
  %v198 = vld [vmem:[#allocation2 + $0x10] sm:$0xff]
  %v199 = vld [vmem:[#allocation2 + $0x18] sm:$0xff]
  %v200 = vld [vmem:[#allocation2 + $0x20] sm:$0xff]
  %v201 = vld [vmem:[#allocation2 + $0x28] sm:$0xff]
  %v202 = vld [vmem:[#allocation2 + $0x30] sm:$0xff]
  %v203 = vld [vmem:[#allocation2 + $0x38] sm:$0xff]
  %v212 = vunpack.c.l.b16 %v196
  %v213 = vunpack.c.h.b16 %v196
  %v214 = vunpack.c.l.b16 %v197
  %v215 = vunpack.c.h.b16 %v197
  %v216 = vunpack.c.l.b16 %v198
  %v217 = vunpack.c.h.b16 %v198
  %v218 = vunpack.c.l.b16 %v199
  %v219 = vunpack.c.h.b16 %v199
  %v220 = vunpack.c.l.b16 %v200
  %v221 = vunpack.c.h.b16 %v200
  %v222 = vunpack.c.l.b16 %v201
  %v223 = vunpack.c.h.b16 %v201
  %v224 = vunpack.c.l.b16 %v202
  %v225 = vunpack.c.h.b16 %v202
  %v226 = vunpack.c.l.b16 %v203
  %v227 = vunpack.c.h.b16 %v203
  %v228 = vpack.c.b16 %v216, %v212
  %v229 = vpack.c.b16 %v217, %v213
  %v230 = vpack.c.b16 %v218, %v214
  %v231 = vpack.c.b16 %v219, %v215
  %v232 = vpack.c.b16 %v224, %v220
  %v233 = vpack.c.b16 %v225, %v221
  %v234 = vpack.c.b16 %v226, %v222
  %v235 = vpack.c.b16 %v227, %v223
  %vm244 = vcmask 261120
  %v246 = vsel %vm244, %v184, 0
  %v249 = vsel %vm244, %v185, 0
  %v252 = vsel %vm244, %v186, 0
  %v255 = vsel %vm244, %v187, 0
  %v258 = vsel %vm244, %v188, 0
  %v261 = vsel %vm244, %v189, 0
  %v264 = vsel %vm244, %v190, 0
  %v267 = vsel %vm244, %v191, 0
  %269 = vmatpush.bf16.msra.mxu0 0
  %270 = vmatpush.bf16.msra.mxu0 0
  %271 = vmatpush.bf16.msra.mxu0 0
  %272 = vmatpush.bf16.msra.mxu0 0
  %273 = vmatpush.bf16.msra.mxu0 0
  %274 = vmatpush.bf16.msra.mxu0 0
  %275 = vmatpush.bf16.msra.mxu0 %v232
  %276 = vmatpush.bf16.msra.mxu0 %v228
  %277 = vmatmul.bf16.gmra.mxu0 %v246
  %v278 = vpop.f32.mrf.mxu0
  %v279 = vadd.f32 0.0, %v278
  %v280 = vpop.f32.mrf.mxu0
  %v281 = vadd.f32 0.0, %v280
  %282 = vmatmul.bf16.gmra.mxu0 %v249
  %v283 = vpop.f32.mrf.mxu0
  %v284 = vadd.f32 0.0, %v283
  %v285 = vpop.f32.mrf.mxu0
  %v286 = vadd.f32 0.0, %v285
  %287 = vmatmul.bf16.gmra.mxu0 %v252
  %v288 = vpop.f32.mrf.mxu0
  %v289 = vadd.f32 0.0, %v288
  %v290 = vpop.f32.mrf.mxu0
  %v291 = vadd.f32 0.0, %v290
  %292 = vmatmul.bf16.gmra.mxu0 %v255
  %v293 = vpop.f32.mrf.mxu0
  %v294 = vadd.f32 0.0, %v293
  %v295 = vpop.f32.mrf.mxu0
  %v296 = vadd.f32 0.0, %v295
  %297 = vmatmul.bf16.gmra.mxu0 %v258
  %v298 = vpop.f32.mrf.mxu0
  %v299 = vadd.f32 0.0, %v298
  %v300 = vpop.f32.mrf.mxu0
  %v301 = vadd.f32 0.0, %v300
  %302 = vmatmul.bf16.gmra.mxu0 %v261
  %v303 = vpop.f32.mrf.mxu0
  %v304 = vadd.f32 0.0, %v303
  %v305 = vpop.f32.mrf.mxu0
  %v306 = vadd.f32 0.0, %v305
  %307 = vmatmul.bf16.gmra.mxu0 %v264
  %v308 = vpop.f32.mrf.mxu0
  %v309 = vadd.f32 0.0, %v308
  %v310 = vpop.f32.mrf.mxu0
  %v311 = vadd.f32 0.0, %v310
  %312 = vmatmul.bf16.gmra.mxu0 %v267
  %v313 = vpop.f32.mrf.mxu0
  %v314 = vadd.f32 0.0, %v313
  %v315 = vpop.f32.mrf.mxu0
  %v316 = vadd.f32 0.0, %v315
  %317 = vdwg.mxu0
  %318 = vmatpush.bf16.msra.mxu0 0
  %319 = vmatpush.bf16.msra.mxu0 0
  %320 = vmatpush.bf16.msra.mxu0 0
  %321 = vmatpush.bf16.msra.mxu0 0
  %322 = vmatpush.bf16.msra.mxu0 0
  %323 = vmatpush.bf16.msra.mxu0 0
  %324 = vmatpush.bf16.msra.mxu0 %v233
  %325 = vmatpush.bf16.msra.mxu0 %v229
  %326 = vmatmul.bf16.gmra.mxu0 %v246
  %v327 = vpop.f32.mrf.mxu0
  %v328 = vadd.f32 0.0, %v327
  %v329 = vpop.f32.mrf.mxu0
  %v330 = vadd.f32 0.0, %v329
  %331 = vmatmul.bf16.gmra.mxu0 %v249
  %v332 = vpop.f32.mrf.mxu0
  %v333 = vadd.f32 0.0, %v332
  %v334 = vpop.f32.mrf.mxu0
  %v335 = vadd.f32 0.0, %v334
  %336 = vmatmul.bf16.gmra.mxu0 %v252
  %v337 = vpop.f32.mrf.mxu0
  %v338 = vadd.f32 0.0, %v337
  %v339 = vpop.f32.mrf.mxu0
  %v340 = vadd.f32 0.0, %v339
  %341 = vmatmul.bf16.gmra.mxu0 %v255
  %v342 = vpop.f32.mrf.mxu0
  %v343 = vadd.f32 0.0, %v342
  %v344 = vpop.f32.mrf.mxu0
  %v345 = vadd.f32 0.0, %v344
  %346 = vmatmul.bf16.gmra.mxu0 %v258
  %v347 = vpop.f32.mrf.mxu0
  %v348 = vadd.f32 0.0, %v347
  %v349 = vpop.f32.mrf.mxu0
  %v350 = vadd.f32 0.0, %v349
  %351 = vmatmul.bf16.gmra.mxu0 %v261
  %v352 = vpop.f32.mrf.mxu0
  %v353 = vadd.f32 0.0, %v352
  %v354 = vpop.f32.mrf.mxu0
  %v355 = vadd.f32 0.0, %v354
  %356 = vmatmul.bf16.gmra.mxu0 %v264
  %v357 = vpop.f32.mrf.mxu0
  %v358 = vadd.f32 0.0, %v357
  %v359 = vpop.f32.mrf.mxu0
  %v360 = vadd.f32 0.0, %v359
  %361 = vmatmul.bf16.gmra.mxu0 %v267
  %v362 = vpop.f32.mrf.mxu0
  %v363 = vadd.f32 0.0, %v362
  %v364 = vpop.f32.mrf.mxu0
  %v365 = vadd.f32 0.0, %v364
  %366 = vdwg.mxu0
  %367 = vmatpush.bf16.msra.mxu0 0
  %368 = vmatpush.bf16.msra.mxu0 0
  %369 = vmatpush.bf16.msra.mxu0 0
  %370 = vmatpush.bf16.msra.mxu0 0
  %371 = vmatpush.bf16.msra.mxu0 0
  %372 = vmatpush.bf16.msra.mxu0 0
  %373 = vmatpush.bf16.msra.mxu0 %v234
  %374 = vmatpush.bf16.msra.mxu0 %v230
  %375 = vmatmul.bf16.gmra.mxu0 %v246
  %v376 = vpop.f32.mrf.mxu0
  %v377 = vadd.f32 0.0, %v376
  %v378 = vpop.f32.mrf.mxu0
  %v379 = vadd.f32 0.0, %v378
  %380 = vmatmul.bf16.gmra.mxu0 %v249
  %v381 = vpop.f32.mrf.mxu0
  %v382 = vadd.f32 0.0, %v381
  %v383 = vpop.f32.mrf.mxu0
  %v384 = vadd.f32 0.0, %v383
  %385 = vmatmul.bf16.gmra.mxu0 %v252
  %v386 = vpop.f32.mrf.mxu0
  %v387 = vadd.f32 0.0, %v386
  %v388 = vpop.f32.mrf.mxu0
  %v389 = vadd.f32 0.0, %v388
  %390 = vmatmul.bf16.gmra.mxu0 %v255
  %v391 = vpop.f32.mrf.mxu0
  %v392 = vadd.f32 0.0, %v391
  %v393 = vpop.f32.mrf.mxu0
  %v394 = vadd.f32 0.0, %v393
  %395 = vmatmul.bf16.gmra.mxu0 %v258
  %v396 = vpop.f32.mrf.mxu0
  %v397 = vadd.f32 0.0, %v396
  %v398 = vpop.f32.mrf.mxu0
  %v399 = vadd.f32 0.0, %v398
  %400 = vmatmul.bf16.gmra.mxu0 %v261
  %v401 = vpop.f32.mrf.mxu0
  %v402 = vadd.f32 0.0, %v401
  %v403 = vpop.f32.mrf.mxu0
  %v404 = vadd.f32 0.0, %v403
  %405 = vmatmul.bf16.gmra.mxu0 %v264
  %v406 = vpop.f32.mrf.mxu0
  %v407 = vadd.f32 0.0, %v406
  %v408 = vpop.f32.mrf.mxu0
  %v409 = vadd.f32 0.0, %v408
  %410 = vmatmul.bf16.gmra.mxu0 %v267
  %v411 = vpop.f32.mrf.mxu0
  %v412 = vadd.f32 0.0, %v411
  %v413 = vpop.f32.mrf.mxu0
  %v414 = vadd.f32 0.0, %v413
  %415 = vdwg.mxu0
  %416 = vmatpush.bf16.msra.mxu0 0
  %417 = vmatpush.bf16.msra.mxu0 0
  %418 = vmatpush.bf16.msra.mxu0 0
  %419 = vmatpush.bf16.msra.mxu0 0
  %420 = vmatpush.bf16.msra.mxu0 0
  %421 = vmatpush.bf16.msra.mxu0 0
  %422 = vmatpush.bf16.msra.mxu0 %v235
  %423 = vmatpush.bf16.msra.mxu0 %v231
  %424 = vmatmul.bf16.gmra.mxu0 %v246
  %v425 = vpop.f32.mrf.mxu0
  %v426 = vadd.f32 0.0, %v425
  %v427 = vpop.f32.mrf.mxu0
  %v428 = vadd.f32 0.0, %v427
  %429 = vmatmul.bf16.gmra.mxu0 %v249
  %v430 = vpop.f32.mrf.mxu0
  %v431 = vadd.f32 0.0, %v430
  %v432 = vpop.f32.mrf.mxu0
  %v433 = vadd.f32 0.0, %v432
  %434 = vmatmul.bf16.gmra.mxu0 %v252
  %v435 = vpop.f32.mrf.mxu0
  %v436 = vadd.f32 0.0, %v435
  %v437 = vpop.f32.mrf.mxu0
  %v438 = vadd.f32 0.0, %v437
  %439 = vmatmul.bf16.gmra.mxu0 %v255
  %v440 = vpop.f32.mrf.mxu0
  %v441 = vadd.f32 0.0, %v440
  %v442 = vpop.f32.mrf.mxu0
  %v443 = vadd.f32 0.0, %v442
  %444 = vmatmul.bf16.gmra.mxu0 %v258
  %v445 = vpop.f32.mrf.mxu0
  %v446 = vadd.f32 0.0, %v445
  %v447 = vpop.f32.mrf.mxu0
  %v448 = vadd.f32 0.0, %v447
  %449 = vmatmul.bf16.gmra.mxu0 %v261
  %v450 = vpop.f32.mrf.mxu0
  %v451 = vadd.f32 0.0, %v450
  %v452 = vpop.f32.mrf.mxu0
  %v453 = vadd.f32 0.0, %v452
  %454 = vmatmul.bf16.gmra.mxu0 %v264
  %v455 = vpop.f32.mrf.mxu0
  %v456 = vadd.f32 0.0, %v455
  %v457 = vpop.f32.mrf.mxu0
  %v458 = vadd.f32 0.0, %v457
  %459 = vmatmul.bf16.gmra.mxu0 %v267
  %v460 = vpop.f32.mrf.mxu0
  %v461 = vadd.f32 0.0, %v460
  %v462 = vpop.f32.mrf.mxu0
  %v463 = vadd.f32 0.0, %v462
  %464 = vdwg.mxu0
  %v465 = vadd.f32 %v279, %v281
  %v466 = vadd.f32 %v465, %v284
  %v467 = vadd.f32 %v466, %v286
  %v468 = vadd.f32 %v467, %v289
  %v469 = vadd.f32 %v468, %v291
  %v470 = vadd.f32 %v469, %v294
  %v471 = vadd.f32 %v470, %v296
  %v472 = vadd.f32 %v471, %v299
  %v473 = vadd.f32 %v472, %v301
  %v474 = vadd.f32 %v473, %v304
  %v475 = vadd.f32 %v474, %v306
  %v476 = vadd.f32 %v475, %v309
  %v477 = vadd.f32 %v476, %v311
  %v478 = vadd.f32 %v477, %v314
  %v479 = vadd.f32 %v478, %v316
  %v480 = vrot.slane %v479, 4
  %v481 = vadd.f32 %v479, %v480
  %v482 = vrot.slane %v481, 2
  %v483 = vadd.f32 %v481, %v482
  %v484 = vrot.slane %v483, 1
  %v485 = vadd.f32 %v483, %v484
  %v486 = vadd.f32 %v328, %v330
  %v487 = vadd.f32 %v486, %v333
  %v488 = vadd.f32 %v487, %v335
  %v489 = vadd.f32 %v488, %v338
  %v490 = vadd.f32 %v489, %v340
  %v491 = vadd.f32 %v490, %v343
  %v492 = vadd.f32 %v491, %v345
  %v493 = vadd.f32 %v492, %v348
  %v494 = vadd.f32 %v493, %v350
  %v495 = vadd.f32 %v494, %v353
  %v496 = vadd.f32 %v495, %v355
  %v497 = vadd.f32 %v496, %v358
  %v498 = vadd.f32 %v497, %v360
  %v499 = vadd.f32 %v498, %v363
  %v500 = vadd.f32 %v499, %v365
  %v501 = vrot.slane %v500, 4
  %v502 = vadd.f32 %v500, %v501
  %v503 = vrot.slane %v502, 2
  %v504 = vadd.f32 %v502, %v503
  %v505 = vrot.slane %v504, 1
  %v506 = vadd.f32 %v504, %v505
  %v507 = vadd.f32 %v377, %v379
  %v508 = vadd.f32 %v507, %v382
  %v509 = vadd.f32 %v508, %v384
  %v510 = vadd.f32 %v509, %v387
  %v511 = vadd.f32 %v510, %v389
  %v512 = vadd.f32 %v511, %v392
  %v513 = vadd.f32 %v512, %v394
  %v514 = vadd.f32 %v513, %v397
  %v515 = vadd.f32 %v514, %v399
  %v516 = vadd.f32 %v515, %v402
  %v517 = vadd.f32 %v516, %v404
  %v518 = vadd.f32 %v517, %v407
  %v519 = vadd.f32 %v518, %v409
  %v520 = vadd.f32 %v519, %v412
  %v521 = vadd.f32 %v520, %v414
  %v522 = vrot.slane %v521, 4
  %v523 = vadd.f32 %v521, %v522
  %v524 = vrot.slane %v523, 2
  %v525 = vadd.f32 %v523, %v524
  %v526 = vrot.slane %v525, 1
  %v527 = vadd.f32 %v525, %v526
  %v528 = vadd.f32 %v426, %v428
  %v529 = vadd.f32 %v528, %v431
  %v530 = vadd.f32 %v529, %v433
  %v531 = vadd.f32 %v530, %v436
  %v532 = vadd.f32 %v531, %v438
  %v533 = vadd.f32 %v532, %v441
  %v534 = vadd.f32 %v533, %v443
  %v535 = vadd.f32 %v534, %v446
  %v536 = vadd.f32 %v535, %v448
  %v537 = vadd.f32 %v536, %v451
  %v538 = vadd.f32 %v537, %v453
  %v539 = vadd.f32 %v538, %v456
  %v540 = vadd.f32 %v539, %v458
  %v541 = vadd.f32 %v540, %v461
  %v542 = vadd.f32 %v541, %v463
  %v543 = vrot.slane %v542, 4
  %v544 = vadd.f32 %v542, %v543
  %v545 = vrot.slane %v544, 2
  %v546 = vadd.f32 %v544, %v545
  %v547 = vrot.slane %v546, 1
  %v548 = vadd.f32 %v546, %v547
  %v549 = vrcp.pop 128.0
  %v550 = vmul.f32 128.0, %v549
  %v551 = vsub.f32 1.0, %v550
  %v552 = vmul.f32 %v549, %v551
  %v553 = vadd.f32 %v549, %v552
  %vm554 = vweird.f32 %v549
  %v555 = vsel %vm554, %v549, %v553
  %v556 = vmul.f32 %v485, %v555
  %v557 = vmul.f32 %v506, %v555
  %v558 = vmul.f32 %v527, %v555
  %v559 = vmul.f32 %v548, %v555
  %v560 = vsub.f32 %v279, %v556
  %v561 = vsub.f32 %v328, %v557
  %v562 = vsub.f32 %v377, %v558
  %v563 = vsub.f32 %v426, %v559
  %v564 = vsub.f32 %v281, %v556
  %v565 = vsub.f32 %v330, %v557
  %v566 = vsub.f32 %v379, %v558
  %v567 = vsub.f32 %v428, %v559
  %v568 = vsub.f32 %v284, %v556
  %v569 = vsub.f32 %v333, %v557
  %v570 = vsub.f32 %v382, %v558
  %v571 = vsub.f32 %v431, %v559
  %v572 = vsub.f32 %v286, %v556
  %v573 = vsub.f32 %v335, %v557
  %v574 = vsub.f32 %v384, %v558
  %v575 = vsub.f32 %v433, %v559
  %v576 = vsub.f32 %v289, %v556
  %v577 = vsub.f32 %v338, %v557
  %v578 = vsub.f32 %v387, %v558
  %v579 = vsub.f32 %v436, %v559
  %v580 = vsub.f32 %v291, %v556
  %v581 = vsub.f32 %v340, %v557
  %v582 = vsub.f32 %v389, %v558
  %v583 = vsub.f32 %v438, %v559
  %v584 = vsub.f32 %v294, %v556
  %v585 = vsub.f32 %v343, %v557
  %v586 = vsub.f32 %v392, %v558
  %v587 = vsub.f32 %v441, %v559
  %v588 = vsub.f32 %v296, %v556
  %v589 = vsub.f32 %v345, %v557
  %v590 = vsub.f32 %v394, %v558
  %v591 = vsub.f32 %v443, %v559
  %v592 = vsub.f32 %v299, %v556
  %v593 = vsub.f32 %v348, %v557
  %v594 = vsub.f32 %v397, %v558
  %v595 = vsub.f32 %v446, %v559
  %v596 = vsub.f32 %v301, %v556
  %v597 = vsub.f32 %v350, %v557
  %v598 = vsub.f32 %v399, %v558
  %v599 = vsub.f32 %v448, %v559
  %v600 = vsub.f32 %v304, %v556
  %v601 = vsub.f32 %v353, %v557
  %v602 = vsub.f32 %v402, %v558
  %v603 = vsub.f32 %v451, %v559
  %v604 = vsub.f32 %v306, %v556
  %v605 = vsub.f32 %v355, %v557
  %v606 = vsub.f32 %v404, %v558
  %v607 = vsub.f32 %v453, %v559
  %v608 = vsub.f32 %v309, %v556
  %v609 = vsub.f32 %v358, %v557
  %v610 = vsub.f32 %v407, %v558
  %v611 = vsub.f32 %v456, %v559
  %v612 = vsub.f32 %v311, %v556
  %v613 = vsub.f32 %v360, %v557
  %v614 = vsub.f32 %v409, %v558
  %v615 = vsub.f32 %v458, %v559
  %v616 = vsub.f32 %v314, %v556
  %v617 = vsub.f32 %v363, %v557
  %v618 = vsub.f32 %v412, %v558
  %v619 = vsub.f32 %v461, %v559
  %v620 = vsub.f32 %v316, %v556
  %v621 = vsub.f32 %v365, %v557
  %v622 = vsub.f32 %v414, %v558
  %v623 = vsub.f32 %v463, %v559
  %v624 = vmul.f32 %v560, %v560
  %v625 = vmul.f32 %v561, %v561
  %v626 = vmul.f32 %v562, %v562
  %v627 = vmul.f32 %v563, %v563
  %v628 = vmul.f32 %v564, %v564
  %v629 = vmul.f32 %v565, %v565
  %v630 = vmul.f32 %v566, %v566
  %v631 = vmul.f32 %v567, %v567
  %v632 = vmul.f32 %v568, %v568
  %v633 = vmul.f32 %v569, %v569
  %v634 = vmul.f32 %v570, %v570
  %v635 = vmul.f32 %v571, %v571
  %v636 = vmul.f32 %v572, %v572
  %v637 = vmul.f32 %v573, %v573
  %v638 = vmul.f32 %v574, %v574
  %v639 = vmul.f32 %v575, %v575
  %v640 = vmul.f32 %v576, %v576
  %v641 = vmul.f32 %v577, %v577
  %v642 = vmul.f32 %v578, %v578
  %v643 = vmul.f32 %v579, %v579
  %v644 = vmul.f32 %v580, %v580
  %v645 = vmul.f32 %v581, %v581
  %v646 = vmul.f32 %v582, %v582
  %v647 = vmul.f32 %v583, %v583
  %v648 = vmul.f32 %v584, %v584
  %v649 = vmul.f32 %v585, %v585
  %v650 = vmul.f32 %v586, %v586
  %v651 = vmul.f32 %v587, %v587
  %v652 = vmul.f32 %v588, %v588
  %v653 = vmul.f32 %v589, %v589
  %v654 = vmul.f32 %v590, %v590
  %v655 = vmul.f32 %v591, %v591
  %v656 = vmul.f32 %v592, %v592
  %v657 = vmul.f32 %v593, %v593
  %v658 = vmul.f32 %v594, %v594
  %v659 = vmul.f32 %v595, %v595
  %v660 = vmul.f32 %v596, %v596
  %v661 = vmul.f32 %v597, %v597
  %v662 = vmul.f32 %v598, %v598
  %v663 = vmul.f32 %v599, %v599
  %v664 = vmul.f32 %v600, %v600
  %v665 = vmul.f32 %v601, %v601
  %v666 = vmul.f32 %v602, %v602
  %v667 = vmul.f32 %v603, %v603
  %v668 = vmul.f32 %v604, %v604
  %v669 = vmul.f32 %v605, %v605
  %v670 = vmul.f32 %v606, %v606
  %v671 = vmul.f32 %v607, %v607
  %v672 = vmul.f32 %v608, %v608
  %v673 = vmul.f32 %v609, %v609
  %v674 = vmul.f32 %v610, %v610
  %v675 = vmul.f32 %v611, %v611
  %v676 = vmul.f32 %v612, %v612
  %v677 = vmul.f32 %v613, %v613
  %v678 = vmul.f32 %v614, %v614
  %v679 = vmul.f32 %v615, %v615
  %v680 = vmul.f32 %v616, %v616
  %v681 = vmul.f32 %v617, %v617
  %v682 = vmul.f32 %v618, %v618
  %v683 = vmul.f32 %v619, %v619
  %v684 = vmul.f32 %v620, %v620
  %v685 = vmul.f32 %v621, %v621
  %v686 = vmul.f32 %v622, %v622
  %v687 = vmul.f32 %v623, %v623
  %v688 = vadd.f32 %v624, %v628
  %v689 = vadd.f32 %v688, %v632
  %v690 = vadd.f32 %v689, %v636
  %v691 = vadd.f32 %v690, %v640
  %v692 = vadd.f32 %v691, %v644
  %v693 = vadd.f32 %v692, %v648
  %v694 = vadd.f32 %v693, %v652
  %v695 = vadd.f32 %v694, %v656
  %v696 = vadd.f32 %v695, %v660
  %v697 = vadd.f32 %v696, %v664
  %v698 = vadd.f32 %v697, %v668
  %v699 = vadd.f32 %v698, %v672
  %v700 = vadd.f32 %v699, %v676
  %v701 = vadd.f32 %v700, %v680
  %v702 = vadd.f32 %v701, %v684
  %v703 = vrot.slane %v702, 4
  %v704 = vadd.f32 %v702, %v703
  %v705 = vrot.slane %v704, 2
  %v706 = vadd.f32 %v704, %v705
  %v707 = vrot.slane %v706, 1
  %v708 = vadd.f32 %v706, %v707
  %v709 = vadd.f32 %v625, %v629
  %v710 = vadd.f32 %v709, %v633
  %v711 = vadd.f32 %v710, %v637
  %v712 = vadd.f32 %v711, %v641
  %v713 = vadd.f32 %v712, %v645
  %v714 = vadd.f32 %v713, %v649
  %v715 = vadd.f32 %v714, %v653
  %v716 = vadd.f32 %v715, %v657
  %v717 = vadd.f32 %v716, %v661
  %v718 = vadd.f32 %v717, %v665
  %v719 = vadd.f32 %v718, %v669
  %v720 = vadd.f32 %v719, %v673
  %v721 = vadd.f32 %v720, %v677
  %v722 = vadd.f32 %v721, %v681
  %v723 = vadd.f32 %v722, %v685
  %v724 = vrot.slane %v723, 4
  %v725 = vadd.f32 %v723, %v724
  %v726 = vrot.slane %v725, 2
  %v727 = vadd.f32 %v725, %v726
  %v728 = vrot.slane %v727, 1
  %v729 = vadd.f32 %v727, %v728
  %v730 = vadd.f32 %v626, %v630
  %v731 = vadd.f32 %v730, %v634
  %v732 = vadd.f32 %v731, %v638
  %v733 = vadd.f32 %v732, %v642
  %v734 = vadd.f32 %v733, %v646
  %v735 = vadd.f32 %v734, %v650
  %v736 = vadd.f32 %v735, %v654
  %v737 = vadd.f32 %v736, %v658
  %v738 = vadd.f32 %v737, %v662
  %v739 = vadd.f32 %v738, %v666
  %v740 = vadd.f32 %v739, %v670
  %v741 = vadd.f32 %v740, %v674
  %v742 = vadd.f32 %v741, %v678
  %v743 = vadd.f32 %v742, %v682
  %v744 = vadd.f32 %v743, %v686
  %v745 = vrot.slane %v744, 4
  %v746 = vadd.f32 %v744, %v745
  %v747 = vrot.slane %v746, 2
  %v748 = vadd.f32 %v746, %v747
  %v749 = vrot.slane %v748, 1
  %v750 = vadd.f32 %v748, %v749
  %v751 = vadd.f32 %v627, %v631
  %v752 = vadd.f32 %v751, %v635
  %v753 = vadd.f32 %v752, %v639
  %v754 = vadd.f32 %v753, %v643
  %v755 = vadd.f32 %v754, %v647
  %v756 = vadd.f32 %v755, %v651
  %v757 = vadd.f32 %v756, %v655
  %v758 = vadd.f32 %v757, %v659
  %v759 = vadd.f32 %v758, %v663
  %v760 = vadd.f32 %v759, %v667
  %v761 = vadd.f32 %v760, %v671
  %v762 = vadd.f32 %v761, %v675
  %v763 = vadd.f32 %v762, %v679
  %v764 = vadd.f32 %v763, %v683
  %v765 = vadd.f32 %v764, %v687
  %v766 = vrot.slane %v765, 4
  %v767 = vadd.f32 %v765, %v766
  %v768 = vrot.slane %v767, 2
  %v769 = vadd.f32 %v767, %v768
  %v770 = vrot.slane %v769, 1
  %v771 = vadd.f32 %v769, %v770
  %v772 = vmul.f32 %v708, %v555
  %v773 = vmul.f32 %v729, %v555
  %v774 = vmul.f32 %v750, %v555
  %v775 = vmul.f32 %v771, %v555
  %v776 = vld [vmem:[%s6] sm:$0xf]
  %v777 = vadd.f32 %v772, 1e-05
  %v778 = vadd.f32 %v773, 1e-05
  %v779 = vadd.f32 %v774, 1e-05
  %v780 = vadd.f32 %v775, 1e-05
  %v781 = vrsqrt.pop %v777
  %v782 = vmul.f32 %v781, %v777
  %v783 = vmul.f32 %v782, %v781
  %v784 = vmul.f32 0.5, %v783
  %v785 = vsub.f32 1.5, %v784
  %v786 = vmul.f32 %v781, %v785
  %vm787 = vweird.f32 %v777
  %vm788 = vweird.f32 %v781
  %vm789 = vmor %vm787, %vm788
  %v790 = vsel %vm789, %v781, %v786
  %v791 = vrsqrt.pop %v778
  %v792 = vmul.f32 %v791, %v778
  %v793 = vmul.f32 %v792, %v791
  %v794 = vmul.f32 0.5, %v793
  %v795 = vsub.f32 1.5, %v794
  %v796 = vmul.f32 %v791, %v795
  %vm797 = vweird.f32 %v778
  %vm798 = vweird.f32 %v791
  %vm799 = vmor %vm797, %vm798
  %v800 = vsel %vm799, %v791, %v796
  %v801 = vrsqrt.pop %v779
  %v802 = vmul.f32 %v801, %v779
  %v803 = vmul.f32 %v802, %v801
  %v804 = vmul.f32 0.5, %v803
  %v805 = vsub.f32 1.5, %v804
  %v806 = vmul.f32 %v801, %v805
  %vm807 = vweird.f32 %v779
  %vm808 = vweird.f32 %v801
  %vm809 = vmor %vm807, %vm808
  %v810 = vsel %vm809, %v801, %v806
  %v811 = vrsqrt.pop %v780
  %v812 = vmul.f32 %v811, %v780
  %v813 = vmul.f32 %v812, %v811
  %v814 = vmul.f32 0.5, %v813
  %v815 = vsub.f32 1.5, %v814
  %v816 = vmul.f32 %v811, %v815
  %vm817 = vweird.f32 %v780
  %vm818 = vweird.f32 %v811
  %vm819 = vmor %vm817, %vm818
  %v820 = vsel %vm819, %v811, %v816
  %v825 = vrot.slane %v800, 7
  %v826 = vrot.slane %v810, 6
  %v827 = vrot.slane %v820, 5
  %vm828 = vcmask 1040384
  %v829 = vsel %vm828, %v790, %v825
  %vm830 = vcmask 1042434
  %v831 = vsel %vm830, %v826, %v827
  %vm832 = vcmask 1041408
  %v833 = vsel %vm832, %v829, %v831
  %v835 = vmul.f32 %v776, %v833
  %v836 = vld [vmem:[%s7] sm:$0xf]
  %v838 = vperm.slane %v835, 0
  %v839 = vperm.slane %v835, 1
  %v840 = vperm.slane %v835, 2
  %v841 = vperm.slane %v835, 3
  %v846 = vmul.f32 %v556, %v838
  %v847 = vmul.f32 %v557, %v839
  %v848 = vmul.f32 %v558, %v840
  %v849 = vmul.f32 %v559, %v841
  %v854 = vrot.slane %v847, 7
  %v855 = vrot.slane %v848, 6
  %v856 = vrot.slane %v849, 5
  %v857 = vsel %vm828, %v846, %v854
  %v858 = vsel %vm830, %v855, %v856
  %v859 = vsel %vm832, %v857, %v858
  %v861 = vsub.f32 %v836, %v859
  %v862 = vmul.f32 %v279, %v838
  %v863 = vmul.f32 %v328, %v839
  %v864 = vmul.f32 %v377, %v840
  %v865 = vmul.f32 %v426, %v841
  %v866 = vmul.f32 %v281, %v838
  %v867 = vmul.f32 %v330, %v839
  %v868 = vmul.f32 %v379, %v840
  %v869 = vmul.f32 %v428, %v841
  %v870 = vmul.f32 %v284, %v838
  %v871 = vmul.f32 %v333, %v839
  %v872 = vmul.f32 %v382, %v840
  %v873 = vmul.f32 %v431, %v841
  %v874 = vmul.f32 %v286, %v838
  %v875 = vmul.f32 %v335, %v839
  %v876 = vmul.f32 %v384, %v840
  %v877 = vmul.f32 %v433, %v841
  %v878 = vmul.f32 %v289, %v838
  %v879 = vmul.f32 %v338, %v839
  %v880 = vmul.f32 %v387, %v840
  %v881 = vmul.f32 %v436, %v841
  %v882 = vmul.f32 %v291, %v838
  %v883 = vmul.f32 %v340, %v839
  %v884 = vmul.f32 %v389, %v840
  %v885 = vmul.f32 %v438, %v841
  %v886 = vmul.f32 %v294, %v838
  %v887 = vmul.f32 %v343, %v839
  %v888 = vmul.f32 %v392, %v840
  %v889 = vmul.f32 %v441, %v841
  %v890 = vmul.f32 %v296, %v838
  %v891 = vmul.f32 %v345, %v839
  %v892 = vmul.f32 %v394, %v840
  %v893 = vmul.f32 %v443, %v841
  %v894 = vmul.f32 %v299, %v838
  %v895 = vmul.f32 %v348, %v839
  %v896 = vmul.f32 %v397, %v840
  %v897 = vmul.f32 %v446, %v841
  %v898 = vmul.f32 %v301, %v838
  %v899 = vmul.f32 %v350, %v839
  %v900 = vmul.f32 %v399, %v840
  %v901 = vmul.f32 %v448, %v841
  %v902 = vmul.f32 %v304, %v838
  %v903 = vmul.f32 %v353, %v839
  %v904 = vmul.f32 %v402, %v840
  %v905 = vmul.f32 %v451, %v841
  %v906 = vmul.f32 %v306, %v838
  %v907 = vmul.f32 %v355, %v839
  %v908 = vmul.f32 %v404, %v840
  %v909 = vmul.f32 %v453, %v841
  %v910 = vmul.f32 %v309, %v838
  %v911 = vmul.f32 %v358, %v839
  %v912 = vmul.f32 %v407, %v840
  %v913 = vmul.f32 %v456, %v841
  %v914 = vmul.f32 %v311, %v838
  %v915 = vmul.f32 %v360, %v839
  %v916 = vmul.f32 %v409, %v840
  %v917 = vmul.f32 %v458, %v841
  %v918 = vmul.f32 %v314, %v838
  %v919 = vmul.f32 %v363, %v839
  %v920 = vmul.f32 %v412, %v840
  %v921 = vmul.f32 %v461, %v841
  %v922 = vmul.f32 %v316, %v838
  %v923 = vmul.f32 %v365, %v839
  %v924 = vmul.f32 %v414, %v840
  %v925 = vmul.f32 %v463, %v841
  %v927 = vperm.slane %v861, 0
  %v928 = vperm.slane %v861, 1
  %v929 = vperm.slane %v861, 2
  %v930 = vperm.slane %v861, 3
  %v935 = vadd.f32 %v862, %v927
  %v936 = vadd.f32 %v863, %v928
  %v937 = vadd.f32 %v864, %v929
  %v938 = vadd.f32 %v865, %v930
  %v939 = vadd.f32 %v866, %v927
  %v940 = vadd.f32 %v867, %v928
  %v941 = vadd.f32 %v868, %v929
  %v942 = vadd.f32 %v869, %v930
  %v943 = vadd.f32 %v870, %v927
  %v944 = vadd.f32 %v871, %v928
  %v945 = vadd.f32 %v872, %v929
  %v946 = vadd.f32 %v873, %v930
  %v947 = vadd.f32 %v874, %v927
  %v948 = vadd.f32 %v875, %v928
  %v949 = vadd.f32 %v876, %v929
  %v950 = vadd.f32 %v877, %v930
  %v951 = vadd.f32 %v878, %v927
  %v952 = vadd.f32 %v879, %v928
  %v953 = vadd.f32 %v880, %v929
  %v954 = vadd.f32 %v881, %v930
  %v955 = vadd.f32 %v882, %v927
  %v956 = vadd.f32 %v883, %v928
  %v957 = vadd.f32 %v884, %v929
  %v958 = vadd.f32 %v885, %v930
  %v959 = vadd.f32 %v886, %v927
  %v960 = vadd.f32 %v887, %v928
  %v961 = vadd.f32 %v888, %v929
  %v962 = vadd.f32 %v889, %v930
  %v963 = vadd.f32 %v890, %v927
  %v964 = vadd.f32 %v891, %v928
  %v965 = vadd.f32 %v892, %v929
  %v966 = vadd.f32 %v893, %v930
  %v967 = vadd.f32 %v894, %v927
  %v968 = vadd.f32 %v895, %v928
  %v969 = vadd.f32 %v896, %v929
  %v970 = vadd.f32 %v897, %v930
  %v971 = vadd.f32 %v898, %v927
  %v972 = vadd.f32 %v899, %v928
  %v973 = vadd.f32 %v900, %v929
  %v974 = vadd.f32 %v901, %v930
  %v975 = vadd.f32 %v902, %v927
  %v976 = vadd.f32 %v903, %v928
  %v977 = vadd.f32 %v904, %v929
  %v978 = vadd.f32 %v905, %v930
  %v979 = vadd.f32 %v906, %v927
  %v980 = vadd.f32 %v907, %v928
  %v981 = vadd.f32 %v908, %v929
  %v982 = vadd.f32 %v909, %v930
  %v983 = vadd.f32 %v910, %v927
  %v984 = vadd.f32 %v911, %v928
  %v985 = vadd.f32 %v912, %v929
  %v986 = vadd.f32 %v913, %v930
  %v987 = vadd.f32 %v914, %v927
  %v988 = vadd.f32 %v915, %v928
  %v989 = vadd.f32 %v916, %v929
  %v990 = vadd.f32 %v917, %v930
  %v991 = vadd.f32 %v918, %v927
  %v992 = vadd.f32 %v919, %v928
  %v993 = vadd.f32 %v920, %v929
  %v994 = vadd.f32 %v921, %v930
  %v995 = vadd.f32 %v922, %v927
  %v996 = vadd.f32 %v923, %v928
  %v997 = vadd.f32 %v924, %v929
  %v998 = vadd.f32 %v925, %v930
  %v999 = vmax.f32 %v935, 0.0
  %v1000 = vmax.f32 %v936, 0.0
  %v1001 = vmax.f32 %v937, 0.0
  %v1002 = vmax.f32 %v938, 0.0
  %v1003 = vmax.f32 %v939, 0.0
  %v1004 = vmax.f32 %v940, 0.0
  %v1005 = vmax.f32 %v941, 0.0
  %v1006 = vmax.f32 %v942, 0.0
  %v1007 = vmax.f32 %v943, 0.0
  %v1008 = vmax.f32 %v944, 0.0
  %v1009 = vmax.f32 %v945, 0.0
  %v1010 = vmax.f32 %v946, 0.0
  %v1011 = vmax.f32 %v947, 0.0
  %v1012 = vmax.f32 %v948, 0.0
  %v1013 = vmax.f32 %v949, 0.0
  %v1014 = vmax.f32 %v950, 0.0
  %v1015 = vmax.f32 %v951, 0.0
  %v1016 = vmax.f32 %v952, 0.0
  %v1017 = vmax.f32 %v953, 0.0
  %v1018 = vmax.f32 %v954, 0.0
  %v1019 = vmax.f32 %v955, 0.0
  %v1020 = vmax.f32 %v956, 0.0
  %v1021 = vmax.f32 %v957, 0.0
  %v1022 = vmax.f32 %v958, 0.0
  %v1023 = vmax.f32 %v959, 0.0
  %v1024 = vmax.f32 %v960, 0.0
  %v1025 = vmax.f32 %v961, 0.0
  %v1026 = vmax.f32 %v962, 0.0
  %v1027 = vmax.f32 %v963, 0.0
  %v1028 = vmax.f32 %v964, 0.0
  %v1029 = vmax.f32 %v965, 0.0
  %v1030 = vmax.f32 %v966, 0.0
  %v1031 = vmax.f32 %v967, 0.0
  %v1032 = vmax.f32 %v968, 0.0
  %v1033 = vmax.f32 %v969, 0.0
  %v1034 = vmax.f32 %v970, 0.0
  %v1035 = vmax.f32 %v971, 0.0
  %v1036 = vmax.f32 %v972, 0.0
  %v1037 = vmax.f32 %v973, 0.0
  %v1038 = vmax.f32 %v974, 0.0
  %v1039 = vmax.f32 %v975, 0.0
  %v1040 = vmax.f32 %v976, 0.0
  %v1041 = vmax.f32 %v977, 0.0
  %v1042 = vmax.f32 %v978, 0.0
  %v1043 = vmax.f32 %v979, 0.0
  %v1044 = vmax.f32 %v980, 0.0
  %v1045 = vmax.f32 %v981, 0.0
  %v1046 = vmax.f32 %v982, 0.0
  %v1047 = vmax.f32 %v983, 0.0
  %v1048 = vmax.f32 %v984, 0.0
  %v1049 = vmax.f32 %v985, 0.0
  %v1050 = vmax.f32 %v986, 0.0
  %v1051 = vmax.f32 %v987, 0.0
  %v1052 = vmax.f32 %v988, 0.0
  %v1053 = vmax.f32 %v989, 0.0
  %v1054 = vmax.f32 %v990, 0.0
  %v1055 = vmax.f32 %v991, 0.0
  %v1056 = vmax.f32 %v992, 0.0
  %v1057 = vmax.f32 %v993, 0.0
  %v1058 = vmax.f32 %v994, 0.0
  %v1059 = vmax.f32 %v995, 0.0
  %v1060 = vmax.f32 %v996, 0.0
  %v1061 = vmax.f32 %v997, 0.0
  %v1062 = vmax.f32 %v998, 0.0
  %v1063 = vpack.c.bf16 %v1003, %v999
  %v1064 = vpack.c.bf16 %v1004, %v1000
  %v1065 = vpack.c.bf16 %v1005, %v1001
  %v1066 = vpack.c.bf16 %v1006, %v1002
  %v1067 = vpack.c.bf16 %v1011, %v1007
  %v1068 = vpack.c.bf16 %v1012, %v1008
  %v1069 = vpack.c.bf16 %v1013, %v1009
  %v1070 = vpack.c.bf16 %v1014, %v1010
  %v1071 = vpack.c.bf16 %v1019, %v1015
  %v1072 = vpack.c.bf16 %v1020, %v1016
  %v1073 = vpack.c.bf16 %v1021, %v1017
  %v1074 = vpack.c.bf16 %v1022, %v1018
  %v1075 = vpack.c.bf16 %v1027, %v1023
  %v1076 = vpack.c.bf16 %v1028, %v1024
  %v1077 = vpack.c.bf16 %v1029, %v1025
  %v1078 = vpack.c.bf16 %v1030, %v1026
  %v1079 = vpack.c.bf16 %v1035, %v1031
  %v1080 = vpack.c.bf16 %v1036, %v1032
  %v1081 = vpack.c.bf16 %v1037, %v1033
  %v1082 = vpack.c.bf16 %v1038, %v1034
  %v1083 = vpack.c.bf16 %v1043, %v1039
  %v1084 = vpack.c.bf16 %v1044, %v1040
  %v1085 = vpack.c.bf16 %v1045, %v1041
  %v1086 = vpack.c.bf16 %v1046, %v1042
  %v1087 = vpack.c.bf16 %v1051, %v1047
  %v1088 = vpack.c.bf16 %v1052, %v1048
  %v1089 = vpack.c.bf16 %v1053, %v1049
  %v1090 = vpack.c.bf16 %v1054, %v1050
  %v1091 = vpack.c.bf16 %v1059, %v1055
  %v1092 = vpack.c.bf16 %v1060, %v1056
  %v1093 = vpack.c.bf16 %v1061, %v1057
  %v1094 = vpack.c.bf16 %v1062, %v1058
  %s1095 = smul.u32 4, 64
  %s1096 = smul.u32 %s1095, 8
  %s1097 = sshll.u32 %s1096, 4
  %1098 = dma.done %s77, %s1097
  %v1099 = vld [vmem:[#allocation3] sm:$0xff]
  %v1100 = vld [vmem:[#allocation3 + $0x8] sm:$0xff]
  %v1101 = vld [vmem:[#allocation3 + $0x10] sm:$0xff]
  %v1102 = vld [vmem:[#allocation3 + $0x18] sm:$0xff]
  %v1103 = vld [vmem:[#allocation3 + $0x20] sm:$0xff]
  %v1104 = vld [vmem:[#allocation3 + $0x28] sm:$0xff]
  %v1105 = vld [vmem:[#allocation3 + $0x30] sm:$0xff]
  %v1106 = vld [vmem:[#allocation3 + $0x38] sm:$0xff]
  %v1107 = vld [vmem:[#allocation3 + $0x40] sm:$0xff]
  %v1108 = vld [vmem:[#allocation3 + $0x48] sm:$0xff]
  %v1109 = vld [vmem:[#allocation3 + $0x50] sm:$0xff]
  %v1110 = vld [vmem:[#allocation3 + $0x58] sm:$0xff]
  %v1111 = vld [vmem:[#allocation3 + $0x60] sm:$0xff]
  %v1112 = vld [vmem:[#allocation3 + $0x68] sm:$0xff]
  %v1113 = vld [vmem:[#allocation3 + $0x70] sm:$0xff]
  %v1114 = vld [vmem:[#allocation3 + $0x78] sm:$0xff]
  %v1115 = vld [vmem:[#allocation3 + $0x80] sm:$0xff]
  %v1116 = vld [vmem:[#allocation3 + $0x88] sm:$0xff]
  %v1117 = vld [vmem:[#allocation3 + $0x90] sm:$0xff]
  %v1118 = vld [vmem:[#allocation3 + $0x98] sm:$0xff]
  %v1119 = vld [vmem:[#allocation3 + $0xa0] sm:$0xff]
  %v1120 = vld [vmem:[#allocation3 + $0xa8] sm:$0xff]
  %v1121 = vld [vmem:[#allocation3 + $0xb0] sm:$0xff]
  %v1122 = vld [vmem:[#allocation3 + $0xb8] sm:$0xff]
  %v1123 = vld [vmem:[#allocation3 + $0xc0] sm:$0xff]
  %v1124 = vld [vmem:[#allocation3 + $0xc8] sm:$0xff]
  %v1125 = vld [vmem:[#allocation3 + $0xd0] sm:$0xff]
  %v1126 = vld [vmem:[#allocation3 + $0xd8] sm:$0xff]
  %v1127 = vld [vmem:[#allocation3 + $0xe0] sm:$0xff]
  %v1128 = vld [vmem:[#allocation3 + $0xe8] sm:$0xff]
  %v1129 = vld [vmem:[#allocation3 + $0xf0] sm:$0xff]
  %v1130 = vld [vmem:[#allocation3 + $0xf8] sm:$0xff]
  %v1131 = vld [vmem:[#allocation3 + $0x100] sm:$0xff]
  %v1132 = vld [vmem:[#allocation3 + $0x108] sm:$0xff]
  %v1133 = vld [vmem:[#allocation3 + $0x110] sm:$0xff]
  %v1134 = vld [vmem:[#allocation3 + $0x118] sm:$0xff]
  %v1135 = vld [vmem:[#allocation3 + $0x120] sm:$0xff]
  %v1136 = vld [vmem:[#allocation3 + $0x128] sm:$0xff]
  %v1137 = vld [vmem:[#allocation3 + $0x130] sm:$0xff]
  %v1138 = vld [vmem:[#allocation3 + $0x138] sm:$0xff]
  %v1139 = vld [vmem:[#allocation3 + $0x140] sm:$0xff]
  %v1140 = vld [vmem:[#allocation3 + $0x148] sm:$0xff]
  %v1141 = vld [vmem:[#allocation3 + $0x150] sm:$0xff]
  %v1142 = vld [vmem:[#allocation3 + $0x158] sm:$0xff]
  %v1143 = vld [vmem:[#allocation3 + $0x160] sm:$0xff]
  %v1144 = vld [vmem:[#allocation3 + $0x168] sm:$0xff]
  %v1145 = vld [vmem:[#allocation3 + $0x170] sm:$0xff]
  %v1146 = vld [vmem:[#allocation3 + $0x178] sm:$0xff]
  %v1147 = vld [vmem:[#allocation3 + $0x180] sm:$0xff]
  %v1148 = vld [vmem:[#allocation3 + $0x188] sm:$0xff]
  %v1149 = vld [vmem:[#allocation3 + $0x190] sm:$0xff]
  %v1150 = vld [vmem:[#allocation3 + $0x198] sm:$0xff]
  %v1151 = vld [vmem:[#allocation3 + $0x1a0] sm:$0xff]
  %v1152 = vld [vmem:[#allocation3 + $0x1a8] sm:$0xff]
  %v1153 = vld [vmem:[#allocation3 + $0x1b0] sm:$0xff]
  %v1154 = vld [vmem:[#allocation3 + $0x1b8] sm:$0xff]
  %v1155 = vld [vmem:[#allocation3 + $0x1c0] sm:$0xff]
  %v1156 = vld [vmem:[#allocation3 + $0x1c8] sm:$0xff]
  %v1157 = vld [vmem:[#allocation3 + $0x1d0] sm:$0xff]
  %v1158 = vld [vmem:[#allocation3 + $0x1d8] sm:$0xff]
  %v1159 = vld [vmem:[#allocation3 + $0x1e0] sm:$0xff]
  %v1160 = vld [vmem:[#allocation3 + $0x1e8] sm:$0xff]
  %v1161 = vld [vmem:[#allocation3 + $0x1f0] sm:$0xff]
  %v1162 = vld [vmem:[#allocation3 + $0x1f8] sm:$0xff]
  %v1163 = vld [vmem:[#allocation3 + $0x200] sm:$0xff]
  %v1164 = vld [vmem:[#allocation3 + $0x208] sm:$0xff]
  %v1165 = vld [vmem:[#allocation3 + $0x210] sm:$0xff]
  %v1166 = vld [vmem:[#allocation3 + $0x218] sm:$0xff]
  %v1167 = vld [vmem:[#allocation3 + $0x220] sm:$0xff]
  %v1168 = vld [vmem:[#allocation3 + $0x228] sm:$0xff]
  %v1169 = vld [vmem:[#allocation3 + $0x230] sm:$0xff]
  %v1170 = vld [vmem:[#allocation3 + $0x238] sm:$0xff]
  %v1171 = vld [vmem:[#allocation3 + $0x240] sm:$0xff]
  %v1172 = vld [vmem:[#allocation3 + $0x248] sm:$0xff]
  %v1173 = vld [vmem:[#allocation3 + $0x250] sm:$0xff]
  %v1174 = vld [vmem:[#allocation3 + $0x258] sm:$0xff]
  %v1175 = vld [vmem:[#allocation3 + $0x260] sm:$0xff]
  %v1176 = vld [vmem:[#allocation3 + $0x268] sm:$0xff]
  %v1177 = vld [vmem:[#allocation3 + $0x270] sm:$0xff]
  %v1178 = vld [vmem:[#allocation3 + $0x278] sm:$0xff]
  %v1179 = vld [vmem:[#allocation3 + $0x280] sm:$0xff]
  %v1180 = vld [vmem:[#allocation3 + $0x288] sm:$0xff]
  %v1181 = vld [vmem:[#allocation3 + $0x290] sm:$0xff]
  %v1182 = vld [vmem:[#allocation3 + $0x298] sm:$0xff]
  %v1183 = vld [vmem:[#allocation3 + $0x2a0] sm:$0xff]
  %v1184 = vld [vmem:[#allocation3 + $0x2a8] sm:$0xff]
  %v1185 = vld [vmem:[#allocation3 + $0x2b0] sm:$0xff]
  %v1186 = vld [vmem:[#allocation3 + $0x2b8] sm:$0xff]
  %v1187 = vld [vmem:[#allocation3 + $0x2c0] sm:$0xff]
  %v1188 = vld [vmem:[#allocation3 + $0x2c8] sm:$0xff]
  %v1189 = vld [vmem:[#allocation3 + $0x2d0] sm:$0xff]
  %v1190 = vld [vmem:[#allocation3 + $0x2d8] sm:$0xff]
  %v1191 = vld [vmem:[#allocation3 + $0x2e0] sm:$0xff]
  %v1192 = vld [vmem:[#allocation3 + $0x2e8] sm:$0xff]
  %v1193 = vld [vmem:[#allocation3 + $0x2f0] sm:$0xff]
  %v1194 = vld [vmem:[#allocation3 + $0x2f8] sm:$0xff]
  %v1195 = vld [vmem:[#allocation3 + $0x300] sm:$0xff]
  %v1196 = vld [vmem:[#allocation3 + $0x308] sm:$0xff]
  %v1197 = vld [vmem:[#allocation3 + $0x310] sm:$0xff]
  %v1198 = vld [vmem:[#allocation3 + $0x318] sm:$0xff]
  %v1199 = vld [vmem:[#allocation3 + $0x320] sm:$0xff]
  %v1200 = vld [vmem:[#allocation3 + $0x328] sm:$0xff]
  %v1201 = vld [vmem:[#allocation3 + $0x330] sm:$0xff]
  %v1202 = vld [vmem:[#allocation3 + $0x338] sm:$0xff]
  %v1203 = vld [vmem:[#allocation3 + $0x340] sm:$0xff]
  %v1204 = vld [vmem:[#allocation3 + $0x348] sm:$0xff]
  %v1205 = vld [vmem:[#allocation3 + $0x350] sm:$0xff]
  %v1206 = vld [vmem:[#allocation3 + $0x358] sm:$0xff]
  %v1207 = vld [vmem:[#allocation3 + $0x360] sm:$0xff]
  %v1208 = vld [vmem:[#allocation3 + $0x368] sm:$0xff]
  %v1209 = vld [vmem:[#allocation3 + $0x370] sm:$0xff]
  %v1210 = vld [vmem:[#allocation3 + $0x378] sm:$0xff]
  %v1211 = vld [vmem:[#allocation3 + $0x380] sm:$0xff]
  %v1212 = vld [vmem:[#allocation3 + $0x388] sm:$0xff]
  %v1213 = vld [vmem:[#allocation3 + $0x390] sm:$0xff]
  %v1214 = vld [vmem:[#allocation3 + $0x398] sm:$0xff]
  %v1215 = vld [vmem:[#allocation3 + $0x3a0] sm:$0xff]
  %v1216 = vld [vmem:[#allocation3 + $0x3a8] sm:$0xff]
  %v1217 = vld [vmem:[#allocation3 + $0x3b0] sm:$0xff]
  %v1218 = vld [vmem:[#allocation3 + $0x3b8] sm:$0xff]
  %v1219 = vld [vmem:[#allocation3 + $0x3c0] sm:$0xff]
  %v1220 = vld [vmem:[#allocation3 + $0x3c8] sm:$0xff]
  %v1221 = vld [vmem:[#allocation3 + $0x3d0] sm:$0xff]
  %v1222 = vld [vmem:[#allocation3 + $0x3d8] sm:$0xff]
  %v1223 = vld [vmem:[#allocation3 + $0x3e0] sm:$0xff]
  %v1224 = vld [vmem:[#allocation3 + $0x3e8] sm:$0xff]
  %v1225 = vld [vmem:[#allocation3 + $0x3f0] sm:$0xff]
  %v1226 = vld [vmem:[#allocation3 + $0x3f8] sm:$0xff]
  %v1227 = vld [vmem:[#allocation3 + $0x400] sm:$0xff]
  %v1228 = vld [vmem:[#allocation3 + $0x408] sm:$0xff]
  %v1229 = vld [vmem:[#allocation3 + $0x410] sm:$0xff]
  %v1230 = vld [vmem:[#allocation3 + $0x418] sm:$0xff]
  %v1231 = vld [vmem:[#allocation3 + $0x420] sm:$0xff]
  %v1232 = vld [vmem:[#allocation3 + $0x428] sm:$0xff]
  %v1233 = vld [vmem:[#allocation3 + $0x430] sm:$0xff]
  %v1234 = vld [vmem:[#allocation3 + $0x438] sm:$0xff]
  %v1235 = vld [vmem:[#allocation3 + $0x440] sm:$0xff]
  %v1236 = vld [vmem:[#allocation3 + $0x448] sm:$0xff]
  %v1237 = vld [vmem:[#allocation3 + $0x450] sm:$0xff]
  %v1238 = vld [vmem:[#allocation3 + $0x458] sm:$0xff]
  %v1239 = vld [vmem:[#allocation3 + $0x460] sm:$0xff]
  %v1240 = vld [vmem:[#allocation3 + $0x468] sm:$0xff]
  %v1241 = vld [vmem:[#allocation3 + $0x470] sm:$0xff]
  %v1242 = vld [vmem:[#allocation3 + $0x478] sm:$0xff]
  %v1243 = vld [vmem:[#allocation3 + $0x480] sm:$0xff]
  %v1244 = vld [vmem:[#allocation3 + $0x488] sm:$0xff]
  %v1245 = vld [vmem:[#allocation3 + $0x490] sm:$0xff]
  %v1246 = vld [vmem:[#allocation3 + $0x498] sm:$0xff]
  %v1247 = vld [vmem:[#allocation3 + $0x4a0] sm:$0xff]
  %v1248 = vld [vmem:[#allocation3 + $0x4a8] sm:$0xff]
  %v1249 = vld [vmem:[#allocation3 + $0x4b0] sm:$0xff]
  %v1250 = vld [vmem:[#allocation3 + $0x4b8] sm:$0xff]
  %v1251 = vld [vmem:[#allocation3 + $0x4c0] sm:$0xff]
  %v1252 = vld [vmem:[#allocation3 + $0x4c8] sm:$0xff]
  %v1253 = vld [vmem:[#allocation3 + $0x4d0] sm:$0xff]
  %v1254 = vld [vmem:[#allocation3 + $0x4d8] sm:$0xff]
  %v1255 = vld [vmem:[#allocation3 + $0x4e0] sm:$0xff]
  %v1256 = vld [vmem:[#allocation3 + $0x4e8] sm:$0xff]
  %v1257 = vld [vmem:[#allocation3 + $0x4f0] sm:$0xff]
  %v1258 = vld [vmem:[#allocation3 + $0x4f8] sm:$0xff]
  %v1259 = vld [vmem:[#allocation3 + $0x500] sm:$0xff]
  %v1260 = vld [vmem:[#allocation3 + $0x508] sm:$0xff]
  %v1261 = vld [vmem:[#allocation3 + $0x510] sm:$0xff]
  %v1262 = vld [vmem:[#allocation3 + $0x518] sm:$0xff]
  %v1263 = vld [vmem:[#allocation3 + $0x520] sm:$0xff]
  %v1264 = vld [vmem:[#allocation3 + $0x528] sm:$0xff]
  %v1265 = vld [vmem:[#allocation3 + $0x530] sm:$0xff]
  %v1266 = vld [vmem:[#allocation3 + $0x538] sm:$0xff]
  %v1267 = vld [vmem:[#allocation3 + $0x540] sm:$0xff]
  %v1268 = vld [vmem:[#allocation3 + $0x548] sm:$0xff]
  %v1269 = vld [vmem:[#allocation3 + $0x550] sm:$0xff]
  %v1270 = vld [vmem:[#allocation3 + $0x558] sm:$0xff]
  %v1271 = vld [vmem:[#allocation3 + $0x560] sm:$0xff]
  %v1272 = vld [vmem:[#allocation3 + $0x568] sm:$0xff]
  %v1273 = vld [vmem:[#allocation3 + $0x570] sm:$0xff]
  %v1274 = vld [vmem:[#allocation3 + $0x578] sm:$0xff]
  %v1275 = vld [vmem:[#allocation3 + $0x580] sm:$0xff]
  %v1276 = vld [vmem:[#allocation3 + $0x588] sm:$0xff]
  %v1277 = vld [vmem:[#allocation3 + $0x590] sm:$0xff]
  %v1278 = vld [vmem:[#allocation3 + $0x598] sm:$0xff]
  %v1279 = vld [vmem:[#allocation3 + $0x5a0] sm:$0xff]
  %v1280 = vld [vmem:[#allocation3 + $0x5a8] sm:$0xff]
  %v1281 = vld [vmem:[#allocation3 + $0x5b0] sm:$0xff]
  %v1282 = vld [vmem:[#allocation3 + $0x5b8] sm:$0xff]
  %v1283 = vld [vmem:[#allocation3 + $0x5c0] sm:$0xff]
  %v1284 = vld [vmem:[#allocation3 + $0x5c8] sm:$0xff]
  %v1285 = vld [vmem:[#allocation3 + $0x5d0] sm:$0xff]
  %v1286 = vld [vmem:[#allocation3 + $0x5d8] sm:$0xff]
  %v1287 = vld [vmem:[#allocation3 + $0x5e0] sm:$0xff]
  %v1288 = vld [vmem:[#allocation3 + $0x5e8] sm:$0xff]
  %v1289 = vld [vmem:[#allocation3 + $0x5f0] sm:$0xff]
  %v1290 = vld [vmem:[#allocation3 + $0x5f8] sm:$0xff]
  %v1291 = vld [vmem:[#allocation3 + $0x600] sm:$0xff]
  %v1292 = vld [vmem:[#allocation3 + $0x608] sm:$0xff]
  %v1293 = vld [vmem:[#allocation3 + $0x610] sm:$0xff]
  %v1294 = vld [vmem:[#allocation3 + $0x618] sm:$0xff]
  %v1295 = vld [vmem:[#allocation3 + $0x620] sm:$0xff]
  %v1296 = vld [vmem:[#allocation3 + $0x628] sm:$0xff]
  %v1297 = vld [vmem:[#allocation3 + $0x630] sm:$0xff]
  %v1298 = vld [vmem:[#allocation3 + $0x638] sm:$0xff]
  %v1299 = vld [vmem:[#allocation3 + $0x640] sm:$0xff]
  %v1300 = vld [vmem:[#allocation3 + $0x648] sm:$0xff]
  %v1301 = vld [vmem:[#allocation3 + $0x650] sm:$0xff]
  %v1302 = vld [vmem:[#allocation3 + $0x658] sm:$0xff]
  %v1303 = vld [vmem:[#allocation3 + $0x660] sm:$0xff]
  %v1304 = vld [vmem:[#allocation3 + $0x668] sm:$0xff]
  %v1305 = vld [vmem:[#allocation3 + $0x670] sm:$0xff]
  %v1306 = vld [vmem:[#allocation3 + $0x678] sm:$0xff]
  %v1307 = vld [vmem:[#allocation3 + $0x680] sm:$0xff]
  %v1308 = vld [vmem:[#allocation3 + $0x688] sm:$0xff]
  %v1309 = vld [vmem:[#allocation3 + $0x690] sm:$0xff]
  %v1310 = vld [vmem:[#allocation3 + $0x698] sm:$0xff]
  %v1311 = vld [vmem:[#allocation3 + $0x6a0] sm:$0xff]
  %v1312 = vld [vmem:[#allocation3 + $0x6a8] sm:$0xff]
  %v1313 = vld [vmem:[#allocation3 + $0x6b0] sm:$0xff]
  %v1314 = vld [vmem:[#allocation3 + $0x6b8] sm:$0xff]
  %v1315 = vld [vmem:[#allocation3 + $0x6c0] sm:$0xff]
  %v1316 = vld [vmem:[#allocation3 + $0x6c8] sm:$0xff]
  %v1317 = vld [vmem:[#allocation3 + $0x6d0] sm:$0xff]
  %v1318 = vld [vmem:[#allocation3 + $0x6d8] sm:$0xff]
  %v1319 = vld [vmem:[#allocation3 + $0x6e0] sm:$0xff]
  %v1320 = vld [vmem:[#allocation3 + $0x6e8] sm:$0xff]
  %v1321 = vld [vmem:[#allocation3 + $0x6f0] sm:$0xff]
  %v1322 = vld [vmem:[#allocation3 + $0x6f8] sm:$0xff]
  %v1323 = vld [vmem:[#allocation3 + $0x700] sm:$0xff]
  %v1324 = vld [vmem:[#allocation3 + $0x708] sm:$0xff]
  %v1325 = vld [vmem:[#allocation3 + $0x710] sm:$0xff]
  %v1326 = vld [vmem:[#allocation3 + $0x718] sm:$0xff]
  %v1327 = vld [vmem:[#allocation3 + $0x720] sm:$0xff]
  %v1328 = vld [vmem:[#allocation3 + $0x728] sm:$0xff]
  %v1329 = vld [vmem:[#allocation3 + $0x730] sm:$0xff]
  %v1330 = vld [vmem:[#allocation3 + $0x738] sm:$0xff]
  %v1331 = vld [vmem:[#allocation3 + $0x740] sm:$0xff]
  %v1332 = vld [vmem:[#allocation3 + $0x748] sm:$0xff]
  %v1333 = vld [vmem:[#allocation3 + $0x750] sm:$0xff]
  %v1334 = vld [vmem:[#allocation3 + $0x758] sm:$0xff]
  %v1335 = vld [vmem:[#allocation3 + $0x760] sm:$0xff]
  %v1336 = vld [vmem:[#allocation3 + $0x768] sm:$0xff]
  %v1337 = vld [vmem:[#allocation3 + $0x770] sm:$0xff]
  %v1338 = vld [vmem:[#allocation3 + $0x778] sm:$0xff]
  %v1339 = vld [vmem:[#allocation3 + $0x780] sm:$0xff]
  %v1340 = vld [vmem:[#allocation3 + $0x788] sm:$0xff]
  %v1341 = vld [vmem:[#allocation3 + $0x790] sm:$0xff]
  %v1342 = vld [vmem:[#allocation3 + $0x798] sm:$0xff]
  %v1343 = vld [vmem:[#allocation3 + $0x7a0] sm:$0xff]
  %v1344 = vld [vmem:[#allocation3 + $0x7a8] sm:$0xff]
  %v1345 = vld [vmem:[#allocation3 + $0x7b0] sm:$0xff]
  %v1346 = vld [vmem:[#allocation3 + $0x7b8] sm:$0xff]
  %v1347 = vld [vmem:[#allocation3 + $0x7c0] sm:$0xff]
  %v1348 = vld [vmem:[#allocation3 + $0x7c8] sm:$0xff]
  %v1349 = vld [vmem:[#allocation3 + $0x7d0] sm:$0xff]
  %v1350 = vld [vmem:[#allocation3 + $0x7d8] sm:$0xff]
  %v1351 = vld [vmem:[#allocation3 + $0x7e0] sm:$0xff]
  %v1352 = vld [vmem:[#allocation3 + $0x7e8] sm:$0xff]
  %v1353 = vld [vmem:[#allocation3 + $0x7f0] sm:$0xff]
  %v1354 = vld [vmem:[#allocation3 + $0x7f8] sm:$0xff]
  %v1611 = vunpack.c.l.b16 %v1099
  %v1612 = vunpack.c.h.b16 %v1099
  %v1613 = vunpack.c.l.b16 %v1100
  %v1614 = vunpack.c.h.b16 %v1100
  %v1615 = vunpack.c.l.b16 %v1101
  %v1616 = vunpack.c.h.b16 %v1101
  %v1617 = vunpack.c.l.b16 %v1102
  %v1618 = vunpack.c.h.b16 %v1102
  %v1619 = vunpack.c.l.b16 %v1103
  %v1620 = vunpack.c.h.b16 %v1103
  %v1621 = vunpack.c.l.b16 %v1104
  %v1622 = vunpack.c.h.b16 %v1104
  %v1623 = vunpack.c.l.b16 %v1105
  %v1624 = vunpack.c.h.b16 %v1105
  %v1625 = vunpack.c.l.b16 %v1106
  %v1626 = vunpack.c.h.b16 %v1106
  %v1627 = vunpack.c.l.b16 %v1107
  %v1628 = vunpack.c.h.b16 %v1107
  %v1629 = vunpack.c.l.b16 %v1108
  %v1630 = vunpack.c.h.b16 %v1108
  %v1631 = vunpack.c.l.b16 %v1109
  %v1632 = vunpack.c.h.b16 %v1109
  %v1633 = vunpack.c.l.b16 %v1110
  %v1634 = vunpack.c.h.b16 %v1110
  %v1635 = vunpack.c.l.b16 %v1111
  %v1636 = vunpack.c.h.b16 %v1111
  %v1637 = vunpack.c.l.b16 %v1112
  %v1638 = vunpack.c.h.b16 %v1112
  %v1639 = vunpack.c.l.b16 %v1113
  %v1640 = vunpack.c.h.b16 %v1113
  %v1641 = vunpack.c.l.b16 %v1114
  %v1642 = vunpack.c.h.b16 %v1114
  %v1643 = vunpack.c.l.b16 %v1115
  %v1644 = vunpack.c.h.b16 %v1115
  %v1645 = vunpack.c.l.b16 %v1116
  %v1646 = vunpack.c.h.b16 %v1116
  %v1647 = vunpack.c.l.b16 %v1117
  %v1648 = vunpack.c.h.b16 %v1117
  %v1649 = vunpack.c.l.b16 %v1118
  %v1650 = vunpack.c.h.b16 %v1118
  %v1651 = vunpack.c.l.b16 %v1119
  %v1652 = vunpack.c.h.b16 %v1119
  %v1653 = vunpack.c.l.b16 %v1120
  %v1654 = vunpack.c.h.b16 %v1120
  %v1655 = vunpack.c.l.b16 %v1121
  %v1656 = vunpack.c.h.b16 %v1121
  %v1657 = vunpack.c.l.b16 %v1122
  %v1658 = vunpack.c.h.b16 %v1122
  %v1659 = vunpack.c.l.b16 %v1123
  %v1660 = vunpack.c.h.b16 %v1123
  %v1661 = vunpack.c.l.b16 %v1124
  %v1662 = vunpack.c.h.b16 %v1124
  %v1663 = vunpack.c.l.b16 %v1125
  %v1664 = vunpack.c.h.b16 %v1125
  %v1665 = vunpack.c.l.b16 %v1126
  %v1666 = vunpack.c.h.b16 %v1126
  %v1667 = vunpack.c.l.b16 %v1127
  %v1668 = vunpack.c.h.b16 %v1127
  %v1669 = vunpack.c.l.b16 %v1128
  %v1670 = vunpack.c.h.b16 %v1128
  %v1671 = vunpack.c.l.b16 %v1129
  %v1672 = vunpack.c.h.b16 %v1129
  %v1673 = vunpack.c.l.b16 %v1130
  %v1674 = vunpack.c.h.b16 %v1130
  %v1675 = vunpack.c.l.b16 %v1131
  %v1676 = vunpack.c.h.b16 %v1131
  %v1677 = vunpack.c.l.b16 %v1132
  %v1678 = vunpack.c.h.b16 %v1132
  %v1679 = vunpack.c.l.b16 %v1133
  %v1680 = vunpack.c.h.b16 %v1133
  %v1681 = vunpack.c.l.b16 %v1134
  %v1682 = vunpack.c.h.b16 %v1134
  %v1683 = vunpack.c.l.b16 %v1135
  %v1684 = vunpack.c.h.b16 %v1135
  %v1685 = vunpack.c.l.b16 %v1136
  %v1686 = vunpack.c.h.b16 %v1136
  %v1687 = vunpack.c.l.b16 %v1137
  %v1688 = vunpack.c.h.b16 %v1137
  %v1689 = vunpack.c.l.b16 %v1138
  %v1690 = vunpack.c.h.b16 %v1138
  %v1691 = vunpack.c.l.b16 %v1139
  %v1692 = vunpack.c.h.b16 %v1139
  %v1693 = vunpack.c.l.b16 %v1140
  %v1694 = vunpack.c.h.b16 %v1140
  %v1695 = vunpack.c.l.b16 %v1141
  %v1696 = vunpack.c.h.b16 %v1141
  %v1697 = vunpack.c.l.b16 %v1142
  %v1698 = vunpack.c.h.b16 %v1142
  %v1699 = vunpack.c.l.b16 %v1143
  %v1700 = vunpack.c.h.b16 %v1143
  %v1701 = vunpack.c.l.b16 %v1144
  %v1702 = vunpack.c.h.b16 %v1144
  %v1703 = vunpack.c.l.b16 %v1145
  %v1704 = vunpack.c.h.b16 %v1145
  %v1705 = vunpack.c.l.b16 %v1146
  %v1706 = vunpack.c.h.b16 %v1146
  %v1707 = vunpack.c.l.b16 %v1147
  %v1708 = vunpack.c.h.b16 %v1147
  %v1709 = vunpack.c.l.b16 %v1148
  %v1710 = vunpack.c.h.b16 %v1148
  %v1711 = vunpack.c.l.b16 %v1149
  %v1712 = vunpack.c.h.b16 %v1149
  %v1713 = vunpack.c.l.b16 %v1150
  %v1714 = vunpack.c.h.b16 %v1150
  %v1715 = vunpack.c.l.b16 %v1151
  %v1716 = vunpack.c.h.b16 %v1151
  %v1717 = vunpack.c.l.b16 %v1152
  %v1718 = vunpack.c.h.b16 %v1152
  %v1719 = vunpack.c.l.b16 %v1153
  %v1720 = vunpack.c.h.b16 %v1153
  %v1721 = vunpack.c.l.b16 %v1154
  %v1722 = vunpack.c.h.b16 %v1154
  %v1723 = vunpack.c.l.b16 %v1155
  %v1724 = vunpack.c.h.b16 %v1155
  %v1725 = vunpack.c.l.b16 %v1156
  %v1726 = vunpack.c.h.b16 %v1156
  %v1727 = vunpack.c.l.b16 %v1157
  %v1728 = vunpack.c.h.b16 %v1157
  %v1729 = vunpack.c.l.b16 %v1158
  %v1730 = vunpack.c.h.b16 %v1158
  %v1731 = vunpack.c.l.b16 %v1159
  %v1732 = vunpack.c.h.b16 %v1159
  %v1733 = vunpack.c.l.b16 %v1160
  %v1734 = vunpack.c.h.b16 %v1160
  %v1735 = vunpack.c.l.b16 %v1161
  %v1736 = vunpack.c.h.b16 %v1161
  %v1737 = vunpack.c.l.b16 %v1162
  %v1738 = vunpack.c.h.b16 %v1162
  %v1739 = vunpack.c.l.b16 %v1163
  %v1740 = vunpack.c.h.b16 %v1163
  %v1741 = vunpack.c.l.b16 %v1164
  %v1742 = vunpack.c.h.b16 %v1164
  %v1743 = vunpack.c.l.b16 %v1165
  %v1744 = vunpack.c.h.b16 %v1165
  %v1745 = vunpack.c.l.b16 %v1166
  %v1746 = vunpack.c.h.b16 %v1166
  %v1747 = vunpack.c.l.b16 %v1167
  %v1748 = vunpack.c.h.b16 %v1167
  %v1749 = vunpack.c.l.b16 %v1168
  %v1750 = vunpack.c.h.b16 %v1168
  %v1751 = vunpack.c.l.b16 %v1169
  %v1752 = vunpack.c.h.b16 %v1169
  %v1753 = vunpack.c.l.b16 %v1170
  %v1754 = vunpack.c.h.b16 %v1170
  %v1755 = vunpack.c.l.b16 %v1171
  %v1756 = vunpack.c.h.b16 %v1171
  %v1757 = vunpack.c.l.b16 %v1172
  %v1758 = vunpack.c.h.b16 %v1172
  %v1759 = vunpack.c.l.b16 %v1173
  %v1760 = vunpack.c.h.b16 %v1173
  %v1761 = vunpack.c.l.b16 %v1174
  %v1762 = vunpack.c.h.b16 %v1174
  %v1763 = vunpack.c.l.b16 %v1175
  %v1764 = vunpack.c.h.b16 %v1175
  %v1765 = vunpack.c.l.b16 %v1176
  %v1766 = vunpack.c.h.b16 %v1176
  %v1767 = vunpack.c.l.b16 %v1177
  %v1768 = vunpack.c.h.b16 %v1177
  %v1769 = vunpack.c.l.b16 %v1178
  %v1770 = vunpack.c.h.b16 %v1178
  %v1771 = vunpack.c.l.b16 %v1179
  %v1772 = vunpack.c.h.b16 %v1179
  %v1773 = vunpack.c.l.b16 %v1180
  %v1774 = vunpack.c.h.b16 %v1180
  %v1775 = vunpack.c.l.b16 %v1181
  %v1776 = vunpack.c.h.b16 %v1181
  %v1777 = vunpack.c.l.b16 %v1182
  %v1778 = vunpack.c.h.b16 %v1182
  %v1779 = vunpack.c.l.b16 %v1183
  %v1780 = vunpack.c.h.b16 %v1183
  %v1781 = vunpack.c.l.b16 %v1184
  %v1782 = vunpack.c.h.b16 %v1184
  %v1783 = vunpack.c.l.b16 %v1185
  %v1784 = vunpack.c.h.b16 %v1185
  %v1785 = vunpack.c.l.b16 %v1186
  %v1786 = vunpack.c.h.b16 %v1186
  %v1787 = vunpack.c.l.b16 %v1187
  %v1788 = vunpack.c.h.b16 %v1187
  %v1789 = vunpack.c.l.b16 %v1188
  %v1790 = vunpack.c.h.b16 %v1188
  %v1791 = vunpack.c.l.b16 %v1189
  %v1792 = vunpack.c.h.b16 %v1189
  %v1793 = vunpack.c.l.b16 %v1190
  %v1794 = vunpack.c.h.b16 %v1190
  %v1795 = vunpack.c.l.b16 %v1191
  %v1796 = vunpack.c.h.b16 %v1191
  %v1797 = vunpack.c.l.b16 %v1192
  %v1798 = vunpack.c.h.b16 %v1192
  %v1799 = vunpack.c.l.b16 %v1193
  %v1800 = vunpack.c.h.b16 %v1193
  %v1801 = vunpack.c.l.b16 %v1194
  %v1802 = vunpack.c.h.b16 %v1194
  %v1803 = vunpack.c.l.b16 %v1195
  %v1804 = vunpack.c.h.b16 %v1195
  %v1805 = vunpack.c.l.b16 %v1196
  %v1806 = vunpack.c.h.b16 %v1196
  %v1807 = vunpack.c.l.b16 %v1197
  %v1808 = vunpack.c.h.b16 %v1197
  %v1809 = vunpack.c.l.b16 %v1198
  %v1810 = vunpack.c.h.b16 %v1198
  %v1811 = vunpack.c.l.b16 %v1199
  %v1812 = vunpack.c.h.b16 %v1199
  %v1813 = vunpack.c.l.b16 %v1200
  %v1814 = vunpack.c.h.b16 %v1200
  %v1815 = vunpack.c.l.b16 %v1201
  %v1816 = vunpack.c.h.b16 %v1201
  %v1817 = vunpack.c.l.b16 %v1202
  %v1818 = vunpack.c.h.b16 %v1202
  %v1819 = vunpack.c.l.b16 %v1203
  %v1820 = vunpack.c.h.b16 %v1203
  %v1821 = vunpack.c.l.b16 %v1204
  %v1822 = vunpack.c.h.b16 %v1204
  %v1823 = vunpack.c.l.b16 %v1205
  %v1824 = vunpack.c.h.b16 %v1205
  %v1825 = vunpack.c.l.b16 %v1206
  %v1826 = vunpack.c.h.b16 %v1206
  %v1827 = vunpack.c.l.b16 %v1207
  %v1828 = vunpack.c.h.b16 %v1207
  %v1829 = vunpack.c.l.b16 %v1208
  %v1830 = vunpack.c.h.b16 %v1208
  %v1831 = vunpack.c.l.b16 %v1209
  %v1832 = vunpack.c.h.b16 %v1209
  %v1833 = vunpack.c.l.b16 %v1210
  %v1834 = vunpack.c.h.b16 %v1210
  %v1835 = vunpack.c.l.b16 %v1211
  %v1836 = vunpack.c.h.b16 %v1211
  %v1837 = vunpack.c.l.b16 %v1212
  %v1838 = vunpack.c.h.b16 %v1212
  %v1839 = vunpack.c.l.b16 %v1213
  %v1840 = vunpack.c.h.b16 %v1213
  %v1841 = vunpack.c.l.b16 %v1214
  %v1842 = vunpack.c.h.b16 %v1214
  %v1843 = vunpack.c.l.b16 %v1215
  %v1844 = vunpack.c.h.b16 %v1215
  %v1845 = vunpack.c.l.b16 %v1216
  %v1846 = vunpack.c.h.b16 %v1216
  %v1847 = vunpack.c.l.b16 %v1217
  %v1848 = vunpack.c.h.b16 %v1217
  %v1849 = vunpack.c.l.b16 %v1218
  %v1850 = vunpack.c.h.b16 %v1218
  %v1851 = vunpack.c.l.b16 %v1219
  %v1852 = vunpack.c.h.b16 %v1219
  %v1853 = vunpack.c.l.b16 %v1220
  %v1854 = vunpack.c.h.b16 %v1220
  %v1855 = vunpack.c.l.b16 %v1221
  %v1856 = vunpack.c.h.b16 %v1221
  %v1857 = vunpack.c.l.b16 %v1222
  %v1858 = vunpack.c.h.b16 %v1222
  %v1859 = vunpack.c.l.b16 %v1223
  %v1860 = vunpack.c.h.b16 %v1223
  %v1861 = vunpack.c.l.b16 %v1224
  %v1862 = vunpack.c.h.b16 %v1224
  %v1863 = vunpack.c.l.b16 %v1225
  %v1864 = vunpack.c.h.b16 %v1225
  %v1865 = vunpack.c.l.b16 %v1226
  %v1866 = vunpack.c.h.b16 %v1226
  %v1867 = vunpack.c.l.b16 %v1227
  %v1868 = vunpack.c.h.b16 %v1227
  %v1869 = vunpack.c.l.b16 %v1228
  %v1870 = vunpack.c.h.b16 %v1228
  %v1871 = vunpack.c.l.b16 %v1229
  %v1872 = vunpack.c.h.b16 %v1229
  %v1873 = vunpack.c.l.b16 %v1230
  %v1874 = vunpack.c.h.b16 %v1230
  %v1875 = vunpack.c.l.b16 %v1231
  %v1876 = vunpack.c.h.b16 %v1231
  %v1877 = vunpack.c.l.b16 %v1232
  %v1878 = vunpack.c.h.b16 %v1232
  %v1879 = vunpack.c.l.b16 %v1233
  %v1880 = vunpack.c.h.b16 %v1233
  %v1881 = vunpack.c.l.b16 %v1234
  %v1882 = vunpack.c.h.b16 %v1234
  %v1883 = vunpack.c.l.b16 %v1235
  %v1884 = vunpack.c.h.b16 %v1235
  %v1885 = vunpack.c.l.b16 %v1236
  %v1886 = vunpack.c.h.b16 %v1236
  %v1887 = vunpack.c.l.b16 %v1237
  %v1888 = vunpack.c.h.b16 %v1237
  %v1889 = vunpack.c.l.b16 %v1238
  %v1890 = vunpack.c.h.b16 %v1238
  %v1891 = vunpack.c.l.b16 %v1239
  %v1892 = vunpack.c.h.b16 %v1239
  %v1893 = vunpack.c.l.b16 %v1240
  %v1894 = vunpack.c.h.b16 %v1240
  %v1895 = vunpack.c.l.b16 %v1241
  %v1896 = vunpack.c.h.b16 %v1241
  %v1897 = vunpack.c.l.b16 %v1242
  %v1898 = vunpack.c.h.b16 %v1242
  %v1899 = vunpack.c.l.b16 %v1243
  %v1900 = vunpack.c.h.b16 %v1243
  %v1901 = vunpack.c.l.b16 %v1244
  %v1902 = vunpack.c.h.b16 %v1244
  %v1903 = vunpack.c.l.b16 %v1245
  %v1904 = vunpack.c.h.b16 %v1245
  %v1905 = vunpack.c.l.b16 %v1246
  %v1906 = vunpack.c.h.b16 %v1246
  %v1907 = vunpack.c.l.b16 %v1247
  %v1908 = vunpack.c.h.b16 %v1247
  %v1909 = vunpack.c.l.b16 %v1248
  %v1910 = vunpack.c.h.b16 %v1248
  %v1911 = vunpack.c.l.b16 %v1249
  %v1912 = vunpack.c.h.b16 %v1249
  %v1913 = vunpack.c.l.b16 %v1250
  %v1914 = vunpack.c.h.b16 %v1250
  %v1915 = vunpack.c.l.b16 %v1251
  %v1916 = vunpack.c.h.b16 %v1251
  %v1917 = vunpack.c.l.b16 %v1252
  %v1918 = vunpack.c.h.b16 %v1252
  %v1919 = vunpack.c.l.b16 %v1253
  %v1920 = vunpack.c.h.b16 %v1253
  %v1921 = vunpack.c.l.b16 %v1254
  %v1922 = vunpack.c.h.b16 %v1254
  %v1923 = vunpack.c.l.b16 %v1255
  %v1924 = vunpack.c.h.b16 %v1255
  %v1925 = vunpack.c.l.b16 %v1256
  %v1926 = vunpack.c.h.b16 %v1256
  %v1927 = vunpack.c.l.b16 %v1257
  %v1928 = vunpack.c.h.b16 %v1257
  %v1929 = vunpack.c.l.b16 %v1258
  %v1930 = vunpack.c.h.b16 %v1258
  %v1931 = vunpack.c.l.b16 %v1259
  %v1932 = vunpack.c.h.b16 %v1259
  %v1933 = vunpack.c.l.b16 %v1260
  %v1934 = vunpack.c.h.b16 %v1260
  %v1935 = vunpack.c.l.b16 %v1261
  %v1936 = vunpack.c.h.b16 %v1261
  %v1937 = vunpack.c.l.b16 %v1262
  %v1938 = vunpack.c.h.b16 %v1262
  %v1939 = vunpack.c.l.b16 %v1263
  %v1940 = vunpack.c.h.b16 %v1263
  %v1941 = vunpack.c.l.b16 %v1264
  %v1942 = vunpack.c.h.b16 %v1264
  %v1943 = vunpack.c.l.b16 %v1265
  %v1944 = vunpack.c.h.b16 %v1265
  %v1945 = vunpack.c.l.b16 %v1266
  %v1946 = vunpack.c.h.b16 %v1266
  %v1947 = vunpack.c.l.b16 %v1267
  %v1948 = vunpack.c.h.b16 %v1267
  %v1949 = vunpack.c.l.b16 %v1268
  %v1950 = vunpack.c.h.b16 %v1268
  %v1951 = vunpack.c.l.b16 %v1269
  %v1952 = vunpack.c.h.b16 %v1269
  %v1953 = vunpack.c.l.b16 %v1270
  %v1954 = vunpack.c.h.b16 %v1270
  %v1955 = vunpack.c.l.b16 %v1271
  %v1956 = vunpack.c.h.b16 %v1271
  %v1957 = vunpack.c.l.b16 %v1272
  %v1958 = vunpack.c.h.b16 %v1272
  %v1959 = vunpack.c.l.b16 %v1273
  %v1960 = vunpack.c.h.b16 %v1273
  %v1961 = vunpack.c.l.b16 %v1274
  %v1962 = vunpack.c.h.b16 %v1274
  %v1963 = vunpack.c.l.b16 %v1275
  %v1964 = vunpack.c.h.b16 %v1275
  %v1965 = vunpack.c.l.b16 %v1276
  %v1966 = vunpack.c.h.b16 %v1276
  %v1967 = vunpack.c.l.b16 %v1277
  %v1968 = vunpack.c.h.b16 %v1277
  %v1969 = vunpack.c.l.b16 %v1278
  %v1970 = vunpack.c.h.b16 %v1278
  %v1971 = vunpack.c.l.b16 %v1279
  %v1972 = vunpack.c.h.b16 %v1279
  %v1973 = vunpack.c.l.b16 %v1280
  %v1974 = vunpack.c.h.b16 %v1280
  %v1975 = vunpack.c.l.b16 %v1281
  %v1976 = vunpack.c.h.b16 %v1281
  %v1977 = vunpack.c.l.b16 %v1282
  %v1978 = vunpack.c.h.b16 %v1282
  %v1979 = vunpack.c.l.b16 %v1283
  %v1980 = vunpack.c.h.b16 %v1283
  %v1981 = vunpack.c.l.b16 %v1284
  %v1982 = vunpack.c.h.b16 %v1284
  %v1983 = vunpack.c.l.b16 %v1285
  %v1984 = vunpack.c.h.b16 %v1285
  %v1985 = vunpack.c.l.b16 %v1286
  %v1986 = vunpack.c.h.b16 %v1286
  %v1987 = vunpack.c.l.b16 %v1287
  %v1988 = vunpack.c.h.b16 %v1287
  %v1989 = vunpack.c.l.b16 %v1288
  %v1990 = vunpack.c.h.b16 %v1288
  %v1991 = vunpack.c.l.b16 %v1289
  %v1992 = vunpack.c.h.b16 %v1289
  %v1993 = vunpack.c.l.b16 %v1290
  %v1994 = vunpack.c.h.b16 %v1290
  %v1995 = vunpack.c.l.b16 %v1291
  %v1996 = vunpack.c.h.b16 %v1291
  %v1997 = vunpack.c.l.b16 %v1292
  %v1998 = vunpack.c.h.b16 %v1292
  %v1999 = vunpack.c.l.b16 %v1293
  %v2000 = vunpack.c.h.b16 %v1293
  %v2001 = vunpack.c.l.b16 %v1294
  %v2002 = vunpack.c.h.b16 %v1294
  %v2003 = vunpack.c.l.b16 %v1295
  %v2004 = vunpack.c.h.b16 %v1295
  %v2005 = vunpack.c.l.b16 %v1296
  %v2006 = vunpack.c.h.b16 %v1296
  %v2007 = vunpack.c.l.b16 %v1297
  %v2008 = vunpack.c.h.b16 %v1297
  %v2009 = vunpack.c.l.b16 %v1298
  %v2010 = vunpack.c.h.b16 %v1298
  %v2011 = vunpack.c.l.b16 %v1299
  %v2012 = vunpack.c.h.b16 %v1299
  %v2013 = vunpack.c.l.b16 %v1300
  %v2014 = vunpack.c.h.b16 %v1300
  %v2015 = vunpack.c.l.b16 %v1301
  %v2016 = vunpack.c.h.b16 %v1301
  %v2017 = vunpack.c.l.b16 %v1302
  %v2018 = vunpack.c.h.b16 %v1302
  %v2019 = vunpack.c.l.b16 %v1303
  %v2020 = vunpack.c.h.b16 %v1303
  %v2021 = vunpack.c.l.b16 %v1304
  %v2022 = vunpack.c.h.b16 %v1304
  %v2023 = vunpack.c.l.b16 %v1305
  %v2024 = vunpack.c.h.b16 %v1305
  %v2025 = vunpack.c.l.b16 %v1306
  %v2026 = vunpack.c.h.b16 %v1306
  %v2027 = vunpack.c.l.b16 %v1307
  %v2028 = vunpack.c.h.b16 %v1307
  %v2029 = vunpack.c.l.b16 %v1308
  %v2030 = vunpack.c.h.b16 %v1308
  %v2031 = vunpack.c.l.b16 %v1309
  %v2032 = vunpack.c.h.b16 %v1309
  %v2033 = vunpack.c.l.b16 %v1310
  %v2034 = vunpack.c.h.b16 %v1310
  %v2035 = vunpack.c.l.b16 %v1311
  %v2036 = vunpack.c.h.b16 %v1311
  %v2037 = vunpack.c.l.b16 %v1312
  %v2038 = vunpack.c.h.b16 %v1312
  %v2039 = vunpack.c.l.b16 %v1313
  %v2040 = vunpack.c.h.b16 %v1313
  %v2041 = vunpack.c.l.b16 %v1314
  %v2042 = vunpack.c.h.b16 %v1314
  %v2043 = vunpack.c.l.b16 %v1315
  %v2044 = vunpack.c.h.b16 %v1315
  %v2045 = vunpack.c.l.b16 %v1316
  %v2046 = vunpack.c.h.b16 %v1316
  %v2047 = vunpack.c.l.b16 %v1317
  %v2048 = vunpack.c.h.b16 %v1317
  %v2049 = vunpack.c.l.b16 %v1318
  %v2050 = vunpack.c.h.b16 %v1318
  %v2051 = vunpack.c.l.b16 %v1319
  %v2052 = vunpack.c.h.b16 %v1319
  %v2053 = vunpack.c.l.b16 %v1320
  %v2054 = vunpack.c.h.b16 %v1320
  %v2055 = vunpack.c.l.b16 %v1321
  %v2056 = vunpack.c.h.b16 %v1321
  %v2057 = vunpack.c.l.b16 %v1322
  %v2058 = vunpack.c.h.b16 %v1322
  %v2059 = vunpack.c.l.b16 %v1323
  %v2060 = vunpack.c.h.b16 %v1323
  %v2061 = vunpack.c.l.b16 %v1324
  %v2062 = vunpack.c.h.b16 %v1324
  %v2063 = vunpack.c.l.b16 %v1325
  %v2064 = vunpack.c.h.b16 %v1325
  %v2065 = vunpack.c.l.b16 %v1326
  %v2066 = vunpack.c.h.b16 %v1326
  %v2067 = vunpack.c.l.b16 %v1327
  %v2068 = vunpack.c.h.b16 %v1327
  %v2069 = vunpack.c.l.b16 %v1328
  %v2070 = vunpack.c.h.b16 %v1328
  %v2071 = vunpack.c.l.b16 %v1329
  %v2072 = vunpack.c.h.b16 %v1329
  %v2073 = vunpack.c.l.b16 %v1330
  %v2074 = vunpack.c.h.b16 %v1330
  %v2075 = vunpack.c.l.b16 %v1331
  %v2076 = vunpack.c.h.b16 %v1331
  %v2077 = vunpack.c.l.b16 %v1332
  %v2078 = vunpack.c.h.b16 %v1332
  %v2079 = vunpack.c.l.b16 %v1333
  %v2080 = vunpack.c.h.b16 %v1333
  %v2081 = vunpack.c.l.b16 %v1334
  %v2082 = vunpack.c.h.b16 %v1334
  %v2083 = vunpack.c.l.b16 %v1335
  %v2084 = vunpack.c.h.b16 %v1335
  %v2085 = vunpack.c.l.b16 %v1336
  %v2086 = vunpack.c.h.b16 %v1336
  %v2087 = vunpack.c.l.b16 %v1337
  %v2088 = vunpack.c.h.b16 %v1337
  %v2089 = vunpack.c.l.b16 %v1338
  %v2090 = vunpack.c.h.b16 %v1338
  %v2091 = vunpack.c.l.b16 %v1339
  %v2092 = vunpack.c.h.b16 %v1339
  %v2093 = vunpack.c.l.b16 %v1340
  %v2094 = vunpack.c.h.b16 %v1340
  %v2095 = vunpack.c.l.b16 %v1341
  %v2096 = vunpack.c.h.b16 %v1341
  %v2097 = vunpack.c.l.b16 %v1342
  %v2098 = vunpack.c.h.b16 %v1342
  %v2099 = vunpack.c.l.b16 %v1343
  %v2100 = vunpack.c.h.b16 %v1343
  %v2101 = vunpack.c.l.b16 %v1344
  %v2102 = vunpack.c.h.b16 %v1344
  %v2103 = vunpack.c.l.b16 %v1345
  %v2104 = vunpack.c.h.b16 %v1345
  %v2105 = vunpack.c.l.b16 %v1346
  %v2106 = vunpack.c.h.b16 %v1346
  %v2107 = vunpack.c.l.b16 %v1347
  %v2108 = vunpack.c.h.b16 %v1347
  %v2109 = vunpack.c.l.b16 %v1348
  %v2110 = vunpack.c.h.b16 %v1348
  %v2111 = vunpack.c.l.b16 %v1349
  %v2112 = vunpack.c.h.b16 %v1349
  %v2113 = vunpack.c.l.b16 %v1350
  %v2114 = vunpack.c.h.b16 %v1350
  %v2115 = vunpack.c.l.b16 %v1351
  %v2116 = vunpack.c.h.b16 %v1351
  %v2117 = vunpack.c.l.b16 %v1352
  %v2118 = vunpack.c.h.b16 %v1352
  %v2119 = vunpack.c.l.b16 %v1353
  %v2120 = vunpack.c.h.b16 %v1353
  %v2121 = vunpack.c.l.b16 %v1354
  %v2122 = vunpack.c.h.b16 %v1354
  %v2123 = vpack.c.b16 %v1619, %v1611
  %v2124 = vpack.c.b16 %v1620, %v1612
  %v2125 = vpack.c.b16 %v1621, %v1613
  %v2126 = vpack.c.b16 %v1622, %v1614
  %v2127 = vpack.c.b16 %v1623, %v1615
  %v2128 = vpack.c.b16 %v1624, %v1616
  %v2129 = vpack.c.b16 %v1625, %v1617
  %v2130 = vpack.c.b16 %v1626, %v1618
  %v2131 = vpack.c.b16 %v1635, %v1627
  %v2132 = vpack.c.b16 %v1636, %v1628
  %v2133 = vpack.c.b16 %v1637, %v1629
  %v2134 = vpack.c.b16 %v1638, %v1630
  %v2135 = vpack.c.b16 %v1639, %v1631
  %v2136 = vpack.c.b16 %v1640, %v1632
  %v2137 = vpack.c.b16 %v1641, %v1633
  %v2138 = vpack.c.b16 %v1642, %v1634
  %v2139 = vpack.c.b16 %v1651, %v1643
  %v2140 = vpack.c.b16 %v1652, %v1644
  %v2141 = vpack.c.b16 %v1653, %v1645
  %v2142 = vpack.c.b16 %v1654, %v1646
  %v2143 = vpack.c.b16 %v1655, %v1647
  %v2144 = vpack.c.b16 %v1656, %v1648
  %v2145 = vpack.c.b16 %v1657, %v1649
  %v2146 = vpack.c.b16 %v1658, %v1650
  %v2147 = vpack.c.b16 %v1667, %v1659
  %v2148 = vpack.c.b16 %v1668, %v1660
  %v2149 = vpack.c.b16 %v1669, %v1661
  %v2150 = vpack.c.b16 %v1670, %v1662
  %v2151 = vpack.c.b16 %v1671, %v1663
  %v2152 = vpack.c.b16 %v1672, %v1664
  %v2153 = vpack.c.b16 %v1673, %v1665
  %v2154 = vpack.c.b16 %v1674, %v1666
  %v2155 = vpack.c.b16 %v1683, %v1675
  %v2156 = vpack.c.b16 %v1684, %v1676
  %v2157 = vpack.c.b16 %v1685, %v1677
  %v2158 = vpack.c.b16 %v1686, %v1678
  %v2159 = vpack.c.b16 %v1687, %v1679
  %v2160 = vpack.c.b16 %v1688, %v1680
  %v2161 = vpack.c.b16 %v1689, %v1681
  %v2162 = vpack.c.b16 %v1690, %v1682
  %v2163 = vpack.c.b16 %v1699, %v1691
  %v2164 = vpack.c.b16 %v1700, %v1692
  %v2165 = vpack.c.b16 %v1701, %v1693
  %v2166 = vpack.c.b16 %v1702, %v1694
  %v2167 = vpack.c.b16 %v1703, %v1695
  %v2168 = vpack.c.b16 %v1704, %v1696
  %v2169 = vpack.c.b16 %v1705, %v1697
  %v2170 = vpack.c.b16 %v1706, %v1698
  %v2171 = vpack.c.b16 %v1715, %v1707
  %v2172 = vpack.c.b16 %v1716, %v1708
  %v2173 = vpack.c.b16 %v1717, %v1709
  %v2174 = vpack.c.b16 %v1718, %v1710
  %v2175 = vpack.c.b16 %v1719, %v1711
  %v2176 = vpack.c.b16 %v1720, %v1712
  %v2177 = vpack.c.b16 %v1721, %v1713
  %v2178 = vpack.c.b16 %v1722, %v1714
  %v2179 = vpack.c.b16 %v1731, %v1723
  %v2180 = vpack.c.b16 %v1732, %v1724
  %v2181 = vpack.c.b16 %v1733, %v1725
  %v2182 = vpack.c.b16 %v1734, %v1726
  %v2183 = vpack.c.b16 %v1735, %v1727
  %v2184 = vpack.c.b16 %v1736, %v1728
  %v2185 = vpack.c.b16 %v1737, %v1729
  %v2186 = vpack.c.b16 %v1738, %v1730
  %v2187 = vpack.c.b16 %v1747, %v1739
  %v2188 = vpack.c.b16 %v1748, %v1740
  %v2189 = vpack.c.b16 %v1749, %v1741
  %v2190 = vpack.c.b16 %v1750, %v1742
  %v2191 = vpack.c.b16 %v1751, %v1743
  %v2192 = vpack.c.b16 %v1752, %v1744
  %v2193 = vpack.c.b16 %v1753, %v1745
  %v2194 = vpack.c.b16 %v1754, %v1746
  %v2195 = vpack.c.b16 %v1763, %v1755
  %v2196 = vpack.c.b16 %v1764, %v1756
  %v2197 = vpack.c.b16 %v1765, %v1757
  %v2198 = vpack.c.b16 %v1766, %v1758
  %v2199 = vpack.c.b16 %v1767, %v1759
  %v2200 = vpack.c.b16 %v1768, %v1760
  %v2201 = vpack.c.b16 %v1769, %v1761
  %v2202 = vpack.c.b16 %v1770, %v1762
  %v2203 = vpack.c.b16 %v1779, %v1771
  %v2204 = vpack.c.b16 %v1780, %v1772
  %v2205 = vpack.c.b16 %v1781, %v1773
  %v2206 = vpack.c.b16 %v1782, %v1774
  %v2207 = vpack.c.b16 %v1783, %v1775
  %v2208 = vpack.c.b16 %v1784, %v1776
  %v2209 = vpack.c.b16 %v1785, %v1777
  %v2210 = vpack.c.b16 %v1786, %v1778
  %v2211 = vpack.c.b16 %v1795, %v1787
  %v2212 = vpack.c.b16 %v1796, %v1788
  %v2213 = vpack.c.b16 %v1797, %v1789
  %v2214 = vpack.c.b16 %v1798, %v1790
  %v2215 = vpack.c.b16 %v1799, %v1791
  %v2216 = vpack.c.b16 %v1800, %v1792
  %v2217 = vpack.c.b16 %v1801, %v1793
  %v2218 = vpack.c.b16 %v1802, %v1794
  %v2219 = vpack.c.b16 %v1811, %v1803
  %v2220 = vpack.c.b16 %v1812, %v1804
  %v2221 = vpack.c.b16 %v1813, %v1805
  %v2222 = vpack.c.b16 %v1814, %v1806
  %v2223 = vpack.c.b16 %v1815, %v1807
  %v2224 = vpack.c.b16 %v1816, %v1808
  %v2225 = vpack.c.b16 %v1817, %v1809
  %v2226 = vpack.c.b16 %v1818, %v1810
  %v2227 = vpack.c.b16 %v1827, %v1819
  %v2228 = vpack.c.b16 %v1828, %v1820
  %v2229 = vpack.c.b16 %v1829, %v1821
  %v2230 = vpack.c.b16 %v1830, %v1822
  %v2231 = vpack.c.b16 %v1831, %v1823
  %v2232 = vpack.c.b16 %v1832, %v1824
  %v2233 = vpack.c.b16 %v1833, %v1825
  %v2234 = vpack.c.b16 %v1834, %v1826
  %v2235 = vpack.c.b16 %v1843, %v1835
  %v2236 = vpack.c.b16 %v1844, %v1836
  %v2237 = vpack.c.b16 %v1845, %v1837
  %v2238 = vpack.c.b16 %v1846, %v1838
  %v2239 = vpack.c.b16 %v1847, %v1839
  %v2240 = vpack.c.b16 %v1848, %v1840
  %v2241 = vpack.c.b16 %v1849, %v1841
  %v2242 = vpack.c.b16 %v1850, %v1842
  %v2243 = vpack.c.b16 %v1859, %v1851
  %v2244 = vpack.c.b16 %v1860, %v1852
  %v2245 = vpack.c.b16 %v1861, %v1853
  %v2246 = vpack.c.b16 %v1862, %v1854
  %v2247 = vpack.c.b16 %v1863, %v1855
  %v2248 = vpack.c.b16 %v1864, %v1856
  %v2249 = vpack.c.b16 %v1865, %v1857
  %v2250 = vpack.c.b16 %v1866, %v1858
  %v2251 = vpack.c.b16 %v1875, %v1867
  %v2252 = vpack.c.b16 %v1876, %v1868
  %v2253 = vpack.c.b16 %v1877, %v1869
  %v2254 = vpack.c.b16 %v1878, %v1870
  %v2255 = vpack.c.b16 %v1879, %v1871
  %v2256 = vpack.c.b16 %v1880, %v1872
  %v2257 = vpack.c.b16 %v1881, %v1873
  %v2258 = vpack.c.b16 %v1882, %v1874
  %v2259 = vpack.c.b16 %v1891, %v1883
  %v2260 = vpack.c.b16 %v1892, %v1884
  %v2261 = vpack.c.b16 %v1893, %v1885
  %v2262 = vpack.c.b16 %v1894, %v1886
  %v2263 = vpack.c.b16 %v1895, %v1887
  %v2264 = vpack.c.b16 %v1896, %v1888
  %v2265 = vpack.c.b16 %v1897, %v1889
  %v2266 = vpack.c.b16 %v1898, %v1890
  %v2267 = vpack.c.b16 %v1907, %v1899
  %v2268 = vpack.c.b16 %v1908, %v1900
  %v2269 = vpack.c.b16 %v1909, %v1901
  %v2270 = vpack.c.b16 %v1910, %v1902
  %v2271 = vpack.c.b16 %v1911, %v1903
  %v2272 = vpack.c.b16 %v1912, %v1904
  %v2273 = vpack.c.b16 %v1913, %v1905
  %v2274 = vpack.c.b16 %v1914, %v1906
  %v2275 = vpack.c.b16 %v1923, %v1915
  %v2276 = vpack.c.b16 %v1924, %v1916
  %v2277 = vpack.c.b16 %v1925, %v1917
  %v2278 = vpack.c.b16 %v1926, %v1918
  %v2279 = vpack.c.b16 %v1927, %v1919
  %v2280 = vpack.c.b16 %v1928, %v1920
  %v2281 = vpack.c.b16 %v1929, %v1921
  %v2282 = vpack.c.b16 %v1930, %v1922
  %v2283 = vpack.c.b16 %v1939, %v1931
  %v2284 = vpack.c.b16 %v1940, %v1932
  %v2285 = vpack.c.b16 %v1941, %v1933
  %v2286 = vpack.c.b16 %v1942, %v1934
  %v2287 = vpack.c.b16 %v1943, %v1935
  %v2288 = vpack.c.b16 %v1944, %v1936
  %v2289 = vpack.c.b16 %v1945, %v1937
  %v2290 = vpack.c.b16 %v1946, %v1938
  %v2291 = vpack.c.b16 %v1955, %v1947
  %v2292 = vpack.c.b16 %v1956, %v1948
  %v2293 = vpack.c.b16 %v1957, %v1949
  %v2294 = vpack.c.b16 %v1958, %v1950
  %v2295 = vpack.c.b16 %v1959, %v1951
  %v2296 = vpack.c.b16 %v1960, %v1952
  %v2297 = vpack.c.b16 %v1961, %v1953
  %v2298 = vpack.c.b16 %v1962, %v1954
  %v2299 = vpack.c.b16 %v1971, %v1963
  %v2300 = vpack.c.b16 %v1972, %v1964
  %v2301 = vpack.c.b16 %v1973, %v1965
  %v2302 = vpack.c.b16 %v1974, %v1966
  %v2303 = vpack.c.b16 %v1975, %v1967
  %v2304 = vpack.c.b16 %v1976, %v1968
  %v2305 = vpack.c.b16 %v1977, %v1969
  %v2306 = vpack.c.b16 %v1978, %v1970
  %v2307 = vpack.c.b16 %v1987, %v1979
  %v2308 = vpack.c.b16 %v1988, %v1980
  %v2309 = vpack.c.b16 %v1989, %v1981
  %v2310 = vpack.c.b16 %v1990, %v1982
  %v2311 = vpack.c.b16 %v1991, %v1983
  %v2312 = vpack.c.b16 %v1992, %v1984
  %v2313 = vpack.c.b16 %v1993, %v1985
  %v2314 = vpack.c.b16 %v1994, %v1986
  %v2315 = vpack.c.b16 %v2003, %v1995
  %v2316 = vpack.c.b16 %v2004, %v1996
  %v2317 = vpack.c.b16 %v2005, %v1997
  %v2318 = vpack.c.b16 %v2006, %v1998
  %v2319 = vpack.c.b16 %v2007, %v1999
  %v2320 = vpack.c.b16 %v2008, %v2000
  %v2321 = vpack.c.b16 %v2009, %v2001
  %v2322 = vpack.c.b16 %v2010, %v2002
  %v2323 = vpack.c.b16 %v2019, %v2011
  %v2324 = vpack.c.b16 %v2020, %v2012
  %v2325 = vpack.c.b16 %v2021, %v2013
  %v2326 = vpack.c.b16 %v2022, %v2014
  %v2327 = vpack.c.b16 %v2023, %v2015
  %v2328 = vpack.c.b16 %v2024, %v2016
  %v2329 = vpack.c.b16 %v2025, %v2017
  %v2330 = vpack.c.b16 %v2026, %v2018
  %v2331 = vpack.c.b16 %v2035, %v2027
  %v2332 = vpack.c.b16 %v2036, %v2028
  %v2333 = vpack.c.b16 %v2037, %v2029
  %v2334 = vpack.c.b16 %v2038, %v2030
  %v2335 = vpack.c.b16 %v2039, %v2031
  %v2336 = vpack.c.b16 %v2040, %v2032
  %v2337 = vpack.c.b16 %v2041, %v2033
  %v2338 = vpack.c.b16 %v2042, %v2034
  %v2339 = vpack.c.b16 %v2051, %v2043
  %v2340 = vpack.c.b16 %v2052, %v2044
  %v2341 = vpack.c.b16 %v2053, %v2045
  %v2342 = vpack.c.b16 %v2054, %v2046
  %v2343 = vpack.c.b16 %v2055, %v2047
  %v2344 = vpack.c.b16 %v2056, %v2048
  %v2345 = vpack.c.b16 %v2057, %v2049
  %v2346 = vpack.c.b16 %v2058, %v2050
  %v2347 = vpack.c.b16 %v2067, %v2059
  %v2348 = vpack.c.b16 %v2068, %v2060
  %v2349 = vpack.c.b16 %v2069, %v2061
  %v2350 = vpack.c.b16 %v2070, %v2062
  %v2351 = vpack.c.b16 %v2071, %v2063
  %v2352 = vpack.c.b16 %v2072, %v2064
  %v2353 = vpack.c.b16 %v2073, %v2065
  %v2354 = vpack.c.b16 %v2074, %v2066
  %v2355 = vpack.c.b16 %v2083, %v2075
  %v2356 = vpack.c.b16 %v2084, %v2076
  %v2357 = vpack.c.b16 %v2085, %v2077
  %v2358 = vpack.c.b16 %v2086, %v2078
  %v2359 = vpack.c.b16 %v2087, %v2079
  %v2360 = vpack.c.b16 %v2088, %v2080
  %v2361 = vpack.c.b16 %v2089, %v2081
  %v2362 = vpack.c.b16 %v2090, %v2082
  %v2363 = vpack.c.b16 %v2099, %v2091
  %v2364 = vpack.c.b16 %v2100, %v2092
  %v2365 = vpack.c.b16 %v2101, %v2093
  %v2366 = vpack.c.b16 %v2102, %v2094
  %v2367 = vpack.c.b16 %v2103, %v2095
  %v2368 = vpack.c.b16 %v2104, %v2096
  %v2369 = vpack.c.b16 %v2105, %v2097
  %v2370 = vpack.c.b16 %v2106, %v2098
  %v2371 = vpack.c.b16 %v2115, %v2107
  %v2372 = vpack.c.b16 %v2116, %v2108
  %v2373 = vpack.c.b16 %v2117, %v2109
  %v2374 = vpack.c.b16 %v2118, %v2110
  %v2375 = vpack.c.b16 %v2119, %v2111
  %v2376 = vpack.c.b16 %v2120, %v2112
  %v2377 = vpack.c.b16 %v2121, %v2113
  %v2378 = vpack.c.b16 %v2122, %v2114
  %2635 = vmatpush.bf16.msra.mxu0 %v2179
  %2636 = vmatpush.bf16.msra.mxu0 %v2171
  %2637 = vmatpush.bf16.msra.mxu0 %v2163
  %2638 = vmatpush.bf16.msra.mxu0 %v2155
  %2639 = vmatpush.bf16.msra.mxu0 %v2147
  %2640 = vmatpush.bf16.msra.mxu0 %v2139
  %2641 = vmatpush.bf16.msra.mxu0 %v2131
  %2642 = vmatpush.bf16.msra.mxu0 %v2123
  %2643 = vmatmul.bf16.gmra.mxu0 %v1063
  %v2644 = vpop.f32.mrf.mxu0
  %v2645 = vadd.f32 0.0, %v2644
  %v2646 = vpop.f32.mrf.mxu0
  %v2647 = vadd.f32 0.0, %v2646
  %2648 = vmatmul.bf16.gmra.mxu0 %v1067
  %v2649 = vpop.f32.mrf.mxu0
  %v2650 = vadd.f32 0.0, %v2649
  %v2651 = vpop.f32.mrf.mxu0
  %v2652 = vadd.f32 0.0, %v2651
  %2653 = vmatmul.bf16.gmra.mxu0 %v1071
  %v2654 = vpop.f32.mrf.mxu0
  %v2655 = vadd.f32 0.0, %v2654
  %v2656 = vpop.f32.mrf.mxu0
  %v2657 = vadd.f32 0.0, %v2656
  %2658 = vmatmul.bf16.gmra.mxu0 %v1075
  %v2659 = vpop.f32.mrf.mxu0
  %v2660 = vadd.f32 0.0, %v2659
  %v2661 = vpop.f32.mrf.mxu0
  %v2662 = vadd.f32 0.0, %v2661
  %2663 = vmatmul.bf16.gmra.mxu0 %v1079
  %v2664 = vpop.f32.mrf.mxu0
  %v2665 = vadd.f32 0.0, %v2664
  %v2666 = vpop.f32.mrf.mxu0
  %v2667 = vadd.f32 0.0, %v2666
  %2668 = vmatmul.bf16.gmra.mxu0 %v1083
  %v2669 = vpop.f32.mrf.mxu0
  %v2670 = vadd.f32 0.0, %v2669
  %v2671 = vpop.f32.mrf.mxu0
  %v2672 = vadd.f32 0.0, %v2671
  %2673 = vmatmul.bf16.gmra.mxu0 %v1087
  %v2674 = vpop.f32.mrf.mxu0
  %v2675 = vadd.f32 0.0, %v2674
  %v2676 = vpop.f32.mrf.mxu0
  %v2677 = vadd.f32 0.0, %v2676
  %2678 = vmatmul.bf16.gmra.mxu0 %v1091
  %v2679 = vpop.f32.mrf.mxu0
  %v2680 = vadd.f32 0.0, %v2679
  %v2681 = vpop.f32.mrf.mxu0
  %v2682 = vadd.f32 0.0, %v2681
  %2683 = vdwg.mxu0
  %2684 = vmatpush.bf16.msra.mxu0 %v2243
  %2685 = vmatpush.bf16.msra.mxu0 %v2235
  %2686 = vmatpush.bf16.msra.mxu0 %v2227
  %2687 = vmatpush.bf16.msra.mxu0 %v2219
  %2688 = vmatpush.bf16.msra.mxu0 %v2211
  %2689 = vmatpush.bf16.msra.mxu0 %v2203
  %2690 = vmatpush.bf16.msra.mxu0 %v2195
  %2691 = vmatpush.bf16.msra.mxu0 %v2187
  %2692 = vmatmul.bf16.gmra.mxu0 %v1064
  %v2693 = vpop.f32.mrf.mxu0
  %v2694 = vadd.f32 %v2645, %v2693
  %v2695 = vpop.f32.mrf.mxu0
  %v2696 = vadd.f32 %v2647, %v2695
  %2697 = vmatmul.bf16.gmra.mxu0 %v1068
  %v2698 = vpop.f32.mrf.mxu0
  %v2699 = vadd.f32 %v2650, %v2698
  %v2700 = vpop.f32.mrf.mxu0
  %v2701 = vadd.f32 %v2652, %v2700
  %2702 = vmatmul.bf16.gmra.mxu0 %v1072
  %v2703 = vpop.f32.mrf.mxu0
  %v2704 = vadd.f32 %v2655, %v2703
  %v2705 = vpop.f32.mrf.mxu0
  %v2706 = vadd.f32 %v2657, %v2705
  %2707 = vmatmul.bf16.gmra.mxu0 %v1076
  %v2708 = vpop.f32.mrf.mxu0
  %v2709 = vadd.f32 %v2660, %v2708
  %v2710 = vpop.f32.mrf.mxu0
  %v2711 = vadd.f32 %v2662, %v2710
  %2712 = vmatmul.bf16.gmra.mxu0 %v1080
  %v2713 = vpop.f32.mrf.mxu0
  %v2714 = vadd.f32 %v2665, %v2713
  %v2715 = vpop.f32.mrf.mxu0
  %v2716 = vadd.f32 %v2667, %v2715
  %2717 = vmatmul.bf16.gmra.mxu0 %v1084
  %v2718 = vpop.f32.mrf.mxu0
  %v2719 = vadd.f32 %v2670, %v2718
  %v2720 = vpop.f32.mrf.mxu0
  %v2721 = vadd.f32 %v2672, %v2720
  %2722 = vmatmul.bf16.gmra.mxu0 %v1088
  %v2723 = vpop.f32.mrf.mxu0
  %v2724 = vadd.f32 %v2675, %v2723
  %v2725 = vpop.f32.mrf.mxu0
  %v2726 = vadd.f32 %v2677, %v2725
  %2727 = vmatmul.bf16.gmra.mxu0 %v1092
  %v2728 = vpop.f32.mrf.mxu0
  %v2729 = vadd.f32 %v2680, %v2728
  %v2730 = vpop.f32.mrf.mxu0
  %v2731 = vadd.f32 %v2682, %v2730
  %2732 = vdwg.mxu0
  %2733 = vmatpush.bf16.msra.mxu0 %v2307
  %2734 = vmatpush.bf16.msra.mxu0 %v2299
  %2735 = vmatpush.bf16.msra.mxu0 %v2291
  %2736 = vmatpush.bf16.msra.mxu0 %v2283
  %2737 = vmatpush.bf16.msra.mxu0 %v2275
  %2738 = vmatpush.bf16.msra.mxu0 %v2267
  %2739 = vmatpush.bf16.msra.mxu0 %v2259
  %2740 = vmatpush.bf16.msra.mxu0 %v2251
  %2741 = vmatmul.bf16.gmra.mxu0 %v1065
  %v2742 = vpop.f32.mrf.mxu0
  %v2743 = vadd.f32 %v2694, %v2742
  %v2744 = vpop.f32.mrf.mxu0
  %v2745 = vadd.f32 %v2696, %v2744
  %2746 = vmatmul.bf16.gmra.mxu0 %v1069
  %v2747 = vpop.f32.mrf.mxu0
  %v2748 = vadd.f32 %v2699, %v2747
  %v2749 = vpop.f32.mrf.mxu0
  %v2750 = vadd.f32 %v2701, %v2749
  %2751 = vmatmul.bf16.gmra.mxu0 %v1073
  %v2752 = vpop.f32.mrf.mxu0
  %v2753 = vadd.f32 %v2704, %v2752
  %v2754 = vpop.f32.mrf.mxu0
  %v2755 = vadd.f32 %v2706, %v2754
  %2756 = vmatmul.bf16.gmra.mxu0 %v1077
  %v2757 = vpop.f32.mrf.mxu0
  %v2758 = vadd.f32 %v2709, %v2757
  %v2759 = vpop.f32.mrf.mxu0
  %v2760 = vadd.f32 %v2711, %v2759
  %2761 = vmatmul.bf16.gmra.mxu0 %v1081
  %v2762 = vpop.f32.mrf.mxu0
  %v2763 = vadd.f32 %v2714, %v2762
  %v2764 = vpop.f32.mrf.mxu0
  %v2765 = vadd.f32 %v2716, %v2764
  %2766 = vmatmul.bf16.gmra.mxu0 %v1085
  %v2767 = vpop.f32.mrf.mxu0
  %v2768 = vadd.f32 %v2719, %v2767
  %v2769 = vpop.f32.mrf.mxu0
  %v2770 = vadd.f32 %v2721, %v2769
  %2771 = vmatmul.bf16.gmra.mxu0 %v1089
  %v2772 = vpop.f32.mrf.mxu0
  %v2773 = vadd.f32 %v2724, %v2772
  %v2774 = vpop.f32.mrf.mxu0
  %v2775 = vadd.f32 %v2726, %v2774
  %2776 = vmatmul.bf16.gmra.mxu0 %v1093
  %v2777 = vpop.f32.mrf.mxu0
  %v2778 = vadd.f32 %v2729, %v2777
  %v2779 = vpop.f32.mrf.mxu0
  %v2780 = vadd.f32 %v2731, %v2779
  %2781 = vdwg.mxu0
  %2782 = vmatpush.bf16.msra.mxu0 %v2371
  %2783 = vmatpush.bf16.msra.mxu0 %v2363
  %2784 = vmatpush.bf16.msra.mxu0 %v2355
  %2785 = vmatpush.bf16.msra.mxu0 %v2347
  %2786 = vmatpush.bf16.msra.mxu0 %v2339
  %2787 = vmatpush.bf16.msra.mxu0 %v2331
  %2788 = vmatpush.bf16.msra.mxu0 %v2323
  %2789 = vmatpush.bf16.msra.mxu0 %v2315
  %2790 = vmatmul.bf16.gmra.mxu0 %v1066
  %v2791 = vpop.f32.mrf.mxu0
  %v2792 = vadd.f32 %v2743, %v2791
  %v2793 = vpop.f32.mrf.mxu0
  %v2794 = vadd.f32 %v2745, %v2793
  %2795 = vmatmul.bf16.gmra.mxu0 %v1070
  %v2796 = vpop.f32.mrf.mxu0
  %v2797 = vadd.f32 %v2748, %v2796
  %v2798 = vpop.f32.mrf.mxu0
  %v2799 = vadd.f32 %v2750, %v2798
  %2800 = vmatmul.bf16.gmra.mxu0 %v1074
  %v2801 = vpop.f32.mrf.mxu0
  %v2802 = vadd.f32 %v2753, %v2801
  %v2803 = vpop.f32.mrf.mxu0
  %v2804 = vadd.f32 %v2755, %v2803
  %2805 = vmatmul.bf16.gmra.mxu0 %v1078
  %v2806 = vpop.f32.mrf.mxu0
  %v2807 = vadd.f32 %v2758, %v2806
  %v2808 = vpop.f32.mrf.mxu0
  %v2809 = vadd.f32 %v2760, %v2808
  %2810 = vmatmul.bf16.gmra.mxu0 %v1082
  %v2811 = vpop.f32.mrf.mxu0
  %v2812 = vadd.f32 %v2763, %v2811
  %v2813 = vpop.f32.mrf.mxu0
  %v2814 = vadd.f32 %v2765, %v2813
  %2815 = vmatmul.bf16.gmra.mxu0 %v1086
  %v2816 = vpop.f32.mrf.mxu0
  %v2817 = vadd.f32 %v2768, %v2816
  %v2818 = vpop.f32.mrf.mxu0
  %v2819 = vadd.f32 %v2770, %v2818
  %2820 = vmatmul.bf16.gmra.mxu0 %v1090
  %v2821 = vpop.f32.mrf.mxu0
  %v2822 = vadd.f32 %v2773, %v2821
  %v2823 = vpop.f32.mrf.mxu0
  %v2824 = vadd.f32 %v2775, %v2823
  %2825 = vmatmul.bf16.gmra.mxu0 %v1094
  %v2826 = vpop.f32.mrf.mxu0
  %v2827 = vadd.f32 %v2778, %v2826
  %v2828 = vpop.f32.mrf.mxu0
  %v2829 = vadd.f32 %v2780, %v2828
  %2830 = vdwg.mxu0
  %2831 = vmatpush.bf16.msra.mxu0 %v2180
  %2832 = vmatpush.bf16.msra.mxu0 %v2172
  %2833 = vmatpush.bf16.msra.mxu0 %v2164
  %2834 = vmatpush.bf16.msra.mxu0 %v2156
  %2835 = vmatpush.bf16.msra.mxu0 %v2148
  %2836 = vmatpush.bf16.msra.mxu0 %v2140
  %2837 = vmatpush.bf16.msra.mxu0 %v2132
  %2838 = vmatpush.bf16.msra.mxu0 %v2124
  %2839 = vmatmul.bf16.gmra.mxu0 %v1063
  %v2840 = vpop.f32.mrf.mxu0
  %v2841 = vadd.f32 0.0, %v2840
  %v2842 = vpop.f32.mrf.mxu0
  %v2843 = vadd.f32 0.0, %v2842
  %2844 = vmatmul.bf16.gmra.mxu0 %v1067
  %v2845 = vpop.f32.mrf.mxu0
  %v2846 = vadd.f32 0.0, %v2845
  %v2847 = vpop.f32.mrf.mxu0
  %v2848 = vadd.f32 0.0, %v2847
  %2849 = vmatmul.bf16.gmra.mxu0 %v1071
  %v2850 = vpop.f32.mrf.mxu0
  %v2851 = vadd.f32 0.0, %v2850
  %v2852 = vpop.f32.mrf.mxu0
  %v2853 = vadd.f32 0.0, %v2852
  %2854 = vmatmul.bf16.gmra.mxu0 %v1075
  %v2855 = vpop.f32.mrf.mxu0
  %v2856 = vadd.f32 0.0, %v2855
  %v2857 = vpop.f32.mrf.mxu0
  %v2858 = vadd.f32 0.0, %v2857
  %2859 = vmatmul.bf16.gmra.mxu0 %v1079
  %v2860 = vpop.f32.mrf.mxu0
  %v2861 = vadd.f32 0.0, %v2860
  %v2862 = vpop.f32.mrf.mxu0
  %v2863 = vadd.f32 0.0, %v2862
  %2864 = vmatmul.bf16.gmra.mxu0 %v1083
  %v2865 = vpop.f32.mrf.mxu0
  %v2866 = vadd.f32 0.0, %v2865
  %v2867 = vpop.f32.mrf.mxu0
  %v2868 = vadd.f32 0.0, %v2867
  %2869 = vmatmul.bf16.gmra.mxu0 %v1087
  %v2870 = vpop.f32.mrf.mxu0
  %v2871 = vadd.f32 0.0, %v2870
  %v2872 = vpop.f32.mrf.mxu0
  %v2873 = vadd.f32 0.0, %v2872
  %2874 = vmatmul.bf16.gmra.mxu0 %v1091
  %v2875 = vpop.f32.mrf.mxu0
  %v2876 = vadd.f32 0.0, %v2875
  %v2877 = vpop.f32.mrf.mxu0
  %v2878 = vadd.f32 0.0, %v2877
  %2879 = vdwg.mxu0
  %2880 = vmatpush.bf16.msra.mxu0 %v2244
  %2881 = vmatpush.bf16.msra.mxu0 %v2236
  %2882 = vmatpush.bf16.msra.mxu0 %v2228
  %2883 = vmatpush.bf16.msra.mxu0 %v2220
  %2884 = vmatpush.bf16.msra.mxu0 %v2212
  %2885 = vmatpush.bf16.msra.mxu0 %v2204
  %2886 = vmatpush.bf16.msra.mxu0 %v2196
  %2887 = vmatpush.bf16.msra.mxu0 %v2188
  %2888 = vmatmul.bf16.gmra.mxu0 %v1064
  %v2889 = vpop.f32.mrf.mxu0
  %v2890 = vadd.f32 %v2841, %v2889
  %v2891 = vpop.f32.mrf.mxu0
  %v2892 = vadd.f32 %v2843, %v2891
  %2893 = vmatmul.bf16.gmra.mxu0 %v1068
  %v2894 = vpop.f32.mrf.mxu0
  %v2895 = vadd.f32 %v2846, %v2894
  %v2896 = vpop.f32.mrf.mxu0
  %v2897 = vadd.f32 %v2848, %v2896
  %2898 = vmatmul.bf16.gmra.mxu0 %v1072
  %v2899 = vpop.f32.mrf.mxu0
  %v2900 = vadd.f32 %v2851, %v2899
  %v2901 = vpop.f32.mrf.mxu0
  %v2902 = vadd.f32 %v2853, %v2901
  %2903 = vmatmul.bf16.gmra.mxu0 %v1076
  %v2904 = vpop.f32.mrf.mxu0
  %v2905 = vadd.f32 %v2856, %v2904
  %v2906 = vpop.f32.mrf.mxu0
  %v2907 = vadd.f32 %v2858, %v2906
  %2908 = vmatmul.bf16.gmra.mxu0 %v1080
  %v2909 = vpop.f32.mrf.mxu0
  %v2910 = vadd.f32 %v2861, %v2909
  %v2911 = vpop.f32.mrf.mxu0
  %v2912 = vadd.f32 %v2863, %v2911
  %2913 = vmatmul.bf16.gmra.mxu0 %v1084
  %v2914 = vpop.f32.mrf.mxu0
  %v2915 = vadd.f32 %v2866, %v2914
  %v2916 = vpop.f32.mrf.mxu0
  %v2917 = vadd.f32 %v2868, %v2916
  %2918 = vmatmul.bf16.gmra.mxu0 %v1088
  %v2919 = vpop.f32.mrf.mxu0
  %v2920 = vadd.f32 %v2871, %v2919
  %v2921 = vpop.f32.mrf.mxu0
  %v2922 = vadd.f32 %v2873, %v2921
  %2923 = vmatmul.bf16.gmra.mxu0 %v1092
  %v2924 = vpop.f32.mrf.mxu0
  %v2925 = vadd.f32 %v2876, %v2924
  %v2926 = vpop.f32.mrf.mxu0
  %v2927 = vadd.f32 %v2878, %v2926
  %2928 = vdwg.mxu0
  %2929 = vmatpush.bf16.msra.mxu0 %v2308
  %2930 = vmatpush.bf16.msra.mxu0 %v2300
  %2931 = vmatpush.bf16.msra.mxu0 %v2292
  %2932 = vmatpush.bf16.msra.mxu0 %v2284
  %2933 = vmatpush.bf16.msra.mxu0 %v2276
  %2934 = vmatpush.bf16.msra.mxu0 %v2268
  %2935 = vmatpush.bf16.msra.mxu0 %v2260
  %2936 = vmatpush.bf16.msra.mxu0 %v2252
  %2937 = vmatmul.bf16.gmra.mxu0 %v1065
  %v2938 = vpop.f32.mrf.mxu0
  %v2939 = vadd.f32 %v2890, %v2938
  %v2940 = vpop.f32.mrf.mxu0
  %v2941 = vadd.f32 %v2892, %v2940
  %2942 = vmatmul.bf16.gmra.mxu0 %v1069
  %v2943 = vpop.f32.mrf.mxu0
  %v2944 = vadd.f32 %v2895, %v2943
  %v2945 = vpop.f32.mrf.mxu0
  %v2946 = vadd.f32 %v2897, %v2945
  %2947 = vmatmul.bf16.gmra.mxu0 %v1073
  %v2948 = vpop.f32.mrf.mxu0
  %v2949 = vadd.f32 %v2900, %v2948
  %v2950 = vpop.f32.mrf.mxu0
  %v2951 = vadd.f32 %v2902, %v2950
  %2952 = vmatmul.bf16.gmra.mxu0 %v1077
  %v2953 = vpop.f32.mrf.mxu0
  %v2954 = vadd.f32 %v2905, %v2953
  %v2955 = vpop.f32.mrf.mxu0
  %v2956 = vadd.f32 %v2907, %v2955
  %2957 = vmatmul.bf16.gmra.mxu0 %v1081
  %v2958 = vpop.f32.mrf.mxu0
  %v2959 = vadd.f32 %v2910, %v2958
  %v2960 = vpop.f32.mrf.mxu0
  %v2961 = vadd.f32 %v2912, %v2960
  %2962 = vmatmul.bf16.gmra.mxu0 %v1085
  %v2963 = vpop.f32.mrf.mxu0
  %v2964 = vadd.f32 %v2915, %v2963
  %v2965 = vpop.f32.mrf.mxu0
  %v2966 = vadd.f32 %v2917, %v2965
  %2967 = vmatmul.bf16.gmra.mxu0 %v1089
  %v2968 = vpop.f32.mrf.mxu0
  %v2969 = vadd.f32 %v2920, %v2968
  %v2970 = vpop.f32.mrf.mxu0
  %v2971 = vadd.f32 %v2922, %v2970
  %2972 = vmatmul.bf16.gmra.mxu0 %v1093
  %v2973 = vpop.f32.mrf.mxu0
  %v2974 = vadd.f32 %v2925, %v2973
  %v2975 = vpop.f32.mrf.mxu0
  %v2976 = vadd.f32 %v2927, %v2975
  %2977 = vdwg.mxu0
  %2978 = vmatpush.bf16.msra.mxu0 %v2372
  %2979 = vmatpush.bf16.msra.mxu0 %v2364
  %2980 = vmatpush.bf16.msra.mxu0 %v2356
  %2981 = vmatpush.bf16.msra.mxu0 %v2348
  %2982 = vmatpush.bf16.msra.mxu0 %v2340
  %2983 = vmatpush.bf16.msra.mxu0 %v2332
  %2984 = vmatpush.bf16.msra.mxu0 %v2324
  %2985 = vmatpush.bf16.msra.mxu0 %v2316
  %2986 = vmatmul.bf16.gmra.mxu0 %v1066
  %v2987 = vpop.f32.mrf.mxu0
  %v2988 = vadd.f32 %v2939, %v2987
  %v2989 = vpop.f32.mrf.mxu0
  %v2990 = vadd.f32 %v2941, %v2989
  %2991 = vmatmul.bf16.gmra.mxu0 %v1070
  %v2992 = vpop.f32.mrf.mxu0
  %v2993 = vadd.f32 %v2944, %v2992
  %v2994 = vpop.f32.mrf.mxu0
  %v2995 = vadd.f32 %v2946, %v2994
  %2996 = vmatmul.bf16.gmra.mxu0 %v1074
  %v2997 = vpop.f32.mrf.mxu0
  %v2998 = vadd.f32 %v2949, %v2997
  %v2999 = vpop.f32.mrf.mxu0
  %v3000 = vadd.f32 %v2951, %v2999
  %3001 = vmatmul.bf16.gmra.mxu0 %v1078
  %v3002 = vpop.f32.mrf.mxu0
  %v3003 = vadd.f32 %v2954, %v3002
  %v3004 = vpop.f32.mrf.mxu0
  %v3005 = vadd.f32 %v2956, %v3004
  %3006 = vmatmul.bf16.gmra.mxu0 %v1082
  %v3007 = vpop.f32.mrf.mxu0
  %v3008 = vadd.f32 %v2959, %v3007
  %v3009 = vpop.f32.mrf.mxu0
  %v3010 = vadd.f32 %v2961, %v3009
  %3011 = vmatmul.bf16.gmra.mxu0 %v1086
  %v3012 = vpop.f32.mrf.mxu0
  %v3013 = vadd.f32 %v2964, %v3012
  %v3014 = vpop.f32.mrf.mxu0
  %v3015 = vadd.f32 %v2966, %v3014
  %3016 = vmatmul.bf16.gmra.mxu0 %v1090
  %v3017 = vpop.f32.mrf.mxu0
  %v3018 = vadd.f32 %v2969, %v3017
  %v3019 = vpop.f32.mrf.mxu0
  %v3020 = vadd.f32 %v2971, %v3019
  %3021 = vmatmul.bf16.gmra.mxu0 %v1094
  %v3022 = vpop.f32.mrf.mxu0
  %v3023 = vadd.f32 %v2974, %v3022
  %v3024 = vpop.f32.mrf.mxu0
  %v3025 = vadd.f32 %v2976, %v3024
  %3026 = vdwg.mxu0
  %3027 = vmatpush.bf16.msra.mxu0 %v2181
  %3028 = vmatpush.bf16.msra.mxu0 %v2173
  %3029 = vmatpush.bf16.msra.mxu0 %v2165
  %3030 = vmatpush.bf16.msra.mxu0 %v2157
  %3031 = vmatpush.bf16.msra.mxu0 %v2149
  %3032 = vmatpush.bf16.msra.mxu0 %v2141
  %3033 = vmatpush.bf16.msra.mxu0 %v2133
  %3034 = vmatpush.bf16.msra.mxu0 %v2125
  %3035 = vmatmul.bf16.gmra.mxu0 %v1063
  %v3036 = vpop.f32.mrf.mxu0
  %v3037 = vadd.f32 0.0, %v3036
  %v3038 = vpop.f32.mrf.mxu0
  %v3039 = vadd.f32 0.0, %v3038
  %3040 = vmatmul.bf16.gmra.mxu0 %v1067
  %v3041 = vpop.f32.mrf.mxu0
  %v3042 = vadd.f32 0.0, %v3041
  %v3043 = vpop.f32.mrf.mxu0
  %v3044 = vadd.f32 0.0, %v3043
  %3045 = vmatmul.bf16.gmra.mxu0 %v1071
  %v3046 = vpop.f32.mrf.mxu0
  %v3047 = vadd.f32 0.0, %v3046
  %v3048 = vpop.f32.mrf.mxu0
  %v3049 = vadd.f32 0.0, %v3048
  %3050 = vmatmul.bf16.gmra.mxu0 %v1075
  %v3051 = vpop.f32.mrf.mxu0
  %v3052 = vadd.f32 0.0, %v3051
  %v3053 = vpop.f32.mrf.mxu0
  %v3054 = vadd.f32 0.0, %v3053
  %3055 = vmatmul.bf16.gmra.mxu0 %v1079
  %v3056 = vpop.f32.mrf.mxu0
  %v3057 = vadd.f32 0.0, %v3056
  %v3058 = vpop.f32.mrf.mxu0
  %v3059 = vadd.f32 0.0, %v3058
  %3060 = vmatmul.bf16.gmra.mxu0 %v1083
  %v3061 = vpop.f32.mrf.mxu0
  %v3062 = vadd.f32 0.0, %v3061
  %v3063 = vpop.f32.mrf.mxu0
  %v3064 = vadd.f32 0.0, %v3063
  %3065 = vmatmul.bf16.gmra.mxu0 %v1087
  %v3066 = vpop.f32.mrf.mxu0
  %v3067 = vadd.f32 0.0, %v3066
  %v3068 = vpop.f32.mrf.mxu0
  %v3069 = vadd.f32 0.0, %v3068
  %3070 = vmatmul.bf16.gmra.mxu0 %v1091
  %v3071 = vpop.f32.mrf.mxu0
  %v3072 = vadd.f32 0.0, %v3071
  %v3073 = vpop.f32.mrf.mxu0
  %v3074 = vadd.f32 0.0, %v3073
  %3075 = vdwg.mxu0
  %3076 = vmatpush.bf16.msra.mxu0 %v2245
  %3077 = vmatpush.bf16.msra.mxu0 %v2237
  %3078 = vmatpush.bf16.msra.mxu0 %v2229
  %3079 = vmatpush.bf16.msra.mxu0 %v2221
  %3080 = vmatpush.bf16.msra.mxu0 %v2213
  %3081 = vmatpush.bf16.msra.mxu0 %v2205
  %3082 = vmatpush.bf16.msra.mxu0 %v2197
  %3083 = vmatpush.bf16.msra.mxu0 %v2189
  %3084 = vmatmul.bf16.gmra.mxu0 %v1064
  %v3085 = vpop.f32.mrf.mxu0
  %v3086 = vadd.f32 %v3037, %v3085
  %v3087 = vpop.f32.mrf.mxu0
  %v3088 = vadd.f32 %v3039, %v3087
  %3089 = vmatmul.bf16.gmra.mxu0 %v1068
  %v3090 = vpop.f32.mrf.mxu0
  %v3091 = vadd.f32 %v3042, %v3090
  %v3092 = vpop.f32.mrf.mxu0
  %v3093 = vadd.f32 %v3044, %v3092
  %3094 = vmatmul.bf16.gmra.mxu0 %v1072
  %v3095 = vpop.f32.mrf.mxu0
  %v3096 = vadd.f32 %v3047, %v3095
  %v3097 = vpop.f32.mrf.mxu0
  %v3098 = vadd.f32 %v3049, %v3097
  %3099 = vmatmul.bf16.gmra.mxu0 %v1076
  %v3100 = vpop.f32.mrf.mxu0
  %v3101 = vadd.f32 %v3052, %v3100
  %v3102 = vpop.f32.mrf.mxu0
  %v3103 = vadd.f32 %v3054, %v3102
  %3104 = vmatmul.bf16.gmra.mxu0 %v1080
  %v3105 = vpop.f32.mrf.mxu0
  %v3106 = vadd.f32 %v3057, %v3105
  %v3107 = vpop.f32.mrf.mxu0
  %v3108 = vadd.f32 %v3059, %v3107
  %3109 = vmatmul.bf16.gmra.mxu0 %v1084
  %v3110 = vpop.f32.mrf.mxu0
  %v3111 = vadd.f32 %v3062, %v3110
  %v3112 = vpop.f32.mrf.mxu0
  %v3113 = vadd.f32 %v3064, %v3112
  %3114 = vmatmul.bf16.gmra.mxu0 %v1088
  %v3115 = vpop.f32.mrf.mxu0
  %v3116 = vadd.f32 %v3067, %v3115
  %v3117 = vpop.f32.mrf.mxu0
  %v3118 = vadd.f32 %v3069, %v3117
  %3119 = vmatmul.bf16.gmra.mxu0 %v1092
  %v3120 = vpop.f32.mrf.mxu0
  %v3121 = vadd.f32 %v3072, %v3120
  %v3122 = vpop.f32.mrf.mxu0
  %v3123 = vadd.f32 %v3074, %v3122
  %3124 = vdwg.mxu0
  %3125 = vmatpush.bf16.msra.mxu0 %v2309
  %3126 = vmatpush.bf16.msra.mxu0 %v2301
  %3127 = vmatpush.bf16.msra.mxu0 %v2293
  %3128 = vmatpush.bf16.msra.mxu0 %v2285
  %3129 = vmatpush.bf16.msra.mxu0 %v2277
  %3130 = vmatpush.bf16.msra.mxu0 %v2269
  %3131 = vmatpush.bf16.msra.mxu0 %v2261
  %3132 = vmatpush.bf16.msra.mxu0 %v2253
  %3133 = vmatmul.bf16.gmra.mxu0 %v1065
  %v3134 = vpop.f32.mrf.mxu0
  %v3135 = vadd.f32 %v3086, %v3134
  %v3136 = vpop.f32.mrf.mxu0
  %v3137 = vadd.f32 %v3088, %v3136
  %3138 = vmatmul.bf16.gmra.mxu0 %v1069
  %v3139 = vpop.f32.mrf.mxu0
  %v3140 = vadd.f32 %v3091, %v3139
  %v3141 = vpop.f32.mrf.mxu0
  %v3142 = vadd.f32 %v3093, %v3141
  %3143 = vmatmul.bf16.gmra.mxu0 %v1073
  %v3144 = vpop.f32.mrf.mxu0
  %v3145 = vadd.f32 %v3096, %v3144
  %v3146 = vpop.f32.mrf.mxu0
  %v3147 = vadd.f32 %v3098, %v3146
  %3148 = vmatmul.bf16.gmra.mxu0 %v1077
  %v3149 = vpop.f32.mrf.mxu0
  %v3150 = vadd.f32 %v3101, %v3149
  %v3151 = vpop.f32.mrf.mxu0
  %v3152 = vadd.f32 %v3103, %v3151
  %3153 = vmatmul.bf16.gmra.mxu0 %v1081
  %v3154 = vpop.f32.mrf.mxu0
  %v3155 = vadd.f32 %v3106, %v3154
  %v3156 = vpop.f32.mrf.mxu0
  %v3157 = vadd.f32 %v3108, %v3156
  %3158 = vmatmul.bf16.gmra.mxu0 %v1085
  %v3159 = vpop.f32.mrf.mxu0
  %v3160 = vadd.f32 %v3111, %v3159
  %v3161 = vpop.f32.mrf.mxu0
  %v3162 = vadd.f32 %v3113, %v3161
  %3163 = vmatmul.bf16.gmra.mxu0 %v1089
  %v3164 = vpop.f32.mrf.mxu0
  %v3165 = vadd.f32 %v3116, %v3164
  %v3166 = vpop.f32.mrf.mxu0
  %v3167 = vadd.f32 %v3118, %v3166
  %3168 = vmatmul.bf16.gmra.mxu0 %v1093
  %v3169 = vpop.f32.mrf.mxu0
  %v3170 = vadd.f32 %v3121, %v3169
  %v3171 = vpop.f32.mrf.mxu0
  %v3172 = vadd.f32 %v3123, %v3171
  %3173 = vdwg.mxu0
  %3174 = vmatpush.bf16.msra.mxu0 %v2373
  %3175 = vmatpush.bf16.msra.mxu0 %v2365
  %3176 = vmatpush.bf16.msra.mxu0 %v2357
  %3177 = vmatpush.bf16.msra.mxu0 %v2349
  %3178 = vmatpush.bf16.msra.mxu0 %v2341
  %3179 = vmatpush.bf16.msra.mxu0 %v2333
  %3180 = vmatpush.bf16.msra.mxu0 %v2325
  %3181 = vmatpush.bf16.msra.mxu0 %v2317
  %3182 = vmatmul.bf16.gmra.mxu0 %v1066
  %v3183 = vpop.f32.mrf.mxu0
  %v3184 = vadd.f32 %v3135, %v3183
  %v3185 = vpop.f32.mrf.mxu0
  %v3186 = vadd.f32 %v3137, %v3185
  %3187 = vmatmul.bf16.gmra.mxu0 %v1070
  %v3188 = vpop.f32.mrf.mxu0
  %v3189 = vadd.f32 %v3140, %v3188
  %v3190 = vpop.f32.mrf.mxu0
  %v3191 = vadd.f32 %v3142, %v3190
  %3192 = vmatmul.bf16.gmra.mxu0 %v1074
  %v3193 = vpop.f32.mrf.mxu0
  %v3194 = vadd.f32 %v3145, %v3193
  %v3195 = vpop.f32.mrf.mxu0
  %v3196 = vadd.f32 %v3147, %v3195
  %3197 = vmatmul.bf16.gmra.mxu0 %v1078
  %v3198 = vpop.f32.mrf.mxu0
  %v3199 = vadd.f32 %v3150, %v3198
  %v3200 = vpop.f32.mrf.mxu0
  %v3201 = vadd.f32 %v3152, %v3200
  %3202 = vmatmul.bf16.gmra.mxu0 %v1082
  %v3203 = vpop.f32.mrf.mxu0
  %v3204 = vadd.f32 %v3155, %v3203
  %v3205 = vpop.f32.mrf.mxu0
  %v3206 = vadd.f32 %v3157, %v3205
  %3207 = vmatmul.bf16.gmra.mxu0 %v1086
  %v3208 = vpop.f32.mrf.mxu0
  %v3209 = vadd.f32 %v3160, %v3208
  %v3210 = vpop.f32.mrf.mxu0
  %v3211 = vadd.f32 %v3162, %v3210
  %3212 = vmatmul.bf16.gmra.mxu0 %v1090
  %v3213 = vpop.f32.mrf.mxu0
  %v3214 = vadd.f32 %v3165, %v3213
  %v3215 = vpop.f32.mrf.mxu0
  %v3216 = vadd.f32 %v3167, %v3215
  %3217 = vmatmul.bf16.gmra.mxu0 %v1094
  %v3218 = vpop.f32.mrf.mxu0
  %v3219 = vadd.f32 %v3170, %v3218
  %v3220 = vpop.f32.mrf.mxu0
  %v3221 = vadd.f32 %v3172, %v3220
  %3222 = vdwg.mxu0
  %3223 = vmatpush.bf16.msra.mxu0 %v2182
  %3224 = vmatpush.bf16.msra.mxu0 %v2174
  %3225 = vmatpush.bf16.msra.mxu0 %v2166
  %3226 = vmatpush.bf16.msra.mxu0 %v2158
  %3227 = vmatpush.bf16.msra.mxu0 %v2150
  %3228 = vmatpush.bf16.msra.mxu0 %v2142
  %3229 = vmatpush.bf16.msra.mxu0 %v2134
  %3230 = vmatpush.bf16.msra.mxu0 %v2126
  %3231 = vmatmul.bf16.gmra.mxu0 %v1063
  %v3232 = vpop.f32.mrf.mxu0
  %v3233 = vadd.f32 0.0, %v3232
  %v3234 = vpop.f32.mrf.mxu0
  %v3235 = vadd.f32 0.0, %v3234
  %3236 = vmatmul.bf16.gmra.mxu0 %v1067
  %v3237 = vpop.f32.mrf.mxu0
  %v3238 = vadd.f32 0.0, %v3237
  %v3239 = vpop.f32.mrf.mxu0
  %v3240 = vadd.f32 0.0, %v3239
  %3241 = vmatmul.bf16.gmra.mxu0 %v1071
  %v3242 = vpop.f32.mrf.mxu0
  %v3243 = vadd.f32 0.0, %v3242
  %v3244 = vpop.f32.mrf.mxu0
  %v3245 = vadd.f32 0.0, %v3244
  %3246 = vmatmul.bf16.gmra.mxu0 %v1075
  %v3247 = vpop.f32.mrf.mxu0
  %v3248 = vadd.f32 0.0, %v3247
  %v3249 = vpop.f32.mrf.mxu0
  %v3250 = vadd.f32 0.0, %v3249
  %3251 = vmatmul.bf16.gmra.mxu0 %v1079
  %v3252 = vpop.f32.mrf.mxu0
  %v3253 = vadd.f32 0.0, %v3252
  %v3254 = vpop.f32.mrf.mxu0
  %v3255 = vadd.f32 0.0, %v3254
  %3256 = vmatmul.bf16.gmra.mxu0 %v1083
  %v3257 = vpop.f32.mrf.mxu0
  %v3258 = vadd.f32 0.0, %v3257
  %v3259 = vpop.f32.mrf.mxu0
  %v3260 = vadd.f32 0.0, %v3259
  %3261 = vmatmul.bf16.gmra.mxu0 %v1087
  %v3262 = vpop.f32.mrf.mxu0
  %v3263 = vadd.f32 0.0, %v3262
  %v3264 = vpop.f32.mrf.mxu0
  %v3265 = vadd.f32 0.0, %v3264
  %3266 = vmatmul.bf16.gmra.mxu0 %v1091
  %v3267 = vpop.f32.mrf.mxu0
  %v3268 = vadd.f32 0.0, %v3267
  %v3269 = vpop.f32.mrf.mxu0
  %v3270 = vadd.f32 0.0, %v3269
  %3271 = vdwg.mxu0
  %3272 = vmatpush.bf16.msra.mxu0 %v2246
  %3273 = vmatpush.bf16.msra.mxu0 %v2238
  %3274 = vmatpush.bf16.msra.mxu0 %v2230
  %3275 = vmatpush.bf16.msra.mxu0 %v2222
  %3276 = vmatpush.bf16.msra.mxu0 %v2214
  %3277 = vmatpush.bf16.msra.mxu0 %v2206
  %3278 = vmatpush.bf16.msra.mxu0 %v2198
  %3279 = vmatpush.bf16.msra.mxu0 %v2190
  %3280 = vmatmul.bf16.gmra.mxu0 %v1064
  %v3281 = vpop.f32.mrf.mxu0
  %v3282 = vadd.f32 %v3233, %v3281
  %v3283 = vpop.f32.mrf.mxu0
  %v3284 = vadd.f32 %v3235, %v3283
  %3285 = vmatmul.bf16.gmra.mxu0 %v1068
  %v3286 = vpop.f32.mrf.mxu0
  %v3287 = vadd.f32 %v3238, %v3286
  %v3288 = vpop.f32.mrf.mxu0
  %v3289 = vadd.f32 %v3240, %v3288
  %3290 = vmatmul.bf16.gmra.mxu0 %v1072
  %v3291 = vpop.f32.mrf.mxu0
  %v3292 = vadd.f32 %v3243, %v3291
  %v3293 = vpop.f32.mrf.mxu0
  %v3294 = vadd.f32 %v3245, %v3293
  %3295 = vmatmul.bf16.gmra.mxu0 %v1076
  %v3296 = vpop.f32.mrf.mxu0
  %v3297 = vadd.f32 %v3248, %v3296
  %v3298 = vpop.f32.mrf.mxu0
  %v3299 = vadd.f32 %v3250, %v3298
  %3300 = vmatmul.bf16.gmra.mxu0 %v1080
  %v3301 = vpop.f32.mrf.mxu0
  %v3302 = vadd.f32 %v3253, %v3301
  %v3303 = vpop.f32.mrf.mxu0
  %v3304 = vadd.f32 %v3255, %v3303
  %3305 = vmatmul.bf16.gmra.mxu0 %v1084
  %v3306 = vpop.f32.mrf.mxu0
  %v3307 = vadd.f32 %v3258, %v3306
  %v3308 = vpop.f32.mrf.mxu0
  %v3309 = vadd.f32 %v3260, %v3308
  %3310 = vmatmul.bf16.gmra.mxu0 %v1088
  %v3311 = vpop.f32.mrf.mxu0
  %v3312 = vadd.f32 %v3263, %v3311
  %v3313 = vpop.f32.mrf.mxu0
  %v3314 = vadd.f32 %v3265, %v3313
  %3315 = vmatmul.bf16.gmra.mxu0 %v1092
  %v3316 = vpop.f32.mrf.mxu0
  %v3317 = vadd.f32 %v3268, %v3316
  %v3318 = vpop.f32.mrf.mxu0
  %v3319 = vadd.f32 %v3270, %v3318
  %3320 = vdwg.mxu0
  %3321 = vmatpush.bf16.msra.mxu0 %v2310
  %3322 = vmatpush.bf16.msra.mxu0 %v2302
  %3323 = vmatpush.bf16.msra.mxu0 %v2294
  %3324 = vmatpush.bf16.msra.mxu0 %v2286
  %3325 = vmatpush.bf16.msra.mxu0 %v2278
  %3326 = vmatpush.bf16.msra.mxu0 %v2270
  %3327 = vmatpush.bf16.msra.mxu0 %v2262
  %3328 = vmatpush.bf16.msra.mxu0 %v2254
  %3329 = vmatmul.bf16.gmra.mxu0 %v1065
  %v3330 = vpop.f32.mrf.mxu0
  %v3331 = vadd.f32 %v3282, %v3330
  %v3332 = vpop.f32.mrf.mxu0
  %v3333 = vadd.f32 %v3284, %v3332
  %3334 = vmatmul.bf16.gmra.mxu0 %v1069
  %v3335 = vpop.f32.mrf.mxu0
  %v3336 = vadd.f32 %v3287, %v3335
  %v3337 = vpop.f32.mrf.mxu0
  %v3338 = vadd.f32 %v3289, %v3337
  %3339 = vmatmul.bf16.gmra.mxu0 %v1073
  %v3340 = vpop.f32.mrf.mxu0
  %v3341 = vadd.f32 %v3292, %v3340
  %v3342 = vpop.f32.mrf.mxu0
  %v3343 = vadd.f32 %v3294, %v3342
  %3344 = vmatmul.bf16.gmra.mxu0 %v1077
  %v3345 = vpop.f32.mrf.mxu0
  %v3346 = vadd.f32 %v3297, %v3345
  %v3347 = vpop.f32.mrf.mxu0
  %v3348 = vadd.f32 %v3299, %v3347
  %3349 = vmatmul.bf16.gmra.mxu0 %v1081
  %v3350 = vpop.f32.mrf.mxu0
  %v3351 = vadd.f32 %v3302, %v3350
  %v3352 = vpop.f32.mrf.mxu0
  %v3353 = vadd.f32 %v3304, %v3352
  %3354 = vmatmul.bf16.gmra.mxu0 %v1085
  %v3355 = vpop.f32.mrf.mxu0
  %v3356 = vadd.f32 %v3307, %v3355
  %v3357 = vpop.f32.mrf.mxu0
  %v3358 = vadd.f32 %v3309, %v3357
  %3359 = vmatmul.bf16.gmra.mxu0 %v1089
  %v3360 = vpop.f32.mrf.mxu0
  %v3361 = vadd.f32 %v3312, %v3360
  %v3362 = vpop.f32.mrf.mxu0
  %v3363 = vadd.f32 %v3314, %v3362
  %3364 = vmatmul.bf16.gmra.mxu0 %v1093
  %v3365 = vpop.f32.mrf.mxu0
  %v3366 = vadd.f32 %v3317, %v3365
  %v3367 = vpop.f32.mrf.mxu0
  %v3368 = vadd.f32 %v3319, %v3367
  %3369 = vdwg.mxu0
  %3370 = vmatpush.bf16.msra.mxu0 %v2374
  %3371 = vmatpush.bf16.msra.mxu0 %v2366
  %3372 = vmatpush.bf16.msra.mxu0 %v2358
  %3373 = vmatpush.bf16.msra.mxu0 %v2350
  %3374 = vmatpush.bf16.msra.mxu0 %v2342
  %3375 = vmatpush.bf16.msra.mxu0 %v2334
  %3376 = vmatpush.bf16.msra.mxu0 %v2326
  %3377 = vmatpush.bf16.msra.mxu0 %v2318
  %3378 = vmatmul.bf16.gmra.mxu0 %v1066
  %v3379 = vpop.f32.mrf.mxu0
  %v3380 = vadd.f32 %v3331, %v3379
  %v3381 = vpop.f32.mrf.mxu0
  %v3382 = vadd.f32 %v3333, %v3381
  %3383 = vmatmul.bf16.gmra.mxu0 %v1070
  %v3384 = vpop.f32.mrf.mxu0
  %v3385 = vadd.f32 %v3336, %v3384
  %v3386 = vpop.f32.mrf.mxu0
  %v3387 = vadd.f32 %v3338, %v3386
  %3388 = vmatmul.bf16.gmra.mxu0 %v1074
  %v3389 = vpop.f32.mrf.mxu0
  %v3390 = vadd.f32 %v3341, %v3389
  %v3391 = vpop.f32.mrf.mxu0
  %v3392 = vadd.f32 %v3343, %v3391
  %3393 = vmatmul.bf16.gmra.mxu0 %v1078
  %v3394 = vpop.f32.mrf.mxu0
  %v3395 = vadd.f32 %v3346, %v3394
  %v3396 = vpop.f32.mrf.mxu0
  %v3397 = vadd.f32 %v3348, %v3396
  %3398 = vmatmul.bf16.gmra.mxu0 %v1082
  %v3399 = vpop.f32.mrf.mxu0
  %v3400 = vadd.f32 %v3351, %v3399
  %v3401 = vpop.f32.mrf.mxu0
  %v3402 = vadd.f32 %v3353, %v3401
  %3403 = vmatmul.bf16.gmra.mxu0 %v1086
  %v3404 = vpop.f32.mrf.mxu0
  %v3405 = vadd.f32 %v3356, %v3404
  %v3406 = vpop.f32.mrf.mxu0
  %v3407 = vadd.f32 %v3358, %v3406
  %3408 = vmatmul.bf16.gmra.mxu0 %v1090
  %v3409 = vpop.f32.mrf.mxu0
  %v3410 = vadd.f32 %v3361, %v3409
  %v3411 = vpop.f32.mrf.mxu0
  %v3412 = vadd.f32 %v3363, %v3411
  %3413 = vmatmul.bf16.gmra.mxu0 %v1094
  %v3414 = vpop.f32.mrf.mxu0
  %v3415 = vadd.f32 %v3366, %v3414
  %v3416 = vpop.f32.mrf.mxu0
  %v3417 = vadd.f32 %v3368, %v3416
  %3418 = vdwg.mxu0
  %3419 = vmatpush.bf16.msra.mxu0 %v2183
  %3420 = vmatpush.bf16.msra.mxu0 %v2175
  %3421 = vmatpush.bf16.msra.mxu0 %v2167
  %3422 = vmatpush.bf16.msra.mxu0 %v2159
  %3423 = vmatpush.bf16.msra.mxu0 %v2151
  %3424 = vmatpush.bf16.msra.mxu0 %v2143
  %3425 = vmatpush.bf16.msra.mxu0 %v2135
  %3426 = vmatpush.bf16.msra.mxu0 %v2127
  %3427 = vmatmul.bf16.gmra.mxu0 %v1063
  %v3428 = vpop.f32.mrf.mxu0
  %v3429 = vadd.f32 0.0, %v3428
  %v3430 = vpop.f32.mrf.mxu0
  %v3431 = vadd.f32 0.0, %v3430
  %3432 = vmatmul.bf16.gmra.mxu0 %v1067
  %v3433 = vpop.f32.mrf.mxu0
  %v3434 = vadd.f32 0.0, %v3433
  %v3435 = vpop.f32.mrf.mxu0
  %v3436 = vadd.f32 0.0, %v3435
  %3437 = vmatmul.bf16.gmra.mxu0 %v1071
  %v3438 = vpop.f32.mrf.mxu0
  %v3439 = vadd.f32 0.0, %v3438
  %v3440 = vpop.f32.mrf.mxu0
  %v3441 = vadd.f32 0.0, %v3440
  %3442 = vmatmul.bf16.gmra.mxu0 %v1075
  %v3443 = vpop.f32.mrf.mxu0
  %v3444 = vadd.f32 0.0, %v3443
  %v3445 = vpop.f32.mrf.mxu0
  %v3446 = vadd.f32 0.0, %v3445
  %3447 = vmatmul.bf16.gmra.mxu0 %v1079
  %v3448 = vpop.f32.mrf.mxu0
  %v3449 = vadd.f32 0.0, %v3448
  %v3450 = vpop.f32.mrf.mxu0
  %v3451 = vadd.f32 0.0, %v3450
  %3452 = vmatmul.bf16.gmra.mxu0 %v1083
  %v3453 = vpop.f32.mrf.mxu0
  %v3454 = vadd.f32 0.0, %v3453
  %v3455 = vpop.f32.mrf.mxu0
  %v3456 = vadd.f32 0.0, %v3455
  %3457 = vmatmul.bf16.gmra.mxu0 %v1087
  %v3458 = vpop.f32.mrf.mxu0
  %v3459 = vadd.f32 0.0, %v3458
  %v3460 = vpop.f32.mrf.mxu0
  %v3461 = vadd.f32 0.0, %v3460
  %3462 = vmatmul.bf16.gmra.mxu0 %v1091
  %v3463 = vpop.f32.mrf.mxu0
  %v3464 = vadd.f32 0.0, %v3463
  %v3465 = vpop.f32.mrf.mxu0
  %v3466 = vadd.f32 0.0, %v3465
  %3467 = vdwg.mxu0
  %3468 = vmatpush.bf16.msra.mxu0 %v2247
  %3469 = vmatpush.bf16.msra.mxu0 %v2239
  %3470 = vmatpush.bf16.msra.mxu0 %v2231
  %3471 = vmatpush.bf16.msra.mxu0 %v2223
  %3472 = vmatpush.bf16.msra.mxu0 %v2215
  %3473 = vmatpush.bf16.msra.mxu0 %v2207
  %3474 = vmatpush.bf16.msra.mxu0 %v2199
  %3475 = vmatpush.bf16.msra.mxu0 %v2191
  %3476 = vmatmul.bf16.gmra.mxu0 %v1064
  %v3477 = vpop.f32.mrf.mxu0
  %v3478 = vadd.f32 %v3429, %v3477
  %v3479 = vpop.f32.mrf.mxu0
  %v3480 = vadd.f32 %v3431, %v3479
  %3481 = vmatmul.bf16.gmra.mxu0 %v1068
  %v3482 = vpop.f32.mrf.mxu0
  %v3483 = vadd.f32 %v3434, %v3482
  %v3484 = vpop.f32.mrf.mxu0
  %v3485 = vadd.f32 %v3436, %v3484
  %3486 = vmatmul.bf16.gmra.mxu0 %v1072
  %v3487 = vpop.f32.mrf.mxu0
  %v3488 = vadd.f32 %v3439, %v3487
  %v3489 = vpop.f32.mrf.mxu0
  %v3490 = vadd.f32 %v3441, %v3489
  %3491 = vmatmul.bf16.gmra.mxu0 %v1076
  %v3492 = vpop.f32.mrf.mxu0
  %v3493 = vadd.f32 %v3444, %v3492
  %v3494 = vpop.f32.mrf.mxu0
  %v3495 = vadd.f32 %v3446, %v3494
  %3496 = vmatmul.bf16.gmra.mxu0 %v1080
  %v3497 = vpop.f32.mrf.mxu0
  %v3498 = vadd.f32 %v3449, %v3497
  %v3499 = vpop.f32.mrf.mxu0
  %v3500 = vadd.f32 %v3451, %v3499
  %3501 = vmatmul.bf16.gmra.mxu0 %v1084
  %v3502 = vpop.f32.mrf.mxu0
  %v3503 = vadd.f32 %v3454, %v3502
  %v3504 = vpop.f32.mrf.mxu0
  %v3505 = vadd.f32 %v3456, %v3504
  %3506 = vmatmul.bf16.gmra.mxu0 %v1088
  %v3507 = vpop.f32.mrf.mxu0
  %v3508 = vadd.f32 %v3459, %v3507
  %v3509 = vpop.f32.mrf.mxu0
  %v3510 = vadd.f32 %v3461, %v3509
  %3511 = vmatmul.bf16.gmra.mxu0 %v1092
  %v3512 = vpop.f32.mrf.mxu0
  %v3513 = vadd.f32 %v3464, %v3512
  %v3514 = vpop.f32.mrf.mxu0
  %v3515 = vadd.f32 %v3466, %v3514
  %3516 = vdwg.mxu0
  %3517 = vmatpush.bf16.msra.mxu0 %v2311
  %3518 = vmatpush.bf16.msra.mxu0 %v2303
  %3519 = vmatpush.bf16.msra.mxu0 %v2295
  %3520 = vmatpush.bf16.msra.mxu0 %v2287
  %3521 = vmatpush.bf16.msra.mxu0 %v2279
  %3522 = vmatpush.bf16.msra.mxu0 %v2271
  %3523 = vmatpush.bf16.msra.mxu0 %v2263
  %3524 = vmatpush.bf16.msra.mxu0 %v2255
  %3525 = vmatmul.bf16.gmra.mxu0 %v1065
  %v3526 = vpop.f32.mrf.mxu0
  %v3527 = vadd.f32 %v3478, %v3526
  %v3528 = vpop.f32.mrf.mxu0
  %v3529 = vadd.f32 %v3480, %v3528
  %3530 = vmatmul.bf16.gmra.mxu0 %v1069
  %v3531 = vpop.f32.mrf.mxu0
  %v3532 = vadd.f32 %v3483, %v3531
  %v3533 = vpop.f32.mrf.mxu0
  %v3534 = vadd.f32 %v3485, %v3533
  %3535 = vmatmul.bf16.gmra.mxu0 %v1073
  %v3536 = vpop.f32.mrf.mxu0
  %v3537 = vadd.f32 %v3488, %v3536
  %v3538 = vpop.f32.mrf.mxu0
  %v3539 = vadd.f32 %v3490, %v3538
  %3540 = vmatmul.bf16.gmra.mxu0 %v1077
  %v3541 = vpop.f32.mrf.mxu0
  %v3542 = vadd.f32 %v3493, %v3541
  %v3543 = vpop.f32.mrf.mxu0
  %v3544 = vadd.f32 %v3495, %v3543
  %3545 = vmatmul.bf16.gmra.mxu0 %v1081
  %v3546 = vpop.f32.mrf.mxu0
  %v3547 = vadd.f32 %v3498, %v3546
  %v3548 = vpop.f32.mrf.mxu0
  %v3549 = vadd.f32 %v3500, %v3548
  %3550 = vmatmul.bf16.gmra.mxu0 %v1085
  %v3551 = vpop.f32.mrf.mxu0
  %v3552 = vadd.f32 %v3503, %v3551
  %v3553 = vpop.f32.mrf.mxu0
  %v3554 = vadd.f32 %v3505, %v3553
  %3555 = vmatmul.bf16.gmra.mxu0 %v1089
  %v3556 = vpop.f32.mrf.mxu0
  %v3557 = vadd.f32 %v3508, %v3556
  %v3558 = vpop.f32.mrf.mxu0
  %v3559 = vadd.f32 %v3510, %v3558
  %3560 = vmatmul.bf16.gmra.mxu0 %v1093
  %v3561 = vpop.f32.mrf.mxu0
  %v3562 = vadd.f32 %v3513, %v3561
  %v3563 = vpop.f32.mrf.mxu0
  %v3564 = vadd.f32 %v3515, %v3563
  %3565 = vdwg.mxu0
  %3566 = vmatpush.bf16.msra.mxu0 %v2375
  %3567 = vmatpush.bf16.msra.mxu0 %v2367
  %3568 = vmatpush.bf16.msra.mxu0 %v2359
  %3569 = vmatpush.bf16.msra.mxu0 %v2351
  %3570 = vmatpush.bf16.msra.mxu0 %v2343
  %3571 = vmatpush.bf16.msra.mxu0 %v2335
  %3572 = vmatpush.bf16.msra.mxu0 %v2327
  %3573 = vmatpush.bf16.msra.mxu0 %v2319
  %3574 = vmatmul.bf16.gmra.mxu0 %v1066
  %v3575 = vpop.f32.mrf.mxu0
  %v3576 = vadd.f32 %v3527, %v3575
  %v3577 = vpop.f32.mrf.mxu0
  %v3578 = vadd.f32 %v3529, %v3577
  %3579 = vmatmul.bf16.gmra.mxu0 %v1070
  %v3580 = vpop.f32.mrf.mxu0
  %v3581 = vadd.f32 %v3532, %v3580
  %v3582 = vpop.f32.mrf.mxu0
  %v3583 = vadd.f32 %v3534, %v3582
  %3584 = vmatmul.bf16.gmra.mxu0 %v1074
  %v3585 = vpop.f32.mrf.mxu0
  %v3586 = vadd.f32 %v3537, %v3585
  %v3587 = vpop.f32.mrf.mxu0
  %v3588 = vadd.f32 %v3539, %v3587
  %3589 = vmatmul.bf16.gmra.mxu0 %v1078
  %v3590 = vpop.f32.mrf.mxu0
  %v3591 = vadd.f32 %v3542, %v3590
  %v3592 = vpop.f32.mrf.mxu0
  %v3593 = vadd.f32 %v3544, %v3592
  %3594 = vmatmul.bf16.gmra.mxu0 %v1082
  %v3595 = vpop.f32.mrf.mxu0
  %v3596 = vadd.f32 %v3547, %v3595
  %v3597 = vpop.f32.mrf.mxu0
  %v3598 = vadd.f32 %v3549, %v3597
  %3599 = vmatmul.bf16.gmra.mxu0 %v1086
  %v3600 = vpop.f32.mrf.mxu0
  %v3601 = vadd.f32 %v3552, %v3600
  %v3602 = vpop.f32.mrf.mxu0
  %v3603 = vadd.f32 %v3554, %v3602
  %3604 = vmatmul.bf16.gmra.mxu0 %v1090
  %v3605 = vpop.f32.mrf.mxu0
  %v3606 = vadd.f32 %v3557, %v3605
  %v3607 = vpop.f32.mrf.mxu0
  %v3608 = vadd.f32 %v3559, %v3607
  %3609 = vmatmul.bf16.gmra.mxu0 %v1094
  %v3610 = vpop.f32.mrf.mxu0
  %v3611 = vadd.f32 %v3562, %v3610
  %v3612 = vpop.f32.mrf.mxu0
  %v3613 = vadd.f32 %v3564, %v3612
  %3614 = vdwg.mxu0
  %3615 = vmatpush.bf16.msra.mxu0 %v2184
  %3616 = vmatpush.bf16.msra.mxu0 %v2176
  %3617 = vmatpush.bf16.msra.mxu0 %v2168
  %3618 = vmatpush.bf16.msra.mxu0 %v2160
  %3619 = vmatpush.bf16.msra.mxu0 %v2152
  %3620 = vmatpush.bf16.msra.mxu0 %v2144
  %3621 = vmatpush.bf16.msra.mxu0 %v2136
  %3622 = vmatpush.bf16.msra.mxu0 %v2128
  %3623 = vmatmul.bf16.gmra.mxu0 %v1063
  %v3624 = vpop.f32.mrf.mxu0
  %v3625 = vadd.f32 0.0, %v3624
  %v3626 = vpop.f32.mrf.mxu0
  %v3627 = vadd.f32 0.0, %v3626
  %3628 = vmatmul.bf16.gmra.mxu0 %v1067
  %v3629 = vpop.f32.mrf.mxu0
  %v3630 = vadd.f32 0.0, %v3629
  %v3631 = vpop.f32.mrf.mxu0
  %v3632 = vadd.f32 0.0, %v3631
  %3633 = vmatmul.bf16.gmra.mxu0 %v1071
  %v3634 = vpop.f32.mrf.mxu0
  %v3635 = vadd.f32 0.0, %v3634
  %v3636 = vpop.f32.mrf.mxu0
  %v3637 = vadd.f32 0.0, %v3636
  %3638 = vmatmul.bf16.gmra.mxu0 %v1075
  %v3639 = vpop.f32.mrf.mxu0
  %v3640 = vadd.f32 0.0, %v3639
  %v3641 = vpop.f32.mrf.mxu0
  %v3642 = vadd.f32 0.0, %v3641
  %3643 = vmatmul.bf16.gmra.mxu0 %v1079
  %v3644 = vpop.f32.mrf.mxu0
  %v3645 = vadd.f32 0.0, %v3644
  %v3646 = vpop.f32.mrf.mxu0
  %v3647 = vadd.f32 0.0, %v3646
  %3648 = vmatmul.bf16.gmra.mxu0 %v1083
  %v3649 = vpop.f32.mrf.mxu0
  %v3650 = vadd.f32 0.0, %v3649
  %v3651 = vpop.f32.mrf.mxu0
  %v3652 = vadd.f32 0.0, %v3651
  %3653 = vmatmul.bf16.gmra.mxu0 %v1087
  %v3654 = vpop.f32.mrf.mxu0
  %v3655 = vadd.f32 0.0, %v3654
  %v3656 = vpop.f32.mrf.mxu0
  %v3657 = vadd.f32 0.0, %v3656
  %3658 = vmatmul.bf16.gmra.mxu0 %v1091
  %v3659 = vpop.f32.mrf.mxu0
  %v3660 = vadd.f32 0.0, %v3659
  %v3661 = vpop.f32.mrf.mxu0
  %v3662 = vadd.f32 0.0, %v3661
  %3663 = vdwg.mxu0
  %3664 = vmatpush.bf16.msra.mxu0 %v2248
  %3665 = vmatpush.bf16.msra.mxu0 %v2240
  %3666 = vmatpush.bf16.msra.mxu0 %v2232
  %3667 = vmatpush.bf16.msra.mxu0 %v2224
  %3668 = vmatpush.bf16.msra.mxu0 %v2216
  %3669 = vmatpush.bf16.msra.mxu0 %v2208
  %3670 = vmatpush.bf16.msra.mxu0 %v2200
  %3671 = vmatpush.bf16.msra.mxu0 %v2192
  %3672 = vmatmul.bf16.gmra.mxu0 %v1064
  %v3673 = vpop.f32.mrf.mxu0
  %v3674 = vadd.f32 %v3625, %v3673
  %v3675 = vpop.f32.mrf.mxu0
  %v3676 = vadd.f32 %v3627, %v3675
  %3677 = vmatmul.bf16.gmra.mxu0 %v1068
  %v3678 = vpop.f32.mrf.mxu0
  %v3679 = vadd.f32 %v3630, %v3678
  %v3680 = vpop.f32.mrf.mxu0
  %v3681 = vadd.f32 %v3632, %v3680
  %3682 = vmatmul.bf16.gmra.mxu0 %v1072
  %v3683 = vpop.f32.mrf.mxu0
  %v3684 = vadd.f32 %v3635, %v3683
  %v3685 = vpop.f32.mrf.mxu0
  %v3686 = vadd.f32 %v3637, %v3685
  %3687 = vmatmul.bf16.gmra.mxu0 %v1076
  %v3688 = vpop.f32.mrf.mxu0
  %v3689 = vadd.f32 %v3640, %v3688
  %v3690 = vpop.f32.mrf.mxu0
  %v3691 = vadd.f32 %v3642, %v3690
  %3692 = vmatmul.bf16.gmra.mxu0 %v1080
  %v3693 = vpop.f32.mrf.mxu0
  %v3694 = vadd.f32 %v3645, %v3693
  %v3695 = vpop.f32.mrf.mxu0
  %v3696 = vadd.f32 %v3647, %v3695
  %3697 = vmatmul.bf16.gmra.mxu0 %v1084
  %v3698 = vpop.f32.mrf.mxu0
  %v3699 = vadd.f32 %v3650, %v3698
  %v3700 = vpop.f32.mrf.mxu0
  %v3701 = vadd.f32 %v3652, %v3700
  %3702 = vmatmul.bf16.gmra.mxu0 %v1088
  %v3703 = vpop.f32.mrf.mxu0
  %v3704 = vadd.f32 %v3655, %v3703
  %v3705 = vpop.f32.mrf.mxu0
  %v3706 = vadd.f32 %v3657, %v3705
  %3707 = vmatmul.bf16.gmra.mxu0 %v1092
  %v3708 = vpop.f32.mrf.mxu0
  %v3709 = vadd.f32 %v3660, %v3708
  %v3710 = vpop.f32.mrf.mxu0
  %v3711 = vadd.f32 %v3662, %v3710
  %3712 = vdwg.mxu0
  %3713 = vmatpush.bf16.msra.mxu0 %v2312
  %3714 = vmatpush.bf16.msra.mxu0 %v2304
  %3715 = vmatpush.bf16.msra.mxu0 %v2296
  %3716 = vmatpush.bf16.msra.mxu0 %v2288
  %3717 = vmatpush.bf16.msra.mxu0 %v2280
  %3718 = vmatpush.bf16.msra.mxu0 %v2272
  %3719 = vmatpush.bf16.msra.mxu0 %v2264
  %3720 = vmatpush.bf16.msra.mxu0 %v2256
  %3721 = vmatmul.bf16.gmra.mxu0 %v1065
  %v3722 = vpop.f32.mrf.mxu0
  %v3723 = vadd.f32 %v3674, %v3722
  %v3724 = vpop.f32.mrf.mxu0
  %v3725 = vadd.f32 %v3676, %v3724
  %3726 = vmatmul.bf16.gmra.mxu0 %v1069
  %v3727 = vpop.f32.mrf.mxu0
  %v3728 = vadd.f32 %v3679, %v3727
  %v3729 = vpop.f32.mrf.mxu0
  %v3730 = vadd.f32 %v3681, %v3729
  %3731 = vmatmul.bf16.gmra.mxu0 %v1073
  %v3732 = vpop.f32.mrf.mxu0
  %v3733 = vadd.f32 %v3684, %v3732
  %v3734 = vpop.f32.mrf.mxu0
  %v3735 = vadd.f32 %v3686, %v3734
  %3736 = vmatmul.bf16.gmra.mxu0 %v1077
  %v3737 = vpop.f32.mrf.mxu0
  %v3738 = vadd.f32 %v3689, %v3737
  %v3739 = vpop.f32.mrf.mxu0
  %v3740 = vadd.f32 %v3691, %v3739
  %3741 = vmatmul.bf16.gmra.mxu0 %v1081
  %v3742 = vpop.f32.mrf.mxu0
  %v3743 = vadd.f32 %v3694, %v3742
  %v3744 = vpop.f32.mrf.mxu0
  %v3745 = vadd.f32 %v3696, %v3744
  %3746 = vmatmul.bf16.gmra.mxu0 %v1085
  %v3747 = vpop.f32.mrf.mxu0
  %v3748 = vadd.f32 %v3699, %v3747
  %v3749 = vpop.f32.mrf.mxu0
  %v3750 = vadd.f32 %v3701, %v3749
  %3751 = vmatmul.bf16.gmra.mxu0 %v1089
  %v3752 = vpop.f32.mrf.mxu0
  %v3753 = vadd.f32 %v3704, %v3752
  %v3754 = vpop.f32.mrf.mxu0
  %v3755 = vadd.f32 %v3706, %v3754
  %3756 = vmatmul.bf16.gmra.mxu0 %v1093
  %v3757 = vpop.f32.mrf.mxu0
  %v3758 = vadd.f32 %v3709, %v3757
  %v3759 = vpop.f32.mrf.mxu0
  %v3760 = vadd.f32 %v3711, %v3759
  %3761 = vdwg.mxu0
  %3762 = vmatpush.bf16.msra.mxu0 %v2376
  %3763 = vmatpush.bf16.msra.mxu0 %v2368
  %3764 = vmatpush.bf16.msra.mxu0 %v2360
  %3765 = vmatpush.bf16.msra.mxu0 %v2352
  %3766 = vmatpush.bf16.msra.mxu0 %v2344
  %3767 = vmatpush.bf16.msra.mxu0 %v2336
  %3768 = vmatpush.bf16.msra.mxu0 %v2328
  %3769 = vmatpush.bf16.msra.mxu0 %v2320
  %3770 = vmatmul.bf16.gmra.mxu0 %v1066
  %v3771 = vpop.f32.mrf.mxu0
  %v3772 = vadd.f32 %v3723, %v3771
  %v3773 = vpop.f32.mrf.mxu0
  %v3774 = vadd.f32 %v3725, %v3773
  %3775 = vmatmul.bf16.gmra.mxu0 %v1070
  %v3776 = vpop.f32.mrf.mxu0
  %v3777 = vadd.f32 %v3728, %v3776
  %v3778 = vpop.f32.mrf.mxu0
  %v3779 = vadd.f32 %v3730, %v3778
  %3780 = vmatmul.bf16.gmra.mxu0 %v1074
  %v3781 = vpop.f32.mrf.mxu0
  %v3782 = vadd.f32 %v3733, %v3781
  %v3783 = vpop.f32.mrf.mxu0
  %v3784 = vadd.f32 %v3735, %v3783
  %3785 = vmatmul.bf16.gmra.mxu0 %v1078
  %v3786 = vpop.f32.mrf.mxu0
  %v3787 = vadd.f32 %v3738, %v3786
  %v3788 = vpop.f32.mrf.mxu0
  %v3789 = vadd.f32 %v3740, %v3788
  %3790 = vmatmul.bf16.gmra.mxu0 %v1082
  %v3791 = vpop.f32.mrf.mxu0
  %v3792 = vadd.f32 %v3743, %v3791
  %v3793 = vpop.f32.mrf.mxu0
  %v3794 = vadd.f32 %v3745, %v3793
  %3795 = vmatmul.bf16.gmra.mxu0 %v1086
  %v3796 = vpop.f32.mrf.mxu0
  %v3797 = vadd.f32 %v3748, %v3796
  %v3798 = vpop.f32.mrf.mxu0
  %v3799 = vadd.f32 %v3750, %v3798
  %3800 = vmatmul.bf16.gmra.mxu0 %v1090
  %v3801 = vpop.f32.mrf.mxu0
  %v3802 = vadd.f32 %v3753, %v3801
  %v3803 = vpop.f32.mrf.mxu0
  %v3804 = vadd.f32 %v3755, %v3803
  %3805 = vmatmul.bf16.gmra.mxu0 %v1094
  %v3806 = vpop.f32.mrf.mxu0
  %v3807 = vadd.f32 %v3758, %v3806
  %v3808 = vpop.f32.mrf.mxu0
  %v3809 = vadd.f32 %v3760, %v3808
  %3810 = vdwg.mxu0
  %3811 = vmatpush.bf16.msra.mxu0 %v2185
  %3812 = vmatpush.bf16.msra.mxu0 %v2177
  %3813 = vmatpush.bf16.msra.mxu0 %v2169
  %3814 = vmatpush.bf16.msra.mxu0 %v2161
  %3815 = vmatpush.bf16.msra.mxu0 %v2153
  %3816 = vmatpush.bf16.msra.mxu0 %v2145
  %3817 = vmatpush.bf16.msra.mxu0 %v2137
  %3818 = vmatpush.bf16.msra.mxu0 %v2129
  %3819 = vmatmul.bf16.gmra.mxu0 %v1063
  %v3820 = vpop.f32.mrf.mxu0
  %v3821 = vadd.f32 0.0, %v3820
  %v3822 = vpop.f32.mrf.mxu0
  %v3823 = vadd.f32 0.0, %v3822
  %3824 = vmatmul.bf16.gmra.mxu0 %v1067
  %v3825 = vpop.f32.mrf.mxu0
  %v3826 = vadd.f32 0.0, %v3825
  %v3827 = vpop.f32.mrf.mxu0
  %v3828 = vadd.f32 0.0, %v3827
  %3829 = vmatmul.bf16.gmra.mxu0 %v1071
  %v3830 = vpop.f32.mrf.mxu0
  %v3831 = vadd.f32 0.0, %v3830
  %v3832 = vpop.f32.mrf.mxu0
  %v3833 = vadd.f32 0.0, %v3832
  %3834 = vmatmul.bf16.gmra.mxu0 %v1075
  %v3835 = vpop.f32.mrf.mxu0
  %v3836 = vadd.f32 0.0, %v3835
  %v3837 = vpop.f32.mrf.mxu0
  %v3838 = vadd.f32 0.0, %v3837
  %3839 = vmatmul.bf16.gmra.mxu0 %v1079
  %v3840 = vpop.f32.mrf.mxu0
  %v3841 = vadd.f32 0.0, %v3840
  %v3842 = vpop.f32.mrf.mxu0
  %v3843 = vadd.f32 0.0, %v3842
  %3844 = vmatmul.bf16.gmra.mxu0 %v1083
  %v3845 = vpop.f32.mrf.mxu0
  %v3846 = vadd.f32 0.0, %v3845
  %v3847 = vpop.f32.mrf.mxu0
  %v3848 = vadd.f32 0.0, %v3847
  %3849 = vmatmul.bf16.gmra.mxu0 %v1087
  %v3850 = vpop.f32.mrf.mxu0
  %v3851 = vadd.f32 0.0, %v3850
  %v3852 = vpop.f32.mrf.mxu0
  %v3853 = vadd.f32 0.0, %v3852
  %3854 = vmatmul.bf16.gmra.mxu0 %v1091
  %v3855 = vpop.f32.mrf.mxu0
  %v3856 = vadd.f32 0.0, %v3855
  %v3857 = vpop.f32.mrf.mxu0
  %v3858 = vadd.f32 0.0, %v3857
  %3859 = vdwg.mxu0
  %3860 = vmatpush.bf16.msra.mxu0 %v2249
  %3861 = vmatpush.bf16.msra.mxu0 %v2241
  %3862 = vmatpush.bf16.msra.mxu0 %v2233
  %3863 = vmatpush.bf16.msra.mxu0 %v2225
  %3864 = vmatpush.bf16.msra.mxu0 %v2217
  %3865 = vmatpush.bf16.msra.mxu0 %v2209
  %3866 = vmatpush.bf16.msra.mxu0 %v2201
  %3867 = vmatpush.bf16.msra.mxu0 %v2193
  %3868 = vmatmul.bf16.gmra.mxu0 %v1064
  %v3869 = vpop.f32.mrf.mxu0
  %v3870 = vadd.f32 %v3821, %v3869
  %v3871 = vpop.f32.mrf.mxu0
  %v3872 = vadd.f32 %v3823, %v3871
  %3873 = vmatmul.bf16.gmra.mxu0 %v1068
  %v3874 = vpop.f32.mrf.mxu0
  %v3875 = vadd.f32 %v3826, %v3874
  %v3876 = vpop.f32.mrf.mxu0
  %v3877 = vadd.f32 %v3828, %v3876
  %3878 = vmatmul.bf16.gmra.mxu0 %v1072
  %v3879 = vpop.f32.mrf.mxu0
  %v3880 = vadd.f32 %v3831, %v3879
  %v3881 = vpop.f32.mrf.mxu0
  %v3882 = vadd.f32 %v3833, %v3881
  %3883 = vmatmul.bf16.gmra.mxu0 %v1076
  %v3884 = vpop.f32.mrf.mxu0
  %v3885 = vadd.f32 %v3836, %v3884
  %v3886 = vpop.f32.mrf.mxu0
  %v3887 = vadd.f32 %v3838, %v3886
  %3888 = vmatmul.bf16.gmra.mxu0 %v1080
  %v3889 = vpop.f32.mrf.mxu0
  %v3890 = vadd.f32 %v3841, %v3889
  %v3891 = vpop.f32.mrf.mxu0
  %v3892 = vadd.f32 %v3843, %v3891
  %3893 = vmatmul.bf16.gmra.mxu0 %v1084
  %v3894 = vpop.f32.mrf.mxu0
  %v3895 = vadd.f32 %v3846, %v3894
  %v3896 = vpop.f32.mrf.mxu0
  %v3897 = vadd.f32 %v3848, %v3896
  %3898 = vmatmul.bf16.gmra.mxu0 %v1088
  %v3899 = vpop.f32.mrf.mxu0
  %v3900 = vadd.f32 %v3851, %v3899
  %v3901 = vpop.f32.mrf.mxu0
  %v3902 = vadd.f32 %v3853, %v3901
  %3903 = vmatmul.bf16.gmra.mxu0 %v1092
  %v3904 = vpop.f32.mrf.mxu0
  %v3905 = vadd.f32 %v3856, %v3904
  %v3906 = vpop.f32.mrf.mxu0
  %v3907 = vadd.f32 %v3858, %v3906
  %3908 = vdwg.mxu0
  %3909 = vmatpush.bf16.msra.mxu0 %v2313
  %3910 = vmatpush.bf16.msra.mxu0 %v2305
  %3911 = vmatpush.bf16.msra.mxu0 %v2297
  %3912 = vmatpush.bf16.msra.mxu0 %v2289
  %3913 = vmatpush.bf16.msra.mxu0 %v2281
  %3914 = vmatpush.bf16.msra.mxu0 %v2273
  %3915 = vmatpush.bf16.msra.mxu0 %v2265
  %3916 = vmatpush.bf16.msra.mxu0 %v2257
  %3917 = vmatmul.bf16.gmra.mxu0 %v1065
  %v3918 = vpop.f32.mrf.mxu0
  %v3919 = vadd.f32 %v3870, %v3918
  %v3920 = vpop.f32.mrf.mxu0
  %v3921 = vadd.f32 %v3872, %v3920
  %3922 = vmatmul.bf16.gmra.mxu0 %v1069
  %v3923 = vpop.f32.mrf.mxu0
  %v3924 = vadd.f32 %v3875, %v3923
  %v3925 = vpop.f32.mrf.mxu0
  %v3926 = vadd.f32 %v3877, %v3925
  %3927 = vmatmul.bf16.gmra.mxu0 %v1073
  %v3928 = vpop.f32.mrf.mxu0
  %v3929 = vadd.f32 %v3880, %v3928
  %v3930 = vpop.f32.mrf.mxu0
  %v3931 = vadd.f32 %v3882, %v3930
  %3932 = vmatmul.bf16.gmra.mxu0 %v1077
  %v3933 = vpop.f32.mrf.mxu0
  %v3934 = vadd.f32 %v3885, %v3933
  %v3935 = vpop.f32.mrf.mxu0
  %v3936 = vadd.f32 %v3887, %v3935
  %3937 = vmatmul.bf16.gmra.mxu0 %v1081
  %v3938 = vpop.f32.mrf.mxu0
  %v3939 = vadd.f32 %v3890, %v3938
  %v3940 = vpop.f32.mrf.mxu0
  %v3941 = vadd.f32 %v3892, %v3940
  %3942 = vmatmul.bf16.gmra.mxu0 %v1085
  %v3943 = vpop.f32.mrf.mxu0
  %v3944 = vadd.f32 %v3895, %v3943
  %v3945 = vpop.f32.mrf.mxu0
  %v3946 = vadd.f32 %v3897, %v3945
  %3947 = vmatmul.bf16.gmra.mxu0 %v1089
  %v3948 = vpop.f32.mrf.mxu0
  %v3949 = vadd.f32 %v3900, %v3948
  %v3950 = vpop.f32.mrf.mxu0
  %v3951 = vadd.f32 %v3902, %v3950
  %3952 = vmatmul.bf16.gmra.mxu0 %v1093
  %v3953 = vpop.f32.mrf.mxu0
  %v3954 = vadd.f32 %v3905, %v3953
  %v3955 = vpop.f32.mrf.mxu0
  %v3956 = vadd.f32 %v3907, %v3955
  %3957 = vdwg.mxu0
  %3958 = vmatpush.bf16.msra.mxu0 %v2377
  %3959 = vmatpush.bf16.msra.mxu0 %v2369
  %3960 = vmatpush.bf16.msra.mxu0 %v2361
  %3961 = vmatpush.bf16.msra.mxu0 %v2353
  %3962 = vmatpush.bf16.msra.mxu0 %v2345
  %3963 = vmatpush.bf16.msra.mxu0 %v2337
  %3964 = vmatpush.bf16.msra.mxu0 %v2329
  %3965 = vmatpush.bf16.msra.mxu0 %v2321
  %3966 = vmatmul.bf16.gmra.mxu0 %v1066
  %v3967 = vpop.f32.mrf.mxu0
  %v3968 = vadd.f32 %v3919, %v3967
  %v3969 = vpop.f32.mrf.mxu0
  %v3970 = vadd.f32 %v3921, %v3969
  %3971 = vmatmul.bf16.gmra.mxu0 %v1070
  %v3972 = vpop.f32.mrf.mxu0
  %v3973 = vadd.f32 %v3924, %v3972
  %v3974 = vpop.f32.mrf.mxu0
  %v3975 = vadd.f32 %v3926, %v3974
  %3976 = vmatmul.bf16.gmra.mxu0 %v1074
  %v3977 = vpop.f32.mrf.mxu0
  %v3978 = vadd.f32 %v3929, %v3977
  %v3979 = vpop.f32.mrf.mxu0
  %v3980 = vadd.f32 %v3931, %v3979
  %3981 = vmatmul.bf16.gmra.mxu0 %v1078
  %v3982 = vpop.f32.mrf.mxu0
  %v3983 = vadd.f32 %v3934, %v3982
  %v3984 = vpop.f32.mrf.mxu0
  %v3985 = vadd.f32 %v3936, %v3984
  %3986 = vmatmul.bf16.gmra.mxu0 %v1082
  %v3987 = vpop.f32.mrf.mxu0
  %v3988 = vadd.f32 %v3939, %v3987
  %v3989 = vpop.f32.mrf.mxu0
  %v3990 = vadd.f32 %v3941, %v3989
  %3991 = vmatmul.bf16.gmra.mxu0 %v1086
  %v3992 = vpop.f32.mrf.mxu0
  %v3993 = vadd.f32 %v3944, %v3992
  %v3994 = vpop.f32.mrf.mxu0
  %v3995 = vadd.f32 %v3946, %v3994
  %3996 = vmatmul.bf16.gmra.mxu0 %v1090
  %v3997 = vpop.f32.mrf.mxu0
  %v3998 = vadd.f32 %v3949, %v3997
  %v3999 = vpop.f32.mrf.mxu0
  %v4000 = vadd.f32 %v3951, %v3999
  %4001 = vmatmul.bf16.gmra.mxu0 %v1094
  %v4002 = vpop.f32.mrf.mxu0
  %v4003 = vadd.f32 %v3954, %v4002
  %v4004 = vpop.f32.mrf.mxu0
  %v4005 = vadd.f32 %v3956, %v4004
  %4006 = vdwg.mxu0
  %4007 = vmatpush.bf16.msra.mxu0 %v2186
  %4008 = vmatpush.bf16.msra.mxu0 %v2178
  %4009 = vmatpush.bf16.msra.mxu0 %v2170
  %4010 = vmatpush.bf16.msra.mxu0 %v2162
  %4011 = vmatpush.bf16.msra.mxu0 %v2154
  %4012 = vmatpush.bf16.msra.mxu0 %v2146
  %4013 = vmatpush.bf16.msra.mxu0 %v2138
  %4014 = vmatpush.bf16.msra.mxu0 %v2130
  %4015 = vmatmul.bf16.gmra.mxu0 %v1063
  %v4016 = vpop.f32.mrf.mxu0
  %v4017 = vadd.f32 0.0, %v4016
  %v4018 = vpop.f32.mrf.mxu0
  %v4019 = vadd.f32 0.0, %v4018
  %4020 = vmatmul.bf16.gmra.mxu0 %v1067
  %v4021 = vpop.f32.mrf.mxu0
  %v4022 = vadd.f32 0.0, %v4021
  %v4023 = vpop.f32.mrf.mxu0
  %v4024 = vadd.f32 0.0, %v4023
  %4025 = vmatmul.bf16.gmra.mxu0 %v1071
  %v4026 = vpop.f32.mrf.mxu0
  %v4027 = vadd.f32 0.0, %v4026
  %v4028 = vpop.f32.mrf.mxu0
  %v4029 = vadd.f32 0.0, %v4028
  %4030 = vmatmul.bf16.gmra.mxu0 %v1075
  %v4031 = vpop.f32.mrf.mxu0
  %v4032 = vadd.f32 0.0, %v4031
  %v4033 = vpop.f32.mrf.mxu0
  %v4034 = vadd.f32 0.0, %v4033
  %4035 = vmatmul.bf16.gmra.mxu0 %v1079
  %v4036 = vpop.f32.mrf.mxu0
  %v4037 = vadd.f32 0.0, %v4036
  %v4038 = vpop.f32.mrf.mxu0
  %v4039 = vadd.f32 0.0, %v4038
  %4040 = vmatmul.bf16.gmra.mxu0 %v1083
  %v4041 = vpop.f32.mrf.mxu0
  %v4042 = vadd.f32 0.0, %v4041
  %v4043 = vpop.f32.mrf.mxu0
  %v4044 = vadd.f32 0.0, %v4043
  %4045 = vmatmul.bf16.gmra.mxu0 %v1087
  %v4046 = vpop.f32.mrf.mxu0
  %v4047 = vadd.f32 0.0, %v4046
  %v4048 = vpop.f32.mrf.mxu0
  %v4049 = vadd.f32 0.0, %v4048
  %4050 = vmatmul.bf16.gmra.mxu0 %v1091
  %v4051 = vpop.f32.mrf.mxu0
  %v4052 = vadd.f32 0.0, %v4051
  %v4053 = vpop.f32.mrf.mxu0
  %v4054 = vadd.f32 0.0, %v4053
  %4055 = vdwg.mxu0
  %4056 = vmatpush.bf16.msra.mxu0 %v2250
  %4057 = vmatpush.bf16.msra.mxu0 %v2242
  %4058 = vmatpush.bf16.msra.mxu0 %v2234
  %4059 = vmatpush.bf16.msra.mxu0 %v2226
  %4060 = vmatpush.bf16.msra.mxu0 %v2218
  %4061 = vmatpush.bf16.msra.mxu0 %v2210
  %4062 = vmatpush.bf16.msra.mxu0 %v2202
  %4063 = vmatpush.bf16.msra.mxu0 %v2194
  %4064 = vmatmul.bf16.gmra.mxu0 %v1064
  %v4065 = vpop.f32.mrf.mxu0
  %v4066 = vadd.f32 %v4017, %v4065
  %v4067 = vpop.f32.mrf.mxu0
  %v4068 = vadd.f32 %v4019, %v4067
  %4069 = vmatmul.bf16.gmra.mxu0 %v1068
  %v4070 = vpop.f32.mrf.mxu0
  %v4071 = vadd.f32 %v4022, %v4070
  %v4072 = vpop.f32.mrf.mxu0
  %v4073 = vadd.f32 %v4024, %v4072
  %4074 = vmatmul.bf16.gmra.mxu0 %v1072
  %v4075 = vpop.f32.mrf.mxu0
  %v4076 = vadd.f32 %v4027, %v4075
  %v4077 = vpop.f32.mrf.mxu0
  %v4078 = vadd.f32 %v4029, %v4077
  %4079 = vmatmul.bf16.gmra.mxu0 %v1076
  %v4080 = vpop.f32.mrf.mxu0
  %v4081 = vadd.f32 %v4032, %v4080
  %v4082 = vpop.f32.mrf.mxu0
  %v4083 = vadd.f32 %v4034, %v4082
  %4084 = vmatmul.bf16.gmra.mxu0 %v1080
  %v4085 = vpop.f32.mrf.mxu0
  %v4086 = vadd.f32 %v4037, %v4085
  %v4087 = vpop.f32.mrf.mxu0
  %v4088 = vadd.f32 %v4039, %v4087
  %4089 = vmatmul.bf16.gmra.mxu0 %v1084
  %v4090 = vpop.f32.mrf.mxu0
  %v4091 = vadd.f32 %v4042, %v4090
  %v4092 = vpop.f32.mrf.mxu0
  %v4093 = vadd.f32 %v4044, %v4092
  %4094 = vmatmul.bf16.gmra.mxu0 %v1088
  %v4095 = vpop.f32.mrf.mxu0
  %v4096 = vadd.f32 %v4047, %v4095
  %v4097 = vpop.f32.mrf.mxu0
  %v4098 = vadd.f32 %v4049, %v4097
  %4099 = vmatmul.bf16.gmra.mxu0 %v1092
  %v4100 = vpop.f32.mrf.mxu0
  %v4101 = vadd.f32 %v4052, %v4100
  %v4102 = vpop.f32.mrf.mxu0
  %v4103 = vadd.f32 %v4054, %v4102
  %4104 = vdwg.mxu0
  %4105 = vmatpush.bf16.msra.mxu0 %v2314
  %4106 = vmatpush.bf16.msra.mxu0 %v2306
  %4107 = vmatpush.bf16.msra.mxu0 %v2298
  %4108 = vmatpush.bf16.msra.mxu0 %v2290
  %4109 = vmatpush.bf16.msra.mxu0 %v2282
  %4110 = vmatpush.bf16.msra.mxu0 %v2274
  %4111 = vmatpush.bf16.msra.mxu0 %v2266
  %4112 = vmatpush.bf16.msra.mxu0 %v2258
  %4113 = vmatmul.bf16.gmra.mxu0 %v1065
  %v4114 = vpop.f32.mrf.mxu0
  %v4115 = vadd.f32 %v4066, %v4114
  %v4116 = vpop.f32.mrf.mxu0
  %v4117 = vadd.f32 %v4068, %v4116
  %4118 = vmatmul.bf16.gmra.mxu0 %v1069
  %v4119 = vpop.f32.mrf.mxu0
  %v4120 = vadd.f32 %v4071, %v4119
  %v4121 = vpop.f32.mrf.mxu0
  %v4122 = vadd.f32 %v4073, %v4121
  %4123 = vmatmul.bf16.gmra.mxu0 %v1073
  %v4124 = vpop.f32.mrf.mxu0
  %v4125 = vadd.f32 %v4076, %v4124
  %v4126 = vpop.f32.mrf.mxu0
  %v4127 = vadd.f32 %v4078, %v4126
  %4128 = vmatmul.bf16.gmra.mxu0 %v1077
  %v4129 = vpop.f32.mrf.mxu0
  %v4130 = vadd.f32 %v4081, %v4129
  %v4131 = vpop.f32.mrf.mxu0
  %v4132 = vadd.f32 %v4083, %v4131
  %4133 = vmatmul.bf16.gmra.mxu0 %v1081
  %v4134 = vpop.f32.mrf.mxu0
  %v4135 = vadd.f32 %v4086, %v4134
  %v4136 = vpop.f32.mrf.mxu0
  %v4137 = vadd.f32 %v4088, %v4136
  %4138 = vmatmul.bf16.gmra.mxu0 %v1085
  %v4139 = vpop.f32.mrf.mxu0
  %v4140 = vadd.f32 %v4091, %v4139
  %v4141 = vpop.f32.mrf.mxu0
  %v4142 = vadd.f32 %v4093, %v4141
  %4143 = vmatmul.bf16.gmra.mxu0 %v1089
  %v4144 = vpop.f32.mrf.mxu0
  %v4145 = vadd.f32 %v4096, %v4144
  %v4146 = vpop.f32.mrf.mxu0
  %v4147 = vadd.f32 %v4098, %v4146
  %4148 = vmatmul.bf16.gmra.mxu0 %v1093
  %v4149 = vpop.f32.mrf.mxu0
  %v4150 = vadd.f32 %v4101, %v4149
  %v4151 = vpop.f32.mrf.mxu0
  %v4152 = vadd.f32 %v4103, %v4151
  %4153 = vdwg.mxu0
  %4154 = vmatpush.bf16.msra.mxu0 %v2378
  %4155 = vmatpush.bf16.msra.mxu0 %v2370
  %4156 = vmatpush.bf16.msra.mxu0 %v2362
  %4157 = vmatpush.bf16.msra.mxu0 %v2354
  %4158 = vmatpush.bf16.msra.mxu0 %v2346
  %4159 = vmatpush.bf16.msra.mxu0 %v2338
  %4160 = vmatpush.bf16.msra.mxu0 %v2330
  %4161 = vmatpush.bf16.msra.mxu0 %v2322
  %4162 = vmatmul.bf16.gmra.mxu0 %v1066
  %v4163 = vpop.f32.mrf.mxu0
  %v4164 = vadd.f32 %v4115, %v4163
  %v4165 = vpop.f32.mrf.mxu0
  %v4166 = vadd.f32 %v4117, %v4165
  %4167 = vmatmul.bf16.gmra.mxu0 %v1070
  %v4168 = vpop.f32.mrf.mxu0
  %v4169 = vadd.f32 %v4120, %v4168
  %v4170 = vpop.f32.mrf.mxu0
  %v4171 = vadd.f32 %v4122, %v4170
  %4172 = vmatmul.bf16.gmra.mxu0 %v1074
  %v4173 = vpop.f32.mrf.mxu0
  %v4174 = vadd.f32 %v4125, %v4173
  %v4175 = vpop.f32.mrf.mxu0
  %v4176 = vadd.f32 %v4127, %v4175
  %4177 = vmatmul.bf16.gmra.mxu0 %v1078
  %v4178 = vpop.f32.mrf.mxu0
  %v4179 = vadd.f32 %v4130, %v4178
  %v4180 = vpop.f32.mrf.mxu0
  %v4181 = vadd.f32 %v4132, %v4180
  %4182 = vmatmul.bf16.gmra.mxu0 %v1082
  %v4183 = vpop.f32.mrf.mxu0
  %v4184 = vadd.f32 %v4135, %v4183
  %v4185 = vpop.f32.mrf.mxu0
  %v4186 = vadd.f32 %v4137, %v4185
  %4187 = vmatmul.bf16.gmra.mxu0 %v1086
  %v4188 = vpop.f32.mrf.mxu0
  %v4189 = vadd.f32 %v4140, %v4188
  %v4190 = vpop.f32.mrf.mxu0
  %v4191 = vadd.f32 %v4142, %v4190
  %4192 = vmatmul.bf16.gmra.mxu0 %v1090
  %v4193 = vpop.f32.mrf.mxu0
  %v4194 = vadd.f32 %v4145, %v4193
  %v4195 = vpop.f32.mrf.mxu0
  %v4196 = vadd.f32 %v4147, %v4195
  %4197 = vmatmul.bf16.gmra.mxu0 %v1094
  %v4198 = vpop.f32.mrf.mxu0
  %v4199 = vadd.f32 %v4150, %v4198
  %v4200 = vpop.f32.mrf.mxu0
  %v4201 = vadd.f32 %v4152, %v4200
  %4202 = vdwg.mxu0
  %v4203 = vadd.f32 %v2792, %v2794
  %v4204 = vadd.f32 %v4203, %v2797
  %v4205 = vadd.f32 %v4204, %v2799
  %v4206 = vadd.f32 %v4205, %v2802
  %v4207 = vadd.f32 %v4206, %v2804
  %v4208 = vadd.f32 %v4207, %v2807
  %v4209 = vadd.f32 %v4208, %v2809
  %v4210 = vadd.f32 %v4209, %v2812
  %v4211 = vadd.f32 %v4210, %v2814
  %v4212 = vadd.f32 %v4211, %v2817
  %v4213 = vadd.f32 %v4212, %v2819
  %v4214 = vadd.f32 %v4213, %v2822
  %v4215 = vadd.f32 %v4214, %v2824
  %v4216 = vadd.f32 %v4215, %v2827
  %v4217 = vadd.f32 %v4216, %v2829
  %v4218 = vrot.slane %v4217, 4
  %v4219 = vadd.f32 %v4217, %v4218
  %v4220 = vrot.slane %v4219, 2
  %v4221 = vadd.f32 %v4219, %v4220
  %v4222 = vrot.slane %v4221, 1
  %v4223 = vadd.f32 %v4221, %v4222
  %v4224 = vadd.f32 %v2988, %v2990
  %v4225 = vadd.f32 %v4224, %v2993
  %v4226 = vadd.f32 %v4225, %v2995
  %v4227 = vadd.f32 %v4226, %v2998
  %v4228 = vadd.f32 %v4227, %v3000
  %v4229 = vadd.f32 %v4228, %v3003
  %v4230 = vadd.f32 %v4229, %v3005
  %v4231 = vadd.f32 %v4230, %v3008
  %v4232 = vadd.f32 %v4231, %v3010
  %v4233 = vadd.f32 %v4232, %v3013
  %v4234 = vadd.f32 %v4233, %v3015
  %v4235 = vadd.f32 %v4234, %v3018
  %v4236 = vadd.f32 %v4235, %v3020
  %v4237 = vadd.f32 %v4236, %v3023
  %v4238 = vadd.f32 %v4237, %v3025
  %v4239 = vrot.slane %v4238, 4
  %v4240 = vadd.f32 %v4238, %v4239
  %v4241 = vrot.slane %v4240, 2
  %v4242 = vadd.f32 %v4240, %v4241
  %v4243 = vrot.slane %v4242, 1
  %v4244 = vadd.f32 %v4242, %v4243
  %v4245 = vadd.f32 %v3184, %v3186
  %v4246 = vadd.f32 %v4245, %v3189
  %v4247 = vadd.f32 %v4246, %v3191
  %v4248 = vadd.f32 %v4247, %v3194
  %v4249 = vadd.f32 %v4248, %v3196
  %v4250 = vadd.f32 %v4249, %v3199
  %v4251 = vadd.f32 %v4250, %v3201
  %v4252 = vadd.f32 %v4251, %v3204
  %v4253 = vadd.f32 %v4252, %v3206
  %v4254 = vadd.f32 %v4253, %v3209
  %v4255 = vadd.f32 %v4254, %v3211
  %v4256 = vadd.f32 %v4255, %v3214
  %v4257 = vadd.f32 %v4256, %v3216
  %v4258 = vadd.f32 %v4257, %v3219
  %v4259 = vadd.f32 %v4258, %v3221
  %v4260 = vrot.slane %v4259, 4
  %v4261 = vadd.f32 %v4259, %v4260
  %v4262 = vrot.slane %v4261, 2
  %v4263 = vadd.f32 %v4261, %v4262
  %v4264 = vrot.slane %v4263, 1
  %v4265 = vadd.f32 %v4263, %v4264
  %v4266 = vadd.f32 %v3380, %v3382
  %v4267 = vadd.f32 %v4266, %v3385
  %v4268 = vadd.f32 %v4267, %v3387
  %v4269 = vadd.f32 %v4268, %v3390
  %v4270 = vadd.f32 %v4269, %v3392
  %v4271 = vadd.f32 %v4270, %v3395
  %v4272 = vadd.f32 %v4271, %v3397
  %v4273 = vadd.f32 %v4272, %v3400
  %v4274 = vadd.f32 %v4273, %v3402
  %v4275 = vadd.f32 %v4274, %v3405
  %v4276 = vadd.f32 %v4275, %v3407
  %v4277 = vadd.f32 %v4276, %v3410
  %v4278 = vadd.f32 %v4277, %v3412
  %v4279 = vadd.f32 %v4278, %v3415
  %v4280 = vadd.f32 %v4279, %v3417
  %v4281 = vrot.slane %v4280, 4
  %v4282 = vadd.f32 %v4280, %v4281
  %v4283 = vrot.slane %v4282, 2
  %v4284 = vadd.f32 %v4282, %v4283
  %v4285 = vrot.slane %v4284, 1
  %v4286 = vadd.f32 %v4284, %v4285
  %v4287 = vadd.f32 %v3576, %v3578
  %v4288 = vadd.f32 %v4287, %v3581
  %v4289 = vadd.f32 %v4288, %v3583
  %v4290 = vadd.f32 %v4289, %v3586
  %v4291 = vadd.f32 %v4290, %v3588
  %v4292 = vadd.f32 %v4291, %v3591
  %v4293 = vadd.f32 %v4292, %v3593
  %v4294 = vadd.f32 %v4293, %v3596
  %v4295 = vadd.f32 %v4294, %v3598
  %v4296 = vadd.f32 %v4295, %v3601
  %v4297 = vadd.f32 %v4296, %v3603
  %v4298 = vadd.f32 %v4297, %v3606
  %v4299 = vadd.f32 %v4298, %v3608
  %v4300 = vadd.f32 %v4299, %v3611
  %v4301 = vadd.f32 %v4300, %v3613
  %v4302 = vrot.slane %v4301, 4
  %v4303 = vadd.f32 %v4301, %v4302
  %v4304 = vrot.slane %v4303, 2
  %v4305 = vadd.f32 %v4303, %v4304
  %v4306 = vrot.slane %v4305, 1
  %v4307 = vadd.f32 %v4305, %v4306
  %v4308 = vadd.f32 %v3772, %v3774
  %v4309 = vadd.f32 %v4308, %v3777
  %v4310 = vadd.f32 %v4309, %v3779
  %v4311 = vadd.f32 %v4310, %v3782
  %v4312 = vadd.f32 %v4311, %v3784
  %v4313 = vadd.f32 %v4312, %v3787
  %v4314 = vadd.f32 %v4313, %v3789
  %v4315 = vadd.f32 %v4314, %v3792
  %v4316 = vadd.f32 %v4315, %v3794
  %v4317 = vadd.f32 %v4316, %v3797
  %v4318 = vadd.f32 %v4317, %v3799
  %v4319 = vadd.f32 %v4318, %v3802
  %v4320 = vadd.f32 %v4319, %v3804
  %v4321 = vadd.f32 %v4320, %v3807
  %v4322 = vadd.f32 %v4321, %v3809
  %v4323 = vrot.slane %v4322, 4
  %v4324 = vadd.f32 %v4322, %v4323
  %v4325 = vrot.slane %v4324, 2
  %v4326 = vadd.f32 %v4324, %v4325
  %v4327 = vrot.slane %v4326, 1
  %v4328 = vadd.f32 %v4326, %v4327
  %v4329 = vadd.f32 %v3968, %v3970
  %v4330 = vadd.f32 %v4329, %v3973
  %v4331 = vadd.f32 %v4330, %v3975
  %v4332 = vadd.f32 %v4331, %v3978
  %v4333 = vadd.f32 %v4332, %v3980
  %v4334 = vadd.f32 %v4333, %v3983
  %v4335 = vadd.f32 %v4334, %v3985
  %v4336 = vadd.f32 %v4335, %v3988
  %v4337 = vadd.f32 %v4336, %v3990
  %v4338 = vadd.f32 %v4337, %v3993
  %v4339 = vadd.f32 %v4338, %v3995
  %v4340 = vadd.f32 %v4339, %v3998
  %v4341 = vadd.f32 %v4340, %v4000
  %v4342 = vadd.f32 %v4341, %v4003
  %v4343 = vadd.f32 %v4342, %v4005
  %v4344 = vrot.slane %v4343, 4
  %v4345 = vadd.f32 %v4343, %v4344
  %v4346 = vrot.slane %v4345, 2
  %v4347 = vadd.f32 %v4345, %v4346
  %v4348 = vrot.slane %v4347, 1
  %v4349 = vadd.f32 %v4347, %v4348
  %v4350 = vadd.f32 %v4164, %v4166
  %v4351 = vadd.f32 %v4350, %v4169
  %v4352 = vadd.f32 %v4351, %v4171
  %v4353 = vadd.f32 %v4352, %v4174
  %v4354 = vadd.f32 %v4353, %v4176
  %v4355 = vadd.f32 %v4354, %v4179
  %v4356 = vadd.f32 %v4355, %v4181
  %v4357 = vadd.f32 %v4356, %v4184
  %v4358 = vadd.f32 %v4357, %v4186
  %v4359 = vadd.f32 %v4358, %v4189
  %v4360 = vadd.f32 %v4359, %v4191
  %v4361 = vadd.f32 %v4360, %v4194
  %v4362 = vadd.f32 %v4361, %v4196
  %v4363 = vadd.f32 %v4362, %v4199
  %v4364 = vadd.f32 %v4363, %v4201
  %v4365 = vrot.slane %v4364, 4
  %v4366 = vadd.f32 %v4364, %v4365
  %v4367 = vrot.slane %v4366, 2
  %v4368 = vadd.f32 %v4366, %v4367
  %v4369 = vrot.slane %v4368, 1
  %v4370 = vadd.f32 %v4368, %v4369
  %v4371 = vmul.f32 %v4223, %v555
  %v4372 = vmul.f32 %v4244, %v555
  %v4373 = vmul.f32 %v4265, %v555
  %v4374 = vmul.f32 %v4286, %v555
  %v4375 = vmul.f32 %v4307, %v555
  %v4376 = vmul.f32 %v4328, %v555
  %v4377 = vmul.f32 %v4349, %v555
  %v4378 = vmul.f32 %v4370, %v555
  %v4379 = vsub.f32 %v2792, %v4371
  %v4380 = vsub.f32 %v2988, %v4372
  %v4381 = vsub.f32 %v3184, %v4373
  %v4382 = vsub.f32 %v3380, %v4374
  %v4383 = vsub.f32 %v3576, %v4375
  %v4384 = vsub.f32 %v3772, %v4376
  %v4385 = vsub.f32 %v3968, %v4377
  %v4386 = vsub.f32 %v4164, %v4378
  %v4387 = vsub.f32 %v2794, %v4371
  %v4388 = vsub.f32 %v2990, %v4372
  %v4389 = vsub.f32 %v3186, %v4373
  %v4390 = vsub.f32 %v3382, %v4374
  %v4391 = vsub.f32 %v3578, %v4375
  %v4392 = vsub.f32 %v3774, %v4376
  %v4393 = vsub.f32 %v3970, %v4377
  %v4394 = vsub.f32 %v4166, %v4378
  %v4395 = vsub.f32 %v2797, %v4371
  %v4396 = vsub.f32 %v2993, %v4372
  %v4397 = vsub.f32 %v3189, %v4373
  %v4398 = vsub.f32 %v3385, %v4374
  %v4399 = vsub.f32 %v3581, %v4375
  %v4400 = vsub.f32 %v3777, %v4376
  %v4401 = vsub.f32 %v3973, %v4377
  %v4402 = vsub.f32 %v4169, %v4378
  %v4403 = vsub.f32 %v2799, %v4371
  %v4404 = vsub.f32 %v2995, %v4372
  %v4405 = vsub.f32 %v3191, %v4373
  %v4406 = vsub.f32 %v3387, %v4374
  %v4407 = vsub.f32 %v3583, %v4375
  %v4408 = vsub.f32 %v3779, %v4376
  %v4409 = vsub.f32 %v3975, %v4377
  %v4410 = vsub.f32 %v4171, %v4378
  %v4411 = vsub.f32 %v2802, %v4371
  %v4412 = vsub.f32 %v2998, %v4372
  %v4413 = vsub.f32 %v3194, %v4373
  %v4414 = vsub.f32 %v3390, %v4374
  %v4415 = vsub.f32 %v3586, %v4375
  %v4416 = vsub.f32 %v3782, %v4376
  %v4417 = vsub.f32 %v3978, %v4377
  %v4418 = vsub.f32 %v4174, %v4378
  %v4419 = vsub.f32 %v2804, %v4371
  %v4420 = vsub.f32 %v3000, %v4372
  %v4421 = vsub.f32 %v3196, %v4373
  %v4422 = vsub.f32 %v3392, %v4374
  %v4423 = vsub.f32 %v3588, %v4375
  %v4424 = vsub.f32 %v3784, %v4376
  %v4425 = vsub.f32 %v3980, %v4377
  %v4426 = vsub.f32 %v4176, %v4378
  %v4427 = vsub.f32 %v2807, %v4371
  %v4428 = vsub.f32 %v3003, %v4372
  %v4429 = vsub.f32 %v3199, %v4373
  %v4430 = vsub.f32 %v3395, %v4374
  %v4431 = vsub.f32 %v3591, %v4375
  %v4432 = vsub.f32 %v3787, %v4376
  %v4433 = vsub.f32 %v3983, %v4377
  %v4434 = vsub.f32 %v4179, %v4378
  %v4435 = vsub.f32 %v2809, %v4371
  %v4436 = vsub.f32 %v3005, %v4372
  %v4437 = vsub.f32 %v3201, %v4373
  %v4438 = vsub.f32 %v3397, %v4374
  %v4439 = vsub.f32 %v3593, %v4375
  %v4440 = vsub.f32 %v3789, %v4376
  %v4441 = vsub.f32 %v3985, %v4377
  %v4442 = vsub.f32 %v4181, %v4378
  %v4443 = vsub.f32 %v2812, %v4371
  %v4444 = vsub.f32 %v3008, %v4372
  %v4445 = vsub.f32 %v3204, %v4373
  %v4446 = vsub.f32 %v3400, %v4374
  %v4447 = vsub.f32 %v3596, %v4375
  %v4448 = vsub.f32 %v3792, %v4376
  %v4449 = vsub.f32 %v3988, %v4377
  %v4450 = vsub.f32 %v4184, %v4378
  %v4451 = vsub.f32 %v2814, %v4371
  %v4452 = vsub.f32 %v3010, %v4372
  %v4453 = vsub.f32 %v3206, %v4373
  %v4454 = vsub.f32 %v3402, %v4374
  %v4455 = vsub.f32 %v3598, %v4375
  %v4456 = vsub.f32 %v3794, %v4376
  %v4457 = vsub.f32 %v3990, %v4377
  %v4458 = vsub.f32 %v4186, %v4378
  %v4459 = vsub.f32 %v2817, %v4371
  %v4460 = vsub.f32 %v3013, %v4372
  %v4461 = vsub.f32 %v3209, %v4373
  %v4462 = vsub.f32 %v3405, %v4374
  %v4463 = vsub.f32 %v3601, %v4375
  %v4464 = vsub.f32 %v3797, %v4376
  %v4465 = vsub.f32 %v3993, %v4377
  %v4466 = vsub.f32 %v4189, %v4378
  %v4467 = vsub.f32 %v2819, %v4371
  %v4468 = vsub.f32 %v3015, %v4372
  %v4469 = vsub.f32 %v3211, %v4373
  %v4470 = vsub.f32 %v3407, %v4374
  %v4471 = vsub.f32 %v3603, %v4375
  %v4472 = vsub.f32 %v3799, %v4376
  %v4473 = vsub.f32 %v3995, %v4377
  %v4474 = vsub.f32 %v4191, %v4378
  %v4475 = vsub.f32 %v2822, %v4371
  %v4476 = vsub.f32 %v3018, %v4372
  %v4477 = vsub.f32 %v3214, %v4373
  %v4478 = vsub.f32 %v3410, %v4374
  %v4479 = vsub.f32 %v3606, %v4375
  %v4480 = vsub.f32 %v3802, %v4376
  %v4481 = vsub.f32 %v3998, %v4377
  %v4482 = vsub.f32 %v4194, %v4378
  %v4483 = vsub.f32 %v2824, %v4371
  %v4484 = vsub.f32 %v3020, %v4372
  %v4485 = vsub.f32 %v3216, %v4373
  %v4486 = vsub.f32 %v3412, %v4374
  %v4487 = vsub.f32 %v3608, %v4375
  %v4488 = vsub.f32 %v3804, %v4376
  %v4489 = vsub.f32 %v4000, %v4377
  %v4490 = vsub.f32 %v4196, %v4378
  %v4491 = vsub.f32 %v2827, %v4371
  %v4492 = vsub.f32 %v3023, %v4372
  %v4493 = vsub.f32 %v3219, %v4373
  %v4494 = vsub.f32 %v3415, %v4374
  %v4495 = vsub.f32 %v3611, %v4375
  %v4496 = vsub.f32 %v3807, %v4376
  %v4497 = vsub.f32 %v4003, %v4377
  %v4498 = vsub.f32 %v4199, %v4378
  %v4499 = vsub.f32 %v2829, %v4371
  %v4500 = vsub.f32 %v3025, %v4372
  %v4501 = vsub.f32 %v3221, %v4373
  %v4502 = vsub.f32 %v3417, %v4374
  %v4503 = vsub.f32 %v3613, %v4375
  %v4504 = vsub.f32 %v3809, %v4376
  %v4505 = vsub.f32 %v4005, %v4377
  %v4506 = vsub.f32 %v4201, %v4378
  %v4507 = vmul.f32 %v4379, %v4379
  %v4508 = vmul.f32 %v4380, %v4380
  %v4509 = vmul.f32 %v4381, %v4381
  %v4510 = vmul.f32 %v4382, %v4382
  %v4511 = vmul.f32 %v4383, %v4383
  %v4512 = vmul.f32 %v4384, %v4384
  %v4513 = vmul.f32 %v4385, %v4385
  %v4514 = vmul.f32 %v4386, %v4386
  %v4515 = vmul.f32 %v4387, %v4387
  %v4516 = vmul.f32 %v4388, %v4388
  %v4517 = vmul.f32 %v4389, %v4389
  %v4518 = vmul.f32 %v4390, %v4390
  %v4519 = vmul.f32 %v4391, %v4391
  %v4520 = vmul.f32 %v4392, %v4392
  %v4521 = vmul.f32 %v4393, %v4393
  %v4522 = vmul.f32 %v4394, %v4394
  %v4523 = vmul.f32 %v4395, %v4395
  %v4524 = vmul.f32 %v4396, %v4396
  %v4525 = vmul.f32 %v4397, %v4397
  %v4526 = vmul.f32 %v4398, %v4398
  %v4527 = vmul.f32 %v4399, %v4399
  %v4528 = vmul.f32 %v4400, %v4400
  %v4529 = vmul.f32 %v4401, %v4401
  %v4530 = vmul.f32 %v4402, %v4402
  %v4531 = vmul.f32 %v4403, %v4403
  %v4532 = vmul.f32 %v4404, %v4404
  %v4533 = vmul.f32 %v4405, %v4405
  %v4534 = vmul.f32 %v4406, %v4406
  %v4535 = vmul.f32 %v4407, %v4407
  %v4536 = vmul.f32 %v4408, %v4408
  %v4537 = vmul.f32 %v4409, %v4409
  %v4538 = vmul.f32 %v4410, %v4410
  %v4539 = vmul.f32 %v4411, %v4411
  %v4540 = vmul.f32 %v4412, %v4412
  %v4541 = vmul.f32 %v4413, %v4413
  %v4542 = vmul.f32 %v4414, %v4414
  %v4543 = vmul.f32 %v4415, %v4415
  %v4544 = vmul.f32 %v4416, %v4416
  %v4545 = vmul.f32 %v4417, %v4417
  %v4546 = vmul.f32 %v4418, %v4418
  %v4547 = vmul.f32 %v4419, %v4419
  %v4548 = vmul.f32 %v4420, %v4420
  %v4549 = vmul.f32 %v4421, %v4421
  %v4550 = vmul.f32 %v4422, %v4422
  %v4551 = vmul.f32 %v4423, %v4423
  %v4552 = vmul.f32 %v4424, %v4424
  %v4553 = vmul.f32 %v4425, %v4425
  %v4554 = vmul.f32 %v4426, %v4426
  %v4555 = vmul.f32 %v4427, %v4427
  %v4556 = vmul.f32 %v4428, %v4428
  %v4557 = vmul.f32 %v4429, %v4429
  %v4558 = vmul.f32 %v4430, %v4430
  %v4559 = vmul.f32 %v4431, %v4431
  %v4560 = vmul.f32 %v4432, %v4432
  %v4561 = vmul.f32 %v4433, %v4433
  %v4562 = vmul.f32 %v4434, %v4434
  %v4563 = vmul.f32 %v4435, %v4435
  %v4564 = vmul.f32 %v4436, %v4436
  %v4565 = vmul.f32 %v4437, %v4437
  %v4566 = vmul.f32 %v4438, %v4438
  %v4567 = vmul.f32 %v4439, %v4439
  %v4568 = vmul.f32 %v4440, %v4440
  %v4569 = vmul.f32 %v4441, %v4441
  %v4570 = vmul.f32 %v4442, %v4442
  %v4571 = vmul.f32 %v4443, %v4443
  %v4572 = vmul.f32 %v4444, %v4444
  %v4573 = vmul.f32 %v4445, %v4445
  %v4574 = vmul.f32 %v4446, %v4446
  %v4575 = vmul.f32 %v4447, %v4447
  %v4576 = vmul.f32 %v4448, %v4448
  %v4577 = vmul.f32 %v4449, %v4449
  %v4578 = vmul.f32 %v4450, %v4450
  %v4579 = vmul.f32 %v4451, %v4451
  %v4580 = vmul.f32 %v4452, %v4452
  %v4581 = vmul.f32 %v4453, %v4453
  %v4582 = vmul.f32 %v4454, %v4454
  %v4583 = vmul.f32 %v4455, %v4455
  %v4584 = vmul.f32 %v4456, %v4456
  %v4585 = vmul.f32 %v4457, %v4457
  %v4586 = vmul.f32 %v4458, %v4458
  %v4587 = vmul.f32 %v4459, %v4459
  %v4588 = vmul.f32 %v4460, %v4460
  %v4589 = vmul.f32 %v4461, %v4461
  %v4590 = vmul.f32 %v4462, %v4462
  %v4591 = vmul.f32 %v4463, %v4463
  %v4592 = vmul.f32 %v4464, %v4464
  %v4593 = vmul.f32 %v4465, %v4465
  %v4594 = vmul.f32 %v4466, %v4466
  %v4595 = vmul.f32 %v4467, %v4467
  %v4596 = vmul.f32 %v4468, %v4468
  %v4597 = vmul.f32 %v4469, %v4469
  %v4598 = vmul.f32 %v4470, %v4470
  %v4599 = vmul.f32 %v4471, %v4471
  %v4600 = vmul.f32 %v4472, %v4472
  %v4601 = vmul.f32 %v4473, %v4473
  %v4602 = vmul.f32 %v4474, %v4474
  %v4603 = vmul.f32 %v4475, %v4475
  %v4604 = vmul.f32 %v4476, %v4476
  %v4605 = vmul.f32 %v4477, %v4477
  %v4606 = vmul.f32 %v4478, %v4478
  %v4607 = vmul.f32 %v4479, %v4479
  %v4608 = vmul.f32 %v4480, %v4480
  %v4609 = vmul.f32 %v4481, %v4481
  %v4610 = vmul.f32 %v4482, %v4482
  %v4611 = vmul.f32 %v4483, %v4483
  %v4612 = vmul.f32 %v4484, %v4484
  %v4613 = vmul.f32 %v4485, %v4485
  %v4614 = vmul.f32 %v4486, %v4486
  %v4615 = vmul.f32 %v4487, %v4487
  %v4616 = vmul.f32 %v4488, %v4488
  %v4617 = vmul.f32 %v4489, %v4489
  %v4618 = vmul.f32 %v4490, %v4490
  %v4619 = vmul.f32 %v4491, %v4491
  %v4620 = vmul.f32 %v4492, %v4492
  %v4621 = vmul.f32 %v4493, %v4493
  %v4622 = vmul.f32 %v4494, %v4494
  %v4623 = vmul.f32 %v4495, %v4495
  %v4624 = vmul.f32 %v4496, %v4496
  %v4625 = vmul.f32 %v4497, %v4497
  %v4626 = vmul.f32 %v4498, %v4498
  %v4627 = vmul.f32 %v4499, %v4499
  %v4628 = vmul.f32 %v4500, %v4500
  %v4629 = vmul.f32 %v4501, %v4501
  %v4630 = vmul.f32 %v4502, %v4502
  %v4631 = vmul.f32 %v4503, %v4503
  %v4632 = vmul.f32 %v4504, %v4504
  %v4633 = vmul.f32 %v4505, %v4505
  %v4634 = vmul.f32 %v4506, %v4506
  %v4635 = vadd.f32 %v4507, %v4515
  %v4636 = vadd.f32 %v4635, %v4523
  %v4637 = vadd.f32 %v4636, %v4531
  %v4638 = vadd.f32 %v4637, %v4539
  %v4639 = vadd.f32 %v4638, %v4547
  %v4640 = vadd.f32 %v4639, %v4555
  %v4641 = vadd.f32 %v4640, %v4563
  %v4642 = vadd.f32 %v4641, %v4571
  %v4643 = vadd.f32 %v4642, %v4579
  %v4644 = vadd.f32 %v4643, %v4587
  %v4645 = vadd.f32 %v4644, %v4595
  %v4646 = vadd.f32 %v4645, %v4603
  %v4647 = vadd.f32 %v4646, %v4611
  %v4648 = vadd.f32 %v4647, %v4619
  %v4649 = vadd.f32 %v4648, %v4627
  %v4650 = vrot.slane %v4649, 4
  %v4651 = vadd.f32 %v4649, %v4650
  %v4652 = vrot.slane %v4651, 2
  %v4653 = vadd.f32 %v4651, %v4652
  %v4654 = vrot.slane %v4653, 1
  %v4655 = vadd.f32 %v4653, %v4654
  %v4656 = vadd.f32 %v4508, %v4516
  %v4657 = vadd.f32 %v4656, %v4524
  %v4658 = vadd.f32 %v4657, %v4532
  %v4659 = vadd.f32 %v4658, %v4540
  %v4660 = vadd.f32 %v4659, %v4548
  %v4661 = vadd.f32 %v4660, %v4556
  %v4662 = vadd.f32 %v4661, %v4564
  %v4663 = vadd.f32 %v4662, %v4572
  %v4664 = vadd.f32 %v4663, %v4580
  %v4665 = vadd.f32 %v4664, %v4588
  %v4666 = vadd.f32 %v4665, %v4596
  %v4667 = vadd.f32 %v4666, %v4604
  %v4668 = vadd.f32 %v4667, %v4612
  %v4669 = vadd.f32 %v4668, %v4620
  %v4670 = vadd.f32 %v4669, %v4628
  %v4671 = vrot.slane %v4670, 4
  %v4672 = vadd.f32 %v4670, %v4671
  %v4673 = vrot.slane %v4672, 2
  %v4674 = vadd.f32 %v4672, %v4673
  %v4675 = vrot.slane %v4674, 1
  %v4676 = vadd.f32 %v4674, %v4675
  %v4677 = vadd.f32 %v4509, %v4517
  %v4678 = vadd.f32 %v4677, %v4525
  %v4679 = vadd.f32 %v4678, %v4533
  %v4680 = vadd.f32 %v4679, %v4541
  %v4681 = vadd.f32 %v4680, %v4549
  %v4682 = vadd.f32 %v4681, %v4557
  %v4683 = vadd.f32 %v4682, %v4565
  %v4684 = vadd.f32 %v4683, %v4573
  %v4685 = vadd.f32 %v4684, %v4581
  %v4686 = vadd.f32 %v4685, %v4589
  %v4687 = vadd.f32 %v4686, %v4597
  %v4688 = vadd.f32 %v4687, %v4605
  %v4689 = vadd.f32 %v4688, %v4613
  %v4690 = vadd.f32 %v4689, %v4621
  %v4691 = vadd.f32 %v4690, %v4629
  %v4692 = vrot.slane %v4691, 4
  %v4693 = vadd.f32 %v4691, %v4692
  %v4694 = vrot.slane %v4693, 2
  %v4695 = vadd.f32 %v4693, %v4694
  %v4696 = vrot.slane %v4695, 1
  %v4697 = vadd.f32 %v4695, %v4696
  %v4698 = vadd.f32 %v4510, %v4518
  %v4699 = vadd.f32 %v4698, %v4526
  %v4700 = vadd.f32 %v4699, %v4534
  %v4701 = vadd.f32 %v4700, %v4542
  %v4702 = vadd.f32 %v4701, %v4550
  %v4703 = vadd.f32 %v4702, %v4558
  %v4704 = vadd.f32 %v4703, %v4566
  %v4705 = vadd.f32 %v4704, %v4574
  %v4706 = vadd.f32 %v4705, %v4582
  %v4707 = vadd.f32 %v4706, %v4590
  %v4708 = vadd.f32 %v4707, %v4598
  %v4709 = vadd.f32 %v4708, %v4606
  %v4710 = vadd.f32 %v4709, %v4614
  %v4711 = vadd.f32 %v4710, %v4622
  %v4712 = vadd.f32 %v4711, %v4630
  %v4713 = vrot.slane %v4712, 4
  %v4714 = vadd.f32 %v4712, %v4713
  %v4715 = vrot.slane %v4714, 2
  %v4716 = vadd.f32 %v4714, %v4715
  %v4717 = vrot.slane %v4716, 1
  %v4718 = vadd.f32 %v4716, %v4717
  %v4719 = vadd.f32 %v4511, %v4519
  %v4720 = vadd.f32 %v4719, %v4527
  %v4721 = vadd.f32 %v4720, %v4535
  %v4722 = vadd.f32 %v4721, %v4543
  %v4723 = vadd.f32 %v4722, %v4551
  %v4724 = vadd.f32 %v4723, %v4559
  %v4725 = vadd.f32 %v4724, %v4567
  %v4726 = vadd.f32 %v4725, %v4575
  %v4727 = vadd.f32 %v4726, %v4583
  %v4728 = vadd.f32 %v4727, %v4591
  %v4729 = vadd.f32 %v4728, %v4599
  %v4730 = vadd.f32 %v4729, %v4607
  %v4731 = vadd.f32 %v4730, %v4615
  %v4732 = vadd.f32 %v4731, %v4623
  %v4733 = vadd.f32 %v4732, %v4631
  %v4734 = vrot.slane %v4733, 4
  %v4735 = vadd.f32 %v4733, %v4734
  %v4736 = vrot.slane %v4735, 2
  %v4737 = vadd.f32 %v4735, %v4736
  %v4738 = vrot.slane %v4737, 1
  %v4739 = vadd.f32 %v4737, %v4738
  %v4740 = vadd.f32 %v4512, %v4520
  %v4741 = vadd.f32 %v4740, %v4528
  %v4742 = vadd.f32 %v4741, %v4536
  %v4743 = vadd.f32 %v4742, %v4544
  %v4744 = vadd.f32 %v4743, %v4552
  %v4745 = vadd.f32 %v4744, %v4560
  %v4746 = vadd.f32 %v4745, %v4568
  %v4747 = vadd.f32 %v4746, %v4576
  %v4748 = vadd.f32 %v4747, %v4584
  %v4749 = vadd.f32 %v4748, %v4592
  %v4750 = vadd.f32 %v4749, %v4600
  %v4751 = vadd.f32 %v4750, %v4608
  %v4752 = vadd.f32 %v4751, %v4616
  %v4753 = vadd.f32 %v4752, %v4624
  %v4754 = vadd.f32 %v4753, %v4632
  %v4755 = vrot.slane %v4754, 4
  %v4756 = vadd.f32 %v4754, %v4755
  %v4757 = vrot.slane %v4756, 2
  %v4758 = vadd.f32 %v4756, %v4757
  %v4759 = vrot.slane %v4758, 1
  %v4760 = vadd.f32 %v4758, %v4759
  %v4761 = vadd.f32 %v4513, %v4521
  %v4762 = vadd.f32 %v4761, %v4529
  %v4763 = vadd.f32 %v4762, %v4537
  %v4764 = vadd.f32 %v4763, %v4545
  %v4765 = vadd.f32 %v4764, %v4553
  %v4766 = vadd.f32 %v4765, %v4561
  %v4767 = vadd.f32 %v4766, %v4569
  %v4768 = vadd.f32 %v4767, %v4577
  %v4769 = vadd.f32 %v4768, %v4585
  %v4770 = vadd.f32 %v4769, %v4593
  %v4771 = vadd.f32 %v4770, %v4601
  %v4772 = vadd.f32 %v4771, %v4609
  %v4773 = vadd.f32 %v4772, %v4617
  %v4774 = vadd.f32 %v4773, %v4625
  %v4775 = vadd.f32 %v4774, %v4633
  %v4776 = vrot.slane %v4775, 4
  %v4777 = vadd.f32 %v4775, %v4776
  %v4778 = vrot.slane %v4777, 2
  %v4779 = vadd.f32 %v4777, %v4778
  %v4780 = vrot.slane %v4779, 1
  %v4781 = vadd.f32 %v4779, %v4780
  %v4782 = vadd.f32 %v4514, %v4522
  %v4783 = vadd.f32 %v4782, %v4530
  %v4784 = vadd.f32 %v4783, %v4538
  %v4785 = vadd.f32 %v4784, %v4546
  %v4786 = vadd.f32 %v4785, %v4554
  %v4787 = vadd.f32 %v4786, %v4562
  %v4788 = vadd.f32 %v4787, %v4570
  %v4789 = vadd.f32 %v4788, %v4578
  %v4790 = vadd.f32 %v4789, %v4586
  %v4791 = vadd.f32 %v4790, %v4594
  %v4792 = vadd.f32 %v4791, %v4602
  %v4793 = vadd.f32 %v4792, %v4610
  %v4794 = vadd.f32 %v4793, %v4618
  %v4795 = vadd.f32 %v4794, %v4626
  %v4796 = vadd.f32 %v4795, %v4634
  %v4797 = vrot.slane %v4796, 4
  %v4798 = vadd.f32 %v4796, %v4797
  %v4799 = vrot.slane %v4798, 2
  %v4800 = vadd.f32 %v4798, %v4799
  %v4801 = vrot.slane %v4800, 1
  %v4802 = vadd.f32 %v4800, %v4801
  %v4803 = vmul.f32 %v4655, %v555
  %v4804 = vmul.f32 %v4676, %v555
  %v4805 = vmul.f32 %v4697, %v555
  %v4806 = vmul.f32 %v4718, %v555
  %v4807 = vmul.f32 %v4739, %v555
  %v4808 = vmul.f32 %v4760, %v555
  %v4809 = vmul.f32 %v4781, %v555
  %v4810 = vmul.f32 %v4802, %v555
  %v4811 = vld [vmem:[%s8] sm:$0xff]
  %v4812 = vadd.f32 %v4803, 1e-05
  %v4813 = vadd.f32 %v4804, 1e-05
  %v4814 = vadd.f32 %v4805, 1e-05
  %v4815 = vadd.f32 %v4806, 1e-05
  %v4816 = vadd.f32 %v4807, 1e-05
  %v4817 = vadd.f32 %v4808, 1e-05
  %v4818 = vadd.f32 %v4809, 1e-05
  %v4819 = vadd.f32 %v4810, 1e-05
  %v4820 = vrsqrt.pop %v4812
  %v4821 = vmul.f32 %v4820, %v4812
  %v4822 = vmul.f32 %v4821, %v4820
  %v4823 = vmul.f32 0.5, %v4822
  %v4824 = vsub.f32 1.5, %v4823
  %v4825 = vmul.f32 %v4820, %v4824
  %vm4826 = vweird.f32 %v4812
  %vm4827 = vweird.f32 %v4820
  %vm4828 = vmor %vm4826, %vm4827
  %v4829 = vsel %vm4828, %v4820, %v4825
  %v4830 = vrsqrt.pop %v4813
  %v4831 = vmul.f32 %v4830, %v4813
  %v4832 = vmul.f32 %v4831, %v4830
  %v4833 = vmul.f32 0.5, %v4832
  %v4834 = vsub.f32 1.5, %v4833
  %v4835 = vmul.f32 %v4830, %v4834
  %vm4836 = vweird.f32 %v4813
  %vm4837 = vweird.f32 %v4830
  %vm4838 = vmor %vm4836, %vm4837
  %v4839 = vsel %vm4838, %v4830, %v4835
  %v4840 = vrsqrt.pop %v4814
  %v4841 = vmul.f32 %v4840, %v4814
  %v4842 = vmul.f32 %v4841, %v4840
  %v4843 = vmul.f32 0.5, %v4842
  %v4844 = vsub.f32 1.5, %v4843
  %v4845 = vmul.f32 %v4840, %v4844
  %vm4846 = vweird.f32 %v4814
  %vm4847 = vweird.f32 %v4840
  %vm4848 = vmor %vm4846, %vm4847
  %v4849 = vsel %vm4848, %v4840, %v4845
  %v4850 = vrsqrt.pop %v4815
  %v4851 = vmul.f32 %v4850, %v4815
  %v4852 = vmul.f32 %v4851, %v4850
  %v4853 = vmul.f32 0.5, %v4852
  %v4854 = vsub.f32 1.5, %v4853
  %v4855 = vmul.f32 %v4850, %v4854
  %vm4856 = vweird.f32 %v4815
  %vm4857 = vweird.f32 %v4850
  %vm4858 = vmor %vm4856, %vm4857
  %v4859 = vsel %vm4858, %v4850, %v4855
  %v4860 = vrsqrt.pop %v4816
  %v4861 = vmul.f32 %v4860, %v4816
  %v4862 = vmul.f32 %v4861, %v4860
  %v4863 = vmul.f32 0.5, %v4862
  %v4864 = vsub.f32 1.5, %v4863
  %v4865 = vmul.f32 %v4860, %v4864
  %vm4866 = vweird.f32 %v4816
  %vm4867 = vweird.f32 %v4860
  %vm4868 = vmor %vm4866, %vm4867
  %v4869 = vsel %vm4868, %v4860, %v4865
  %v4870 = vrsqrt.pop %v4817
  %v4871 = vmul.f32 %v4870, %v4817
  %v4872 = vmul.f32 %v4871, %v4870
  %v4873 = vmul.f32 0.5, %v4872
  %v4874 = vsub.f32 1.5, %v4873
  %v4875 = vmul.f32 %v4870, %v4874
  %vm4876 = vweird.f32 %v4817
  %vm4877 = vweird.f32 %v4870
  %vm4878 = vmor %vm4876, %vm4877
  %v4879 = vsel %vm4878, %v4870, %v4875
  %v4880 = vrsqrt.pop %v4818
  %v4881 = vmul.f32 %v4880, %v4818
  %v4882 = vmul.f32 %v4881, %v4880
  %v4883 = vmul.f32 0.5, %v4882
  %v4884 = vsub.f32 1.5, %v4883
  %v4885 = vmul.f32 %v4880, %v4884
  %vm4886 = vweird.f32 %v4818
  %vm4887 = vweird.f32 %v4880
  %vm4888 = vmor %vm4886, %vm4887
  %v4889 = vsel %vm4888, %v4880, %v4885
  %v4890 = vrsqrt.pop %v4819
  %v4891 = vmul.f32 %v4890, %v4819
  %v4892 = vmul.f32 %v4891, %v4890
  %v4893 = vmul.f32 0.5, %v4892
  %v4894 = vsub.f32 1.5, %v4893
  %v4895 = vmul.f32 %v4890, %v4894
  %vm4896 = vweird.f32 %v4819
  %vm4897 = vweird.f32 %v4890
  %vm4898 = vmor %vm4896, %vm4897
  %v4899 = vsel %vm4898, %v4890, %v4895
  %v4908 = vrot.slane %v4839, 7
  %v4909 = vrot.slane %v4849, 6
  %v4910 = vrot.slane %v4859, 5
  %v4911 = vrot.slane %v4869, 4
  %v4912 = vrot.slane %v4879, 3
  %v4913 = vrot.slane %v4889, 2
  %v4914 = vrot.slane %v4899, 1
  %v4915 = vsel %vm828, %v4829, %v4908
  %v4916 = vsel %vm830, %v4909, %v4910
  %v4917 = vsel %vm832, %v4915, %v4916
  %vm4918 = vcmask 1044484
  %v4919 = vsel %vm4918, %v4911, %v4912
  %vm4920 = vcmask 1046534
  %v4921 = vsel %vm4920, %v4913, %v4914
  %vm4922 = vcmask 1045508
  %v4923 = vsel %vm4922, %v4919, %v4921
  %vm4924 = vcmask 1043456
  %v4925 = vsel %vm4924, %v4917, %v4923
  %v4927 = vmul.f32 %v4811, %v4925
  %v4928 = vld [vmem:[%s9] sm:$0xff]
  %v4930 = vperm.slane %v4927, 0
  %v4931 = vperm.slane %v4927, 1
  %v4932 = vperm.slane %v4927, 2
  %v4933 = vperm.slane %v4927, 3
  %v4934 = vperm.slane %v4927, 4
  %v4935 = vperm.slane %v4927, 5
  %v4936 = vperm.slane %v4927, 6
  %v4937 = vperm.slane %v4927, 7
  %v4946 = vmul.f32 %v4371, %v4930
  %v4947 = vmul.f32 %v4372, %v4931
  %v4948 = vmul.f32 %v4373, %v4932
  %v4949 = vmul.f32 %v4374, %v4933
  %v4950 = vmul.f32 %v4375, %v4934
  %v4951 = vmul.f32 %v4376, %v4935
  %v4952 = vmul.f32 %v4377, %v4936
  %v4953 = vmul.f32 %v4378, %v4937
  %v4962 = vrot.slane %v4947, 7
  %v4963 = vrot.slane %v4948, 6
  %v4964 = vrot.slane %v4949, 5
  %v4965 = vrot.slane %v4950, 4
  %v4966 = vrot.slane %v4951, 3
  %v4967 = vrot.slane %v4952, 2
  %v4968 = vrot.slane %v4953, 1
  %v4969 = vsel %vm828, %v4946, %v4962
  %v4970 = vsel %vm830, %v4963, %v4964
  %v4971 = vsel %vm832, %v4969, %v4970
  %v4972 = vsel %vm4918, %v4965, %v4966
  %v4973 = vsel %vm4920, %v4967, %v4968
  %v4974 = vsel %vm4922, %v4972, %v4973
  %v4975 = vsel %vm4924, %v4971, %v4974
  %v4977 = vsub.f32 %v4928, %v4975
  %v4978 = vmul.f32 %v2792, %v4930
  %v4979 = vmul.f32 %v2988, %v4931
  %v4980 = vmul.f32 %v3184, %v4932
  %v4981 = vmul.f32 %v3380, %v4933
  %v4982 = vmul.f32 %v3576, %v4934
  %v4983 = vmul.f32 %v3772, %v4935
  %v4984 = vmul.f32 %v3968, %v4936
  %v4985 = vmul.f32 %v4164, %v4937
  %v4986 = vmul.f32 %v2794, %v4930
  %v4987 = vmul.f32 %v2990, %v4931
  %v4988 = vmul.f32 %v3186, %v4932
  %v4989 = vmul.f32 %v3382, %v4933
  %v4990 = vmul.f32 %v3578, %v4934
  %v4991 = vmul.f32 %v3774, %v4935
  %v4992 = vmul.f32 %v3970, %v4936
  %v4993 = vmul.f32 %v4166, %v4937
  %v4994 = vmul.f32 %v2797, %v4930
  %v4995 = vmul.f32 %v2993, %v4931
  %v4996 = vmul.f32 %v3189, %v4932
  %v4997 = vmul.f32 %v3385, %v4933
  %v4998 = vmul.f32 %v3581, %v4934
  %v4999 = vmul.f32 %v3777, %v4935
  %v5000 = vmul.f32 %v3973, %v4936
  %v5001 = vmul.f32 %v4169, %v4937
  %v5002 = vmul.f32 %v2799, %v4930
  %v5003 = vmul.f32 %v2995, %v4931
  %v5004 = vmul.f32 %v3191, %v4932
  %v5005 = vmul.f32 %v3387, %v4933
  %v5006 = vmul.f32 %v3583, %v4934
  %v5007 = vmul.f32 %v3779, %v4935
  %v5008 = vmul.f32 %v3975, %v4936
  %v5009 = vmul.f32 %v4171, %v4937
  %v5010 = vmul.f32 %v2802, %v4930
  %v5011 = vmul.f32 %v2998, %v4931
  %v5012 = vmul.f32 %v3194, %v4932
  %v5013 = vmul.f32 %v3390, %v4933
  %v5014 = vmul.f32 %v3586, %v4934
  %v5015 = vmul.f32 %v3782, %v4935
  %v5016 = vmul.f32 %v3978, %v4936
  %v5017 = vmul.f32 %v4174, %v4937
  %v5018 = vmul.f32 %v2804, %v4930
  %v5019 = vmul.f32 %v3000, %v4931
  %v5020 = vmul.f32 %v3196, %v4932
  %v5021 = vmul.f32 %v3392, %v4933
  %v5022 = vmul.f32 %v3588, %v4934
  %v5023 = vmul.f32 %v3784, %v4935
  %v5024 = vmul.f32 %v3980, %v4936
  %v5025 = vmul.f32 %v4176, %v4937
  %v5026 = vmul.f32 %v2807, %v4930
  %v5027 = vmul.f32 %v3003, %v4931
  %v5028 = vmul.f32 %v3199, %v4932
  %v5029 = vmul.f32 %v3395, %v4933
  %v5030 = vmul.f32 %v3591, %v4934
  %v5031 = vmul.f32 %v3787, %v4935
  %v5032 = vmul.f32 %v3983, %v4936
  %v5033 = vmul.f32 %v4179, %v4937
  %v5034 = vmul.f32 %v2809, %v4930
  %v5035 = vmul.f32 %v3005, %v4931
  %v5036 = vmul.f32 %v3201, %v4932
  %v5037 = vmul.f32 %v3397, %v4933
  %v5038 = vmul.f32 %v3593, %v4934
  %v5039 = vmul.f32 %v3789, %v4935
  %v5040 = vmul.f32 %v3985, %v4936
  %v5041 = vmul.f32 %v4181, %v4937
  %v5042 = vmul.f32 %v2812, %v4930
  %v5043 = vmul.f32 %v3008, %v4931
  %v5044 = vmul.f32 %v3204, %v4932
  %v5045 = vmul.f32 %v3400, %v4933
  %v5046 = vmul.f32 %v3596, %v4934
  %v5047 = vmul.f32 %v3792, %v4935
  %v5048 = vmul.f32 %v3988, %v4936
  %v5049 = vmul.f32 %v4184, %v4937
  %v5050 = vmul.f32 %v2814, %v4930
  %v5051 = vmul.f32 %v3010, %v4931
  %v5052 = vmul.f32 %v3206, %v4932
  %v5053 = vmul.f32 %v3402, %v4933
  %v5054 = vmul.f32 %v3598, %v4934
  %v5055 = vmul.f32 %v3794, %v4935
  %v5056 = vmul.f32 %v3990, %v4936
  %v5057 = vmul.f32 %v4186, %v4937
  %v5058 = vmul.f32 %v2817, %v4930
  %v5059 = vmul.f32 %v3013, %v4931
  %v5060 = vmul.f32 %v3209, %v4932
  %v5061 = vmul.f32 %v3405, %v4933
  %v5062 = vmul.f32 %v3601, %v4934
  %v5063 = vmul.f32 %v3797, %v4935
  %v5064 = vmul.f32 %v3993, %v4936
  %v5065 = vmul.f32 %v4189, %v4937
  %v5066 = vmul.f32 %v2819, %v4930
  %v5067 = vmul.f32 %v3015, %v4931
  %v5068 = vmul.f32 %v3211, %v4932
  %v5069 = vmul.f32 %v3407, %v4933
  %v5070 = vmul.f32 %v3603, %v4934
  %v5071 = vmul.f32 %v3799, %v4935
  %v5072 = vmul.f32 %v3995, %v4936
  %v5073 = vmul.f32 %v4191, %v4937
  %v5074 = vmul.f32 %v2822, %v4930
  %v5075 = vmul.f32 %v3018, %v4931
  %v5076 = vmul.f32 %v3214, %v4932
  %v5077 = vmul.f32 %v3410, %v4933
  %v5078 = vmul.f32 %v3606, %v4934
  %v5079 = vmul.f32 %v3802, %v4935
  %v5080 = vmul.f32 %v3998, %v4936
  %v5081 = vmul.f32 %v4194, %v4937
  %v5082 = vmul.f32 %v2824, %v4930
  %v5083 = vmul.f32 %v3020, %v4931
  %v5084 = vmul.f32 %v3216, %v4932
  %v5085 = vmul.f32 %v3412, %v4933
  %v5086 = vmul.f32 %v3608, %v4934
  %v5087 = vmul.f32 %v3804, %v4935
  %v5088 = vmul.f32 %v4000, %v4936
  %v5089 = vmul.f32 %v4196, %v4937
  %v5090 = vmul.f32 %v2827, %v4930
  %v5091 = vmul.f32 %v3023, %v4931
  %v5092 = vmul.f32 %v3219, %v4932
  %v5093 = vmul.f32 %v3415, %v4933
  %v5094 = vmul.f32 %v3611, %v4934
  %v5095 = vmul.f32 %v3807, %v4935
  %v5096 = vmul.f32 %v4003, %v4936
  %v5097 = vmul.f32 %v4199, %v4937
  %v5098 = vmul.f32 %v2829, %v4930
  %v5099 = vmul.f32 %v3025, %v4931
  %v5100 = vmul.f32 %v3221, %v4932
  %v5101 = vmul.f32 %v3417, %v4933
  %v5102 = vmul.f32 %v3613, %v4934
  %v5103 = vmul.f32 %v3809, %v4935
  %v5104 = vmul.f32 %v4005, %v4936
  %v5105 = vmul.f32 %v4201, %v4937
  %v5107 = vperm.slane %v4977, 0
  %v5108 = vperm.slane %v4977, 1
  %v5109 = vperm.slane %v4977, 2
  %v5110 = vperm.slane %v4977, 3
  %v5111 = vperm.slane %v4977, 4
  %v5112 = vperm.slane %v4977, 5
  %v5113 = vperm.slane %v4977, 6
  %v5114 = vperm.slane %v4977, 7
  %v5123 = vadd.f32 %v4978, %v5107
  %v5124 = vadd.f32 %v4979, %v5108
  %v5125 = vadd.f32 %v4980, %v5109
  %v5126 = vadd.f32 %v4981, %v5110
  %v5127 = vadd.f32 %v4982, %v5111
  %v5128 = vadd.f32 %v4983, %v5112
  %v5129 = vadd.f32 %v4984, %v5113
  %v5130 = vadd.f32 %v4985, %v5114
  %v5131 = vadd.f32 %v4986, %v5107
  %v5132 = vadd.f32 %v4987, %v5108
  %v5133 = vadd.f32 %v4988, %v5109
  %v5134 = vadd.f32 %v4989, %v5110
  %v5135 = vadd.f32 %v4990, %v5111
  %v5136 = vadd.f32 %v4991, %v5112
  %v5137 = vadd.f32 %v4992, %v5113
  %v5138 = vadd.f32 %v4993, %v5114
  %v5139 = vadd.f32 %v4994, %v5107
  %v5140 = vadd.f32 %v4995, %v5108
  %v5141 = vadd.f32 %v4996, %v5109
  %v5142 = vadd.f32 %v4997, %v5110
  %v5143 = vadd.f32 %v4998, %v5111
  %v5144 = vadd.f32 %v4999, %v5112
  %v5145 = vadd.f32 %v5000, %v5113
  %v5146 = vadd.f32 %v5001, %v5114
  %v5147 = vadd.f32 %v5002, %v5107
  %v5148 = vadd.f32 %v5003, %v5108
  %v5149 = vadd.f32 %v5004, %v5109
  %v5150 = vadd.f32 %v5005, %v5110
  %v5151 = vadd.f32 %v5006, %v5111
  %v5152 = vadd.f32 %v5007, %v5112
  %v5153 = vadd.f32 %v5008, %v5113
  %v5154 = vadd.f32 %v5009, %v5114
  %v5155 = vadd.f32 %v5010, %v5107
  %v5156 = vadd.f32 %v5011, %v5108
  %v5157 = vadd.f32 %v5012, %v5109
  %v5158 = vadd.f32 %v5013, %v5110
  %v5159 = vadd.f32 %v5014, %v5111
  %v5160 = vadd.f32 %v5015, %v5112
  %v5161 = vadd.f32 %v5016, %v5113
  %v5162 = vadd.f32 %v5017, %v5114
  %v5163 = vadd.f32 %v5018, %v5107
  %v5164 = vadd.f32 %v5019, %v5108
  %v5165 = vadd.f32 %v5020, %v5109
  %v5166 = vadd.f32 %v5021, %v5110
  %v5167 = vadd.f32 %v5022, %v5111
  %v5168 = vadd.f32 %v5023, %v5112
  %v5169 = vadd.f32 %v5024, %v5113
  %v5170 = vadd.f32 %v5025, %v5114
  %v5171 = vadd.f32 %v5026, %v5107
  %v5172 = vadd.f32 %v5027, %v5108
  %v5173 = vadd.f32 %v5028, %v5109
  %v5174 = vadd.f32 %v5029, %v5110
  %v5175 = vadd.f32 %v5030, %v5111
  %v5176 = vadd.f32 %v5031, %v5112
  %v5177 = vadd.f32 %v5032, %v5113
  %v5178 = vadd.f32 %v5033, %v5114
  %v5179 = vadd.f32 %v5034, %v5107
  %v5180 = vadd.f32 %v5035, %v5108
  %v5181 = vadd.f32 %v5036, %v5109
  %v5182 = vadd.f32 %v5037, %v5110
  %v5183 = vadd.f32 %v5038, %v5111
  %v5184 = vadd.f32 %v5039, %v5112
  %v5185 = vadd.f32 %v5040, %v5113
  %v5186 = vadd.f32 %v5041, %v5114
  %v5187 = vadd.f32 %v5042, %v5107
  %v5188 = vadd.f32 %v5043, %v5108
  %v5189 = vadd.f32 %v5044, %v5109
  %v5190 = vadd.f32 %v5045, %v5110
  %v5191 = vadd.f32 %v5046, %v5111
  %v5192 = vadd.f32 %v5047, %v5112
  %v5193 = vadd.f32 %v5048, %v5113
  %v5194 = vadd.f32 %v5049, %v5114
  %v5195 = vadd.f32 %v5050, %v5107
  %v5196 = vadd.f32 %v5051, %v5108
  %v5197 = vadd.f32 %v5052, %v5109
  %v5198 = vadd.f32 %v5053, %v5110
  %v5199 = vadd.f32 %v5054, %v5111
  %v5200 = vadd.f32 %v5055, %v5112
  %v5201 = vadd.f32 %v5056, %v5113
  %v5202 = vadd.f32 %v5057, %v5114
  %v5203 = vadd.f32 %v5058, %v5107
  %v5204 = vadd.f32 %v5059, %v5108
  %v5205 = vadd.f32 %v5060, %v5109
  %v5206 = vadd.f32 %v5061, %v5110
  %v5207 = vadd.f32 %v5062, %v5111
  %v5208 = vadd.f32 %v5063, %v5112
  %v5209 = vadd.f32 %v5064, %v5113
  %v5210 = vadd.f32 %v5065, %v5114
  %v5211 = vadd.f32 %v5066, %v5107
  %v5212 = vadd.f32 %v5067, %v5108
  %v5213 = vadd.f32 %v5068, %v5109
  %v5214 = vadd.f32 %v5069, %v5110
  %v5215 = vadd.f32 %v5070, %v5111
  %v5216 = vadd.f32 %v5071, %v5112
  %v5217 = vadd.f32 %v5072, %v5113
  %v5218 = vadd.f32 %v5073, %v5114
  %v5219 = vadd.f32 %v5074, %v5107
  %v5220 = vadd.f32 %v5075, %v5108
  %v5221 = vadd.f32 %v5076, %v5109
  %v5222 = vadd.f32 %v5077, %v5110
  %v5223 = vadd.f32 %v5078, %v5111
  %v5224 = vadd.f32 %v5079, %v5112
  %v5225 = vadd.f32 %v5080, %v5113
  %v5226 = vadd.f32 %v5081, %v5114
  %v5227 = vadd.f32 %v5082, %v5107
  %v5228 = vadd.f32 %v5083, %v5108
  %v5229 = vadd.f32 %v5084, %v5109
  %v5230 = vadd.f32 %v5085, %v5110
  %v5231 = vadd.f32 %v5086, %v5111
  %v5232 = vadd.f32 %v5087, %v5112
  %v5233 = vadd.f32 %v5088, %v5113
  %v5234 = vadd.f32 %v5089, %v5114
  %v5235 = vadd.f32 %v5090, %v5107
  %v5236 = vadd.f32 %v5091, %v5108
  %v5237 = vadd.f32 %v5092, %v5109
  %v5238 = vadd.f32 %v5093, %v5110
  %v5239 = vadd.f32 %v5094, %v5111
  %v5240 = vadd.f32 %v5095, %v5112
  %v5241 = vadd.f32 %v5096, %v5113
  %v5242 = vadd.f32 %v5097, %v5114
  %v5243 = vadd.f32 %v5098, %v5107
  %v5244 = vadd.f32 %v5099, %v5108
  %v5245 = vadd.f32 %v5100, %v5109
  %v5246 = vadd.f32 %v5101, %v5110
  %v5247 = vadd.f32 %v5102, %v5111
  %v5248 = vadd.f32 %v5103, %v5112
  %v5249 = vadd.f32 %v5104, %v5113
  %v5250 = vadd.f32 %v5105, %v5114
  %v5251 = vmax.f32 %v5123, 0.0
  %v5252 = vmax.f32 %v5124, 0.0
  %v5253 = vmax.f32 %v5125, 0.0
  %v5254 = vmax.f32 %v5126, 0.0
  %v5255 = vmax.f32 %v5127, 0.0
  %v5256 = vmax.f32 %v5128, 0.0
  %v5257 = vmax.f32 %v5129, 0.0
  %v5258 = vmax.f32 %v5130, 0.0
  %v5259 = vmax.f32 %v5131, 0.0
  %v5260 = vmax.f32 %v5132, 0.0
  %v5261 = vmax.f32 %v5133, 0.0
  %v5262 = vmax.f32 %v5134, 0.0
  %v5263 = vmax.f32 %v5135, 0.0
  %v5264 = vmax.f32 %v5136, 0.0
  %v5265 = vmax.f32 %v5137, 0.0
  %v5266 = vmax.f32 %v5138, 0.0
  %v5267 = vmax.f32 %v5139, 0.0
  %v5268 = vmax.f32 %v5140, 0.0
  %v5269 = vmax.f32 %v5141, 0.0
  %v5270 = vmax.f32 %v5142, 0.0
  %v5271 = vmax.f32 %v5143, 0.0
  %v5272 = vmax.f32 %v5144, 0.0
  %v5273 = vmax.f32 %v5145, 0.0
  %v5274 = vmax.f32 %v5146, 0.0
  %v5275 = vmax.f32 %v5147, 0.0
  %v5276 = vmax.f32 %v5148, 0.0
  %v5277 = vmax.f32 %v5149, 0.0
  %v5278 = vmax.f32 %v5150, 0.0
  %v5279 = vmax.f32 %v5151, 0.0
  %v5280 = vmax.f32 %v5152, 0.0
  %v5281 = vmax.f32 %v5153, 0.0
  %v5282 = vmax.f32 %v5154, 0.0
  %v5283 = vmax.f32 %v5155, 0.0
  %v5284 = vmax.f32 %v5156, 0.0
  %v5285 = vmax.f32 %v5157, 0.0
  %v5286 = vmax.f32 %v5158, 0.0
  %v5287 = vmax.f32 %v5159, 0.0
  %v5288 = vmax.f32 %v5160, 0.0
  %v5289 = vmax.f32 %v5161, 0.0
  %v5290 = vmax.f32 %v5162, 0.0
  %v5291 = vmax.f32 %v5163, 0.0
  %v5292 = vmax.f32 %v5164, 0.0
  %v5293 = vmax.f32 %v5165, 0.0
  %v5294 = vmax.f32 %v5166, 0.0
  %v5295 = vmax.f32 %v5167, 0.0
  %v5296 = vmax.f32 %v5168, 0.0
  %v5297 = vmax.f32 %v5169, 0.0
  %v5298 = vmax.f32 %v5170, 0.0
  %v5299 = vmax.f32 %v5171, 0.0
  %v5300 = vmax.f32 %v5172, 0.0
  %v5301 = vmax.f32 %v5173, 0.0
  %v5302 = vmax.f32 %v5174, 0.0
  %v5303 = vmax.f32 %v5175, 0.0
  %v5304 = vmax.f32 %v5176, 0.0
  %v5305 = vmax.f32 %v5177, 0.0
  %v5306 = vmax.f32 %v5178, 0.0
  %v5307 = vmax.f32 %v5179, 0.0
  %v5308 = vmax.f32 %v5180, 0.0
  %v5309 = vmax.f32 %v5181, 0.0
  %v5310 = vmax.f32 %v5182, 0.0
  %v5311 = vmax.f32 %v5183, 0.0
  %v5312 = vmax.f32 %v5184, 0.0
  %v5313 = vmax.f32 %v5185, 0.0
  %v5314 = vmax.f32 %v5186, 0.0
  %v5315 = vmax.f32 %v5187, 0.0
  %v5316 = vmax.f32 %v5188, 0.0
  %v5317 = vmax.f32 %v5189, 0.0
  %v5318 = vmax.f32 %v5190, 0.0
  %v5319 = vmax.f32 %v5191, 0.0
  %v5320 = vmax.f32 %v5192, 0.0
  %v5321 = vmax.f32 %v5193, 0.0
  %v5322 = vmax.f32 %v5194, 0.0
  %v5323 = vmax.f32 %v5195, 0.0
  %v5324 = vmax.f32 %v5196, 0.0
  %v5325 = vmax.f32 %v5197, 0.0
  %v5326 = vmax.f32 %v5198, 0.0
  %v5327 = vmax.f32 %v5199, 0.0
  %v5328 = vmax.f32 %v5200, 0.0
  %v5329 = vmax.f32 %v5201, 0.0
  %v5330 = vmax.f32 %v5202, 0.0
  %v5331 = vmax.f32 %v5203, 0.0
  %v5332 = vmax.f32 %v5204, 0.0
  %v5333 = vmax.f32 %v5205, 0.0
  %v5334 = vmax.f32 %v5206, 0.0
  %v5335 = vmax.f32 %v5207, 0.0
  %v5336 = vmax.f32 %v5208, 0.0
  %v5337 = vmax.f32 %v5209, 0.0
  %v5338 = vmax.f32 %v5210, 0.0
  %v5339 = vmax.f32 %v5211, 0.0
  %v5340 = vmax.f32 %v5212, 0.0
  %v5341 = vmax.f32 %v5213, 0.0
  %v5342 = vmax.f32 %v5214, 0.0
  %v5343 = vmax.f32 %v5215, 0.0
  %v5344 = vmax.f32 %v5216, 0.0
  %v5345 = vmax.f32 %v5217, 0.0
  %v5346 = vmax.f32 %v5218, 0.0
  %v5347 = vmax.f32 %v5219, 0.0
  %v5348 = vmax.f32 %v5220, 0.0
  %v5349 = vmax.f32 %v5221, 0.0
  %v5350 = vmax.f32 %v5222, 0.0
  %v5351 = vmax.f32 %v5223, 0.0
  %v5352 = vmax.f32 %v5224, 0.0
  %v5353 = vmax.f32 %v5225, 0.0
  %v5354 = vmax.f32 %v5226, 0.0
  %v5355 = vmax.f32 %v5227, 0.0
  %v5356 = vmax.f32 %v5228, 0.0
  %v5357 = vmax.f32 %v5229, 0.0
  %v5358 = vmax.f32 %v5230, 0.0
  %v5359 = vmax.f32 %v5231, 0.0
  %v5360 = vmax.f32 %v5232, 0.0
  %v5361 = vmax.f32 %v5233, 0.0
  %v5362 = vmax.f32 %v5234, 0.0
  %v5363 = vmax.f32 %v5235, 0.0
  %v5364 = vmax.f32 %v5236, 0.0
  %v5365 = vmax.f32 %v5237, 0.0
  %v5366 = vmax.f32 %v5238, 0.0
  %v5367 = vmax.f32 %v5239, 0.0
  %v5368 = vmax.f32 %v5240, 0.0
  %v5369 = vmax.f32 %v5241, 0.0
  %v5370 = vmax.f32 %v5242, 0.0
  %v5371 = vmax.f32 %v5243, 0.0
  %v5372 = vmax.f32 %v5244, 0.0
  %v5373 = vmax.f32 %v5245, 0.0
  %v5374 = vmax.f32 %v5246, 0.0
  %v5375 = vmax.f32 %v5247, 0.0
  %v5376 = vmax.f32 %v5248, 0.0
  %v5377 = vmax.f32 %v5249, 0.0
  %v5378 = vmax.f32 %v5250, 0.0
  %v5379 = vpack.c.bf16 %v5259, %v5251
  %v5380 = vpack.c.bf16 %v5260, %v5252
  %v5381 = vpack.c.bf16 %v5261, %v5253
  %v5382 = vpack.c.bf16 %v5262, %v5254
  %v5383 = vpack.c.bf16 %v5263, %v5255
  %v5384 = vpack.c.bf16 %v5264, %v5256
  %v5385 = vpack.c.bf16 %v5265, %v5257
  %v5386 = vpack.c.bf16 %v5266, %v5258
  %v5387 = vpack.c.bf16 %v5275, %v5267
  %v5388 = vpack.c.bf16 %v5276, %v5268
  %v5389 = vpack.c.bf16 %v5277, %v5269
  %v5390 = vpack.c.bf16 %v5278, %v5270
  %v5391 = vpack.c.bf16 %v5279, %v5271
  %v5392 = vpack.c.bf16 %v5280, %v5272
  %v5393 = vpack.c.bf16 %v5281, %v5273
  %v5394 = vpack.c.bf16 %v5282, %v5274
  %v5395 = vpack.c.bf16 %v5291, %v5283
  %v5396 = vpack.c.bf16 %v5292, %v5284
  %v5397 = vpack.c.bf16 %v5293, %v5285
  %v5398 = vpack.c.bf16 %v5294, %v5286
  %v5399 = vpack.c.bf16 %v5295, %v5287
  %v5400 = vpack.c.bf16 %v5296, %v5288
  %v5401 = vpack.c.bf16 %v5297, %v5289
  %v5402 = vpack.c.bf16 %v5298, %v5290
  %v5403 = vpack.c.bf16 %v5307, %v5299
  %v5404 = vpack.c.bf16 %v5308, %v5300
  %v5405 = vpack.c.bf16 %v5309, %v5301
  %v5406 = vpack.c.bf16 %v5310, %v5302
  %v5407 = vpack.c.bf16 %v5311, %v5303
  %v5408 = vpack.c.bf16 %v5312, %v5304
  %v5409 = vpack.c.bf16 %v5313, %v5305
  %v5410 = vpack.c.bf16 %v5314, %v5306
  %v5411 = vpack.c.bf16 %v5323, %v5315
  %v5412 = vpack.c.bf16 %v5324, %v5316
  %v5413 = vpack.c.bf16 %v5325, %v5317
  %v5414 = vpack.c.bf16 %v5326, %v5318
  %v5415 = vpack.c.bf16 %v5327, %v5319
  %v5416 = vpack.c.bf16 %v5328, %v5320
  %v5417 = vpack.c.bf16 %v5329, %v5321
  %v5418 = vpack.c.bf16 %v5330, %v5322
  %v5419 = vpack.c.bf16 %v5339, %v5331
  %v5420 = vpack.c.bf16 %v5340, %v5332
  %v5421 = vpack.c.bf16 %v5341, %v5333
  %v5422 = vpack.c.bf16 %v5342, %v5334
  %v5423 = vpack.c.bf16 %v5343, %v5335
  %v5424 = vpack.c.bf16 %v5344, %v5336
  %v5425 = vpack.c.bf16 %v5345, %v5337
  %v5426 = vpack.c.bf16 %v5346, %v5338
  %v5427 = vpack.c.bf16 %v5355, %v5347
  %v5428 = vpack.c.bf16 %v5356, %v5348
  %v5429 = vpack.c.bf16 %v5357, %v5349
  %v5430 = vpack.c.bf16 %v5358, %v5350
  %v5431 = vpack.c.bf16 %v5359, %v5351
  %v5432 = vpack.c.bf16 %v5360, %v5352
  %v5433 = vpack.c.bf16 %v5361, %v5353
  %v5434 = vpack.c.bf16 %v5362, %v5354
  %v5435 = vpack.c.bf16 %v5371, %v5363
  %v5436 = vpack.c.bf16 %v5372, %v5364
  %v5437 = vpack.c.bf16 %v5373, %v5365
  %v5438 = vpack.c.bf16 %v5374, %v5366
  %v5439 = vpack.c.bf16 %v5375, %v5367
  %v5440 = vpack.c.bf16 %v5376, %v5368
  %v5441 = vpack.c.bf16 %v5377, %v5369
  %v5442 = vpack.c.bf16 %v5378, %v5370
  %s5443 = smul.u32 4, 128
  %s5444 = smul.u32 %s5443, 4
  %s5445 = sshll.u32 %s5444, 4
  %5446 = dma.done %s91, %s5445
  %v5447 = vld [vmem:[#allocation4] sm:$0xff]
  %v5448 = vld [vmem:[#allocation4 + $0x8] sm:$0xff]
  %v5449 = vld [vmem:[#allocation4 + $0x10] sm:$0xff]
  %v5450 = vld [vmem:[#allocation4 + $0x18] sm:$0xff]
  %v5451 = vld [vmem:[#allocation4 + $0x20] sm:$0xff]
  %v5452 = vld [vmem:[#allocation4 + $0x28] sm:$0xff]
  %v5453 = vld [vmem:[#allocation4 + $0x30] sm:$0xff]
  %v5454 = vld [vmem:[#allocation4 + $0x38] sm:$0xff]
  %v5455 = vld [vmem:[#allocation4 + $0x40] sm:$0xff]
  %v5456 = vld [vmem:[#allocation4 + $0x48] sm:$0xff]
  %v5457 = vld [vmem:[#allocation4 + $0x50] sm:$0xff]
  %v5458 = vld [vmem:[#allocation4 + $0x58] sm:$0xff]
  %v5459 = vld [vmem:[#allocation4 + $0x60] sm:$0xff]
  %v5460 = vld [vmem:[#allocation4 + $0x68] sm:$0xff]
  %v5461 = vld [vmem:[#allocation4 + $0x70] sm:$0xff]
  %v5462 = vld [vmem:[#allocation4 + $0x78] sm:$0xff]
  %v5463 = vld [vmem:[#allocation4 + $0x80] sm:$0xff]
  %v5464 = vld [vmem:[#allocation4 + $0x88] sm:$0xff]
  %v5465 = vld [vmem:[#allocation4 + $0x90] sm:$0xff]
  %v5466 = vld [vmem:[#allocation4 + $0x98] sm:$0xff]
  %v5467 = vld [vmem:[#allocation4 + $0xa0] sm:$0xff]
  %v5468 = vld [vmem:[#allocation4 + $0xa8] sm:$0xff]
  %v5469 = vld [vmem:[#allocation4 + $0xb0] sm:$0xff]
  %v5470 = vld [vmem:[#allocation4 + $0xb8] sm:$0xff]
  %v5471 = vld [vmem:[#allocation4 + $0xc0] sm:$0xff]
  %v5472 = vld [vmem:[#allocation4 + $0xc8] sm:$0xff]
  %v5473 = vld [vmem:[#allocation4 + $0xd0] sm:$0xff]
  %v5474 = vld [vmem:[#allocation4 + $0xd8] sm:$0xff]
  %v5475 = vld [vmem:[#allocation4 + $0xe0] sm:$0xff]
  %v5476 = vld [vmem:[#allocation4 + $0xe8] sm:$0xff]
  %v5477 = vld [vmem:[#allocation4 + $0xf0] sm:$0xff]
  %v5478 = vld [vmem:[#allocation4 + $0xf8] sm:$0xff]
  %v5479 = vld [vmem:[#allocation4 + $0x100] sm:$0xff]
  %v5480 = vld [vmem:[#allocation4 + $0x108] sm:$0xff]
  %v5481 = vld [vmem:[#allocation4 + $0x110] sm:$0xff]
  %v5482 = vld [vmem:[#allocation4 + $0x118] sm:$0xff]
  %v5483 = vld [vmem:[#allocation4 + $0x120] sm:$0xff]
  %v5484 = vld [vmem:[#allocation4 + $0x128] sm:$0xff]
  %v5485 = vld [vmem:[#allocation4 + $0x130] sm:$0xff]
  %v5486 = vld [vmem:[#allocation4 + $0x138] sm:$0xff]
  %v5487 = vld [vmem:[#allocation4 + $0x140] sm:$0xff]
  %v5488 = vld [vmem:[#allocation4 + $0x148] sm:$0xff]
  %v5489 = vld [vmem:[#allocation4 + $0x150] sm:$0xff]
  %v5490 = vld [vmem:[#allocation4 + $0x158] sm:$0xff]
  %v5491 = vld [vmem:[#allocation4 + $0x160] sm:$0xff]
  %v5492 = vld [vmem:[#allocation4 + $0x168] sm:$0xff]
  %v5493 = vld [vmem:[#allocation4 + $0x170] sm:$0xff]
  %v5494 = vld [vmem:[#allocation4 + $0x178] sm:$0xff]
  %v5495 = vld [vmem:[#allocation4 + $0x180] sm:$0xff]
  %v5496 = vld [vmem:[#allocation4 + $0x188] sm:$0xff]
  %v5497 = vld [vmem:[#allocation4 + $0x190] sm:$0xff]
  %v5498 = vld [vmem:[#allocation4 + $0x198] sm:$0xff]
  %v5499 = vld [vmem:[#allocation4 + $0x1a0] sm:$0xff]
  %v5500 = vld [vmem:[#allocation4 + $0x1a8] sm:$0xff]
  %v5501 = vld [vmem:[#allocation4 + $0x1b0] sm:$0xff]
  %v5502 = vld [vmem:[#allocation4 + $0x1b8] sm:$0xff]
  %v5503 = vld [vmem:[#allocation4 + $0x1c0] sm:$0xff]
  %v5504 = vld [vmem:[#allocation4 + $0x1c8] sm:$0xff]
  %v5505 = vld [vmem:[#allocation4 + $0x1d0] sm:$0xff]
  %v5506 = vld [vmem:[#allocation4 + $0x1d8] sm:$0xff]
  %v5507 = vld [vmem:[#allocation4 + $0x1e0] sm:$0xff]
  %v5508 = vld [vmem:[#allocation4 + $0x1e8] sm:$0xff]
  %v5509 = vld [vmem:[#allocation4 + $0x1f0] sm:$0xff]
  %v5510 = vld [vmem:[#allocation4 + $0x1f8] sm:$0xff]
  %v5511 = vld [vmem:[#allocation4 + $0x200] sm:$0xff]
  %v5512 = vld [vmem:[#allocation4 + $0x208] sm:$0xff]
  %v5513 = vld [vmem:[#allocation4 + $0x210] sm:$0xff]
  %v5514 = vld [vmem:[#allocation4 + $0x218] sm:$0xff]
  %v5515 = vld [vmem:[#allocation4 + $0x220] sm:$0xff]
  %v5516 = vld [vmem:[#allocation4 + $0x228] sm:$0xff]
  %v5517 = vld [vmem:[#allocation4 + $0x230] sm:$0xff]
  %v5518 = vld [vmem:[#allocation4 + $0x238] sm:$0xff]
  %v5519 = vld [vmem:[#allocation4 + $0x240] sm:$0xff]
  %v5520 = vld [vmem:[#allocation4 + $0x248] sm:$0xff]
  %v5521 = vld [vmem:[#allocation4 + $0x250] sm:$0xff]
  %v5522 = vld [vmem:[#allocation4 + $0x258] sm:$0xff]
  %v5523 = vld [vmem:[#allocation4 + $0x260] sm:$0xff]
  %v5524 = vld [vmem:[#allocation4 + $0x268] sm:$0xff]
  %v5525 = vld [vmem:[#allocation4 + $0x270] sm:$0xff]
  %v5526 = vld [vmem:[#allocation4 + $0x278] sm:$0xff]
  %v5527 = vld [vmem:[#allocation4 + $0x280] sm:$0xff]
  %v5528 = vld [vmem:[#allocation4 + $0x288] sm:$0xff]
  %v5529 = vld [vmem:[#allocation4 + $0x290] sm:$0xff]
  %v5530 = vld [vmem:[#allocation4 + $0x298] sm:$0xff]
  %v5531 = vld [vmem:[#allocation4 + $0x2a0] sm:$0xff]
  %v5532 = vld [vmem:[#allocation4 + $0x2a8] sm:$0xff]
  %v5533 = vld [vmem:[#allocation4 + $0x2b0] sm:$0xff]
  %v5534 = vld [vmem:[#allocation4 + $0x2b8] sm:$0xff]
  %v5535 = vld [vmem:[#allocation4 + $0x2c0] sm:$0xff]
  %v5536 = vld [vmem:[#allocation4 + $0x2c8] sm:$0xff]
  %v5537 = vld [vmem:[#allocation4 + $0x2d0] sm:$0xff]
  %v5538 = vld [vmem:[#allocation4 + $0x2d8] sm:$0xff]
  %v5539 = vld [vmem:[#allocation4 + $0x2e0] sm:$0xff]
  %v5540 = vld [vmem:[#allocation4 + $0x2e8] sm:$0xff]
  %v5541 = vld [vmem:[#allocation4 + $0x2f0] sm:$0xff]
  %v5542 = vld [vmem:[#allocation4 + $0x2f8] sm:$0xff]
  %v5543 = vld [vmem:[#allocation4 + $0x300] sm:$0xff]
  %v5544 = vld [vmem:[#allocation4 + $0x308] sm:$0xff]
  %v5545 = vld [vmem:[#allocation4 + $0x310] sm:$0xff]
  %v5546 = vld [vmem:[#allocation4 + $0x318] sm:$0xff]
  %v5547 = vld [vmem:[#allocation4 + $0x320] sm:$0xff]
  %v5548 = vld [vmem:[#allocation4 + $0x328] sm:$0xff]
  %v5549 = vld [vmem:[#allocation4 + $0x330] sm:$0xff]
  %v5550 = vld [vmem:[#allocation4 + $0x338] sm:$0xff]
  %v5551 = vld [vmem:[#allocation4 + $0x340] sm:$0xff]
  %v5552 = vld [vmem:[#allocation4 + $0x348] sm:$0xff]
  %v5553 = vld [vmem:[#allocation4 + $0x350] sm:$0xff]
  %v5554 = vld [vmem:[#allocation4 + $0x358] sm:$0xff]
  %v5555 = vld [vmem:[#allocation4 + $0x360] sm:$0xff]
  %v5556 = vld [vmem:[#allocation4 + $0x368] sm:$0xff]
  %v5557 = vld [vmem:[#allocation4 + $0x370] sm:$0xff]
  %v5558 = vld [vmem:[#allocation4 + $0x378] sm:$0xff]
  %v5559 = vld [vmem:[#allocation4 + $0x380] sm:$0xff]
  %v5560 = vld [vmem:[#allocation4 + $0x388] sm:$0xff]
  %v5561 = vld [vmem:[#allocation4 + $0x390] sm:$0xff]
  %v5562 = vld [vmem:[#allocation4 + $0x398] sm:$0xff]
  %v5563 = vld [vmem:[#allocation4 + $0x3a0] sm:$0xff]
  %v5564 = vld [vmem:[#allocation4 + $0x3a8] sm:$0xff]
  %v5565 = vld [vmem:[#allocation4 + $0x3b0] sm:$0xff]
  %v5566 = vld [vmem:[#allocation4 + $0x3b8] sm:$0xff]
  %v5567 = vld [vmem:[#allocation4 + $0x3c0] sm:$0xff]
  %v5568 = vld [vmem:[#allocation4 + $0x3c8] sm:$0xff]
  %v5569 = vld [vmem:[#allocation4 + $0x3d0] sm:$0xff]
  %v5570 = vld [vmem:[#allocation4 + $0x3d8] sm:$0xff]
  %v5571 = vld [vmem:[#allocation4 + $0x3e0] sm:$0xff]
  %v5572 = vld [vmem:[#allocation4 + $0x3e8] sm:$0xff]
  %v5573 = vld [vmem:[#allocation4 + $0x3f0] sm:$0xff]
  %v5574 = vld [vmem:[#allocation4 + $0x3f8] sm:$0xff]
  %v5575 = vld [vmem:[#allocation4 + $0x400] sm:$0xff]
  %v5576 = vld [vmem:[#allocation4 + $0x408] sm:$0xff]
  %v5577 = vld [vmem:[#allocation4 + $0x410] sm:$0xff]
  %v5578 = vld [vmem:[#allocation4 + $0x418] sm:$0xff]
  %v5579 = vld [vmem:[#allocation4 + $0x420] sm:$0xff]
  %v5580 = vld [vmem:[#allocation4 + $0x428] sm:$0xff]
  %v5581 = vld [vmem:[#allocation4 + $0x430] sm:$0xff]
  %v5582 = vld [vmem:[#allocation4 + $0x438] sm:$0xff]
  %v5583 = vld [vmem:[#allocation4 + $0x440] sm:$0xff]
  %v5584 = vld [vmem:[#allocation4 + $0x448] sm:$0xff]
  %v5585 = vld [vmem:[#allocation4 + $0x450] sm:$0xff]
  %v5586 = vld [vmem:[#allocation4 + $0x458] sm:$0xff]
  %v5587 = vld [vmem:[#allocation4 + $0x460] sm:$0xff]
  %v5588 = vld [vmem:[#allocation4 + $0x468] sm:$0xff]
  %v5589 = vld [vmem:[#allocation4 + $0x470] sm:$0xff]
  %v5590 = vld [vmem:[#allocation4 + $0x478] sm:$0xff]
  %v5591 = vld [vmem:[#allocation4 + $0x480] sm:$0xff]
  %v5592 = vld [vmem:[#allocation4 + $0x488] sm:$0xff]
  %v5593 = vld [vmem:[#allocation4 + $0x490] sm:$0xff]
  %v5594 = vld [vmem:[#allocation4 + $0x498] sm:$0xff]
  %v5595 = vld [vmem:[#allocation4 + $0x4a0] sm:$0xff]
  %v5596 = vld [vmem:[#allocation4 + $0x4a8] sm:$0xff]
  %v5597 = vld [vmem:[#allocation4 + $0x4b0] sm:$0xff]
  %v5598 = vld [vmem:[#allocation4 + $0x4b8] sm:$0xff]
  %v5599 = vld [vmem:[#allocation4 + $0x4c0] sm:$0xff]
  %v5600 = vld [vmem:[#allocation4 + $0x4c8] sm:$0xff]
  %v5601 = vld [vmem:[#allocation4 + $0x4d0] sm:$0xff]
  %v5602 = vld [vmem:[#allocation4 + $0x4d8] sm:$0xff]
  %v5603 = vld [vmem:[#allocation4 + $0x4e0] sm:$0xff]
  %v5604 = vld [vmem:[#allocation4 + $0x4e8] sm:$0xff]
  %v5605 = vld [vmem:[#allocation4 + $0x4f0] sm:$0xff]
  %v5606 = vld [vmem:[#allocation4 + $0x4f8] sm:$0xff]
  %v5607 = vld [vmem:[#allocation4 + $0x500] sm:$0xff]
  %v5608 = vld [vmem:[#allocation4 + $0x508] sm:$0xff]
  %v5609 = vld [vmem:[#allocation4 + $0x510] sm:$0xff]
  %v5610 = vld [vmem:[#allocation4 + $0x518] sm:$0xff]
  %v5611 = vld [vmem:[#allocation4 + $0x520] sm:$0xff]
  %v5612 = vld [vmem:[#allocation4 + $0x528] sm:$0xff]
  %v5613 = vld [vmem:[#allocation4 + $0x530] sm:$0xff]
  %v5614 = vld [vmem:[#allocation4 + $0x538] sm:$0xff]
  %v5615 = vld [vmem:[#allocation4 + $0x540] sm:$0xff]
  %v5616 = vld [vmem:[#allocation4 + $0x548] sm:$0xff]
  %v5617 = vld [vmem:[#allocation4 + $0x550] sm:$0xff]
  %v5618 = vld [vmem:[#allocation4 + $0x558] sm:$0xff]
  %v5619 = vld [vmem:[#allocation4 + $0x560] sm:$0xff]
  %v5620 = vld [vmem:[#allocation4 + $0x568] sm:$0xff]
  %v5621 = vld [vmem:[#allocation4 + $0x570] sm:$0xff]
  %v5622 = vld [vmem:[#allocation4 + $0x578] sm:$0xff]
  %v5623 = vld [vmem:[#allocation4 + $0x580] sm:$0xff]
  %v5624 = vld [vmem:[#allocation4 + $0x588] sm:$0xff]
  %v5625 = vld [vmem:[#allocation4 + $0x590] sm:$0xff]
  %v5626 = vld [vmem:[#allocation4 + $0x598] sm:$0xff]
  %v5627 = vld [vmem:[#allocation4 + $0x5a0] sm:$0xff]
  %v5628 = vld [vmem:[#allocation4 + $0x5a8] sm:$0xff]
  %v5629 = vld [vmem:[#allocation4 + $0x5b0] sm:$0xff]
  %v5630 = vld [vmem:[#allocation4 + $0x5b8] sm:$0xff]
  %v5631 = vld [vmem:[#allocation4 + $0x5c0] sm:$0xff]
  %v5632 = vld [vmem:[#allocation4 + $0x5c8] sm:$0xff]
  %v5633 = vld [vmem:[#allocation4 + $0x5d0] sm:$0xff]
  %v5634 = vld [vmem:[#allocation4 + $0x5d8] sm:$0xff]
  %v5635 = vld [vmem:[#allocation4 + $0x5e0] sm:$0xff]
  %v5636 = vld [vmem:[#allocation4 + $0x5e8] sm:$0xff]
  %v5637 = vld [vmem:[#allocation4 + $0x5f0] sm:$0xff]
  %v5638 = vld [vmem:[#allocation4 + $0x5f8] sm:$0xff]
  %v5639 = vld [vmem:[#allocation4 + $0x600] sm:$0xff]
  %v5640 = vld [vmem:[#allocation4 + $0x608] sm:$0xff]
  %v5641 = vld [vmem:[#allocation4 + $0x610] sm:$0xff]
  %v5642 = vld [vmem:[#allocation4 + $0x618] sm:$0xff]
  %v5643 = vld [vmem:[#allocation4 + $0x620] sm:$0xff]
  %v5644 = vld [vmem:[#allocation4 + $0x628] sm:$0xff]
  %v5645 = vld [vmem:[#allocation4 + $0x630] sm:$0xff]
  %v5646 = vld [vmem:[#allocation4 + $0x638] sm:$0xff]
  %v5647 = vld [vmem:[#allocation4 + $0x640] sm:$0xff]
  %v5648 = vld [vmem:[#allocation4 + $0x648] sm:$0xff]
  %v5649 = vld [vmem:[#allocation4 + $0x650] sm:$0xff]
  %v5650 = vld [vmem:[#allocation4 + $0x658] sm:$0xff]
  %v5651 = vld [vmem:[#allocation4 + $0x660] sm:$0xff]
  %v5652 = vld [vmem:[#allocation4 + $0x668] sm:$0xff]
  %v5653 = vld [vmem:[#allocation4 + $0x670] sm:$0xff]
  %v5654 = vld [vmem:[#allocation4 + $0x678] sm:$0xff]
  %v5655 = vld [vmem:[#allocation4 + $0x680] sm:$0xff]
  %v5656 = vld [vmem:[#allocation4 + $0x688] sm:$0xff]
  %v5657 = vld [vmem:[#allocation4 + $0x690] sm:$0xff]
  %v5658 = vld [vmem:[#allocation4 + $0x698] sm:$0xff]
  %v5659 = vld [vmem:[#allocation4 + $0x6a0] sm:$0xff]
  %v5660 = vld [vmem:[#allocation4 + $0x6a8] sm:$0xff]
  %v5661 = vld [vmem:[#allocation4 + $0x6b0] sm:$0xff]
  %v5662 = vld [vmem:[#allocation4 + $0x6b8] sm:$0xff]
  %v5663 = vld [vmem:[#allocation4 + $0x6c0] sm:$0xff]
  %v5664 = vld [vmem:[#allocation4 + $0x6c8] sm:$0xff]
  %v5665 = vld [vmem:[#allocation4 + $0x6d0] sm:$0xff]
  %v5666 = vld [vmem:[#allocation4 + $0x6d8] sm:$0xff]
  %v5667 = vld [vmem:[#allocation4 + $0x6e0] sm:$0xff]
  %v5668 = vld [vmem:[#allocation4 + $0x6e8] sm:$0xff]
  %v5669 = vld [vmem:[#allocation4 + $0x6f0] sm:$0xff]
  %v5670 = vld [vmem:[#allocation4 + $0x6f8] sm:$0xff]
  %v5671 = vld [vmem:[#allocation4 + $0x700] sm:$0xff]
  %v5672 = vld [vmem:[#allocation4 + $0x708] sm:$0xff]
  %v5673 = vld [vmem:[#allocation4 + $0x710] sm:$0xff]
  %v5674 = vld [vmem:[#allocation4 + $0x718] sm:$0xff]
  %v5675 = vld [vmem:[#allocation4 + $0x720] sm:$0xff]
  %v5676 = vld [vmem:[#allocation4 + $0x728] sm:$0xff]
  %v5677 = vld [vmem:[#allocation4 + $0x730] sm:$0xff]
  %v5678 = vld [vmem:[#allocation4 + $0x738] sm:$0xff]
  %v5679 = vld [vmem:[#allocation4 + $0x740] sm:$0xff]
  %v5680 = vld [vmem:[#allocation4 + $0x748] sm:$0xff]
  %v5681 = vld [vmem:[#allocation4 + $0x750] sm:$0xff]
  %v5682 = vld [vmem:[#allocation4 + $0x758] sm:$0xff]
  %v5683 = vld [vmem:[#allocation4 + $0x760] sm:$0xff]
  %v5684 = vld [vmem:[#allocation4 + $0x768] sm:$0xff]
  %v5685 = vld [vmem:[#allocation4 + $0x770] sm:$0xff]
  %v5686 = vld [vmem:[#allocation4 + $0x778] sm:$0xff]
  %v5687 = vld [vmem:[#allocation4 + $0x780] sm:$0xff]
  %v5688 = vld [vmem:[#allocation4 + $0x788] sm:$0xff]
  %v5689 = vld [vmem:[#allocation4 + $0x790] sm:$0xff]
  %v5690 = vld [vmem:[#allocation4 + $0x798] sm:$0xff]
  %v5691 = vld [vmem:[#allocation4 + $0x7a0] sm:$0xff]
  %v5692 = vld [vmem:[#allocation4 + $0x7a8] sm:$0xff]
  %v5693 = vld [vmem:[#allocation4 + $0x7b0] sm:$0xff]
  %v5694 = vld [vmem:[#allocation4 + $0x7b8] sm:$0xff]
  %v5695 = vld [vmem:[#allocation4 + $0x7c0] sm:$0xff]
  %v5696 = vld [vmem:[#allocation4 + $0x7c8] sm:$0xff]
  %v5697 = vld [vmem:[#allocation4 + $0x7d0] sm:$0xff]
  %v5698 = vld [vmem:[#allocation4 + $0x7d8] sm:$0xff]
  %v5699 = vld [vmem:[#allocation4 + $0x7e0] sm:$0xff]
  %v5700 = vld [vmem:[#allocation4 + $0x7e8] sm:$0xff]
  %v5701 = vld [vmem:[#allocation4 + $0x7f0] sm:$0xff]
  %v5702 = vld [vmem:[#allocation4 + $0x7f8] sm:$0xff]
  %v5959 = vunpack.c.l.b16 %v5447
  %v5960 = vunpack.c.h.b16 %v5447
  %v5961 = vunpack.c.l.b16 %v5448
  %v5962 = vunpack.c.h.b16 %v5448
  %v5963 = vunpack.c.l.b16 %v5449
  %v5964 = vunpack.c.h.b16 %v5449
  %v5965 = vunpack.c.l.b16 %v5450
  %v5966 = vunpack.c.h.b16 %v5450
  %v5967 = vunpack.c.l.b16 %v5451
  %v5968 = vunpack.c.h.b16 %v5451
  %v5969 = vunpack.c.l.b16 %v5452
  %v5970 = vunpack.c.h.b16 %v5452
  %v5971 = vunpack.c.l.b16 %v5453
  %v5972 = vunpack.c.h.b16 %v5453
  %v5973 = vunpack.c.l.b16 %v5454
  %v5974 = vunpack.c.h.b16 %v5454
  %v5975 = vunpack.c.l.b16 %v5455
  %v5976 = vunpack.c.h.b16 %v5455
  %v5977 = vunpack.c.l.b16 %v5456
  %v5978 = vunpack.c.h.b16 %v5456
  %v5979 = vunpack.c.l.b16 %v5457
  %v5980 = vunpack.c.h.b16 %v5457
  %v5981 = vunpack.c.l.b16 %v5458
  %v5982 = vunpack.c.h.b16 %v5458
  %v5983 = vunpack.c.l.b16 %v5459
  %v5984 = vunpack.c.h.b16 %v5459
  %v5985 = vunpack.c.l.b16 %v5460
  %v5986 = vunpack.c.h.b16 %v5460
  %v5987 = vunpack.c.l.b16 %v5461
  %v5988 = vunpack.c.h.b16 %v5461
  %v5989 = vunpack.c.l.b16 %v5462
  %v5990 = vunpack.c.h.b16 %v5462
  %v5991 = vunpack.c.l.b16 %v5463
  %v5992 = vunpack.c.h.b16 %v5463
  %v5993 = vunpack.c.l.b16 %v5464
  %v5994 = vunpack.c.h.b16 %v5464
  %v5995 = vunpack.c.l.b16 %v5465
  %v5996 = vunpack.c.h.b16 %v5465
  %v5997 = vunpack.c.l.b16 %v5466
  %v5998 = vunpack.c.h.b16 %v5466
  %v5999 = vunpack.c.l.b16 %v5467
  %v6000 = vunpack.c.h.b16 %v5467
  %v6001 = vunpack.c.l.b16 %v5468
  %v6002 = vunpack.c.h.b16 %v5468
  %v6003 = vunpack.c.l.b16 %v5469
  %v6004 = vunpack.c.h.b16 %v5469
  %v6005 = vunpack.c.l.b16 %v5470
  %v6006 = vunpack.c.h.b16 %v5470
  %v6007 = vunpack.c.l.b16 %v5471
  %v6008 = vunpack.c.h.b16 %v5471
  %v6009 = vunpack.c.l.b16 %v5472
  %v6010 = vunpack.c.h.b16 %v5472
  %v6011 = vunpack.c.l.b16 %v5473
  %v6012 = vunpack.c.h.b16 %v5473
  %v6013 = vunpack.c.l.b16 %v5474
  %v6014 = vunpack.c.h.b16 %v5474
  %v6015 = vunpack.c.l.b16 %v5475
  %v6016 = vunpack.c.h.b16 %v5475
  %v6017 = vunpack.c.l.b16 %v5476
  %v6018 = vunpack.c.h.b16 %v5476
  %v6019 = vunpack.c.l.b16 %v5477
  %v6020 = vunpack.c.h.b16 %v5477
  %v6021 = vunpack.c.l.b16 %v5478
  %v6022 = vunpack.c.h.b16 %v5478
  %v6023 = vunpack.c.l.b16 %v5479
  %v6024 = vunpack.c.h.b16 %v5479
  %v6025 = vunpack.c.l.b16 %v5480
  %v6026 = vunpack.c.h.b16 %v5480
  %v6027 = vunpack.c.l.b16 %v5481
  %v6028 = vunpack.c.h.b16 %v5481
  %v6029 = vunpack.c.l.b16 %v5482
  %v6030 = vunpack.c.h.b16 %v5482
  %v6031 = vunpack.c.l.b16 %v5483
  %v6032 = vunpack.c.h.b16 %v5483
  %v6033 = vunpack.c.l.b16 %v5484
  %v6034 = vunpack.c.h.b16 %v5484
  %v6035 = vunpack.c.l.b16 %v5485
  %v6036 = vunpack.c.h.b16 %v5485
  %v6037 = vunpack.c.l.b16 %v5486
  %v6038 = vunpack.c.h.b16 %v5486
  %v6039 = vunpack.c.l.b16 %v5487
  %v6040 = vunpack.c.h.b16 %v5487
  %v6041 = vunpack.c.l.b16 %v5488
  %v6042 = vunpack.c.h.b16 %v5488
  %v6043 = vunpack.c.l.b16 %v5489
  %v6044 = vunpack.c.h.b16 %v5489
  %v6045 = vunpack.c.l.b16 %v5490
  %v6046 = vunpack.c.h.b16 %v5490
  %v6047 = vunpack.c.l.b16 %v5491
  %v6048 = vunpack.c.h.b16 %v5491
  %v6049 = vunpack.c.l.b16 %v5492
  %v6050 = vunpack.c.h.b16 %v5492
  %v6051 = vunpack.c.l.b16 %v5493
  %v6052 = vunpack.c.h.b16 %v5493
  %v6053 = vunpack.c.l.b16 %v5494
  %v6054 = vunpack.c.h.b16 %v5494
  %v6055 = vunpack.c.l.b16 %v5495
  %v6056 = vunpack.c.h.b16 %v5495
  %v6057 = vunpack.c.l.b16 %v5496
  %v6058 = vunpack.c.h.b16 %v5496
  %v6059 = vunpack.c.l.b16 %v5497
  %v6060 = vunpack.c.h.b16 %v5497
  %v6061 = vunpack.c.l.b16 %v5498
  %v6062 = vunpack.c.h.b16 %v5498
  %v6063 = vunpack.c.l.b16 %v5499
  %v6064 = vunpack.c.h.b16 %v5499
  %v6065 = vunpack.c.l.b16 %v5500
  %v6066 = vunpack.c.h.b16 %v5500
  %v6067 = vunpack.c.l.b16 %v5501
  %v6068 = vunpack.c.h.b16 %v5501
  %v6069 = vunpack.c.l.b16 %v5502
  %v6070 = vunpack.c.h.b16 %v5502
  %v6071 = vunpack.c.l.b16 %v5503
  %v6072 = vunpack.c.h.b16 %v5503
  %v6073 = vunpack.c.l.b16 %v5504
  %v6074 = vunpack.c.h.b16 %v5504
  %v6075 = vunpack.c.l.b16 %v5505
  %v6076 = vunpack.c.h.b16 %v5505
  %v6077 = vunpack.c.l.b16 %v5506
  %v6078 = vunpack.c.h.b16 %v5506
  %v6079 = vunpack.c.l.b16 %v5507
  %v6080 = vunpack.c.h.b16 %v5507
  %v6081 = vunpack.c.l.b16 %v5508
  %v6082 = vunpack.c.h.b16 %v5508
  %v6083 = vunpack.c.l.b16 %v5509
  %v6084 = vunpack.c.h.b16 %v5509
  %v6085 = vunpack.c.l.b16 %v5510
  %v6086 = vunpack.c.h.b16 %v5510
  %v6087 = vunpack.c.l.b16 %v5511
  %v6088 = vunpack.c.h.b16 %v5511
  %v6089 = vunpack.c.l.b16 %v5512
  %v6090 = vunpack.c.h.b16 %v5512
  %v6091 = vunpack.c.l.b16 %v5513
  %v6092 = vunpack.c.h.b16 %v5513
  %v6093 = vunpack.c.l.b16 %v5514
  %v6094 = vunpack.c.h.b16 %v5514
  %v6095 = vunpack.c.l.b16 %v5515
  %v6096 = vunpack.c.h.b16 %v5515
  %v6097 = vunpack.c.l.b16 %v5516
  %v6098 = vunpack.c.h.b16 %v5516
  %v6099 = vunpack.c.l.b16 %v5517
  %v6100 = vunpack.c.h.b16 %v5517
  %v6101 = vunpack.c.l.b16 %v5518
  %v6102 = vunpack.c.h.b16 %v5518
  %v6103 = vunpack.c.l.b16 %v5519
  %v6104 = vunpack.c.h.b16 %v5519
  %v6105 = vunpack.c.l.b16 %v5520
  %v6106 = vunpack.c.h.b16 %v5520
  %v6107 = vunpack.c.l.b16 %v5521
  %v6108 = vunpack.c.h.b16 %v5521
  %v6109 = vunpack.c.l.b16 %v5522
  %v6110 = vunpack.c.h.b16 %v5522
  %v6111 = vunpack.c.l.b16 %v5523
  %v6112 = vunpack.c.h.b16 %v5523
  %v6113 = vunpack.c.l.b16 %v5524
  %v6114 = vunpack.c.h.b16 %v5524
  %v6115 = vunpack.c.l.b16 %v5525
  %v6116 = vunpack.c.h.b16 %v5525
  %v6117 = vunpack.c.l.b16 %v5526
  %v6118 = vunpack.c.h.b16 %v5526
  %v6119 = vunpack.c.l.b16 %v5527
  %v6120 = vunpack.c.h.b16 %v5527
  %v6121 = vunpack.c.l.b16 %v5528
  %v6122 = vunpack.c.h.b16 %v5528
  %v6123 = vunpack.c.l.b16 %v5529
  %v6124 = vunpack.c.h.b16 %v5529
  %v6125 = vunpack.c.l.b16 %v5530
  %v6126 = vunpack.c.h.b16 %v5530
  %v6127 = vunpack.c.l.b16 %v5531
  %v6128 = vunpack.c.h.b16 %v5531
  %v6129 = vunpack.c.l.b16 %v5532
  %v6130 = vunpack.c.h.b16 %v5532
  %v6131 = vunpack.c.l.b16 %v5533
  %v6132 = vunpack.c.h.b16 %v5533
  %v6133 = vunpack.c.l.b16 %v5534
  %v6134 = vunpack.c.h.b16 %v5534
  %v6135 = vunpack.c.l.b16 %v5535
  %v6136 = vunpack.c.h.b16 %v5535
  %v6137 = vunpack.c.l.b16 %v5536
  %v6138 = vunpack.c.h.b16 %v5536
  %v6139 = vunpack.c.l.b16 %v5537
  %v6140 = vunpack.c.h.b16 %v5537
  %v6141 = vunpack.c.l.b16 %v5538
  %v6142 = vunpack.c.h.b16 %v5538
  %v6143 = vunpack.c.l.b16 %v5539
  %v6144 = vunpack.c.h.b16 %v5539
  %v6145 = vunpack.c.l.b16 %v5540
  %v6146 = vunpack.c.h.b16 %v5540
  %v6147 = vunpack.c.l.b16 %v5541
  %v6148 = vunpack.c.h.b16 %v5541
  %v6149 = vunpack.c.l.b16 %v5542
  %v6150 = vunpack.c.h.b16 %v5542
  %v6151 = vunpack.c.l.b16 %v5543
  %v6152 = vunpack.c.h.b16 %v5543
  %v6153 = vunpack.c.l.b16 %v5544
  %v6154 = vunpack.c.h.b16 %v5544
  %v6155 = vunpack.c.l.b16 %v5545
  %v6156 = vunpack.c.h.b16 %v5545
  %v6157 = vunpack.c.l.b16 %v5546
  %v6158 = vunpack.c.h.b16 %v5546
  %v6159 = vunpack.c.l.b16 %v5547
  %v6160 = vunpack.c.h.b16 %v5547
  %v6161 = vunpack.c.l.b16 %v5548
  %v6162 = vunpack.c.h.b16 %v5548
  %v6163 = vunpack.c.l.b16 %v5549
  %v6164 = vunpack.c.h.b16 %v5549
  %v6165 = vunpack.c.l.b16 %v5550
  %v6166 = vunpack.c.h.b16 %v5550
  %v6167 = vunpack.c.l.b16 %v5551
  %v6168 = vunpack.c.h.b16 %v5551
  %v6169 = vunpack.c.l.b16 %v5552
  %v6170 = vunpack.c.h.b16 %v5552
  %v6171 = vunpack.c.l.b16 %v5553
  %v6172 = vunpack.c.h.b16 %v5553
  %v6173 = vunpack.c.l.b16 %v5554
  %v6174 = vunpack.c.h.b16 %v5554
  %v6175 = vunpack.c.l.b16 %v5555
  %v6176 = vunpack.c.h.b16 %v5555
  %v6177 = vunpack.c.l.b16 %v5556
  %v6178 = vunpack.c.h.b16 %v5556
  %v6179 = vunpack.c.l.b16 %v5557
  %v6180 = vunpack.c.h.b16 %v5557
  %v6181 = vunpack.c.l.b16 %v5558
  %v6182 = vunpack.c.h.b16 %v5558
  %v6183 = vunpack.c.l.b16 %v5559
  %v6184 = vunpack.c.h.b16 %v5559
  %v6185 = vunpack.c.l.b16 %v5560
  %v6186 = vunpack.c.h.b16 %v5560
  %v6187 = vunpack.c.l.b16 %v5561
  %v6188 = vunpack.c.h.b16 %v5561
  %v6189 = vunpack.c.l.b16 %v5562
  %v6190 = vunpack.c.h.b16 %v5562
  %v6191 = vunpack.c.l.b16 %v5563
  %v6192 = vunpack.c.h.b16 %v5563
  %v6193 = vunpack.c.l.b16 %v5564
  %v6194 = vunpack.c.h.b16 %v5564
  %v6195 = vunpack.c.l.b16 %v5565
  %v6196 = vunpack.c.h.b16 %v5565
  %v6197 = vunpack.c.l.b16 %v5566
  %v6198 = vunpack.c.h.b16 %v5566
  %v6199 = vunpack.c.l.b16 %v5567
  %v6200 = vunpack.c.h.b16 %v5567
  %v6201 = vunpack.c.l.b16 %v5568
  %v6202 = vunpack.c.h.b16 %v5568
  %v6203 = vunpack.c.l.b16 %v5569
  %v6204 = vunpack.c.h.b16 %v5569
  %v6205 = vunpack.c.l.b16 %v5570
  %v6206 = vunpack.c.h.b16 %v5570
  %v6207 = vunpack.c.l.b16 %v5571
  %v6208 = vunpack.c.h.b16 %v5571
  %v6209 = vunpack.c.l.b16 %v5572
  %v6210 = vunpack.c.h.b16 %v5572
  %v6211 = vunpack.c.l.b16 %v5573
  %v6212 = vunpack.c.h.b16 %v5573
  %v6213 = vunpack.c.l.b16 %v5574
  %v6214 = vunpack.c.h.b16 %v5574
  %v6215 = vunpack.c.l.b16 %v5575
  %v6216 = vunpack.c.h.b16 %v5575
  %v6217 = vunpack.c.l.b16 %v5576
  %v6218 = vunpack.c.h.b16 %v5576
  %v6219 = vunpack.c.l.b16 %v5577
  %v6220 = vunpack.c.h.b16 %v5577
  %v6221 = vunpack.c.l.b16 %v5578
  %v6222 = vunpack.c.h.b16 %v5578
  %v6223 = vunpack.c.l.b16 %v5579
  %v6224 = vunpack.c.h.b16 %v5579
  %v6225 = vunpack.c.l.b16 %v5580
  %v6226 = vunpack.c.h.b16 %v5580
  %v6227 = vunpack.c.l.b16 %v5581
  %v6228 = vunpack.c.h.b16 %v5581
  %v6229 = vunpack.c.l.b16 %v5582
  %v6230 = vunpack.c.h.b16 %v5582
  %v6231 = vunpack.c.l.b16 %v5583
  %v6232 = vunpack.c.h.b16 %v5583
  %v6233 = vunpack.c.l.b16 %v5584
  %v6234 = vunpack.c.h.b16 %v5584
  %v6235 = vunpack.c.l.b16 %v5585
  %v6236 = vunpack.c.h.b16 %v5585
  %v6237 = vunpack.c.l.b16 %v5586
  %v6238 = vunpack.c.h.b16 %v5586
  %v6239 = vunpack.c.l.b16 %v5587
  %v6240 = vunpack.c.h.b16 %v5587
  %v6241 = vunpack.c.l.b16 %v5588
  %v6242 = vunpack.c.h.b16 %v5588
  %v6243 = vunpack.c.l.b16 %v5589
  %v6244 = vunpack.c.h.b16 %v5589
  %v6245 = vunpack.c.l.b16 %v5590
  %v6246 = vunpack.c.h.b16 %v5590
  %v6247 = vunpack.c.l.b16 %v5591
  %v6248 = vunpack.c.h.b16 %v5591
  %v6249 = vunpack.c.l.b16 %v5592
  %v6250 = vunpack.c.h.b16 %v5592
  %v6251 = vunpack.c.l.b16 %v5593
  %v6252 = vunpack.c.h.b16 %v5593
  %v6253 = vunpack.c.l.b16 %v5594
  %v6254 = vunpack.c.h.b16 %v5594
  %v6255 = vunpack.c.l.b16 %v5595
  %v6256 = vunpack.c.h.b16 %v5595
  %v6257 = vunpack.c.l.b16 %v5596
  %v6258 = vunpack.c.h.b16 %v5596
  %v6259 = vunpack.c.l.b16 %v5597
  %v6260 = vunpack.c.h.b16 %v5597
  %v6261 = vunpack.c.l.b16 %v5598
  %v6262 = vunpack.c.h.b16 %v5598
  %v6263 = vunpack.c.l.b16 %v5599
  %v6264 = vunpack.c.h.b16 %v5599
  %v6265 = vunpack.c.l.b16 %v5600
  %v6266 = vunpack.c.h.b16 %v5600
  %v6267 = vunpack.c.l.b16 %v5601
  %v6268 = vunpack.c.h.b16 %v5601
  %v6269 = vunpack.c.l.b16 %v5602
  %v6270 = vunpack.c.h.b16 %v5602
  %v6271 = vunpack.c.l.b16 %v5603
  %v6272 = vunpack.c.h.b16 %v5603
  %v6273 = vunpack.c.l.b16 %v5604
  %v6274 = vunpack.c.h.b16 %v5604
  %v6275 = vunpack.c.l.b16 %v5605
  %v6276 = vunpack.c.h.b16 %v5605
  %v6277 = vunpack.c.l.b16 %v5606
  %v6278 = vunpack.c.h.b16 %v5606
  %v6279 = vunpack.c.l.b16 %v5607
  %v6280 = vunpack.c.h.b16 %v5607
  %v6281 = vunpack.c.l.b16 %v5608
  %v6282 = vunpack.c.h.b16 %v5608
  %v6283 = vunpack.c.l.b16 %v5609
  %v6284 = vunpack.c.h.b16 %v5609
  %v6285 = vunpack.c.l.b16 %v5610
  %v6286 = vunpack.c.h.b16 %v5610
  %v6287 = vunpack.c.l.b16 %v5611
  %v6288 = vunpack.c.h.b16 %v5611
  %v6289 = vunpack.c.l.b16 %v5612
  %v6290 = vunpack.c.h.b16 %v5612
  %v6291 = vunpack.c.l.b16 %v5613
  %v6292 = vunpack.c.h.b16 %v5613
  %v6293 = vunpack.c.l.b16 %v5614
  %v6294 = vunpack.c.h.b16 %v5614
  %v6295 = vunpack.c.l.b16 %v5615
  %v6296 = vunpack.c.h.b16 %v5615
  %v6297 = vunpack.c.l.b16 %v5616
  %v6298 = vunpack.c.h.b16 %v5616
  %v6299 = vunpack.c.l.b16 %v5617
  %v6300 = vunpack.c.h.b16 %v5617
  %v6301 = vunpack.c.l.b16 %v5618
  %v6302 = vunpack.c.h.b16 %v5618
  %v6303 = vunpack.c.l.b16 %v5619
  %v6304 = vunpack.c.h.b16 %v5619
  %v6305 = vunpack.c.l.b16 %v5620
  %v6306 = vunpack.c.h.b16 %v5620
  %v6307 = vunpack.c.l.b16 %v5621
  %v6308 = vunpack.c.h.b16 %v5621
  %v6309 = vunpack.c.l.b16 %v5622
  %v6310 = vunpack.c.h.b16 %v5622
  %v6311 = vunpack.c.l.b16 %v5623
  %v6312 = vunpack.c.h.b16 %v5623
  %v6313 = vunpack.c.l.b16 %v5624
  %v6314 = vunpack.c.h.b16 %v5624
  %v6315 = vunpack.c.l.b16 %v5625
  %v6316 = vunpack.c.h.b16 %v5625
  %v6317 = vunpack.c.l.b16 %v5626
  %v6318 = vunpack.c.h.b16 %v5626
  %v6319 = vunpack.c.l.b16 %v5627
  %v6320 = vunpack.c.h.b16 %v5627
  %v6321 = vunpack.c.l.b16 %v5628
  %v6322 = vunpack.c.h.b16 %v5628
  %v6323 = vunpack.c.l.b16 %v5629
  %v6324 = vunpack.c.h.b16 %v5629
  %v6325 = vunpack.c.l.b16 %v5630
  %v6326 = vunpack.c.h.b16 %v5630
  %v6327 = vunpack.c.l.b16 %v5631
  %v6328 = vunpack.c.h.b16 %v5631
  %v6329 = vunpack.c.l.b16 %v5632
  %v6330 = vunpack.c.h.b16 %v5632
  %v6331 = vunpack.c.l.b16 %v5633
  %v6332 = vunpack.c.h.b16 %v5633
  %v6333 = vunpack.c.l.b16 %v5634
  %v6334 = vunpack.c.h.b16 %v5634
  %v6335 = vunpack.c.l.b16 %v5635
  %v6336 = vunpack.c.h.b16 %v5635
  %v6337 = vunpack.c.l.b16 %v5636
  %v6338 = vunpack.c.h.b16 %v5636
  %v6339 = vunpack.c.l.b16 %v5637
  %v6340 = vunpack.c.h.b16 %v5637
  %v6341 = vunpack.c.l.b16 %v5638
  %v6342 = vunpack.c.h.b16 %v5638
  %v6343 = vunpack.c.l.b16 %v5639
  %v6344 = vunpack.c.h.b16 %v5639
  %v6345 = vunpack.c.l.b16 %v5640
  %v6346 = vunpack.c.h.b16 %v5640
  %v6347 = vunpack.c.l.b16 %v5641
  %v6348 = vunpack.c.h.b16 %v5641
  %v6349 = vunpack.c.l.b16 %v5642
  %v6350 = vunpack.c.h.b16 %v5642
  %v6351 = vunpack.c.l.b16 %v5643
  %v6352 = vunpack.c.h.b16 %v5643
  %v6353 = vunpack.c.l.b16 %v5644
  %v6354 = vunpack.c.h.b16 %v5644
  %v6355 = vunpack.c.l.b16 %v5645
  %v6356 = vunpack.c.h.b16 %v5645
  %v6357 = vunpack.c.l.b16 %v5646
  %v6358 = vunpack.c.h.b16 %v5646
  %v6359 = vunpack.c.l.b16 %v5647
  %v6360 = vunpack.c.h.b16 %v5647
  %v6361 = vunpack.c.l.b16 %v5648
  %v6362 = vunpack.c.h.b16 %v5648
  %v6363 = vunpack.c.l.b16 %v5649
  %v6364 = vunpack.c.h.b16 %v5649
  %v6365 = vunpack.c.l.b16 %v5650
  %v6366 = vunpack.c.h.b16 %v5650
  %v6367 = vunpack.c.l.b16 %v5651
  %v6368 = vunpack.c.h.b16 %v5651
  %v6369 = vunpack.c.l.b16 %v5652
  %v6370 = vunpack.c.h.b16 %v5652
  %v6371 = vunpack.c.l.b16 %v5653
  %v6372 = vunpack.c.h.b16 %v5653
  %v6373 = vunpack.c.l.b16 %v5654
  %v6374 = vunpack.c.h.b16 %v5654
  %v6375 = vunpack.c.l.b16 %v5655
  %v6376 = vunpack.c.h.b16 %v5655
  %v6377 = vunpack.c.l.b16 %v5656
  %v6378 = vunpack.c.h.b16 %v5656
  %v6379 = vunpack.c.l.b16 %v5657
  %v6380 = vunpack.c.h.b16 %v5657
  %v6381 = vunpack.c.l.b16 %v5658
  %v6382 = vunpack.c.h.b16 %v5658
  %v6383 = vunpack.c.l.b16 %v5659
  %v6384 = vunpack.c.h.b16 %v5659
  %v6385 = vunpack.c.l.b16 %v5660
  %v6386 = vunpack.c.h.b16 %v5660
  %v6387 = vunpack.c.l.b16 %v5661
  %v6388 = vunpack.c.h.b16 %v5661
  %v6389 = vunpack.c.l.b16 %v5662
  %v6390 = vunpack.c.h.b16 %v5662
  %v6391 = vunpack.c.l.b16 %v5663
  %v6392 = vunpack.c.h.b16 %v5663
  %v6393 = vunpack.c.l.b16 %v5664
  %v6394 = vunpack.c.h.b16 %v5664
  %v6395 = vunpack.c.l.b16 %v5665
  %v6396 = vunpack.c.h.b16 %v5665
  %v6397 = vunpack.c.l.b16 %v5666
  %v6398 = vunpack.c.h.b16 %v5666
  %v6399 = vunpack.c.l.b16 %v5667
  %v6400 = vunpack.c.h.b16 %v5667
  %v6401 = vunpack.c.l.b16 %v5668
  %v6402 = vunpack.c.h.b16 %v5668
  %v6403 = vunpack.c.l.b16 %v5669
  %v6404 = vunpack.c.h.b16 %v5669
  %v6405 = vunpack.c.l.b16 %v5670
  %v6406 = vunpack.c.h.b16 %v5670
  %v6407 = vunpack.c.l.b16 %v5671
  %v6408 = vunpack.c.h.b16 %v5671
  %v6409 = vunpack.c.l.b16 %v5672
  %v6410 = vunpack.c.h.b16 %v5672
  %v6411 = vunpack.c.l.b16 %v5673
  %v6412 = vunpack.c.h.b16 %v5673
  %v6413 = vunpack.c.l.b16 %v5674
  %v6414 = vunpack.c.h.b16 %v5674
  %v6415 = vunpack.c.l.b16 %v5675
  %v6416 = vunpack.c.h.b16 %v5675
  %v6417 = vunpack.c.l.b16 %v5676
  %v6418 = vunpack.c.h.b16 %v5676
  %v6419 = vunpack.c.l.b16 %v5677
  %v6420 = vunpack.c.h.b16 %v5677
  %v6421 = vunpack.c.l.b16 %v5678
  %v6422 = vunpack.c.h.b16 %v5678
  %v6423 = vunpack.c.l.b16 %v5679
  %v6424 = vunpack.c.h.b16 %v5679
  %v6425 = vunpack.c.l.b16 %v5680
  %v6426 = vunpack.c.h.b16 %v5680
  %v6427 = vunpack.c.l.b16 %v5681
  %v6428 = vunpack.c.h.b16 %v5681
  %v6429 = vunpack.c.l.b16 %v5682
  %v6430 = vunpack.c.h.b16 %v5682
  %v6431 = vunpack.c.l.b16 %v5683
  %v6432 = vunpack.c.h.b16 %v5683
  %v6433 = vunpack.c.l.b16 %v5684
  %v6434 = vunpack.c.h.b16 %v5684
  %v6435 = vunpack.c.l.b16 %v5685
  %v6436 = vunpack.c.h.b16 %v5685
  %v6437 = vunpack.c.l.b16 %v5686
  %v6438 = vunpack.c.h.b16 %v5686
  %v6439 = vunpack.c.l.b16 %v5687
  %v6440 = vunpack.c.h.b16 %v5687
  %v6441 = vunpack.c.l.b16 %v5688
  %v6442 = vunpack.c.h.b16 %v5688
  %v6443 = vunpack.c.l.b16 %v5689
  %v6444 = vunpack.c.h.b16 %v5689
  %v6445 = vunpack.c.l.b16 %v5690
  %v6446 = vunpack.c.h.b16 %v5690
  %v6447 = vunpack.c.l.b16 %v5691
  %v6448 = vunpack.c.h.b16 %v5691
  %v6449 = vunpack.c.l.b16 %v5692
  %v6450 = vunpack.c.h.b16 %v5692
  %v6451 = vunpack.c.l.b16 %v5693
  %v6452 = vunpack.c.h.b16 %v5693
  %v6453 = vunpack.c.l.b16 %v5694
  %v6454 = vunpack.c.h.b16 %v5694
  %v6455 = vunpack.c.l.b16 %v5695
  %v6456 = vunpack.c.h.b16 %v5695
  %v6457 = vunpack.c.l.b16 %v5696
  %v6458 = vunpack.c.h.b16 %v5696
  %v6459 = vunpack.c.l.b16 %v5697
  %v6460 = vunpack.c.h.b16 %v5697
  %v6461 = vunpack.c.l.b16 %v5698
  %v6462 = vunpack.c.h.b16 %v5698
  %v6463 = vunpack.c.l.b16 %v5699
  %v6464 = vunpack.c.h.b16 %v5699
  %v6465 = vunpack.c.l.b16 %v5700
  %v6466 = vunpack.c.h.b16 %v5700
  %v6467 = vunpack.c.l.b16 %v5701
  %v6468 = vunpack.c.h.b16 %v5701
  %v6469 = vunpack.c.l.b16 %v5702
  %v6470 = vunpack.c.h.b16 %v5702
  %v6471 = vpack.c.b16 %v5963, %v5959
  %v6472 = vpack.c.b16 %v5964, %v5960
  %v6473 = vpack.c.b16 %v5965, %v5961
  %v6474 = vpack.c.b16 %v5966, %v5962
  %v6475 = vpack.c.b16 %v5971, %v5967
  %v6476 = vpack.c.b16 %v5972, %v5968
  %v6477 = vpack.c.b16 %v5973, %v5969
  %v6478 = vpack.c.b16 %v5974, %v5970
  %v6479 = vpack.c.b16 %v5979, %v5975
  %v6480 = vpack.c.b16 %v5980, %v5976
  %v6481 = vpack.c.b16 %v5981, %v5977
  %v6482 = vpack.c.b16 %v5982, %v5978
  %v6483 = vpack.c.b16 %v5987, %v5983
  %v6484 = vpack.c.b16 %v5988, %v5984
  %v6485 = vpack.c.b16 %v5989, %v5985
  %v6486 = vpack.c.b16 %v5990, %v5986
  %v6487 = vpack.c.b16 %v5995, %v5991
  %v6488 = vpack.c.b16 %v5996, %v5992
  %v6489 = vpack.c.b16 %v5997, %v5993
  %v6490 = vpack.c.b16 %v5998, %v5994
  %v6491 = vpack.c.b16 %v6003, %v5999
  %v6492 = vpack.c.b16 %v6004, %v6000
  %v6493 = vpack.c.b16 %v6005, %v6001
  %v6494 = vpack.c.b16 %v6006, %v6002
  %v6495 = vpack.c.b16 %v6011, %v6007
  %v6496 = vpack.c.b16 %v6012, %v6008
  %v6497 = vpack.c.b16 %v6013, %v6009
  %v6498 = vpack.c.b16 %v6014, %v6010
  %v6499 = vpack.c.b16 %v6019, %v6015
  %v6500 = vpack.c.b16 %v6020, %v6016
  %v6501 = vpack.c.b16 %v6021, %v6017
  %v6502 = vpack.c.b16 %v6022, %v6018
  %v6503 = vpack.c.b16 %v6027, %v6023
  %v6504 = vpack.c.b16 %v6028, %v6024
  %v6505 = vpack.c.b16 %v6029, %v6025
  %v6506 = vpack.c.b16 %v6030, %v6026
  %v6507 = vpack.c.b16 %v6035, %v6031
  %v6508 = vpack.c.b16 %v6036, %v6032
  %v6509 = vpack.c.b16 %v6037, %v6033
  %v6510 = vpack.c.b16 %v6038, %v6034
  %v6511 = vpack.c.b16 %v6043, %v6039
  %v6512 = vpack.c.b16 %v6044, %v6040
  %v6513 = vpack.c.b16 %v6045, %v6041
  %v6514 = vpack.c.b16 %v6046, %v6042
  %v6515 = vpack.c.b16 %v6051, %v6047
  %v6516 = vpack.c.b16 %v6052, %v6048
  %v6517 = vpack.c.b16 %v6053, %v6049
  %v6518 = vpack.c.b16 %v6054, %v6050
  %v6519 = vpack.c.b16 %v6059, %v6055
  %v6520 = vpack.c.b16 %v6060, %v6056
  %v6521 = vpack.c.b16 %v6061, %v6057
  %v6522 = vpack.c.b16 %v6062, %v6058
  %v6523 = vpack.c.b16 %v6067, %v6063
  %v6524 = vpack.c.b16 %v6068, %v6064
  %v6525 = vpack.c.b16 %v6069, %v6065
  %v6526 = vpack.c.b16 %v6070, %v6066
  %v6527 = vpack.c.b16 %v6075, %v6071
  %v6528 = vpack.c.b16 %v6076, %v6072
  %v6529 = vpack.c.b16 %v6077, %v6073
  %v6530 = vpack.c.b16 %v6078, %v6074
  %v6531 = vpack.c.b16 %v6083, %v6079
  %v6532 = vpack.c.b16 %v6084, %v6080
  %v6533 = vpack.c.b16 %v6085, %v6081
  %v6534 = vpack.c.b16 %v6086, %v6082
  %v6535 = vpack.c.b16 %v6091, %v6087
  %v6536 = vpack.c.b16 %v6092, %v6088
  %v6537 = vpack.c.b16 %v6093, %v6089
  %v6538 = vpack.c.b16 %v6094, %v6090
  %v6539 = vpack.c.b16 %v6099, %v6095
  %v6540 = vpack.c.b16 %v6100, %v6096
  %v6541 = vpack.c.b16 %v6101, %v6097
  %v6542 = vpack.c.b16 %v6102, %v6098
  %v6543 = vpack.c.b16 %v6107, %v6103
  %v6544 = vpack.c.b16 %v6108, %v6104
  %v6545 = vpack.c.b16 %v6109, %v6105
  %v6546 = vpack.c.b16 %v6110, %v6106
  %v6547 = vpack.c.b16 %v6115, %v6111
  %v6548 = vpack.c.b16 %v6116, %v6112
  %v6549 = vpack.c.b16 %v6117, %v6113
  %v6550 = vpack.c.b16 %v6118, %v6114
  %v6551 = vpack.c.b16 %v6123, %v6119
  %v6552 = vpack.c.b16 %v6124, %v6120
  %v6553 = vpack.c.b16 %v6125, %v6121
  %v6554 = vpack.c.b16 %v6126, %v6122
  %v6555 = vpack.c.b16 %v6131, %v6127
  %v6556 = vpack.c.b16 %v6132, %v6128
  %v6557 = vpack.c.b16 %v6133, %v6129
  %v6558 = vpack.c.b16 %v6134, %v6130
  %v6559 = vpack.c.b16 %v6139, %v6135
  %v6560 = vpack.c.b16 %v6140, %v6136
  %v6561 = vpack.c.b16 %v6141, %v6137
  %v6562 = vpack.c.b16 %v6142, %v6138
  %v6563 = vpack.c.b16 %v6147, %v6143
  %v6564 = vpack.c.b16 %v6148, %v6144
  %v6565 = vpack.c.b16 %v6149, %v6145
  %v6566 = vpack.c.b16 %v6150, %v6146
  %v6567 = vpack.c.b16 %v6155, %v6151
  %v6568 = vpack.c.b16 %v6156, %v6152
  %v6569 = vpack.c.b16 %v6157, %v6153
  %v6570 = vpack.c.b16 %v6158, %v6154
  %v6571 = vpack.c.b16 %v6163, %v6159
  %v6572 = vpack.c.b16 %v6164, %v6160
  %v6573 = vpack.c.b16 %v6165, %v6161
  %v6574 = vpack.c.b16 %v6166, %v6162
  %v6575 = vpack.c.b16 %v6171, %v6167
  %v6576 = vpack.c.b16 %v6172, %v6168
  %v6577 = vpack.c.b16 %v6173, %v6169
  %v6578 = vpack.c.b16 %v6174, %v6170
  %v6579 = vpack.c.b16 %v6179, %v6175
  %v6580 = vpack.c.b16 %v6180, %v6176
  %v6581 = vpack.c.b16 %v6181, %v6177
  %v6582 = vpack.c.b16 %v6182, %v6178
  %v6583 = vpack.c.b16 %v6187, %v6183
  %v6584 = vpack.c.b16 %v6188, %v6184
  %v6585 = vpack.c.b16 %v6189, %v6185
  %v6586 = vpack.c.b16 %v6190, %v6186
  %v6587 = vpack.c.b16 %v6195, %v6191
  %v6588 = vpack.c.b16 %v6196, %v6192
  %v6589 = vpack.c.b16 %v6197, %v6193
  %v6590 = vpack.c.b16 %v6198, %v6194
  %v6591 = vpack.c.b16 %v6203, %v6199
  %v6592 = vpack.c.b16 %v6204, %v6200
  %v6593 = vpack.c.b16 %v6205, %v6201
  %v6594 = vpack.c.b16 %v6206, %v6202
  %v6595 = vpack.c.b16 %v6211, %v6207
  %v6596 = vpack.c.b16 %v6212, %v6208
  %v6597 = vpack.c.b16 %v6213, %v6209
  %v6598 = vpack.c.b16 %v6214, %v6210
  %v6599 = vpack.c.b16 %v6219, %v6215
  %v6600 = vpack.c.b16 %v6220, %v6216
  %v6601 = vpack.c.b16 %v6221, %v6217
  %v6602 = vpack.c.b16 %v6222, %v6218
  %v6603 = vpack.c.b16 %v6227, %v6223
  %v6604 = vpack.c.b16 %v6228, %v6224
  %v6605 = vpack.c.b16 %v6229, %v6225
  %v6606 = vpack.c.b16 %v6230, %v6226
  %v6607 = vpack.c.b16 %v6235, %v6231
  %v6608 = vpack.c.b16 %v6236, %v6232
  %v6609 = vpack.c.b16 %v6237, %v6233
  %v6610 = vpack.c.b16 %v6238, %v6234
  %v6611 = vpack.c.b16 %v6243, %v6239
  %v6612 = vpack.c.b16 %v6244, %v6240
  %v6613 = vpack.c.b16 %v6245, %v6241
  %v6614 = vpack.c.b16 %v6246, %v6242
  %v6615 = vpack.c.b16 %v6251, %v6247
  %v6616 = vpack.c.b16 %v6252, %v6248
  %v6617 = vpack.c.b16 %v6253, %v6249
  %v6618 = vpack.c.b16 %v6254, %v6250
  %v6619 = vpack.c.b16 %v6259, %v6255
  %v6620 = vpack.c.b16 %v6260, %v6256
  %v6621 = vpack.c.b16 %v6261, %v6257
  %v6622 = vpack.c.b16 %v6262, %v6258
  %v6623 = vpack.c.b16 %v6267, %v6263
  %v6624 = vpack.c.b16 %v6268, %v6264
  %v6625 = vpack.c.b16 %v6269, %v6265
  %v6626 = vpack.c.b16 %v6270, %v6266
  %v6627 = vpack.c.b16 %v6275, %v6271
  %v6628 = vpack.c.b16 %v6276, %v6272
  %v6629 = vpack.c.b16 %v6277, %v6273
  %v6630 = vpack.c.b16 %v6278, %v6274
  %v6631 = vpack.c.b16 %v6283, %v6279
  %v6632 = vpack.c.b16 %v6284, %v6280
  %v6633 = vpack.c.b16 %v6285, %v6281
  %v6634 = vpack.c.b16 %v6286, %v6282
  %v6635 = vpack.c.b16 %v6291, %v6287
  %v6636 = vpack.c.b16 %v6292, %v6288
  %v6637 = vpack.c.b16 %v6293, %v6289
  %v6638 = vpack.c.b16 %v6294, %v6290
  %v6639 = vpack.c.b16 %v6299, %v6295
  %v6640 = vpack.c.b16 %v6300, %v6296
  %v6641 = vpack.c.b16 %v6301, %v6297
  %v6642 = vpack.c.b16 %v6302, %v6298
  %v6643 = vpack.c.b16 %v6307, %v6303
  %v6644 = vpack.c.b16 %v6308, %v6304
  %v6645 = vpack.c.b16 %v6309, %v6305
  %v6646 = vpack.c.b16 %v6310, %v6306
  %v6647 = vpack.c.b16 %v6315, %v6311
  %v6648 = vpack.c.b16 %v6316, %v6312
  %v6649 = vpack.c.b16 %v6317, %v6313
  %v6650 = vpack.c.b16 %v6318, %v6314
  %v6651 = vpack.c.b16 %v6323, %v6319
  %v6652 = vpack.c.b16 %v6324, %v6320
  %v6653 = vpack.c.b16 %v6325, %v6321
  %v6654 = vpack.c.b16 %v6326, %v6322
  %v6655 = vpack.c.b16 %v6331, %v6327
  %v6656 = vpack.c.b16 %v6332, %v6328
  %v6657 = vpack.c.b16 %v6333, %v6329
  %v6658 = vpack.c.b16 %v6334, %v6330
  %v6659 = vpack.c.b16 %v6339, %v6335
  %v6660 = vpack.c.b16 %v6340, %v6336
  %v6661 = vpack.c.b16 %v6341, %v6337
  %v6662 = vpack.c.b16 %v6342, %v6338
  %v6663 = vpack.c.b16 %v6347, %v6343
  %v6664 = vpack.c.b16 %v6348, %v6344
  %v6665 = vpack.c.b16 %v6349, %v6345
  %v6666 = vpack.c.b16 %v6350, %v6346
  %v6667 = vpack.c.b16 %v6355, %v6351
  %v6668 = vpack.c.b16 %v6356, %v6352
  %v6669 = vpack.c.b16 %v6357, %v6353
  %v6670 = vpack.c.b16 %v6358, %v6354
  %v6671 = vpack.c.b16 %v6363, %v6359
  %v6672 = vpack.c.b16 %v6364, %v6360
  %v6673 = vpack.c.b16 %v6365, %v6361
  %v6674 = vpack.c.b16 %v6366, %v6362
  %v6675 = vpack.c.b16 %v6371, %v6367
  %v6676 = vpack.c.b16 %v6372, %v6368
  %v6677 = vpack.c.b16 %v6373, %v6369
  %v6678 = vpack.c.b16 %v6374, %v6370
  %v6679 = vpack.c.b16 %v6379, %v6375
  %v6680 = vpack.c.b16 %v6380, %v6376
  %v6681 = vpack.c.b16 %v6381, %v6377
  %v6682 = vpack.c.b16 %v6382, %v6378
  %v6683 = vpack.c.b16 %v6387, %v6383
  %v6684 = vpack.c.b16 %v6388, %v6384
  %v6685 = vpack.c.b16 %v6389, %v6385
  %v6686 = vpack.c.b16 %v6390, %v6386
  %v6687 = vpack.c.b16 %v6395, %v6391
  %v6688 = vpack.c.b16 %v6396, %v6392
  %v6689 = vpack.c.b16 %v6397, %v6393
  %v6690 = vpack.c.b16 %v6398, %v6394
  %v6691 = vpack.c.b16 %v6403, %v6399
  %v6692 = vpack.c.b16 %v6404, %v6400
  %v6693 = vpack.c.b16 %v6405, %v6401
  %v6694 = vpack.c.b16 %v6406, %v6402
  %v6695 = vpack.c.b16 %v6411, %v6407
  %v6696 = vpack.c.b16 %v6412, %v6408
  %v6697 = vpack.c.b16 %v6413, %v6409
  %v6698 = vpack.c.b16 %v6414, %v6410
  %v6699 = vpack.c.b16 %v6419, %v6415
  %v6700 = vpack.c.b16 %v6420, %v6416
  %v6701 = vpack.c.b16 %v6421, %v6417
  %v6702 = vpack.c.b16 %v6422, %v6418
  %v6703 = vpack.c.b16 %v6427, %v6423
  %v6704 = vpack.c.b16 %v6428, %v6424
  %v6705 = vpack.c.b16 %v6429, %v6425
  %v6706 = vpack.c.b16 %v6430, %v6426
  %v6707 = vpack.c.b16 %v6435, %v6431
  %v6708 = vpack.c.b16 %v6436, %v6432
  %v6709 = vpack.c.b16 %v6437, %v6433
  %v6710 = vpack.c.b16 %v6438, %v6434
  %v6711 = vpack.c.b16 %v6443, %v6439
  %v6712 = vpack.c.b16 %v6444, %v6440
  %v6713 = vpack.c.b16 %v6445, %v6441
  %v6714 = vpack.c.b16 %v6446, %v6442
  %v6715 = vpack.c.b16 %v6451, %v6447
  %v6716 = vpack.c.b16 %v6452, %v6448
  %v6717 = vpack.c.b16 %v6453, %v6449
  %v6718 = vpack.c.b16 %v6454, %v6450
  %v6719 = vpack.c.b16 %v6459, %v6455
  %v6720 = vpack.c.b16 %v6460, %v6456
  %v6721 = vpack.c.b16 %v6461, %v6457
  %v6722 = vpack.c.b16 %v6462, %v6458
  %v6723 = vpack.c.b16 %v6467, %v6463
  %v6724 = vpack.c.b16 %v6468, %v6464
  %v6725 = vpack.c.b16 %v6469, %v6465
  %v6726 = vpack.c.b16 %v6470, %v6466
  %6983 = vmatpush.bf16.msra.mxu0 %v6499
  %6984 = vmatpush.bf16.msra.mxu0 %v6495
  %6985 = vmatpush.bf16.msra.mxu0 %v6491
  %6986 = vmatpush.bf16.msra.mxu0 %v6487
  %6987 = vmatpush.bf16.msra.mxu0 %v6483
  %6988 = vmatpush.bf16.msra.mxu0 %v6479
  %6989 = vmatpush.bf16.msra.mxu0 %v6475
  %6990 = vmatpush.bf16.msra.mxu0 %v6471
  %6991 = vmatmul.bf16.gmra.mxu0 %v5379
  %v6992 = vpop.f32.mrf.mxu0
  %v6993 = vadd.f32 0.0, %v6992
  %v6994 = vpop.f32.mrf.mxu0
  %v6995 = vadd.f32 0.0, %v6994
  %6996 = vmatmul.bf16.gmra.mxu0 %v5387
  %v6997 = vpop.f32.mrf.mxu0
  %v6998 = vadd.f32 0.0, %v6997
  %v6999 = vpop.f32.mrf.mxu0
  %v7000 = vadd.f32 0.0, %v6999
  %7001 = vmatmul.bf16.gmra.mxu0 %v5395
  %v7002 = vpop.f32.mrf.mxu0
  %v7003 = vadd.f32 0.0, %v7002
  %v7004 = vpop.f32.mrf.mxu0
  %v7005 = vadd.f32 0.0, %v7004
  %7006 = vmatmul.bf16.gmra.mxu0 %v5403
  %v7007 = vpop.f32.mrf.mxu0
  %v7008 = vadd.f32 0.0, %v7007
  %v7009 = vpop.f32.mrf.mxu0
  %v7010 = vadd.f32 0.0, %v7009
  %7011 = vmatmul.bf16.gmra.mxu0 %v5411
  %v7012 = vpop.f32.mrf.mxu0
  %v7013 = vadd.f32 0.0, %v7012
  %v7014 = vpop.f32.mrf.mxu0
  %v7015 = vadd.f32 0.0, %v7014
  %7016 = vmatmul.bf16.gmra.mxu0 %v5419
  %v7017 = vpop.f32.mrf.mxu0
  %v7018 = vadd.f32 0.0, %v7017
  %v7019 = vpop.f32.mrf.mxu0
  %v7020 = vadd.f32 0.0, %v7019
  %7021 = vmatmul.bf16.gmra.mxu0 %v5427
  %v7022 = vpop.f32.mrf.mxu0
  %v7023 = vadd.f32 0.0, %v7022
  %v7024 = vpop.f32.mrf.mxu0
  %v7025 = vadd.f32 0.0, %v7024
  %7026 = vmatmul.bf16.gmra.mxu0 %v5435
  %v7027 = vpop.f32.mrf.mxu0
  %v7028 = vadd.f32 0.0, %v7027
  %v7029 = vpop.f32.mrf.mxu0
  %v7030 = vadd.f32 0.0, %v7029
  %7031 = vdwg.mxu0
  %7032 = vmatpush.bf16.msra.mxu0 %v6531
  %7033 = vmatpush.bf16.msra.mxu0 %v6527
  %7034 = vmatpush.bf16.msra.mxu0 %v6523
  %7035 = vmatpush.bf16.msra.mxu0 %v6519
  %7036 = vmatpush.bf16.msra.mxu0 %v6515
  %7037 = vmatpush.bf16.msra.mxu0 %v6511
  %7038 = vmatpush.bf16.msra.mxu0 %v6507
  %7039 = vmatpush.bf16.msra.mxu0 %v6503
  %7040 = vmatmul.bf16.gmra.mxu0 %v5380
  %v7041 = vpop.f32.mrf.mxu0
  %v7042 = vadd.f32 %v6993, %v7041
  %v7043 = vpop.f32.mrf.mxu0
  %v7044 = vadd.f32 %v6995, %v7043
  %7045 = vmatmul.bf16.gmra.mxu0 %v5388
  %v7046 = vpop.f32.mrf.mxu0
  %v7047 = vadd.f32 %v6998, %v7046
  %v7048 = vpop.f32.mrf.mxu0
  %v7049 = vadd.f32 %v7000, %v7048
  %7050 = vmatmul.bf16.gmra.mxu0 %v5396
  %v7051 = vpop.f32.mrf.mxu0
  %v7052 = vadd.f32 %v7003, %v7051
  %v7053 = vpop.f32.mrf.mxu0
  %v7054 = vadd.f32 %v7005, %v7053
  %7055 = vmatmul.bf16.gmra.mxu0 %v5404
  %v7056 = vpop.f32.mrf.mxu0
  %v7057 = vadd.f32 %v7008, %v7056
  %v7058 = vpop.f32.mrf.mxu0
  %v7059 = vadd.f32 %v7010, %v7058
  %7060 = vmatmul.bf16.gmra.mxu0 %v5412
  %v7061 = vpop.f32.mrf.mxu0
  %v7062 = vadd.f32 %v7013, %v7061
  %v7063 = vpop.f32.mrf.mxu0
  %v7064 = vadd.f32 %v7015, %v7063
  %7065 = vmatmul.bf16.gmra.mxu0 %v5420
  %v7066 = vpop.f32.mrf.mxu0
  %v7067 = vadd.f32 %v7018, %v7066
  %v7068 = vpop.f32.mrf.mxu0
  %v7069 = vadd.f32 %v7020, %v7068
  %7070 = vmatmul.bf16.gmra.mxu0 %v5428
  %v7071 = vpop.f32.mrf.mxu0
  %v7072 = vadd.f32 %v7023, %v7071
  %v7073 = vpop.f32.mrf.mxu0
  %v7074 = vadd.f32 %v7025, %v7073
  %7075 = vmatmul.bf16.gmra.mxu0 %v5436
  %v7076 = vpop.f32.mrf.mxu0
  %v7077 = vadd.f32 %v7028, %v7076
  %v7078 = vpop.f32.mrf.mxu0
  %v7079 = vadd.f32 %v7030, %v7078
  %7080 = vdwg.mxu0
  %7081 = vmatpush.bf16.msra.mxu0 %v6563
  %7082 = vmatpush.bf16.msra.mxu0 %v6559
  %7083 = vmatpush.bf16.msra.mxu0 %v6555
  %7084 = vmatpush.bf16.msra.mxu0 %v6551
  %7085 = vmatpush.bf16.msra.mxu0 %v6547
  %7086 = vmatpush.bf16.msra.mxu0 %v6543
  %7087 = vmatpush.bf16.msra.mxu0 %v6539
  %7088 = vmatpush.bf16.msra.mxu0 %v6535
  %7089 = vmatmul.bf16.gmra.mxu0 %v5381
  %v7090 = vpop.f32.mrf.mxu0
  %v7091 = vadd.f32 %v7042, %v7090
  %v7092 = vpop.f32.mrf.mxu0
  %v7093 = vadd.f32 %v7044, %v7092
  %7094 = vmatmul.bf16.gmra.mxu0 %v5389
  %v7095 = vpop.f32.mrf.mxu0
  %v7096 = vadd.f32 %v7047, %v7095
  %v7097 = vpop.f32.mrf.mxu0
  %v7098 = vadd.f32 %v7049, %v7097
  %7099 = vmatmul.bf16.gmra.mxu0 %v5397
  %v7100 = vpop.f32.mrf.mxu0
  %v7101 = vadd.f32 %v7052, %v7100
  %v7102 = vpop.f32.mrf.mxu0
  %v7103 = vadd.f32 %v7054, %v7102
  %7104 = vmatmul.bf16.gmra.mxu0 %v5405
  %v7105 = vpop.f32.mrf.mxu0
  %v7106 = vadd.f32 %v7057, %v7105
  %v7107 = vpop.f32.mrf.mxu0
  %v7108 = vadd.f32 %v7059, %v7107
  %7109 = vmatmul.bf16.gmra.mxu0 %v5413
  %v7110 = vpop.f32.mrf.mxu0
  %v7111 = vadd.f32 %v7062, %v7110
  %v7112 = vpop.f32.mrf.mxu0
  %v7113 = vadd.f32 %v7064, %v7112
  %7114 = vmatmul.bf16.gmra.mxu0 %v5421
  %v7115 = vpop.f32.mrf.mxu0
  %v7116 = vadd.f32 %v7067, %v7115
  %v7117 = vpop.f32.mrf.mxu0
  %v7118 = vadd.f32 %v7069, %v7117
  %7119 = vmatmul.bf16.gmra.mxu0 %v5429
  %v7120 = vpop.f32.mrf.mxu0
  %v7121 = vadd.f32 %v7072, %v7120
  %v7122 = vpop.f32.mrf.mxu0
  %v7123 = vadd.f32 %v7074, %v7122
  %7124 = vmatmul.bf16.gmra.mxu0 %v5437
  %v7125 = vpop.f32.mrf.mxu0
  %v7126 = vadd.f32 %v7077, %v7125
  %v7127 = vpop.f32.mrf.mxu0
  %v7128 = vadd.f32 %v7079, %v7127
  %7129 = vdwg.mxu0
  %7130 = vmatpush.bf16.msra.mxu0 %v6595
  %7131 = vmatpush.bf16.msra.mxu0 %v6591
  %7132 = vmatpush.bf16.msra.mxu0 %v6587
  %7133 = vmatpush.bf16.msra.mxu0 %v6583
  %7134 = vmatpush.bf16.msra.mxu0 %v6579
  %7135 = vmatpush.bf16.msra.mxu0 %v6575
  %7136 = vmatpush.bf16.msra.mxu0 %v6571
  %7137 = vmatpush.bf16.msra.mxu0 %v6567
  %7138 = vmatmul.bf16.gmra.mxu0 %v5382
  %v7139 = vpop.f32.mrf.mxu0
  %v7140 = vadd.f32 %v7091, %v7139
  %v7141 = vpop.f32.mrf.mxu0
  %v7142 = vadd.f32 %v7093, %v7141
  %7143 = vmatmul.bf16.gmra.mxu0 %v5390
  %v7144 = vpop.f32.mrf.mxu0
  %v7145 = vadd.f32 %v7096, %v7144
  %v7146 = vpop.f32.mrf.mxu0
  %v7147 = vadd.f32 %v7098, %v7146
  %7148 = vmatmul.bf16.gmra.mxu0 %v5398
  %v7149 = vpop.f32.mrf.mxu0
  %v7150 = vadd.f32 %v7101, %v7149
  %v7151 = vpop.f32.mrf.mxu0
  %v7152 = vadd.f32 %v7103, %v7151
  %7153 = vmatmul.bf16.gmra.mxu0 %v5406
  %v7154 = vpop.f32.mrf.mxu0
  %v7155 = vadd.f32 %v7106, %v7154
  %v7156 = vpop.f32.mrf.mxu0
  %v7157 = vadd.f32 %v7108, %v7156
  %7158 = vmatmul.bf16.gmra.mxu0 %v5414
  %v7159 = vpop.f32.mrf.mxu0
  %v7160 = vadd.f32 %v7111, %v7159
  %v7161 = vpop.f32.mrf.mxu0
  %v7162 = vadd.f32 %v7113, %v7161
  %7163 = vmatmul.bf16.gmra.mxu0 %v5422
  %v7164 = vpop.f32.mrf.mxu0
  %v7165 = vadd.f32 %v7116, %v7164
  %v7166 = vpop.f32.mrf.mxu0
  %v7167 = vadd.f32 %v7118, %v7166
  %7168 = vmatmul.bf16.gmra.mxu0 %v5430
  %v7169 = vpop.f32.mrf.mxu0
  %v7170 = vadd.f32 %v7121, %v7169
  %v7171 = vpop.f32.mrf.mxu0
  %v7172 = vadd.f32 %v7123, %v7171
  %7173 = vmatmul.bf16.gmra.mxu0 %v5438
  %v7174 = vpop.f32.mrf.mxu0
  %v7175 = vadd.f32 %v7126, %v7174
  %v7176 = vpop.f32.mrf.mxu0
  %v7177 = vadd.f32 %v7128, %v7176
  %7178 = vdwg.mxu0
  %7179 = vmatpush.bf16.msra.mxu0 %v6627
  %7180 = vmatpush.bf16.msra.mxu0 %v6623
  %7181 = vmatpush.bf16.msra.mxu0 %v6619
  %7182 = vmatpush.bf16.msra.mxu0 %v6615
  %7183 = vmatpush.bf16.msra.mxu0 %v6611
  %7184 = vmatpush.bf16.msra.mxu0 %v6607
  %7185 = vmatpush.bf16.msra.mxu0 %v6603
  %7186 = vmatpush.bf16.msra.mxu0 %v6599
  %7187 = vmatmul.bf16.gmra.mxu0 %v5383
  %v7188 = vpop.f32.mrf.mxu0
  %v7189 = vadd.f32 %v7140, %v7188
  %v7190 = vpop.f32.mrf.mxu0
  %v7191 = vadd.f32 %v7142, %v7190
  %7192 = vmatmul.bf16.gmra.mxu0 %v5391
  %v7193 = vpop.f32.mrf.mxu0
  %v7194 = vadd.f32 %v7145, %v7193
  %v7195 = vpop.f32.mrf.mxu0
  %v7196 = vadd.f32 %v7147, %v7195
  %7197 = vmatmul.bf16.gmra.mxu0 %v5399
  %v7198 = vpop.f32.mrf.mxu0
  %v7199 = vadd.f32 %v7150, %v7198
  %v7200 = vpop.f32.mrf.mxu0
  %v7201 = vadd.f32 %v7152, %v7200
  %7202 = vmatmul.bf16.gmra.mxu0 %v5407
  %v7203 = vpop.f32.mrf.mxu0
  %v7204 = vadd.f32 %v7155, %v7203
  %v7205 = vpop.f32.mrf.mxu0
  %v7206 = vadd.f32 %v7157, %v7205
  %7207 = vmatmul.bf16.gmra.mxu0 %v5415
  %v7208 = vpop.f32.mrf.mxu0
  %v7209 = vadd.f32 %v7160, %v7208
  %v7210 = vpop.f32.mrf.mxu0
  %v7211 = vadd.f32 %v7162, %v7210
  %7212 = vmatmul.bf16.gmra.mxu0 %v5423
  %v7213 = vpop.f32.mrf.mxu0
  %v7214 = vadd.f32 %v7165, %v7213
  %v7215 = vpop.f32.mrf.mxu0
  %v7216 = vadd.f32 %v7167, %v7215
  %7217 = vmatmul.bf16.gmra.mxu0 %v5431
  %v7218 = vpop.f32.mrf.mxu0
  %v7219 = vadd.f32 %v7170, %v7218
  %v7220 = vpop.f32.mrf.mxu0
  %v7221 = vadd.f32 %v7172, %v7220
  %7222 = vmatmul.bf16.gmra.mxu0 %v5439
  %v7223 = vpop.f32.mrf.mxu0
  %v7224 = vadd.f32 %v7175, %v7223
  %v7225 = vpop.f32.mrf.mxu0
  %v7226 = vadd.f32 %v7177, %v7225
  %7227 = vdwg.mxu0
  %7228 = vmatpush.bf16.msra.mxu0 %v6659
  %7229 = vmatpush.bf16.msra.mxu0 %v6655
  %7230 = vmatpush.bf16.msra.mxu0 %v6651
  %7231 = vmatpush.bf16.msra.mxu0 %v6647
  %7232 = vmatpush.bf16.msra.mxu0 %v6643
  %7233 = vmatpush.bf16.msra.mxu0 %v6639
  %7234 = vmatpush.bf16.msra.mxu0 %v6635
  %7235 = vmatpush.bf16.msra.mxu0 %v6631
  %7236 = vmatmul.bf16.gmra.mxu0 %v5384
  %v7237 = vpop.f32.mrf.mxu0
  %v7238 = vadd.f32 %v7189, %v7237
  %v7239 = vpop.f32.mrf.mxu0
  %v7240 = vadd.f32 %v7191, %v7239
  %7241 = vmatmul.bf16.gmra.mxu0 %v5392
  %v7242 = vpop.f32.mrf.mxu0
  %v7243 = vadd.f32 %v7194, %v7242
  %v7244 = vpop.f32.mrf.mxu0
  %v7245 = vadd.f32 %v7196, %v7244
  %7246 = vmatmul.bf16.gmra.mxu0 %v5400
  %v7247 = vpop.f32.mrf.mxu0
  %v7248 = vadd.f32 %v7199, %v7247
  %v7249 = vpop.f32.mrf.mxu0
  %v7250 = vadd.f32 %v7201, %v7249
  %7251 = vmatmul.bf16.gmra.mxu0 %v5408
  %v7252 = vpop.f32.mrf.mxu0
  %v7253 = vadd.f32 %v7204, %v7252
  %v7254 = vpop.f32.mrf.mxu0
  %v7255 = vadd.f32 %v7206, %v7254
  %7256 = vmatmul.bf16.gmra.mxu0 %v5416
  %v7257 = vpop.f32.mrf.mxu0
  %v7258 = vadd.f32 %v7209, %v7257
  %v7259 = vpop.f32.mrf.mxu0
  %v7260 = vadd.f32 %v7211, %v7259
  %7261 = vmatmul.bf16.gmra.mxu0 %v5424
  %v7262 = vpop.f32.mrf.mxu0
  %v7263 = vadd.f32 %v7214, %v7262
  %v7264 = vpop.f32.mrf.mxu0
  %v7265 = vadd.f32 %v7216, %v7264
  %7266 = vmatmul.bf16.gmra.mxu0 %v5432
  %v7267 = vpop.f32.mrf.mxu0
  %v7268 = vadd.f32 %v7219, %v7267
  %v7269 = vpop.f32.mrf.mxu0
  %v7270 = vadd.f32 %v7221, %v7269
  %7271 = vmatmul.bf16.gmra.mxu0 %v5440
  %v7272 = vpop.f32.mrf.mxu0
  %v7273 = vadd.f32 %v7224, %v7272
  %v7274 = vpop.f32.mrf.mxu0
  %v7275 = vadd.f32 %v7226, %v7274
  %7276 = vdwg.mxu0
  %7277 = vmatpush.bf16.msra.mxu0 %v6691
  %7278 = vmatpush.bf16.msra.mxu0 %v6687
  %7279 = vmatpush.bf16.msra.mxu0 %v6683
  %7280 = vmatpush.bf16.msra.mxu0 %v6679
  %7281 = vmatpush.bf16.msra.mxu0 %v6675
  %7282 = vmatpush.bf16.msra.mxu0 %v6671
  %7283 = vmatpush.bf16.msra.mxu0 %v6667
  %7284 = vmatpush.bf16.msra.mxu0 %v6663
  %7285 = vmatmul.bf16.gmra.mxu0 %v5385
  %v7286 = vpop.f32.mrf.mxu0
  %v7287 = vadd.f32 %v7238, %v7286
  %v7288 = vpop.f32.mrf.mxu0
  %v7289 = vadd.f32 %v7240, %v7288
  %7290 = vmatmul.bf16.gmra.mxu0 %v5393
  %v7291 = vpop.f32.mrf.mxu0
  %v7292 = vadd.f32 %v7243, %v7291
  %v7293 = vpop.f32.mrf.mxu0
  %v7294 = vadd.f32 %v7245, %v7293
  %7295 = vmatmul.bf16.gmra.mxu0 %v5401
  %v7296 = vpop.f32.mrf.mxu0
  %v7297 = vadd.f32 %v7248, %v7296
  %v7298 = vpop.f32.mrf.mxu0
  %v7299 = vadd.f32 %v7250, %v7298
  %7300 = vmatmul.bf16.gmra.mxu0 %v5409
  %v7301 = vpop.f32.mrf.mxu0
  %v7302 = vadd.f32 %v7253, %v7301
  %v7303 = vpop.f32.mrf.mxu0
  %v7304 = vadd.f32 %v7255, %v7303
  %7305 = vmatmul.bf16.gmra.mxu0 %v5417
  %v7306 = vpop.f32.mrf.mxu0
  %v7307 = vadd.f32 %v7258, %v7306
  %v7308 = vpop.f32.mrf.mxu0
  %v7309 = vadd.f32 %v7260, %v7308
  %7310 = vmatmul.bf16.gmra.mxu0 %v5425
  %v7311 = vpop.f32.mrf.mxu0
  %v7312 = vadd.f32 %v7263, %v7311
  %v7313 = vpop.f32.mrf.mxu0
  %v7314 = vadd.f32 %v7265, %v7313
  %7315 = vmatmul.bf16.gmra.mxu0 %v5433
  %v7316 = vpop.f32.mrf.mxu0
  %v7317 = vadd.f32 %v7268, %v7316
  %v7318 = vpop.f32.mrf.mxu0
  %v7319 = vadd.f32 %v7270, %v7318
  %7320 = vmatmul.bf16.gmra.mxu0 %v5441
  %v7321 = vpop.f32.mrf.mxu0
  %v7322 = vadd.f32 %v7273, %v7321
  %v7323 = vpop.f32.mrf.mxu0
  %v7324 = vadd.f32 %v7275, %v7323
  %7325 = vdwg.mxu0
  %7326 = vmatpush.bf16.msra.mxu0 %v6723
  %7327 = vmatpush.bf16.msra.mxu0 %v6719
  %7328 = vmatpush.bf16.msra.mxu0 %v6715
  %7329 = vmatpush.bf16.msra.mxu0 %v6711
  %7330 = vmatpush.bf16.msra.mxu0 %v6707
  %7331 = vmatpush.bf16.msra.mxu0 %v6703
  %7332 = vmatpush.bf16.msra.mxu0 %v6699
  %7333 = vmatpush.bf16.msra.mxu0 %v6695
  %7334 = vmatmul.bf16.gmra.mxu0 %v5386
  %v7335 = vpop.f32.mrf.mxu0
  %v7336 = vadd.f32 %v7287, %v7335
  %v7337 = vpop.f32.mrf.mxu0
  %v7338 = vadd.f32 %v7289, %v7337
  %7339 = vmatmul.bf16.gmra.mxu0 %v5394
  %v7340 = vpop.f32.mrf.mxu0
  %v7341 = vadd.f32 %v7292, %v7340
  %v7342 = vpop.f32.mrf.mxu0
  %v7343 = vadd.f32 %v7294, %v7342
  %7344 = vmatmul.bf16.gmra.mxu0 %v5402
  %v7345 = vpop.f32.mrf.mxu0
  %v7346 = vadd.f32 %v7297, %v7345
  %v7347 = vpop.f32.mrf.mxu0
  %v7348 = vadd.f32 %v7299, %v7347
  %7349 = vmatmul.bf16.gmra.mxu0 %v5410
  %v7350 = vpop.f32.mrf.mxu0
  %v7351 = vadd.f32 %v7302, %v7350
  %v7352 = vpop.f32.mrf.mxu0
  %v7353 = vadd.f32 %v7304, %v7352
  %7354 = vmatmul.bf16.gmra.mxu0 %v5418
  %v7355 = vpop.f32.mrf.mxu0
  %v7356 = vadd.f32 %v7307, %v7355
  %v7357 = vpop.f32.mrf.mxu0
  %v7358 = vadd.f32 %v7309, %v7357
  %7359 = vmatmul.bf16.gmra.mxu0 %v5426
  %v7360 = vpop.f32.mrf.mxu0
  %v7361 = vadd.f32 %v7312, %v7360
  %v7362 = vpop.f32.mrf.mxu0
  %v7363 = vadd.f32 %v7314, %v7362
  %7364 = vmatmul.bf16.gmra.mxu0 %v5434
  %v7365 = vpop.f32.mrf.mxu0
  %v7366 = vadd.f32 %v7317, %v7365
  %v7367 = vpop.f32.mrf.mxu0
  %v7368 = vadd.f32 %v7319, %v7367
  %7369 = vmatmul.bf16.gmra.mxu0 %v5442
  %v7370 = vpop.f32.mrf.mxu0
  %v7371 = vadd.f32 %v7322, %v7370
  %v7372 = vpop.f32.mrf.mxu0
  %v7373 = vadd.f32 %v7324, %v7372
  %7374 = vdwg.mxu0
  %7375 = vmatpush.bf16.msra.mxu0 %v6500
  %7376 = vmatpush.bf16.msra.mxu0 %v6496
  %7377 = vmatpush.bf16.msra.mxu0 %v6492
  %7378 = vmatpush.bf16.msra.mxu0 %v6488
  %7379 = vmatpush.bf16.msra.mxu0 %v6484
  %7380 = vmatpush.bf16.msra.mxu0 %v6480
  %7381 = vmatpush.bf16.msra.mxu0 %v6476
  %7382 = vmatpush.bf16.msra.mxu0 %v6472
  %7383 = vmatmul.bf16.gmra.mxu0 %v5379
  %v7384 = vpop.f32.mrf.mxu0
  %v7385 = vadd.f32 0.0, %v7384
  %v7386 = vpop.f32.mrf.mxu0
  %v7387 = vadd.f32 0.0, %v7386
  %7388 = vmatmul.bf16.gmra.mxu0 %v5387
  %v7389 = vpop.f32.mrf.mxu0
  %v7390 = vadd.f32 0.0, %v7389
  %v7391 = vpop.f32.mrf.mxu0
  %v7392 = vadd.f32 0.0, %v7391
  %7393 = vmatmul.bf16.gmra.mxu0 %v5395
  %v7394 = vpop.f32.mrf.mxu0
  %v7395 = vadd.f32 0.0, %v7394
  %v7396 = vpop.f32.mrf.mxu0
  %v7397 = vadd.f32 0.0, %v7396
  %7398 = vmatmul.bf16.gmra.mxu0 %v5403
  %v7399 = vpop.f32.mrf.mxu0
  %v7400 = vadd.f32 0.0, %v7399
  %v7401 = vpop.f32.mrf.mxu0
  %v7402 = vadd.f32 0.0, %v7401
  %7403 = vmatmul.bf16.gmra.mxu0 %v5411
  %v7404 = vpop.f32.mrf.mxu0
  %v7405 = vadd.f32 0.0, %v7404
  %v7406 = vpop.f32.mrf.mxu0
  %v7407 = vadd.f32 0.0, %v7406
  %7408 = vmatmul.bf16.gmra.mxu0 %v5419
  %v7409 = vpop.f32.mrf.mxu0
  %v7410 = vadd.f32 0.0, %v7409
  %v7411 = vpop.f32.mrf.mxu0
  %v7412 = vadd.f32 0.0, %v7411
  %7413 = vmatmul.bf16.gmra.mxu0 %v5427
  %v7414 = vpop.f32.mrf.mxu0
  %v7415 = vadd.f32 0.0, %v7414
  %v7416 = vpop.f32.mrf.mxu0
  %v7417 = vadd.f32 0.0, %v7416
  %7418 = vmatmul.bf16.gmra.mxu0 %v5435
  %v7419 = vpop.f32.mrf.mxu0
  %v7420 = vadd.f32 0.0, %v7419
  %v7421 = vpop.f32.mrf.mxu0
  %v7422 = vadd.f32 0.0, %v7421
  %7423 = vdwg.mxu0
  %7424 = vmatpush.bf16.msra.mxu0 %v6532
  %7425 = vmatpush.bf16.msra.mxu0 %v6528
  %7426 = vmatpush.bf16.msra.mxu0 %v6524
  %7427 = vmatpush.bf16.msra.mxu0 %v6520
  %7428 = vmatpush.bf16.msra.mxu0 %v6516
  %7429 = vmatpush.bf16.msra.mxu0 %v6512
  %7430 = vmatpush.bf16.msra.mxu0 %v6508
  %7431 = vmatpush.bf16.msra.mxu0 %v6504
  %7432 = vmatmul.bf16.gmra.mxu0 %v5380
  %v7433 = vpop.f32.mrf.mxu0
  %v7434 = vadd.f32 %v7385, %v7433
  %v7435 = vpop.f32.mrf.mxu0
  %v7436 = vadd.f32 %v7387, %v7435
  %7437 = vmatmul.bf16.gmra.mxu0 %v5388
  %v7438 = vpop.f32.mrf.mxu0
  %v7439 = vadd.f32 %v7390, %v7438
  %v7440 = vpop.f32.mrf.mxu0
  %v7441 = vadd.f32 %v7392, %v7440
  %7442 = vmatmul.bf16.gmra.mxu0 %v5396
  %v7443 = vpop.f32.mrf.mxu0
  %v7444 = vadd.f32 %v7395, %v7443
  %v7445 = vpop.f32.mrf.mxu0
  %v7446 = vadd.f32 %v7397, %v7445
  %7447 = vmatmul.bf16.gmra.mxu0 %v5404
  %v7448 = vpop.f32.mrf.mxu0
  %v7449 = vadd.f32 %v7400, %v7448
  %v7450 = vpop.f32.mrf.mxu0
  %v7451 = vadd.f32 %v7402, %v7450
  %7452 = vmatmul.bf16.gmra.mxu0 %v5412
  %v7453 = vpop.f32.mrf.mxu0
  %v7454 = vadd.f32 %v7405, %v7453
  %v7455 = vpop.f32.mrf.mxu0
  %v7456 = vadd.f32 %v7407, %v7455
  %7457 = vmatmul.bf16.gmra.mxu0 %v5420
  %v7458 = vpop.f32.mrf.mxu0
  %v7459 = vadd.f32 %v7410, %v7458
  %v7460 = vpop.f32.mrf.mxu0
  %v7461 = vadd.f32 %v7412, %v7460
  %7462 = vmatmul.bf16.gmra.mxu0 %v5428
  %v7463 = vpop.f32.mrf.mxu0
  %v7464 = vadd.f32 %v7415, %v7463
  %v7465 = vpop.f32.mrf.mxu0
  %v7466 = vadd.f32 %v7417, %v7465
  %7467 = vmatmul.bf16.gmra.mxu0 %v5436
  %v7468 = vpop.f32.mrf.mxu0
  %v7469 = vadd.f32 %v7420, %v7468
  %v7470 = vpop.f32.mrf.mxu0
  %v7471 = vadd.f32 %v7422, %v7470
  %7472 = vdwg.mxu0
  %7473 = vmatpush.bf16.msra.mxu0 %v6564
  %7474 = vmatpush.bf16.msra.mxu0 %v6560
  %7475 = vmatpush.bf16.msra.mxu0 %v6556
  %7476 = vmatpush.bf16.msra.mxu0 %v6552
  %7477 = vmatpush.bf16.msra.mxu0 %v6548
  %7478 = vmatpush.bf16.msra.mxu0 %v6544
  %7479 = vmatpush.bf16.msra.mxu0 %v6540
  %7480 = vmatpush.bf16.msra.mxu0 %v6536
  %7481 = vmatmul.bf16.gmra.mxu0 %v5381
  %v7482 = vpop.f32.mrf.mxu0
  %v7483 = vadd.f32 %v7434, %v7482
  %v7484 = vpop.f32.mrf.mxu0
  %v7485 = vadd.f32 %v7436, %v7484
  %7486 = vmatmul.bf16.gmra.mxu0 %v5389
  %v7487 = vpop.f32.mrf.mxu0
  %v7488 = vadd.f32 %v7439, %v7487
  %v7489 = vpop.f32.mrf.mxu0
  %v7490 = vadd.f32 %v7441, %v7489
  %7491 = vmatmul.bf16.gmra.mxu0 %v5397
  %v7492 = vpop.f32.mrf.mxu0
  %v7493 = vadd.f32 %v7444, %v7492
  %v7494 = vpop.f32.mrf.mxu0
  %v7495 = vadd.f32 %v7446, %v7494
  %7496 = vmatmul.bf16.gmra.mxu0 %v5405
  %v7497 = vpop.f32.mrf.mxu0
  %v7498 = vadd.f32 %v7449, %v7497
  %v7499 = vpop.f32.mrf.mxu0
  %v7500 = vadd.f32 %v7451, %v7499
  %7501 = vmatmul.bf16.gmra.mxu0 %v5413
  %v7502 = vpop.f32.mrf.mxu0
  %v7503 = vadd.f32 %v7454, %v7502
  %v7504 = vpop.f32.mrf.mxu0
  %v7505 = vadd.f32 %v7456, %v7504
  %7506 = vmatmul.bf16.gmra.mxu0 %v5421
  %v7507 = vpop.f32.mrf.mxu0
  %v7508 = vadd.f32 %v7459, %v7507
  %v7509 = vpop.f32.mrf.mxu0
  %v7510 = vadd.f32 %v7461, %v7509
  %7511 = vmatmul.bf16.gmra.mxu0 %v5429
  %v7512 = vpop.f32.mrf.mxu0
  %v7513 = vadd.f32 %v7464, %v7512
  %v7514 = vpop.f32.mrf.mxu0
  %v7515 = vadd.f32 %v7466, %v7514
  %7516 = vmatmul.bf16.gmra.mxu0 %v5437
  %v7517 = vpop.f32.mrf.mxu0
  %v7518 = vadd.f32 %v7469, %v7517
  %v7519 = vpop.f32.mrf.mxu0
  %v7520 = vadd.f32 %v7471, %v7519
  %7521 = vdwg.mxu0
  %7522 = vmatpush.bf16.msra.mxu0 %v6596
  %7523 = vmatpush.bf16.msra.mxu0 %v6592
  %7524 = vmatpush.bf16.msra.mxu0 %v6588
  %7525 = vmatpush.bf16.msra.mxu0 %v6584
  %7526 = vmatpush.bf16.msra.mxu0 %v6580
  %7527 = vmatpush.bf16.msra.mxu0 %v6576
  %7528 = vmatpush.bf16.msra.mxu0 %v6572
  %7529 = vmatpush.bf16.msra.mxu0 %v6568
  %7530 = vmatmul.bf16.gmra.mxu0 %v5382
  %v7531 = vpop.f32.mrf.mxu0
  %v7532 = vadd.f32 %v7483, %v7531
  %v7533 = vpop.f32.mrf.mxu0
  %v7534 = vadd.f32 %v7485, %v7533
  %7535 = vmatmul.bf16.gmra.mxu0 %v5390
  %v7536 = vpop.f32.mrf.mxu0
  %v7537 = vadd.f32 %v7488, %v7536
  %v7538 = vpop.f32.mrf.mxu0
  %v7539 = vadd.f32 %v7490, %v7538
  %7540 = vmatmul.bf16.gmra.mxu0 %v5398
  %v7541 = vpop.f32.mrf.mxu0
  %v7542 = vadd.f32 %v7493, %v7541
  %v7543 = vpop.f32.mrf.mxu0
  %v7544 = vadd.f32 %v7495, %v7543
  %7545 = vmatmul.bf16.gmra.mxu0 %v5406
  %v7546 = vpop.f32.mrf.mxu0
  %v7547 = vadd.f32 %v7498, %v7546
  %v7548 = vpop.f32.mrf.mxu0
  %v7549 = vadd.f32 %v7500, %v7548
  %7550 = vmatmul.bf16.gmra.mxu0 %v5414
  %v7551 = vpop.f32.mrf.mxu0
  %v7552 = vadd.f32 %v7503, %v7551
  %v7553 = vpop.f32.mrf.mxu0
  %v7554 = vadd.f32 %v7505, %v7553
  %7555 = vmatmul.bf16.gmra.mxu0 %v5422
  %v7556 = vpop.f32.mrf.mxu0
  %v7557 = vadd.f32 %v7508, %v7556
  %v7558 = vpop.f32.mrf.mxu0
  %v7559 = vadd.f32 %v7510, %v7558
  %7560 = vmatmul.bf16.gmra.mxu0 %v5430
  %v7561 = vpop.f32.mrf.mxu0
  %v7562 = vadd.f32 %v7513, %v7561
  %v7563 = vpop.f32.mrf.mxu0
  %v7564 = vadd.f32 %v7515, %v7563
  %7565 = vmatmul.bf16.gmra.mxu0 %v5438
  %v7566 = vpop.f32.mrf.mxu0
  %v7567 = vadd.f32 %v7518, %v7566
  %v7568 = vpop.f32.mrf.mxu0
  %v7569 = vadd.f32 %v7520, %v7568
  %7570 = vdwg.mxu0
  %7571 = vmatpush.bf16.msra.mxu0 %v6628
  %7572 = vmatpush.bf16.msra.mxu0 %v6624
  %7573 = vmatpush.bf16.msra.mxu0 %v6620
  %7574 = vmatpush.bf16.msra.mxu0 %v6616
  %7575 = vmatpush.bf16.msra.mxu0 %v6612
  %7576 = vmatpush.bf16.msra.mxu0 %v6608
  %7577 = vmatpush.bf16.msra.mxu0 %v6604
  %7578 = vmatpush.bf16.msra.mxu0 %v6600
  %7579 = vmatmul.bf16.gmra.mxu0 %v5383
  %v7580 = vpop.f32.mrf.mxu0
  %v7581 = vadd.f32 %v7532, %v7580
  %v7582 = vpop.f32.mrf.mxu0
  %v7583 = vadd.f32 %v7534, %v7582
  %7584 = vmatmul.bf16.gmra.mxu0 %v5391
  %v7585 = vpop.f32.mrf.mxu0
  %v7586 = vadd.f32 %v7537, %v7585
  %v7587 = vpop.f32.mrf.mxu0
  %v7588 = vadd.f32 %v7539, %v7587
  %7589 = vmatmul.bf16.gmra.mxu0 %v5399
  %v7590 = vpop.f32.mrf.mxu0
  %v7591 = vadd.f32 %v7542, %v7590
  %v7592 = vpop.f32.mrf.mxu0
  %v7593 = vadd.f32 %v7544, %v7592
  %7594 = vmatmul.bf16.gmra.mxu0 %v5407
  %v7595 = vpop.f32.mrf.mxu0
  %v7596 = vadd.f32 %v7547, %v7595
  %v7597 = vpop.f32.mrf.mxu0
  %v7598 = vadd.f32 %v7549, %v7597
  %7599 = vmatmul.bf16.gmra.mxu0 %v5415
  %v7600 = vpop.f32.mrf.mxu0
  %v7601 = vadd.f32 %v7552, %v7600
  %v7602 = vpop.f32.mrf.mxu0
  %v7603 = vadd.f32 %v7554, %v7602
  %7604 = vmatmul.bf16.gmra.mxu0 %v5423
  %v7605 = vpop.f32.mrf.mxu0
  %v7606 = vadd.f32 %v7557, %v7605
  %v7607 = vpop.f32.mrf.mxu0
  %v7608 = vadd.f32 %v7559, %v7607
  %7609 = vmatmul.bf16.gmra.mxu0 %v5431
  %v7610 = vpop.f32.mrf.mxu0
  %v7611 = vadd.f32 %v7562, %v7610
  %v7612 = vpop.f32.mrf.mxu0
  %v7613 = vadd.f32 %v7564, %v7612
  %7614 = vmatmul.bf16.gmra.mxu0 %v5439
  %v7615 = vpop.f32.mrf.mxu0
  %v7616 = vadd.f32 %v7567, %v7615
  %v7617 = vpop.f32.mrf.mxu0
  %v7618 = vadd.f32 %v7569, %v7617
  %7619 = vdwg.mxu0
  %7620 = vmatpush.bf16.msra.mxu0 %v6660
  %7621 = vmatpush.bf16.msra.mxu0 %v6656
  %7622 = vmatpush.bf16.msra.mxu0 %v6652
  %7623 = vmatpush.bf16.msra.mxu0 %v6648
  %7624 = vmatpush.bf16.msra.mxu0 %v6644
  %7625 = vmatpush.bf16.msra.mxu0 %v6640
  %7626 = vmatpush.bf16.msra.mxu0 %v6636
  %7627 = vmatpush.bf16.msra.mxu0 %v6632
  %7628 = vmatmul.bf16.gmra.mxu0 %v5384
  %v7629 = vpop.f32.mrf.mxu0
  %v7630 = vadd.f32 %v7581, %v7629
  %v7631 = vpop.f32.mrf.mxu0
  %v7632 = vadd.f32 %v7583, %v7631
  %7633 = vmatmul.bf16.gmra.mxu0 %v5392
  %v7634 = vpop.f32.mrf.mxu0
  %v7635 = vadd.f32 %v7586, %v7634
  %v7636 = vpop.f32.mrf.mxu0
  %v7637 = vadd.f32 %v7588, %v7636
  %7638 = vmatmul.bf16.gmra.mxu0 %v5400
  %v7639 = vpop.f32.mrf.mxu0
  %v7640 = vadd.f32 %v7591, %v7639
  %v7641 = vpop.f32.mrf.mxu0
  %v7642 = vadd.f32 %v7593, %v7641
  %7643 = vmatmul.bf16.gmra.mxu0 %v5408
  %v7644 = vpop.f32.mrf.mxu0
  %v7645 = vadd.f32 %v7596, %v7644
  %v7646 = vpop.f32.mrf.mxu0
  %v7647 = vadd.f32 %v7598, %v7646
  %7648 = vmatmul.bf16.gmra.mxu0 %v5416
  %v7649 = vpop.f32.mrf.mxu0
  %v7650 = vadd.f32 %v7601, %v7649
  %v7651 = vpop.f32.mrf.mxu0
  %v7652 = vadd.f32 %v7603, %v7651
  %7653 = vmatmul.bf16.gmra.mxu0 %v5424
  %v7654 = vpop.f32.mrf.mxu0
  %v7655 = vadd.f32 %v7606, %v7654
  %v7656 = vpop.f32.mrf.mxu0
  %v7657 = vadd.f32 %v7608, %v7656
  %7658 = vmatmul.bf16.gmra.mxu0 %v5432
  %v7659 = vpop.f32.mrf.mxu0
  %v7660 = vadd.f32 %v7611, %v7659
  %v7661 = vpop.f32.mrf.mxu0
  %v7662 = vadd.f32 %v7613, %v7661
  %7663 = vmatmul.bf16.gmra.mxu0 %v5440
  %v7664 = vpop.f32.mrf.mxu0
  %v7665 = vadd.f32 %v7616, %v7664
  %v7666 = vpop.f32.mrf.mxu0
  %v7667 = vadd.f32 %v7618, %v7666
  %7668 = vdwg.mxu0
  %7669 = vmatpush.bf16.msra.mxu0 %v6692
  %7670 = vmatpush.bf16.msra.mxu0 %v6688
  %7671 = vmatpush.bf16.msra.mxu0 %v6684
  %7672 = vmatpush.bf16.msra.mxu0 %v6680
  %7673 = vmatpush.bf16.msra.mxu0 %v6676
  %7674 = vmatpush.bf16.msra.mxu0 %v6672
  %7675 = vmatpush.bf16.msra.mxu0 %v6668
  %7676 = vmatpush.bf16.msra.mxu0 %v6664
  %7677 = vmatmul.bf16.gmra.mxu0 %v5385
  %v7678 = vpop.f32.mrf.mxu0
  %v7679 = vadd.f32 %v7630, %v7678
  %v7680 = vpop.f32.mrf.mxu0
  %v7681 = vadd.f32 %v7632, %v7680
  %7682 = vmatmul.bf16.gmra.mxu0 %v5393
  %v7683 = vpop.f32.mrf.mxu0
  %v7684 = vadd.f32 %v7635, %v7683
  %v7685 = vpop.f32.mrf.mxu0
  %v7686 = vadd.f32 %v7637, %v7685
  %7687 = vmatmul.bf16.gmra.mxu0 %v5401
  %v7688 = vpop.f32.mrf.mxu0
  %v7689 = vadd.f32 %v7640, %v7688
  %v7690 = vpop.f32.mrf.mxu0
  %v7691 = vadd.f32 %v7642, %v7690
  %7692 = vmatmul.bf16.gmra.mxu0 %v5409
  %v7693 = vpop.f32.mrf.mxu0
  %v7694 = vadd.f32 %v7645, %v7693
  %v7695 = vpop.f32.mrf.mxu0
  %v7696 = vadd.f32 %v7647, %v7695
  %7697 = vmatmul.bf16.gmra.mxu0 %v5417
  %v7698 = vpop.f32.mrf.mxu0
  %v7699 = vadd.f32 %v7650, %v7698
  %v7700 = vpop.f32.mrf.mxu0
  %v7701 = vadd.f32 %v7652, %v7700
  %7702 = vmatmul.bf16.gmra.mxu0 %v5425
  %v7703 = vpop.f32.mrf.mxu0
  %v7704 = vadd.f32 %v7655, %v7703
  %v7705 = vpop.f32.mrf.mxu0
  %v7706 = vadd.f32 %v7657, %v7705
  %7707 = vmatmul.bf16.gmra.mxu0 %v5433
  %v7708 = vpop.f32.mrf.mxu0
  %v7709 = vadd.f32 %v7660, %v7708
  %v7710 = vpop.f32.mrf.mxu0
  %v7711 = vadd.f32 %v7662, %v7710
  %7712 = vmatmul.bf16.gmra.mxu0 %v5441
  %v7713 = vpop.f32.mrf.mxu0
  %v7714 = vadd.f32 %v7665, %v7713
  %v7715 = vpop.f32.mrf.mxu0
  %v7716 = vadd.f32 %v7667, %v7715
  %7717 = vdwg.mxu0
  %7718 = vmatpush.bf16.msra.mxu0 %v6724
  %7719 = vmatpush.bf16.msra.mxu0 %v6720
  %7720 = vmatpush.bf16.msra.mxu0 %v6716
  %7721 = vmatpush.bf16.msra.mxu0 %v6712
  %7722 = vmatpush.bf16.msra.mxu0 %v6708
  %7723 = vmatpush.bf16.msra.mxu0 %v6704
  %7724 = vmatpush.bf16.msra.mxu0 %v6700
  %7725 = vmatpush.bf16.msra.mxu0 %v6696
  %7726 = vmatmul.bf16.gmra.mxu0 %v5386
  %v7727 = vpop.f32.mrf.mxu0
  %v7728 = vadd.f32 %v7679, %v7727
  %v7729 = vpop.f32.mrf.mxu0
  %v7730 = vadd.f32 %v7681, %v7729
  %7731 = vmatmul.bf16.gmra.mxu0 %v5394
  %v7732 = vpop.f32.mrf.mxu0
  %v7733 = vadd.f32 %v7684, %v7732
  %v7734 = vpop.f32.mrf.mxu0
  %v7735 = vadd.f32 %v7686, %v7734
  %7736 = vmatmul.bf16.gmra.mxu0 %v5402
  %v7737 = vpop.f32.mrf.mxu0
  %v7738 = vadd.f32 %v7689, %v7737
  %v7739 = vpop.f32.mrf.mxu0
  %v7740 = vadd.f32 %v7691, %v7739
  %7741 = vmatmul.bf16.gmra.mxu0 %v5410
  %v7742 = vpop.f32.mrf.mxu0
  %v7743 = vadd.f32 %v7694, %v7742
  %v7744 = vpop.f32.mrf.mxu0
  %v7745 = vadd.f32 %v7696, %v7744
  %7746 = vmatmul.bf16.gmra.mxu0 %v5418
  %v7747 = vpop.f32.mrf.mxu0
  %v7748 = vadd.f32 %v7699, %v7747
  %v7749 = vpop.f32.mrf.mxu0
  %v7750 = vadd.f32 %v7701, %v7749
  %7751 = vmatmul.bf16.gmra.mxu0 %v5426
  %v7752 = vpop.f32.mrf.mxu0
  %v7753 = vadd.f32 %v7704, %v7752
  %v7754 = vpop.f32.mrf.mxu0
  %v7755 = vadd.f32 %v7706, %v7754
  %7756 = vmatmul.bf16.gmra.mxu0 %v5434
  %v7757 = vpop.f32.mrf.mxu0
  %v7758 = vadd.f32 %v7709, %v7757
  %v7759 = vpop.f32.mrf.mxu0
  %v7760 = vadd.f32 %v7711, %v7759
  %7761 = vmatmul.bf16.gmra.mxu0 %v5442
  %v7762 = vpop.f32.mrf.mxu0
  %v7763 = vadd.f32 %v7714, %v7762
  %v7764 = vpop.f32.mrf.mxu0
  %v7765 = vadd.f32 %v7716, %v7764
  %7766 = vdwg.mxu0
  %7767 = vmatpush.bf16.msra.mxu0 %v6501
  %7768 = vmatpush.bf16.msra.mxu0 %v6497
  %7769 = vmatpush.bf16.msra.mxu0 %v6493
  %7770 = vmatpush.bf16.msra.mxu0 %v6489
  %7771 = vmatpush.bf16.msra.mxu0 %v6485
  %7772 = vmatpush.bf16.msra.mxu0 %v6481
  %7773 = vmatpush.bf16.msra.mxu0 %v6477
  %7774 = vmatpush.bf16.msra.mxu0 %v6473
  %7775 = vmatmul.bf16.gmra.mxu0 %v5379
  %v7776 = vpop.f32.mrf.mxu0
  %v7777 = vadd.f32 0.0, %v7776
  %v7778 = vpop.f32.mrf.mxu0
  %v7779 = vadd.f32 0.0, %v7778
  %7780 = vmatmul.bf16.gmra.mxu0 %v5387
  %v7781 = vpop.f32.mrf.mxu0
  %v7782 = vadd.f32 0.0, %v7781
  %v7783 = vpop.f32.mrf.mxu0
  %v7784 = vadd.f32 0.0, %v7783
  %7785 = vmatmul.bf16.gmra.mxu0 %v5395
  %v7786 = vpop.f32.mrf.mxu0
  %v7787 = vadd.f32 0.0, %v7786
  %v7788 = vpop.f32.mrf.mxu0
  %v7789 = vadd.f32 0.0, %v7788
  %7790 = vmatmul.bf16.gmra.mxu0 %v5403
  %v7791 = vpop.f32.mrf.mxu0
  %v7792 = vadd.f32 0.0, %v7791
  %v7793 = vpop.f32.mrf.mxu0
  %v7794 = vadd.f32 0.0, %v7793
  %7795 = vmatmul.bf16.gmra.mxu0 %v5411
  %v7796 = vpop.f32.mrf.mxu0
  %v7797 = vadd.f32 0.0, %v7796
  %v7798 = vpop.f32.mrf.mxu0
  %v7799 = vadd.f32 0.0, %v7798
  %7800 = vmatmul.bf16.gmra.mxu0 %v5419
  %v7801 = vpop.f32.mrf.mxu0
  %v7802 = vadd.f32 0.0, %v7801
  %v7803 = vpop.f32.mrf.mxu0
  %v7804 = vadd.f32 0.0, %v7803
  %7805 = vmatmul.bf16.gmra.mxu0 %v5427
  %v7806 = vpop.f32.mrf.mxu0
  %v7807 = vadd.f32 0.0, %v7806
  %v7808 = vpop.f32.mrf.mxu0
  %v7809 = vadd.f32 0.0, %v7808
  %7810 = vmatmul.bf16.gmra.mxu0 %v5435
  %v7811 = vpop.f32.mrf.mxu0
  %v7812 = vadd.f32 0.0, %v7811
  %v7813 = vpop.f32.mrf.mxu0
  %v7814 = vadd.f32 0.0, %v7813
  %7815 = vdwg.mxu0
  %7816 = vmatpush.bf16.msra.mxu0 %v6533
  %7817 = vmatpush.bf16.msra.mxu0 %v6529
  %7818 = vmatpush.bf16.msra.mxu0 %v6525
  %7819 = vmatpush.bf16.msra.mxu0 %v6521
  %7820 = vmatpush.bf16.msra.mxu0 %v6517
  %7821 = vmatpush.bf16.msra.mxu0 %v6513
  %7822 = vmatpush.bf16.msra.mxu0 %v6509
  %7823 = vmatpush.bf16.msra.mxu0 %v6505
  %7824 = vmatmul.bf16.gmra.mxu0 %v5380
  %v7825 = vpop.f32.mrf.mxu0
  %v7826 = vadd.f32 %v7777, %v7825
  %v7827 = vpop.f32.mrf.mxu0
  %v7828 = vadd.f32 %v7779, %v7827
  %7829 = vmatmul.bf16.gmra.mxu0 %v5388
  %v7830 = vpop.f32.mrf.mxu0
  %v7831 = vadd.f32 %v7782, %v7830
  %v7832 = vpop.f32.mrf.mxu0
  %v7833 = vadd.f32 %v7784, %v7832
  %7834 = vmatmul.bf16.gmra.mxu0 %v5396
  %v7835 = vpop.f32.mrf.mxu0
  %v7836 = vadd.f32 %v7787, %v7835
  %v7837 = vpop.f32.mrf.mxu0
  %v7838 = vadd.f32 %v7789, %v7837
  %7839 = vmatmul.bf16.gmra.mxu0 %v5404
  %v7840 = vpop.f32.mrf.mxu0
  %v7841 = vadd.f32 %v7792, %v7840
  %v7842 = vpop.f32.mrf.mxu0
  %v7843 = vadd.f32 %v7794, %v7842
  %7844 = vmatmul.bf16.gmra.mxu0 %v5412
  %v7845 = vpop.f32.mrf.mxu0
  %v7846 = vadd.f32 %v7797, %v7845
  %v7847 = vpop.f32.mrf.mxu0
  %v7848 = vadd.f32 %v7799, %v7847
  %7849 = vmatmul.bf16.gmra.mxu0 %v5420
  %v7850 = vpop.f32.mrf.mxu0
  %v7851 = vadd.f32 %v7802, %v7850
  %v7852 = vpop.f32.mrf.mxu0
  %v7853 = vadd.f32 %v7804, %v7852
  %7854 = vmatmul.bf16.gmra.mxu0 %v5428
  %v7855 = vpop.f32.mrf.mxu0
  %v7856 = vadd.f32 %v7807, %v7855
  %v7857 = vpop.f32.mrf.mxu0
  %v7858 = vadd.f32 %v7809, %v7857
  %7859 = vmatmul.bf16.gmra.mxu0 %v5436
  %v7860 = vpop.f32.mrf.mxu0
  %v7861 = vadd.f32 %v7812, %v7860
  %v7862 = vpop.f32.mrf.mxu0
  %v7863 = vadd.f32 %v7814, %v7862
  %7864 = vdwg.mxu0
  %7865 = vmatpush.bf16.msra.mxu0 %v6565
  %7866 = vmatpush.bf16.msra.mxu0 %v6561
  %7867 = vmatpush.bf16.msra.mxu0 %v6557
  %7868 = vmatpush.bf16.msra.mxu0 %v6553
  %7869 = vmatpush.bf16.msra.mxu0 %v6549
  %7870 = vmatpush.bf16.msra.mxu0 %v6545
  %7871 = vmatpush.bf16.msra.mxu0 %v6541
  %7872 = vmatpush.bf16.msra.mxu0 %v6537
  %7873 = vmatmul.bf16.gmra.mxu0 %v5381
  %v7874 = vpop.f32.mrf.mxu0
  %v7875 = vadd.f32 %v7826, %v7874
  %v7876 = vpop.f32.mrf.mxu0
  %v7877 = vadd.f32 %v7828, %v7876
  %7878 = vmatmul.bf16.gmra.mxu0 %v5389
  %v7879 = vpop.f32.mrf.mxu0
  %v7880 = vadd.f32 %v7831, %v7879
  %v7881 = vpop.f32.mrf.mxu0
  %v7882 = vadd.f32 %v7833, %v7881
  %7883 = vmatmul.bf16.gmra.mxu0 %v5397
  %v7884 = vpop.f32.mrf.mxu0
  %v7885 = vadd.f32 %v7836, %v7884
  %v7886 = vpop.f32.mrf.mxu0
  %v7887 = vadd.f32 %v7838, %v7886
  %7888 = vmatmul.bf16.gmra.mxu0 %v5405
  %v7889 = vpop.f32.mrf.mxu0
  %v7890 = vadd.f32 %v7841, %v7889
  %v7891 = vpop.f32.mrf.mxu0
  %v7892 = vadd.f32 %v7843, %v7891
  %7893 = vmatmul.bf16.gmra.mxu0 %v5413
  %v7894 = vpop.f32.mrf.mxu0
  %v7895 = vadd.f32 %v7846, %v7894
  %v7896 = vpop.f32.mrf.mxu0
  %v7897 = vadd.f32 %v7848, %v7896
  %7898 = vmatmul.bf16.gmra.mxu0 %v5421
  %v7899 = vpop.f32.mrf.mxu0
  %v7900 = vadd.f32 %v7851, %v7899
  %v7901 = vpop.f32.mrf.mxu0
  %v7902 = vadd.f32 %v7853, %v7901
  %7903 = vmatmul.bf16.gmra.mxu0 %v5429
  %v7904 = vpop.f32.mrf.mxu0
  %v7905 = vadd.f32 %v7856, %v7904
  %v7906 = vpop.f32.mrf.mxu0
  %v7907 = vadd.f32 %v7858, %v7906
  %7908 = vmatmul.bf16.gmra.mxu0 %v5437
  %v7909 = vpop.f32.mrf.mxu0
  %v7910 = vadd.f32 %v7861, %v7909
  %v7911 = vpop.f32.mrf.mxu0
  %v7912 = vadd.f32 %v7863, %v7911
  %7913 = vdwg.mxu0
  %7914 = vmatpush.bf16.msra.mxu0 %v6597
  %7915 = vmatpush.bf16.msra.mxu0 %v6593
  %7916 = vmatpush.bf16.msra.mxu0 %v6589
  %7917 = vmatpush.bf16.msra.mxu0 %v6585
  %7918 = vmatpush.bf16.msra.mxu0 %v6581
  %7919 = vmatpush.bf16.msra.mxu0 %v6577
  %7920 = vmatpush.bf16.msra.mxu0 %v6573
  %7921 = vmatpush.bf16.msra.mxu0 %v6569
  %7922 = vmatmul.bf16.gmra.mxu0 %v5382
  %v7923 = vpop.f32.mrf.mxu0
  %v7924 = vadd.f32 %v7875, %v7923
  %v7925 = vpop.f32.mrf.mxu0
  %v7926 = vadd.f32 %v7877, %v7925
  %7927 = vmatmul.bf16.gmra.mxu0 %v5390
  %v7928 = vpop.f32.mrf.mxu0
  %v7929 = vadd.f32 %v7880, %v7928
  %v7930 = vpop.f32.mrf.mxu0
  %v7931 = vadd.f32 %v7882, %v7930
  %7932 = vmatmul.bf16.gmra.mxu0 %v5398
  %v7933 = vpop.f32.mrf.mxu0
  %v7934 = vadd.f32 %v7885, %v7933
  %v7935 = vpop.f32.mrf.mxu0
  %v7936 = vadd.f32 %v7887, %v7935
  %7937 = vmatmul.bf16.gmra.mxu0 %v5406
  %v7938 = vpop.f32.mrf.mxu0
  %v7939 = vadd.f32 %v7890, %v7938
  %v7940 = vpop.f32.mrf.mxu0
  %v7941 = vadd.f32 %v7892, %v7940
  %7942 = vmatmul.bf16.gmra.mxu0 %v5414
  %v7943 = vpop.f32.mrf.mxu0
  %v7944 = vadd.f32 %v7895, %v7943
  %v7945 = vpop.f32.mrf.mxu0
  %v7946 = vadd.f32 %v7897, %v7945
  %7947 = vmatmul.bf16.gmra.mxu0 %v5422
  %v7948 = vpop.f32.mrf.mxu0
  %v7949 = vadd.f32 %v7900, %v7948
  %v7950 = vpop.f32.mrf.mxu0
  %v7951 = vadd.f32 %v7902, %v7950
  %7952 = vmatmul.bf16.gmra.mxu0 %v5430
  %v7953 = vpop.f32.mrf.mxu0
  %v7954 = vadd.f32 %v7905, %v7953
  %v7955 = vpop.f32.mrf.mxu0
  %v7956 = vadd.f32 %v7907, %v7955
  %7957 = vmatmul.bf16.gmra.mxu0 %v5438
  %v7958 = vpop.f32.mrf.mxu0
  %v7959 = vadd.f32 %v7910, %v7958
  %v7960 = vpop.f32.mrf.mxu0
  %v7961 = vadd.f32 %v7912, %v7960
  %7962 = vdwg.mxu0
  %7963 = vmatpush.bf16.msra.mxu0 %v6629
  %7964 = vmatpush.bf16.msra.mxu0 %v6625
  %7965 = vmatpush.bf16.msra.mxu0 %v6621
  %7966 = vmatpush.bf16.msra.mxu0 %v6617
  %7967 = vmatpush.bf16.msra.mxu0 %v6613
  %7968 = vmatpush.bf16.msra.mxu0 %v6609
  %7969 = vmatpush.bf16.msra.mxu0 %v6605
  %7970 = vmatpush.bf16.msra.mxu0 %v6601
  %7971 = vmatmul.bf16.gmra.mxu0 %v5383
  %v7972 = vpop.f32.mrf.mxu0
  %v7973 = vadd.f32 %v7924, %v7972
  %v7974 = vpop.f32.mrf.mxu0
  %v7975 = vadd.f32 %v7926, %v7974
  %7976 = vmatmul.bf16.gmra.mxu0 %v5391
  %v7977 = vpop.f32.mrf.mxu0
  %v7978 = vadd.f32 %v7929, %v7977
  %v7979 = vpop.f32.mrf.mxu0
  %v7980 = vadd.f32 %v7931, %v7979
  %7981 = vmatmul.bf16.gmra.mxu0 %v5399
  %v7982 = vpop.f32.mrf.mxu0
  %v7983 = vadd.f32 %v7934, %v7982
  %v7984 = vpop.f32.mrf.mxu0
  %v7985 = vadd.f32 %v7936, %v7984
  %7986 = vmatmul.bf16.gmra.mxu0 %v5407
  %v7987 = vpop.f32.mrf.mxu0
  %v7988 = vadd.f32 %v7939, %v7987
  %v7989 = vpop.f32.mrf.mxu0
  %v7990 = vadd.f32 %v7941, %v7989
  %7991 = vmatmul.bf16.gmra.mxu0 %v5415
  %v7992 = vpop.f32.mrf.mxu0
  %v7993 = vadd.f32 %v7944, %v7992
  %v7994 = vpop.f32.mrf.mxu0
  %v7995 = vadd.f32 %v7946, %v7994
  %7996 = vmatmul.bf16.gmra.mxu0 %v5423
  %v7997 = vpop.f32.mrf.mxu0
  %v7998 = vadd.f32 %v7949, %v7997
  %v7999 = vpop.f32.mrf.mxu0
  %v8000 = vadd.f32 %v7951, %v7999
  %8001 = vmatmul.bf16.gmra.mxu0 %v5431
  %v8002 = vpop.f32.mrf.mxu0
  %v8003 = vadd.f32 %v7954, %v8002
  %v8004 = vpop.f32.mrf.mxu0
  %v8005 = vadd.f32 %v7956, %v8004
  %8006 = vmatmul.bf16.gmra.mxu0 %v5439
  %v8007 = vpop.f32.mrf.mxu0
  %v8008 = vadd.f32 %v7959, %v8007
  %v8009 = vpop.f32.mrf.mxu0
  %v8010 = vadd.f32 %v7961, %v8009
  %8011 = vdwg.mxu0
  %8012 = vmatpush.bf16.msra.mxu0 %v6661
  %8013 = vmatpush.bf16.msra.mxu0 %v6657
  %8014 = vmatpush.bf16.msra.mxu0 %v6653
  %8015 = vmatpush.bf16.msra.mxu0 %v6649
  %8016 = vmatpush.bf16.msra.mxu0 %v6645
  %8017 = vmatpush.bf16.msra.mxu0 %v6641
  %8018 = vmatpush.bf16.msra.mxu0 %v6637
  %8019 = vmatpush.bf16.msra.mxu0 %v6633
  %8020 = vmatmul.bf16.gmra.mxu0 %v5384
  %v8021 = vpop.f32.mrf.mxu0
  %v8022 = vadd.f32 %v7973, %v8021
  %v8023 = vpop.f32.mrf.mxu0
  %v8024 = vadd.f32 %v7975, %v8023
  %8025 = vmatmul.bf16.gmra.mxu0 %v5392
  %v8026 = vpop.f32.mrf.mxu0
  %v8027 = vadd.f32 %v7978, %v8026
  %v8028 = vpop.f32.mrf.mxu0
  %v8029 = vadd.f32 %v7980, %v8028
  %8030 = vmatmul.bf16.gmra.mxu0 %v5400
  %v8031 = vpop.f32.mrf.mxu0
  %v8032 = vadd.f32 %v7983, %v8031
  %v8033 = vpop.f32.mrf.mxu0
  %v8034 = vadd.f32 %v7985, %v8033
  %8035 = vmatmul.bf16.gmra.mxu0 %v5408
  %v8036 = vpop.f32.mrf.mxu0
  %v8037 = vadd.f32 %v7988, %v8036
  %v8038 = vpop.f32.mrf.mxu0
  %v8039 = vadd.f32 %v7990, %v8038
  %8040 = vmatmul.bf16.gmra.mxu0 %v5416
  %v8041 = vpop.f32.mrf.mxu0
  %v8042 = vadd.f32 %v7993, %v8041
  %v8043 = vpop.f32.mrf.mxu0
  %v8044 = vadd.f32 %v7995, %v8043
  %8045 = vmatmul.bf16.gmra.mxu0 %v5424
  %v8046 = vpop.f32.mrf.mxu0
  %v8047 = vadd.f32 %v7998, %v8046
  %v8048 = vpop.f32.mrf.mxu0
  %v8049 = vadd.f32 %v8000, %v8048
  %8050 = vmatmul.bf16.gmra.mxu0 %v5432
  %v8051 = vpop.f32.mrf.mxu0
  %v8052 = vadd.f32 %v8003, %v8051
  %v8053 = vpop.f32.mrf.mxu0
  %v8054 = vadd.f32 %v8005, %v8053
  %8055 = vmatmul.bf16.gmra.mxu0 %v5440
  %v8056 = vpop.f32.mrf.mxu0
  %v8057 = vadd.f32 %v8008, %v8056
  %v8058 = vpop.f32.mrf.mxu0
  %v8059 = vadd.f32 %v8010, %v8058
  %8060 = vdwg.mxu0
  %8061 = vmatpush.bf16.msra.mxu0 %v6693
  %8062 = vmatpush.bf16.msra.mxu0 %v6689
  %8063 = vmatpush.bf16.msra.mxu0 %v6685
  %8064 = vmatpush.bf16.msra.mxu0 %v6681
  %8065 = vmatpush.bf16.msra.mxu0 %v6677
  %8066 = vmatpush.bf16.msra.mxu0 %v6673
  %8067 = vmatpush.bf16.msra.mxu0 %v6669
  %8068 = vmatpush.bf16.msra.mxu0 %v6665
  %8069 = vmatmul.bf16.gmra.mxu0 %v5385
  %v8070 = vpop.f32.mrf.mxu0
  %v8071 = vadd.f32 %v8022, %v8070
  %v8072 = vpop.f32.mrf.mxu0
  %v8073 = vadd.f32 %v8024, %v8072
  %8074 = vmatmul.bf16.gmra.mxu0 %v5393
  %v8075 = vpop.f32.mrf.mxu0
  %v8076 = vadd.f32 %v8027, %v8075
  %v8077 = vpop.f32.mrf.mxu0
  %v8078 = vadd.f32 %v8029, %v8077
  %8079 = vmatmul.bf16.gmra.mxu0 %v5401
  %v8080 = vpop.f32.mrf.mxu0
  %v8081 = vadd.f32 %v8032, %v8080
  %v8082 = vpop.f32.mrf.mxu0
  %v8083 = vadd.f32 %v8034, %v8082
  %8084 = vmatmul.bf16.gmra.mxu0 %v5409
  %v8085 = vpop.f32.mrf.mxu0
  %v8086 = vadd.f32 %v8037, %v8085
  %v8087 = vpop.f32.mrf.mxu0
  %v8088 = vadd.f32 %v8039, %v8087
  %8089 = vmatmul.bf16.gmra.mxu0 %v5417
  %v8090 = vpop.f32.mrf.mxu0
  %v8091 = vadd.f32 %v8042, %v8090
  %v8092 = vpop.f32.mrf.mxu0
  %v8093 = vadd.f32 %v8044, %v8092
  %8094 = vmatmul.bf16.gmra.mxu0 %v5425
  %v8095 = vpop.f32.mrf.mxu0
  %v8096 = vadd.f32 %v8047, %v8095
  %v8097 = vpop.f32.mrf.mxu0
  %v8098 = vadd.f32 %v8049, %v8097
  %8099 = vmatmul.bf16.gmra.mxu0 %v5433
  %v8100 = vpop.f32.mrf.mxu0
  %v8101 = vadd.f32 %v8052, %v8100
  %v8102 = vpop.f32.mrf.mxu0
  %v8103 = vadd.f32 %v8054, %v8102
  %8104 = vmatmul.bf16.gmra.mxu0 %v5441
  %v8105 = vpop.f32.mrf.mxu0
  %v8106 = vadd.f32 %v8057, %v8105
  %v8107 = vpop.f32.mrf.mxu0
  %v8108 = vadd.f32 %v8059, %v8107
  %8109 = vdwg.mxu0
  %8110 = vmatpush.bf16.msra.mxu0 %v6725
  %8111 = vmatpush.bf16.msra.mxu0 %v6721
  %8112 = vmatpush.bf16.msra.mxu0 %v6717
  %8113 = vmatpush.bf16.msra.mxu0 %v6713
  %8114 = vmatpush.bf16.msra.mxu0 %v6709
  %8115 = vmatpush.bf16.msra.mxu0 %v6705
  %8116 = vmatpush.bf16.msra.mxu0 %v6701
  %8117 = vmatpush.bf16.msra.mxu0 %v6697
  %8118 = vmatmul.bf16.gmra.mxu0 %v5386
  %v8119 = vpop.f32.mrf.mxu0
  %v8120 = vadd.f32 %v8071, %v8119
  %v8121 = vpop.f32.mrf.mxu0
  %v8122 = vadd.f32 %v8073, %v8121
  %8123 = vmatmul.bf16.gmra.mxu0 %v5394
  %v8124 = vpop.f32.mrf.mxu0
  %v8125 = vadd.f32 %v8076, %v8124
  %v8126 = vpop.f32.mrf.mxu0
  %v8127 = vadd.f32 %v8078, %v8126
  %8128 = vmatmul.bf16.gmra.mxu0 %v5402
  %v8129 = vpop.f32.mrf.mxu0
  %v8130 = vadd.f32 %v8081, %v8129
  %v8131 = vpop.f32.mrf.mxu0
  %v8132 = vadd.f32 %v8083, %v8131
  %8133 = vmatmul.bf16.gmra.mxu0 %v5410
  %v8134 = vpop.f32.mrf.mxu0
  %v8135 = vadd.f32 %v8086, %v8134
  %v8136 = vpop.f32.mrf.mxu0
  %v8137 = vadd.f32 %v8088, %v8136
  %8138 = vmatmul.bf16.gmra.mxu0 %v5418
  %v8139 = vpop.f32.mrf.mxu0
  %v8140 = vadd.f32 %v8091, %v8139
  %v8141 = vpop.f32.mrf.mxu0
  %v8142 = vadd.f32 %v8093, %v8141
  %8143 = vmatmul.bf16.gmra.mxu0 %v5426
  %v8144 = vpop.f32.mrf.mxu0
  %v8145 = vadd.f32 %v8096, %v8144
  %v8146 = vpop.f32.mrf.mxu0
  %v8147 = vadd.f32 %v8098, %v8146
  %8148 = vmatmul.bf16.gmra.mxu0 %v5434
  %v8149 = vpop.f32.mrf.mxu0
  %v8150 = vadd.f32 %v8101, %v8149
  %v8151 = vpop.f32.mrf.mxu0
  %v8152 = vadd.f32 %v8103, %v8151
  %8153 = vmatmul.bf16.gmra.mxu0 %v5442
  %v8154 = vpop.f32.mrf.mxu0
  %v8155 = vadd.f32 %v8106, %v8154
  %v8156 = vpop.f32.mrf.mxu0
  %v8157 = vadd.f32 %v8108, %v8156
  %8158 = vdwg.mxu0
  %8159 = vmatpush.bf16.msra.mxu0 %v6502
  %8160 = vmatpush.bf16.msra.mxu0 %v6498
  %8161 = vmatpush.bf16.msra.mxu0 %v6494
  %8162 = vmatpush.bf16.msra.mxu0 %v6490
  %8163 = vmatpush.bf16.msra.mxu0 %v6486
  %8164 = vmatpush.bf16.msra.mxu0 %v6482
  %8165 = vmatpush.bf16.msra.mxu0 %v6478
  %8166 = vmatpush.bf16.msra.mxu0 %v6474
  %8167 = vmatmul.bf16.gmra.mxu0 %v5379
  %v8168 = vpop.f32.mrf.mxu0
  %v8169 = vadd.f32 0.0, %v8168
  %v8170 = vpop.f32.mrf.mxu0
  %v8171 = vadd.f32 0.0, %v8170
  %8172 = vmatmul.bf16.gmra.mxu0 %v5387
  %v8173 = vpop.f32.mrf.mxu0
  %v8174 = vadd.f32 0.0, %v8173
  %v8175 = vpop.f32.mrf.mxu0
  %v8176 = vadd.f32 0.0, %v8175
  %8177 = vmatmul.bf16.gmra.mxu0 %v5395
  %v8178 = vpop.f32.mrf.mxu0
  %v8179 = vadd.f32 0.0, %v8178
  %v8180 = vpop.f32.mrf.mxu0
  %v8181 = vadd.f32 0.0, %v8180
  %8182 = vmatmul.bf16.gmra.mxu0 %v5403
  %v8183 = vpop.f32.mrf.mxu0
  %v8184 = vadd.f32 0.0, %v8183
  %v8185 = vpop.f32.mrf.mxu0
  %v8186 = vadd.f32 0.0, %v8185
  %8187 = vmatmul.bf16.gmra.mxu0 %v5411
  %v8188 = vpop.f32.mrf.mxu0
  %v8189 = vadd.f32 0.0, %v8188
  %v8190 = vpop.f32.mrf.mxu0
  %v8191 = vadd.f32 0.0, %v8190
  %8192 = vmatmul.bf16.gmra.mxu0 %v5419
  %v8193 = vpop.f32.mrf.mxu0
  %v8194 = vadd.f32 0.0, %v8193
  %v8195 = vpop.f32.mrf.mxu0
  %v8196 = vadd.f32 0.0, %v8195
  %8197 = vmatmul.bf16.gmra.mxu0 %v5427
  %v8198 = vpop.f32.mrf.mxu0
  %v8199 = vadd.f32 0.0, %v8198
  %v8200 = vpop.f32.mrf.mxu0
  %v8201 = vadd.f32 0.0, %v8200
  %8202 = vmatmul.bf16.gmra.mxu0 %v5435
  %v8203 = vpop.f32.mrf.mxu0
  %v8204 = vadd.f32 0.0, %v8203
  %v8205 = vpop.f32.mrf.mxu0
  %v8206 = vadd.f32 0.0, %v8205
  %8207 = vdwg.mxu0
  %8208 = vmatpush.bf16.msra.mxu0 %v6534
  %8209 = vmatpush.bf16.msra.mxu0 %v6530
  %8210 = vmatpush.bf16.msra.mxu0 %v6526
  %8211 = vmatpush.bf16.msra.mxu0 %v6522
  %8212 = vmatpush.bf16.msra.mxu0 %v6518
  %8213 = vmatpush.bf16.msra.mxu0 %v6514
  %8214 = vmatpush.bf16.msra.mxu0 %v6510
  %8215 = vmatpush.bf16.msra.mxu0 %v6506
  %8216 = vmatmul.bf16.gmra.mxu0 %v5380
  %v8217 = vpop.f32.mrf.mxu0
  %v8218 = vadd.f32 %v8169, %v8217
  %v8219 = vpop.f32.mrf.mxu0
  %v8220 = vadd.f32 %v8171, %v8219
  %8221 = vmatmul.bf16.gmra.mxu0 %v5388
  %v8222 = vpop.f32.mrf.mxu0
  %v8223 = vadd.f32 %v8174, %v8222
  %v8224 = vpop.f32.mrf.mxu0
  %v8225 = vadd.f32 %v8176, %v8224
  %8226 = vmatmul.bf16.gmra.mxu0 %v5396
  %v8227 = vpop.f32.mrf.mxu0
  %v8228 = vadd.f32 %v8179, %v8227
  %v8229 = vpop.f32.mrf.mxu0
  %v8230 = vadd.f32 %v8181, %v8229
  %8231 = vmatmul.bf16.gmra.mxu0 %v5404
  %v8232 = vpop.f32.mrf.mxu0
  %v8233 = vadd.f32 %v8184, %v8232
  %v8234 = vpop.f32.mrf.mxu0
  %v8235 = vadd.f32 %v8186, %v8234
  %8236 = vmatmul.bf16.gmra.mxu0 %v5412
  %v8237 = vpop.f32.mrf.mxu0
  %v8238 = vadd.f32 %v8189, %v8237
  %v8239 = vpop.f32.mrf.mxu0
  %v8240 = vadd.f32 %v8191, %v8239
  %8241 = vmatmul.bf16.gmra.mxu0 %v5420
  %v8242 = vpop.f32.mrf.mxu0
  %v8243 = vadd.f32 %v8194, %v8242
  %v8244 = vpop.f32.mrf.mxu0
  %v8245 = vadd.f32 %v8196, %v8244
  %8246 = vmatmul.bf16.gmra.mxu0 %v5428
  %v8247 = vpop.f32.mrf.mxu0
  %v8248 = vadd.f32 %v8199, %v8247
  %v8249 = vpop.f32.mrf.mxu0
  %v8250 = vadd.f32 %v8201, %v8249
  %8251 = vmatmul.bf16.gmra.mxu0 %v5436
  %v8252 = vpop.f32.mrf.mxu0
  %v8253 = vadd.f32 %v8204, %v8252
  %v8254 = vpop.f32.mrf.mxu0
  %v8255 = vadd.f32 %v8206, %v8254
  %8256 = vdwg.mxu0
  %8257 = vmatpush.bf16.msra.mxu0 %v6566
  %8258 = vmatpush.bf16.msra.mxu0 %v6562
  %8259 = vmatpush.bf16.msra.mxu0 %v6558
  %8260 = vmatpush.bf16.msra.mxu0 %v6554
  %8261 = vmatpush.bf16.msra.mxu0 %v6550
  %8262 = vmatpush.bf16.msra.mxu0 %v6546
  %8263 = vmatpush.bf16.msra.mxu0 %v6542
  %8264 = vmatpush.bf16.msra.mxu0 %v6538
  %8265 = vmatmul.bf16.gmra.mxu0 %v5381
  %v8266 = vpop.f32.mrf.mxu0
  %v8267 = vadd.f32 %v8218, %v8266
  %v8268 = vpop.f32.mrf.mxu0
  %v8269 = vadd.f32 %v8220, %v8268
  %8270 = vmatmul.bf16.gmra.mxu0 %v5389
  %v8271 = vpop.f32.mrf.mxu0
  %v8272 = vadd.f32 %v8223, %v8271
  %v8273 = vpop.f32.mrf.mxu0
  %v8274 = vadd.f32 %v8225, %v8273
  %8275 = vmatmul.bf16.gmra.mxu0 %v5397
  %v8276 = vpop.f32.mrf.mxu0
  %v8277 = vadd.f32 %v8228, %v8276
  %v8278 = vpop.f32.mrf.mxu0
  %v8279 = vadd.f32 %v8230, %v8278
  %8280 = vmatmul.bf16.gmra.mxu0 %v5405
  %v8281 = vpop.f32.mrf.mxu0
  %v8282 = vadd.f32 %v8233, %v8281
  %v8283 = vpop.f32.mrf.mxu0
  %v8284 = vadd.f32 %v8235, %v8283
  %8285 = vmatmul.bf16.gmra.mxu0 %v5413
  %v8286 = vpop.f32.mrf.mxu0
  %v8287 = vadd.f32 %v8238, %v8286
  %v8288 = vpop.f32.mrf.mxu0
  %v8289 = vadd.f32 %v8240, %v8288
  %8290 = vmatmul.bf16.gmra.mxu0 %v5421
  %v8291 = vpop.f32.mrf.mxu0
  %v8292 = vadd.f32 %v8243, %v8291
  %v8293 = vpop.f32.mrf.mxu0
  %v8294 = vadd.f32 %v8245, %v8293
  %8295 = vmatmul.bf16.gmra.mxu0 %v5429
  %v8296 = vpop.f32.mrf.mxu0
  %v8297 = vadd.f32 %v8248, %v8296
  %v8298 = vpop.f32.mrf.mxu0
  %v8299 = vadd.f32 %v8250, %v8298
  %8300 = vmatmul.bf16.gmra.mxu0 %v5437
  %v8301 = vpop.f32.mrf.mxu0
  %v8302 = vadd.f32 %v8253, %v8301
  %v8303 = vpop.f32.mrf.mxu0
  %v8304 = vadd.f32 %v8255, %v8303
  %8305 = vdwg.mxu0
  %8306 = vmatpush.bf16.msra.mxu0 %v6598
  %8307 = vmatpush.bf16.msra.mxu0 %v6594
  %8308 = vmatpush.bf16.msra.mxu0 %v6590
  %8309 = vmatpush.bf16.msra.mxu0 %v6586
  %8310 = vmatpush.bf16.msra.mxu0 %v6582
  %8311 = vmatpush.bf16.msra.mxu0 %v6578
  %8312 = vmatpush.bf16.msra.mxu0 %v6574
  %8313 = vmatpush.bf16.msra.mxu0 %v6570
  %8314 = vmatmul.bf16.gmra.mxu0 %v5382
  %v8315 = vpop.f32.mrf.mxu0
  %v8316 = vadd.f32 %v8267, %v8315
  %v8317 = vpop.f32.mrf.mxu0
  %v8318 = vadd.f32 %v8269, %v8317
  %8319 = vmatmul.bf16.gmra.mxu0 %v5390
  %v8320 = vpop.f32.mrf.mxu0
  %v8321 = vadd.f32 %v8272, %v8320
  %v8322 = vpop.f32.mrf.mxu0
  %v8323 = vadd.f32 %v8274, %v8322
  %8324 = vmatmul.bf16.gmra.mxu0 %v5398
  %v8325 = vpop.f32.mrf.mxu0
  %v8326 = vadd.f32 %v8277, %v8325
  %v8327 = vpop.f32.mrf.mxu0
  %v8328 = vadd.f32 %v8279, %v8327
  %8329 = vmatmul.bf16.gmra.mxu0 %v5406
  %v8330 = vpop.f32.mrf.mxu0
  %v8331 = vadd.f32 %v8282, %v8330
  %v8332 = vpop.f32.mrf.mxu0
  %v8333 = vadd.f32 %v8284, %v8332
  %8334 = vmatmul.bf16.gmra.mxu0 %v5414
  %v8335 = vpop.f32.mrf.mxu0
  %v8336 = vadd.f32 %v8287, %v8335
  %v8337 = vpop.f32.mrf.mxu0
  %v8338 = vadd.f32 %v8289, %v8337
  %8339 = vmatmul.bf16.gmra.mxu0 %v5422
  %v8340 = vpop.f32.mrf.mxu0
  %v8341 = vadd.f32 %v8292, %v8340
  %v8342 = vpop.f32.mrf.mxu0
  %v8343 = vadd.f32 %v8294, %v8342
  %8344 = vmatmul.bf16.gmra.mxu0 %v5430
  %v8345 = vpop.f32.mrf.mxu0
  %v8346 = vadd.f32 %v8297, %v8345
  %v8347 = vpop.f32.mrf.mxu0
  %v8348 = vadd.f32 %v8299, %v8347
  %8349 = vmatmul.bf16.gmra.mxu0 %v5438
  %v8350 = vpop.f32.mrf.mxu0
  %v8351 = vadd.f32 %v8302, %v8350
  %v8352 = vpop.f32.mrf.mxu0
  %v8353 = vadd.f32 %v8304, %v8352
  %8354 = vdwg.mxu0
  %8355 = vmatpush.bf16.msra.mxu0 %v6630
  %8356 = vmatpush.bf16.msra.mxu0 %v6626
  %8357 = vmatpush.bf16.msra.mxu0 %v6622
  %8358 = vmatpush.bf16.msra.mxu0 %v6618
  %8359 = vmatpush.bf16.msra.mxu0 %v6614
  %8360 = vmatpush.bf16.msra.mxu0 %v6610
  %8361 = vmatpush.bf16.msra.mxu0 %v6606
  %8362 = vmatpush.bf16.msra.mxu0 %v6602
  %8363 = vmatmul.bf16.gmra.mxu0 %v5383
  %v8364 = vpop.f32.mrf.mxu0
  %v8365 = vadd.f32 %v8316, %v8364
  %v8366 = vpop.f32.mrf.mxu0
  %v8367 = vadd.f32 %v8318, %v8366
  %8368 = vmatmul.bf16.gmra.mxu0 %v5391
  %v8369 = vpop.f32.mrf.mxu0
  %v8370 = vadd.f32 %v8321, %v8369
  %v8371 = vpop.f32.mrf.mxu0
  %v8372 = vadd.f32 %v8323, %v8371
  %8373 = vmatmul.bf16.gmra.mxu0 %v5399
  %v8374 = vpop.f32.mrf.mxu0
  %v8375 = vadd.f32 %v8326, %v8374
  %v8376 = vpop.f32.mrf.mxu0
  %v8377 = vadd.f32 %v8328, %v8376
  %8378 = vmatmul.bf16.gmra.mxu0 %v5407
  %v8379 = vpop.f32.mrf.mxu0
  %v8380 = vadd.f32 %v8331, %v8379
  %v8381 = vpop.f32.mrf.mxu0
  %v8382 = vadd.f32 %v8333, %v8381
  %8383 = vmatmul.bf16.gmra.mxu0 %v5415
  %v8384 = vpop.f32.mrf.mxu0
  %v8385 = vadd.f32 %v8336, %v8384
  %v8386 = vpop.f32.mrf.mxu0
  %v8387 = vadd.f32 %v8338, %v8386
  %8388 = vmatmul.bf16.gmra.mxu0 %v5423
  %v8389 = vpop.f32.mrf.mxu0
  %v8390 = vadd.f32 %v8341, %v8389
  %v8391 = vpop.f32.mrf.mxu0
  %v8392 = vadd.f32 %v8343, %v8391
  %8393 = vmatmul.bf16.gmra.mxu0 %v5431
  %v8394 = vpop.f32.mrf.mxu0
  %v8395 = vadd.f32 %v8346, %v8394
  %v8396 = vpop.f32.mrf.mxu0
  %v8397 = vadd.f32 %v8348, %v8396
  %8398 = vmatmul.bf16.gmra.mxu0 %v5439
  %v8399 = vpop.f32.mrf.mxu0
  %v8400 = vadd.f32 %v8351, %v8399
  %v8401 = vpop.f32.mrf.mxu0
  %v8402 = vadd.f32 %v8353, %v8401
  %8403 = vdwg.mxu0
  %8404 = vmatpush.bf16.msra.mxu0 %v6662
  %8405 = vmatpush.bf16.msra.mxu0 %v6658
  %8406 = vmatpush.bf16.msra.mxu0 %v6654
  %8407 = vmatpush.bf16.msra.mxu0 %v6650
  %8408 = vmatpush.bf16.msra.mxu0 %v6646
  %8409 = vmatpush.bf16.msra.mxu0 %v6642
  %8410 = vmatpush.bf16.msra.mxu0 %v6638
  %8411 = vmatpush.bf16.msra.mxu0 %v6634
  %8412 = vmatmul.bf16.gmra.mxu0 %v5384
  %v8413 = vpop.f32.mrf.mxu0
  %v8414 = vadd.f32 %v8365, %v8413
  %v8415 = vpop.f32.mrf.mxu0
  %v8416 = vadd.f32 %v8367, %v8415
  %8417 = vmatmul.bf16.gmra.mxu0 %v5392
  %v8418 = vpop.f32.mrf.mxu0
  %v8419 = vadd.f32 %v8370, %v8418
  %v8420 = vpop.f32.mrf.mxu0
  %v8421 = vadd.f32 %v8372, %v8420
  %8422 = vmatmul.bf16.gmra.mxu0 %v5400
  %v8423 = vpop.f32.mrf.mxu0
  %v8424 = vadd.f32 %v8375, %v8423
  %v8425 = vpop.f32.mrf.mxu0
  %v8426 = vadd.f32 %v8377, %v8425
  %8427 = vmatmul.bf16.gmra.mxu0 %v5408
  %v8428 = vpop.f32.mrf.mxu0
  %v8429 = vadd.f32 %v8380, %v8428
  %v8430 = vpop.f32.mrf.mxu0
  %v8431 = vadd.f32 %v8382, %v8430
  %8432 = vmatmul.bf16.gmra.mxu0 %v5416
  %v8433 = vpop.f32.mrf.mxu0
  %v8434 = vadd.f32 %v8385, %v8433
  %v8435 = vpop.f32.mrf.mxu0
  %v8436 = vadd.f32 %v8387, %v8435
  %8437 = vmatmul.bf16.gmra.mxu0 %v5424
  %v8438 = vpop.f32.mrf.mxu0
  %v8439 = vadd.f32 %v8390, %v8438
  %v8440 = vpop.f32.mrf.mxu0
  %v8441 = vadd.f32 %v8392, %v8440
  %8442 = vmatmul.bf16.gmra.mxu0 %v5432
  %v8443 = vpop.f32.mrf.mxu0
  %v8444 = vadd.f32 %v8395, %v8443
  %v8445 = vpop.f32.mrf.mxu0
  %v8446 = vadd.f32 %v8397, %v8445
  %8447 = vmatmul.bf16.gmra.mxu0 %v5440
  %v8448 = vpop.f32.mrf.mxu0
  %v8449 = vadd.f32 %v8400, %v8448
  %v8450 = vpop.f32.mrf.mxu0
  %v8451 = vadd.f32 %v8402, %v8450
  %8452 = vdwg.mxu0
  %8453 = vmatpush.bf16.msra.mxu0 %v6694
  %8454 = vmatpush.bf16.msra.mxu0 %v6690
  %8455 = vmatpush.bf16.msra.mxu0 %v6686
  %8456 = vmatpush.bf16.msra.mxu0 %v6682
  %8457 = vmatpush.bf16.msra.mxu0 %v6678
  %8458 = vmatpush.bf16.msra.mxu0 %v6674
  %8459 = vmatpush.bf16.msra.mxu0 %v6670
  %8460 = vmatpush.bf16.msra.mxu0 %v6666
  %8461 = vmatmul.bf16.gmra.mxu0 %v5385
  %v8462 = vpop.f32.mrf.mxu0
  %v8463 = vadd.f32 %v8414, %v8462
  %v8464 = vpop.f32.mrf.mxu0
  %v8465 = vadd.f32 %v8416, %v8464
  %8466 = vmatmul.bf16.gmra.mxu0 %v5393
  %v8467 = vpop.f32.mrf.mxu0
  %v8468 = vadd.f32 %v8419, %v8467
  %v8469 = vpop.f32.mrf.mxu0
  %v8470 = vadd.f32 %v8421, %v8469
  %8471 = vmatmul.bf16.gmra.mxu0 %v5401
  %v8472 = vpop.f32.mrf.mxu0
  %v8473 = vadd.f32 %v8424, %v8472
  %v8474 = vpop.f32.mrf.mxu0
  %v8475 = vadd.f32 %v8426, %v8474
  %8476 = vmatmul.bf16.gmra.mxu0 %v5409
  %v8477 = vpop.f32.mrf.mxu0
  %v8478 = vadd.f32 %v8429, %v8477
  %v8479 = vpop.f32.mrf.mxu0
  %v8480 = vadd.f32 %v8431, %v8479
  %8481 = vmatmul.bf16.gmra.mxu0 %v5417
  %v8482 = vpop.f32.mrf.mxu0
  %v8483 = vadd.f32 %v8434, %v8482
  %v8484 = vpop.f32.mrf.mxu0
  %v8485 = vadd.f32 %v8436, %v8484
  %8486 = vmatmul.bf16.gmra.mxu0 %v5425
  %v8487 = vpop.f32.mrf.mxu0
  %v8488 = vadd.f32 %v8439, %v8487
  %v8489 = vpop.f32.mrf.mxu0
  %v8490 = vadd.f32 %v8441, %v8489
  %8491 = vmatmul.bf16.gmra.mxu0 %v5433
  %v8492 = vpop.f32.mrf.mxu0
  %v8493 = vadd.f32 %v8444, %v8492
  %v8494 = vpop.f32.mrf.mxu0
  %v8495 = vadd.f32 %v8446, %v8494
  %8496 = vmatmul.bf16.gmra.mxu0 %v5441
  %v8497 = vpop.f32.mrf.mxu0
  %v8498 = vadd.f32 %v8449, %v8497
  %v8499 = vpop.f32.mrf.mxu0
  %v8500 = vadd.f32 %v8451, %v8499
  %8501 = vdwg.mxu0
  %8502 = vmatpush.bf16.msra.mxu0 %v6726
  %8503 = vmatpush.bf16.msra.mxu0 %v6722
  %8504 = vmatpush.bf16.msra.mxu0 %v6718
  %8505 = vmatpush.bf16.msra.mxu0 %v6714
  %8506 = vmatpush.bf16.msra.mxu0 %v6710
  %8507 = vmatpush.bf16.msra.mxu0 %v6706
  %8508 = vmatpush.bf16.msra.mxu0 %v6702
  %8509 = vmatpush.bf16.msra.mxu0 %v6698
  %8510 = vmatmul.bf16.gmra.mxu0 %v5386
  %v8511 = vpop.f32.mrf.mxu0
  %v8512 = vadd.f32 %v8463, %v8511
  %v8513 = vpop.f32.mrf.mxu0
  %v8514 = vadd.f32 %v8465, %v8513
  %8515 = vmatmul.bf16.gmra.mxu0 %v5394
  %v8516 = vpop.f32.mrf.mxu0
  %v8517 = vadd.f32 %v8468, %v8516
  %v8518 = vpop.f32.mrf.mxu0
  %v8519 = vadd.f32 %v8470, %v8518
  %8520 = vmatmul.bf16.gmra.mxu0 %v5402
  %v8521 = vpop.f32.mrf.mxu0
  %v8522 = vadd.f32 %v8473, %v8521
  %v8523 = vpop.f32.mrf.mxu0
  %v8524 = vadd.f32 %v8475, %v8523
  %8525 = vmatmul.bf16.gmra.mxu0 %v5410
  %v8526 = vpop.f32.mrf.mxu0
  %v8527 = vadd.f32 %v8478, %v8526
  %v8528 = vpop.f32.mrf.mxu0
  %v8529 = vadd.f32 %v8480, %v8528
  %8530 = vmatmul.bf16.gmra.mxu0 %v5418
  %v8531 = vpop.f32.mrf.mxu0
  %v8532 = vadd.f32 %v8483, %v8531
  %v8533 = vpop.f32.mrf.mxu0
  %v8534 = vadd.f32 %v8485, %v8533
  %8535 = vmatmul.bf16.gmra.mxu0 %v5426
  %v8536 = vpop.f32.mrf.mxu0
  %v8537 = vadd.f32 %v8488, %v8536
  %v8538 = vpop.f32.mrf.mxu0
  %v8539 = vadd.f32 %v8490, %v8538
  %8540 = vmatmul.bf16.gmra.mxu0 %v5434
  %v8541 = vpop.f32.mrf.mxu0
  %v8542 = vadd.f32 %v8493, %v8541
  %v8543 = vpop.f32.mrf.mxu0
  %v8544 = vadd.f32 %v8495, %v8543
  %8545 = vmatmul.bf16.gmra.mxu0 %v5442
  %v8546 = vpop.f32.mrf.mxu0
  %v8547 = vadd.f32 %v8498, %v8546
  %v8548 = vpop.f32.mrf.mxu0
  %v8549 = vadd.f32 %v8500, %v8548
  %8550 = vdwg.mxu0
  %v8551 = vadd.f32 %v7336, %v7338
  %v8552 = vadd.f32 %v8551, %v7341
  %v8553 = vadd.f32 %v8552, %v7343
  %v8554 = vadd.f32 %v8553, %v7346
  %v8555 = vadd.f32 %v8554, %v7348
  %v8556 = vadd.f32 %v8555, %v7351
  %v8557 = vadd.f32 %v8556, %v7353
  %v8558 = vadd.f32 %v8557, %v7356
  %v8559 = vadd.f32 %v8558, %v7358
  %v8560 = vadd.f32 %v8559, %v7361
  %v8561 = vadd.f32 %v8560, %v7363
  %v8562 = vadd.f32 %v8561, %v7366
  %v8563 = vadd.f32 %v8562, %v7368
  %v8564 = vadd.f32 %v8563, %v7371
  %v8565 = vadd.f32 %v8564, %v7373
  %v8566 = vrot.slane %v8565, 4
  %v8567 = vadd.f32 %v8565, %v8566
  %v8568 = vrot.slane %v8567, 2
  %v8569 = vadd.f32 %v8567, %v8568
  %v8570 = vrot.slane %v8569, 1
  %v8571 = vadd.f32 %v8569, %v8570
  %v8572 = vadd.f32 %v7728, %v7730
  %v8573 = vadd.f32 %v8572, %v7733
  %v8574 = vadd.f32 %v8573, %v7735
  %v8575 = vadd.f32 %v8574, %v7738
  %v8576 = vadd.f32 %v8575, %v7740
  %v8577 = vadd.f32 %v8576, %v7743
  %v8578 = vadd.f32 %v8577, %v7745
  %v8579 = vadd.f32 %v8578, %v7748
  %v8580 = vadd.f32 %v8579, %v7750
  %v8581 = vadd.f32 %v8580, %v7753
  %v8582 = vadd.f32 %v8581, %v7755
  %v8583 = vadd.f32 %v8582, %v7758
  %v8584 = vadd.f32 %v8583, %v7760
  %v8585 = vadd.f32 %v8584, %v7763
  %v8586 = vadd.f32 %v8585, %v7765
  %v8587 = vrot.slane %v8586, 4
  %v8588 = vadd.f32 %v8586, %v8587
  %v8589 = vrot.slane %v8588, 2
  %v8590 = vadd.f32 %v8588, %v8589
  %v8591 = vrot.slane %v8590, 1
  %v8592 = vadd.f32 %v8590, %v8591
  %v8593 = vadd.f32 %v8120, %v8122
  %v8594 = vadd.f32 %v8593, %v8125
  %v8595 = vadd.f32 %v8594, %v8127
  %v8596 = vadd.f32 %v8595, %v8130
  %v8597 = vadd.f32 %v8596, %v8132
  %v8598 = vadd.f32 %v8597, %v8135
  %v8599 = vadd.f32 %v8598, %v8137
  %v8600 = vadd.f32 %v8599, %v8140
  %v8601 = vadd.f32 %v8600, %v8142
  %v8602 = vadd.f32 %v8601, %v8145
  %v8603 = vadd.f32 %v8602, %v8147
  %v8604 = vadd.f32 %v8603, %v8150
  %v8605 = vadd.f32 %v8604, %v8152
  %v8606 = vadd.f32 %v8605, %v8155
  %v8607 = vadd.f32 %v8606, %v8157
  %v8608 = vrot.slane %v8607, 4
  %v8609 = vadd.f32 %v8607, %v8608
  %v8610 = vrot.slane %v8609, 2
  %v8611 = vadd.f32 %v8609, %v8610
  %v8612 = vrot.slane %v8611, 1
  %v8613 = vadd.f32 %v8611, %v8612
  %v8614 = vadd.f32 %v8512, %v8514
  %v8615 = vadd.f32 %v8614, %v8517
  %v8616 = vadd.f32 %v8615, %v8519
  %v8617 = vadd.f32 %v8616, %v8522
  %v8618 = vadd.f32 %v8617, %v8524
  %v8619 = vadd.f32 %v8618, %v8527
  %v8620 = vadd.f32 %v8619, %v8529
  %v8621 = vadd.f32 %v8620, %v8532
  %v8622 = vadd.f32 %v8621, %v8534
  %v8623 = vadd.f32 %v8622, %v8537
  %v8624 = vadd.f32 %v8623, %v8539
  %v8625 = vadd.f32 %v8624, %v8542
  %v8626 = vadd.f32 %v8625, %v8544
  %v8627 = vadd.f32 %v8626, %v8547
  %v8628 = vadd.f32 %v8627, %v8549
  %v8629 = vrot.slane %v8628, 4
  %v8630 = vadd.f32 %v8628, %v8629
  %v8631 = vrot.slane %v8630, 2
  %v8632 = vadd.f32 %v8630, %v8631
  %v8633 = vrot.slane %v8632, 1
  %v8634 = vadd.f32 %v8632, %v8633
  %v8635 = vmul.f32 %v8571, %v555
  %v8636 = vmul.f32 %v8592, %v555
  %v8637 = vmul.f32 %v8613, %v555
  %v8638 = vmul.f32 %v8634, %v555
  %v8639 = vsub.f32 %v7336, %v8635
  %v8640 = vsub.f32 %v7728, %v8636
  %v8641 = vsub.f32 %v8120, %v8637
  %v8642 = vsub.f32 %v8512, %v8638
  %v8643 = vsub.f32 %v7338, %v8635
  %v8644 = vsub.f32 %v7730, %v8636
  %v8645 = vsub.f32 %v8122, %v8637
  %v8646 = vsub.f32 %v8514, %v8638
  %v8647 = vsub.f32 %v7341, %v8635
  %v8648 = vsub.f32 %v7733, %v8636
  %v8649 = vsub.f32 %v8125, %v8637
  %v8650 = vsub.f32 %v8517, %v8638
  %v8651 = vsub.f32 %v7343, %v8635
  %v8652 = vsub.f32 %v7735, %v8636
  %v8653 = vsub.f32 %v8127, %v8637
  %v8654 = vsub.f32 %v8519, %v8638
  %v8655 = vsub.f32 %v7346, %v8635
  %v8656 = vsub.f32 %v7738, %v8636
  %v8657 = vsub.f32 %v8130, %v8637
  %v8658 = vsub.f32 %v8522, %v8638
  %v8659 = vsub.f32 %v7348, %v8635
  %v8660 = vsub.f32 %v7740, %v8636
  %v8661 = vsub.f32 %v8132, %v8637
  %v8662 = vsub.f32 %v8524, %v8638
  %v8663 = vsub.f32 %v7351, %v8635
  %v8664 = vsub.f32 %v7743, %v8636
  %v8665 = vsub.f32 %v8135, %v8637
  %v8666 = vsub.f32 %v8527, %v8638
  %v8667 = vsub.f32 %v7353, %v8635
  %v8668 = vsub.f32 %v7745, %v8636
  %v8669 = vsub.f32 %v8137, %v8637
  %v8670 = vsub.f32 %v8529, %v8638
  %v8671 = vsub.f32 %v7356, %v8635
  %v8672 = vsub.f32 %v7748, %v8636
  %v8673 = vsub.f32 %v8140, %v8637
  %v8674 = vsub.f32 %v8532, %v8638
  %v8675 = vsub.f32 %v7358, %v8635
  %v8676 = vsub.f32 %v7750, %v8636
  %v8677 = vsub.f32 %v8142, %v8637
  %v8678 = vsub.f32 %v8534, %v8638
  %v8679 = vsub.f32 %v7361, %v8635
  %v8680 = vsub.f32 %v7753, %v8636
  %v8681 = vsub.f32 %v8145, %v8637
  %v8682 = vsub.f32 %v8537, %v8638
  %v8683 = vsub.f32 %v7363, %v8635
  %v8684 = vsub.f32 %v7755, %v8636
  %v8685 = vsub.f32 %v8147, %v8637
  %v8686 = vsub.f32 %v8539, %v8638
  %v8687 = vsub.f32 %v7366, %v8635
  %v8688 = vsub.f32 %v7758, %v8636
  %v8689 = vsub.f32 %v8150, %v8637
  %v8690 = vsub.f32 %v8542, %v8638
  %v8691 = vsub.f32 %v7368, %v8635
  %v8692 = vsub.f32 %v7760, %v8636
  %v8693 = vsub.f32 %v8152, %v8637
  %v8694 = vsub.f32 %v8544, %v8638
  %v8695 = vsub.f32 %v7371, %v8635
  %v8696 = vsub.f32 %v7763, %v8636
  %v8697 = vsub.f32 %v8155, %v8637
  %v8698 = vsub.f32 %v8547, %v8638
  %v8699 = vsub.f32 %v7373, %v8635
  %v8700 = vsub.f32 %v7765, %v8636
  %v8701 = vsub.f32 %v8157, %v8637
  %v8702 = vsub.f32 %v8549, %v8638
  %v8703 = vmul.f32 %v8639, %v8639
  %v8704 = vmul.f32 %v8640, %v8640
  %v8705 = vmul.f32 %v8641, %v8641
  %v8706 = vmul.f32 %v8642, %v8642
  %v8707 = vmul.f32 %v8643, %v8643
  %v8708 = vmul.f32 %v8644, %v8644
  %v8709 = vmul.f32 %v8645, %v8645
  %v8710 = vmul.f32 %v8646, %v8646
  %v8711 = vmul.f32 %v8647, %v8647
  %v8712 = vmul.f32 %v8648, %v8648
  %v8713 = vmul.f32 %v8649, %v8649
  %v8714 = vmul.f32 %v8650, %v8650
  %v8715 = vmul.f32 %v8651, %v8651
  %v8716 = vmul.f32 %v8652, %v8652
  %v8717 = vmul.f32 %v8653, %v8653
  %v8718 = vmul.f32 %v8654, %v8654
  %v8719 = vmul.f32 %v8655, %v8655
  %v8720 = vmul.f32 %v8656, %v8656
  %v8721 = vmul.f32 %v8657, %v8657
  %v8722 = vmul.f32 %v8658, %v8658
  %v8723 = vmul.f32 %v8659, %v8659
  %v8724 = vmul.f32 %v8660, %v8660
  %v8725 = vmul.f32 %v8661, %v8661
  %v8726 = vmul.f32 %v8662, %v8662
  %v8727 = vmul.f32 %v8663, %v8663
  %v8728 = vmul.f32 %v8664, %v8664
  %v8729 = vmul.f32 %v8665, %v8665
  %v8730 = vmul.f32 %v8666, %v8666
  %v8731 = vmul.f32 %v8667, %v8667
  %v8732 = vmul.f32 %v8668, %v8668
  %v8733 = vmul.f32 %v8669, %v8669
  %v8734 = vmul.f32 %v8670, %v8670
  %v8735 = vmul.f32 %v8671, %v8671
  %v8736 = vmul.f32 %v8672, %v8672
  %v8737 = vmul.f32 %v8673, %v8673
  %v8738 = vmul.f32 %v8674, %v8674
  %v8739 = vmul.f32 %v8675, %v8675
  %v8740 = vmul.f32 %v8676, %v8676
  %v8741 = vmul.f32 %v8677, %v8677
  %v8742 = vmul.f32 %v8678, %v8678
  %v8743 = vmul.f32 %v8679, %v8679
  %v8744 = vmul.f32 %v8680, %v8680
  %v8745 = vmul.f32 %v8681, %v8681
  %v8746 = vmul.f32 %v8682, %v8682
  %v8747 = vmul.f32 %v8683, %v8683
  %v8748 = vmul.f32 %v8684, %v8684
  %v8749 = vmul.f32 %v8685, %v8685
  %v8750 = vmul.f32 %v8686, %v8686
  %v8751 = vmul.f32 %v8687, %v8687
  %v8752 = vmul.f32 %v8688, %v8688
  %v8753 = vmul.f32 %v8689, %v8689
  %v8754 = vmul.f32 %v8690, %v8690
  %v8755 = vmul.f32 %v8691, %v8691
  %v8756 = vmul.f32 %v8692, %v8692
  %v8757 = vmul.f32 %v8693, %v8693
  %v8758 = vmul.f32 %v8694, %v8694
  %v8759 = vmul.f32 %v8695, %v8695
  %v8760 = vmul.f32 %v8696, %v8696
  %v8761 = vmul.f32 %v8697, %v8697
  %v8762 = vmul.f32 %v8698, %v8698
  %v8763 = vmul.f32 %v8699, %v8699
  %v8764 = vmul.f32 %v8700, %v8700
  %v8765 = vmul.f32 %v8701, %v8701
  %v8766 = vmul.f32 %v8702, %v8702
  %v8767 = vadd.f32 %v8703, %v8707
  %v8768 = vadd.f32 %v8767, %v8711
  %v8769 = vadd.f32 %v8768, %v8715
  %v8770 = vadd.f32 %v8769, %v8719
  %v8771 = vadd.f32 %v8770, %v8723
  %v8772 = vadd.f32 %v8771, %v8727
  %v8773 = vadd.f32 %v8772, %v8731
  %v8774 = vadd.f32 %v8773, %v8735
  %v8775 = vadd.f32 %v8774, %v8739
  %v8776 = vadd.f32 %v8775, %v8743
  %v8777 = vadd.f32 %v8776, %v8747
  %v8778 = vadd.f32 %v8777, %v8751
  %v8779 = vadd.f32 %v8778, %v8755
  %v8780 = vadd.f32 %v8779, %v8759
  %v8781 = vadd.f32 %v8780, %v8763
  %v8782 = vrot.slane %v8781, 4
  %v8783 = vadd.f32 %v8781, %v8782
  %v8784 = vrot.slane %v8783, 2
  %v8785 = vadd.f32 %v8783, %v8784
  %v8786 = vrot.slane %v8785, 1
  %v8787 = vadd.f32 %v8785, %v8786
  %v8788 = vadd.f32 %v8704, %v8708
  %v8789 = vadd.f32 %v8788, %v8712
  %v8790 = vadd.f32 %v8789, %v8716
  %v8791 = vadd.f32 %v8790, %v8720
  %v8792 = vadd.f32 %v8791, %v8724
  %v8793 = vadd.f32 %v8792, %v8728
  %v8794 = vadd.f32 %v8793, %v8732
  %v8795 = vadd.f32 %v8794, %v8736
  %v8796 = vadd.f32 %v8795, %v8740
  %v8797 = vadd.f32 %v8796, %v8744
  %v8798 = vadd.f32 %v8797, %v8748
  %v8799 = vadd.f32 %v8798, %v8752
  %v8800 = vadd.f32 %v8799, %v8756
  %v8801 = vadd.f32 %v8800, %v8760
  %v8802 = vadd.f32 %v8801, %v8764
  %v8803 = vrot.slane %v8802, 4
  %v8804 = vadd.f32 %v8802, %v8803
  %v8805 = vrot.slane %v8804, 2
  %v8806 = vadd.f32 %v8804, %v8805
  %v8807 = vrot.slane %v8806, 1
  %v8808 = vadd.f32 %v8806, %v8807
  %v8809 = vadd.f32 %v8705, %v8709
  %v8810 = vadd.f32 %v8809, %v8713
  %v8811 = vadd.f32 %v8810, %v8717
  %v8812 = vadd.f32 %v8811, %v8721
  %v8813 = vadd.f32 %v8812, %v8725
  %v8814 = vadd.f32 %v8813, %v8729
  %v8815 = vadd.f32 %v8814, %v8733
  %v8816 = vadd.f32 %v8815, %v8737
  %v8817 = vadd.f32 %v8816, %v8741
  %v8818 = vadd.f32 %v8817, %v8745
  %v8819 = vadd.f32 %v8818, %v8749
  %v8820 = vadd.f32 %v8819, %v8753
  %v8821 = vadd.f32 %v8820, %v8757
  %v8822 = vadd.f32 %v8821, %v8761
  %v8823 = vadd.f32 %v8822, %v8765
  %v8824 = vrot.slane %v8823, 4
  %v8825 = vadd.f32 %v8823, %v8824
  %v8826 = vrot.slane %v8825, 2
  %v8827 = vadd.f32 %v8825, %v8826
  %v8828 = vrot.slane %v8827, 1
  %v8829 = vadd.f32 %v8827, %v8828
  %v8830 = vadd.f32 %v8706, %v8710
  %v8831 = vadd.f32 %v8830, %v8714
  %v8832 = vadd.f32 %v8831, %v8718
  %v8833 = vadd.f32 %v8832, %v8722
  %v8834 = vadd.f32 %v8833, %v8726
  %v8835 = vadd.f32 %v8834, %v8730
  %v8836 = vadd.f32 %v8835, %v8734
  %v8837 = vadd.f32 %v8836, %v8738
  %v8838 = vadd.f32 %v8837, %v8742
  %v8839 = vadd.f32 %v8838, %v8746
  %v8840 = vadd.f32 %v8839, %v8750
  %v8841 = vadd.f32 %v8840, %v8754
  %v8842 = vadd.f32 %v8841, %v8758
  %v8843 = vadd.f32 %v8842, %v8762
  %v8844 = vadd.f32 %v8843, %v8766
  %v8845 = vrot.slane %v8844, 4
  %v8846 = vadd.f32 %v8844, %v8845
  %v8847 = vrot.slane %v8846, 2
  %v8848 = vadd.f32 %v8846, %v8847
  %v8849 = vrot.slane %v8848, 1
  %v8850 = vadd.f32 %v8848, %v8849
  %v8851 = vmul.f32 %v8787, %v555
  %v8852 = vmul.f32 %v8808, %v555
  %v8853 = vmul.f32 %v8829, %v555
  %v8854 = vmul.f32 %v8850, %v555
  %v8855 = vld [vmem:[%s10] sm:$0xf]
  %v8856 = vadd.f32 %v8851, 1e-05
  %v8857 = vadd.f32 %v8852, 1e-05
  %v8858 = vadd.f32 %v8853, 1e-05
  %v8859 = vadd.f32 %v8854, 1e-05
  %v8860 = vrsqrt.pop %v8856
  %v8861 = vmul.f32 %v8860, %v8856
  %v8862 = vmul.f32 %v8861, %v8860
  %v8863 = vmul.f32 0.5, %v8862
  %v8864 = vsub.f32 1.5, %v8863
  %v8865 = vmul.f32 %v8860, %v8864
  %vm8866 = vweird.f32 %v8856
  %vm8867 = vweird.f32 %v8860
  %vm8868 = vmor %vm8866, %vm8867
  %v8869 = vsel %vm8868, %v8860, %v8865
  %v8870 = vrsqrt.pop %v8857
  %v8871 = vmul.f32 %v8870, %v8857
  %v8872 = vmul.f32 %v8871, %v8870
  %v8873 = vmul.f32 0.5, %v8872
  %v8874 = vsub.f32 1.5, %v8873
  %v8875 = vmul.f32 %v8870, %v8874
  %vm8876 = vweird.f32 %v8857
  %vm8877 = vweird.f32 %v8870
  %vm8878 = vmor %vm8876, %vm8877
  %v8879 = vsel %vm8878, %v8870, %v8875
  %v8880 = vrsqrt.pop %v8858
  %v8881 = vmul.f32 %v8880, %v8858
  %v8882 = vmul.f32 %v8881, %v8880
  %v8883 = vmul.f32 0.5, %v8882
  %v8884 = vsub.f32 1.5, %v8883
  %v8885 = vmul.f32 %v8880, %v8884
  %vm8886 = vweird.f32 %v8858
  %vm8887 = vweird.f32 %v8880
  %vm8888 = vmor %vm8886, %vm8887
  %v8889 = vsel %vm8888, %v8880, %v8885
  %v8890 = vrsqrt.pop %v8859
  %v8891 = vmul.f32 %v8890, %v8859
  %v8892 = vmul.f32 %v8891, %v8890
  %v8893 = vmul.f32 0.5, %v8892
  %v8894 = vsub.f32 1.5, %v8893
  %v8895 = vmul.f32 %v8890, %v8894
  %vm8896 = vweird.f32 %v8859
  %vm8897 = vweird.f32 %v8890
  %vm8898 = vmor %vm8896, %vm8897
  %v8899 = vsel %vm8898, %v8890, %v8895
  %v8904 = vrot.slane %v8879, 7
  %v8905 = vrot.slane %v8889, 6
  %v8906 = vrot.slane %v8899, 5
  %v8907 = vsel %vm828, %v8869, %v8904
  %v8908 = vsel %vm830, %v8905, %v8906
  %v8909 = vsel %vm832, %v8907, %v8908
  %v8911 = vmul.f32 %v8855, %v8909
  %v8912 = vld [vmem:[%s11] sm:$0xf]
  %v8914 = vperm.slane %v8911, 0
  %v8915 = vperm.slane %v8911, 1
  %v8916 = vperm.slane %v8911, 2
  %v8917 = vperm.slane %v8911, 3
  %v8922 = vmul.f32 %v8635, %v8914
  %v8923 = vmul.f32 %v8636, %v8915
  %v8924 = vmul.f32 %v8637, %v8916
  %v8925 = vmul.f32 %v8638, %v8917
  %v8930 = vrot.slane %v8923, 7
  %v8931 = vrot.slane %v8924, 6
  %v8932 = vrot.slane %v8925, 5
  %v8933 = vsel %vm828, %v8922, %v8930
  %v8934 = vsel %vm830, %v8931, %v8932
  %v8935 = vsel %vm832, %v8933, %v8934
  %v8937 = vsub.f32 %v8912, %v8935
  %v8938 = vmul.f32 %v7336, %v8914
  %v8939 = vmul.f32 %v7728, %v8915
  %v8940 = vmul.f32 %v8120, %v8916
  %v8941 = vmul.f32 %v8512, %v8917
  %v8942 = vmul.f32 %v7338, %v8914
  %v8943 = vmul.f32 %v7730, %v8915
  %v8944 = vmul.f32 %v8122, %v8916
  %v8945 = vmul.f32 %v8514, %v8917
  %v8946 = vmul.f32 %v7341, %v8914
  %v8947 = vmul.f32 %v7733, %v8915
  %v8948 = vmul.f32 %v8125, %v8916
  %v8949 = vmul.f32 %v8517, %v8917
  %v8950 = vmul.f32 %v7343, %v8914
  %v8951 = vmul.f32 %v7735, %v8915
  %v8952 = vmul.f32 %v8127, %v8916
  %v8953 = vmul.f32 %v8519, %v8917
  %v8954 = vmul.f32 %v7346, %v8914
  %v8955 = vmul.f32 %v7738, %v8915
  %v8956 = vmul.f32 %v8130, %v8916
  %v8957 = vmul.f32 %v8522, %v8917
  %v8958 = vmul.f32 %v7348, %v8914
  %v8959 = vmul.f32 %v7740, %v8915
  %v8960 = vmul.f32 %v8132, %v8916
  %v8961 = vmul.f32 %v8524, %v8917
  %v8962 = vmul.f32 %v7351, %v8914
  %v8963 = vmul.f32 %v7743, %v8915
  %v8964 = vmul.f32 %v8135, %v8916
  %v8965 = vmul.f32 %v8527, %v8917
  %v8966 = vmul.f32 %v7353, %v8914
  %v8967 = vmul.f32 %v7745, %v8915
  %v8968 = vmul.f32 %v8137, %v8916
  %v8969 = vmul.f32 %v8529, %v8917
  %v8970 = vmul.f32 %v7356, %v8914
  %v8971 = vmul.f32 %v7748, %v8915
  %v8972 = vmul.f32 %v8140, %v8916
  %v8973 = vmul.f32 %v8532, %v8917
  %v8974 = vmul.f32 %v7358, %v8914
  %v8975 = vmul.f32 %v7750, %v8915
  %v8976 = vmul.f32 %v8142, %v8916
  %v8977 = vmul.f32 %v8534, %v8917
  %v8978 = vmul.f32 %v7361, %v8914
  %v8979 = vmul.f32 %v7753, %v8915
  %v8980 = vmul.f32 %v8145, %v8916
  %v8981 = vmul.f32 %v8537, %v8917
  %v8982 = vmul.f32 %v7363, %v8914
  %v8983 = vmul.f32 %v7755, %v8915
  %v8984 = vmul.f32 %v8147, %v8916
  %v8985 = vmul.f32 %v8539, %v8917
  %v8986 = vmul.f32 %v7366, %v8914
  %v8987 = vmul.f32 %v7758, %v8915
  %v8988 = vmul.f32 %v8150, %v8916
  %v8989 = vmul.f32 %v8542, %v8917
  %v8990 = vmul.f32 %v7368, %v8914
  %v8991 = vmul.f32 %v7760, %v8915
  %v8992 = vmul.f32 %v8152, %v8916
  %v8993 = vmul.f32 %v8544, %v8917
  %v8994 = vmul.f32 %v7371, %v8914
  %v8995 = vmul.f32 %v7763, %v8915
  %v8996 = vmul.f32 %v8155, %v8916
  %v8997 = vmul.f32 %v8547, %v8917
  %v8998 = vmul.f32 %v7373, %v8914
  %v8999 = vmul.f32 %v7765, %v8915
  %v9000 = vmul.f32 %v8157, %v8916
  %v9001 = vmul.f32 %v8549, %v8917
  %v9003 = vperm.slane %v8937, 0
  %v9004 = vperm.slane %v8937, 1
  %v9005 = vperm.slane %v8937, 2
  %v9006 = vperm.slane %v8937, 3
  %v9011 = vadd.f32 %v8938, %v9003
  %v9012 = vadd.f32 %v8939, %v9004
  %v9013 = vadd.f32 %v8940, %v9005
  %v9014 = vadd.f32 %v8941, %v9006
  %v9015 = vadd.f32 %v8942, %v9003
  %v9016 = vadd.f32 %v8943, %v9004
  %v9017 = vadd.f32 %v8944, %v9005
  %v9018 = vadd.f32 %v8945, %v9006
  %v9019 = vadd.f32 %v8946, %v9003
  %v9020 = vadd.f32 %v8947, %v9004
  %v9021 = vadd.f32 %v8948, %v9005
  %v9022 = vadd.f32 %v8949, %v9006
  %v9023 = vadd.f32 %v8950, %v9003
  %v9024 = vadd.f32 %v8951, %v9004
  %v9025 = vadd.f32 %v8952, %v9005
  %v9026 = vadd.f32 %v8953, %v9006
  %v9027 = vadd.f32 %v8954, %v9003
  %v9028 = vadd.f32 %v8955, %v9004
  %v9029 = vadd.f32 %v8956, %v9005
  %v9030 = vadd.f32 %v8957, %v9006
  %v9031 = vadd.f32 %v8958, %v9003
  %v9032 = vadd.f32 %v8959, %v9004
  %v9033 = vadd.f32 %v8960, %v9005
  %v9034 = vadd.f32 %v8961, %v9006
  %v9035 = vadd.f32 %v8962, %v9003
  %v9036 = vadd.f32 %v8963, %v9004
  %v9037 = vadd.f32 %v8964, %v9005
  %v9038 = vadd.f32 %v8965, %v9006
  %v9039 = vadd.f32 %v8966, %v9003
  %v9040 = vadd.f32 %v8967, %v9004
  %v9041 = vadd.f32 %v8968, %v9005
  %v9042 = vadd.f32 %v8969, %v9006
  %v9043 = vadd.f32 %v8970, %v9003
  %v9044 = vadd.f32 %v8971, %v9004
  %v9045 = vadd.f32 %v8972, %v9005
  %v9046 = vadd.f32 %v8973, %v9006
  %v9047 = vadd.f32 %v8974, %v9003
  %v9048 = vadd.f32 %v8975, %v9004
  %v9049 = vadd.f32 %v8976, %v9005
  %v9050 = vadd.f32 %v8977, %v9006
  %v9051 = vadd.f32 %v8978, %v9003
  %v9052 = vadd.f32 %v8979, %v9004
  %v9053 = vadd.f32 %v8980, %v9005
  %v9054 = vadd.f32 %v8981, %v9006
  %v9055 = vadd.f32 %v8982, %v9003
  %v9056 = vadd.f32 %v8983, %v9004
  %v9057 = vadd.f32 %v8984, %v9005
  %v9058 = vadd.f32 %v8985, %v9006
  %v9059 = vadd.f32 %v8986, %v9003
  %v9060 = vadd.f32 %v8987, %v9004
  %v9061 = vadd.f32 %v8988, %v9005
  %v9062 = vadd.f32 %v8989, %v9006
  %v9063 = vadd.f32 %v8990, %v9003
  %v9064 = vadd.f32 %v8991, %v9004
  %v9065 = vadd.f32 %v8992, %v9005
  %v9066 = vadd.f32 %v8993, %v9006
  %v9067 = vadd.f32 %v8994, %v9003
  %v9068 = vadd.f32 %v8995, %v9004
  %v9069 = vadd.f32 %v8996, %v9005
  %v9070 = vadd.f32 %v8997, %v9006
  %v9071 = vadd.f32 %v8998, %v9003
  %v9072 = vadd.f32 %v8999, %v9004
  %v9073 = vadd.f32 %v9000, %v9005
  %v9074 = vadd.f32 %v9001, %v9006
  %v9075 = vmax.f32 %v9011, 0.0
  %v9076 = vmax.f32 %v9012, 0.0
  %v9077 = vmax.f32 %v9013, 0.0
  %v9078 = vmax.f32 %v9014, 0.0
  %v9079 = vmax.f32 %v9015, 0.0
  %v9080 = vmax.f32 %v9016, 0.0
  %v9081 = vmax.f32 %v9017, 0.0
  %v9082 = vmax.f32 %v9018, 0.0
  %v9083 = vmax.f32 %v9019, 0.0
  %v9084 = vmax.f32 %v9020, 0.0
  %v9085 = vmax.f32 %v9021, 0.0
  %v9086 = vmax.f32 %v9022, 0.0
  %v9087 = vmax.f32 %v9023, 0.0
  %v9088 = vmax.f32 %v9024, 0.0
  %v9089 = vmax.f32 %v9025, 0.0
  %v9090 = vmax.f32 %v9026, 0.0
  %v9091 = vmax.f32 %v9027, 0.0
  %v9092 = vmax.f32 %v9028, 0.0
  %v9093 = vmax.f32 %v9029, 0.0
  %v9094 = vmax.f32 %v9030, 0.0
  %v9095 = vmax.f32 %v9031, 0.0
  %v9096 = vmax.f32 %v9032, 0.0
  %v9097 = vmax.f32 %v9033, 0.0
  %v9098 = vmax.f32 %v9034, 0.0
  %v9099 = vmax.f32 %v9035, 0.0
  %v9100 = vmax.f32 %v9036, 0.0
  %v9101 = vmax.f32 %v9037, 0.0
  %v9102 = vmax.f32 %v9038, 0.0
  %v9103 = vmax.f32 %v9039, 0.0
  %v9104 = vmax.f32 %v9040, 0.0
  %v9105 = vmax.f32 %v9041, 0.0
  %v9106 = vmax.f32 %v9042, 0.0
  %v9107 = vmax.f32 %v9043, 0.0
  %v9108 = vmax.f32 %v9044, 0.0
  %v9109 = vmax.f32 %v9045, 0.0
  %v9110 = vmax.f32 %v9046, 0.0
  %v9111 = vmax.f32 %v9047, 0.0
  %v9112 = vmax.f32 %v9048, 0.0
  %v9113 = vmax.f32 %v9049, 0.0
  %v9114 = vmax.f32 %v9050, 0.0
  %v9115 = vmax.f32 %v9051, 0.0
  %v9116 = vmax.f32 %v9052, 0.0
  %v9117 = vmax.f32 %v9053, 0.0
  %v9118 = vmax.f32 %v9054, 0.0
  %v9119 = vmax.f32 %v9055, 0.0
  %v9120 = vmax.f32 %v9056, 0.0
  %v9121 = vmax.f32 %v9057, 0.0
  %v9122 = vmax.f32 %v9058, 0.0
  %v9123 = vmax.f32 %v9059, 0.0
  %v9124 = vmax.f32 %v9060, 0.0
  %v9125 = vmax.f32 %v9061, 0.0
  %v9126 = vmax.f32 %v9062, 0.0
  %v9127 = vmax.f32 %v9063, 0.0
  %v9128 = vmax.f32 %v9064, 0.0
  %v9129 = vmax.f32 %v9065, 0.0
  %v9130 = vmax.f32 %v9066, 0.0
  %v9131 = vmax.f32 %v9067, 0.0
  %v9132 = vmax.f32 %v9068, 0.0
  %v9133 = vmax.f32 %v9069, 0.0
  %v9134 = vmax.f32 %v9070, 0.0
  %v9135 = vmax.f32 %v9071, 0.0
  %v9136 = vmax.f32 %v9072, 0.0
  %v9137 = vmax.f32 %v9073, 0.0
  %v9138 = vmax.f32 %v9074, 0.0
  %v9139 = vpack.c.bf16 %v9079, %v9075
  %v9140 = vpack.c.bf16 %v9080, %v9076
  %v9141 = vpack.c.bf16 %v9081, %v9077
  %v9142 = vpack.c.bf16 %v9082, %v9078
  %v9143 = vpack.c.bf16 %v9087, %v9083
  %v9144 = vpack.c.bf16 %v9088, %v9084
  %v9145 = vpack.c.bf16 %v9089, %v9085
  %v9146 = vpack.c.bf16 %v9090, %v9086
  %v9147 = vpack.c.bf16 %v9095, %v9091
  %v9148 = vpack.c.bf16 %v9096, %v9092
  %v9149 = vpack.c.bf16 %v9097, %v9093
  %v9150 = vpack.c.bf16 %v9098, %v9094
  %v9151 = vpack.c.bf16 %v9103, %v9099
  %v9152 = vpack.c.bf16 %v9104, %v9100
  %v9153 = vpack.c.bf16 %v9105, %v9101
  %v9154 = vpack.c.bf16 %v9106, %v9102
  %v9155 = vpack.c.bf16 %v9111, %v9107
  %v9156 = vpack.c.bf16 %v9112, %v9108
  %v9157 = vpack.c.bf16 %v9113, %v9109
  %v9158 = vpack.c.bf16 %v9114, %v9110
  %v9159 = vpack.c.bf16 %v9119, %v9115
  %v9160 = vpack.c.bf16 %v9120, %v9116
  %v9161 = vpack.c.bf16 %v9121, %v9117
  %v9162 = vpack.c.bf16 %v9122, %v9118
  %v9163 = vpack.c.bf16 %v9127, %v9123
  %v9164 = vpack.c.bf16 %v9128, %v9124
  %v9165 = vpack.c.bf16 %v9129, %v9125
  %v9166 = vpack.c.bf16 %v9130, %v9126
  %v9167 = vpack.c.bf16 %v9135, %v9131
  %v9168 = vpack.c.bf16 %v9136, %v9132
  %v9169 = vpack.c.bf16 %v9137, %v9133
  %v9170 = vpack.c.bf16 %v9138, %v9134
  %s9171 = smul.u32 %s1095, 2
  %s9172 = sshll.u32 %s9171, 4
  %9173 = dma.done %s105, %s9172
  %v9174 = vld [vmem:[#allocation5] sm:$0xff]
  %v9175 = vld [vmem:[#allocation5 + $0x8] sm:$0xff]
  %v9176 = vld [vmem:[#allocation5 + $0x10] sm:$0xff]
  %v9177 = vld [vmem:[#allocation5 + $0x18] sm:$0xff]
  %v9178 = vld [vmem:[#allocation5 + $0x20] sm:$0xff]
  %v9179 = vld [vmem:[#allocation5 + $0x28] sm:$0xff]
  %v9180 = vld [vmem:[#allocation5 + $0x30] sm:$0xff]
  %v9181 = vld [vmem:[#allocation5 + $0x38] sm:$0xff]
  %v9182 = vld [vmem:[#allocation5 + $0x40] sm:$0xff]
  %v9183 = vld [vmem:[#allocation5 + $0x48] sm:$0xff]
  %v9184 = vld [vmem:[#allocation5 + $0x50] sm:$0xff]
  %v9185 = vld [vmem:[#allocation5 + $0x58] sm:$0xff]
  %v9186 = vld [vmem:[#allocation5 + $0x60] sm:$0xff]
  %v9187 = vld [vmem:[#allocation5 + $0x68] sm:$0xff]
  %v9188 = vld [vmem:[#allocation5 + $0x70] sm:$0xff]
  %v9189 = vld [vmem:[#allocation5 + $0x78] sm:$0xff]
  %v9190 = vld [vmem:[#allocation5 + $0x80] sm:$0xff]
  %v9191 = vld [vmem:[#allocation5 + $0x88] sm:$0xff]
  %v9192 = vld [vmem:[#allocation5 + $0x90] sm:$0xff]
  %v9193 = vld [vmem:[#allocation5 + $0x98] sm:$0xff]
  %v9194 = vld [vmem:[#allocation5 + $0xa0] sm:$0xff]
  %v9195 = vld [vmem:[#allocation5 + $0xa8] sm:$0xff]
  %v9196 = vld [vmem:[#allocation5 + $0xb0] sm:$0xff]
  %v9197 = vld [vmem:[#allocation5 + $0xb8] sm:$0xff]
  %v9198 = vld [vmem:[#allocation5 + $0xc0] sm:$0xff]
  %v9199 = vld [vmem:[#allocation5 + $0xc8] sm:$0xff]
  %v9200 = vld [vmem:[#allocation5 + $0xd0] sm:$0xff]
  %v9201 = vld [vmem:[#allocation5 + $0xd8] sm:$0xff]
  %v9202 = vld [vmem:[#allocation5 + $0xe0] sm:$0xff]
  %v9203 = vld [vmem:[#allocation5 + $0xe8] sm:$0xff]
  %v9204 = vld [vmem:[#allocation5 + $0xf0] sm:$0xff]
  %v9205 = vld [vmem:[#allocation5 + $0xf8] sm:$0xff]
  %v9206 = vld [vmem:[#allocation5 + $0x100] sm:$0xff]
  %v9207 = vld [vmem:[#allocation5 + $0x108] sm:$0xff]
  %v9208 = vld [vmem:[#allocation5 + $0x110] sm:$0xff]
  %v9209 = vld [vmem:[#allocation5 + $0x118] sm:$0xff]
  %v9210 = vld [vmem:[#allocation5 + $0x120] sm:$0xff]
  %v9211 = vld [vmem:[#allocation5 + $0x128] sm:$0xff]
  %v9212 = vld [vmem:[#allocation5 + $0x130] sm:$0xff]
  %v9213 = vld [vmem:[#allocation5 + $0x138] sm:$0xff]
  %v9214 = vld [vmem:[#allocation5 + $0x140] sm:$0xff]
  %v9215 = vld [vmem:[#allocation5 + $0x148] sm:$0xff]
  %v9216 = vld [vmem:[#allocation5 + $0x150] sm:$0xff]
  %v9217 = vld [vmem:[#allocation5 + $0x158] sm:$0xff]
  %v9218 = vld [vmem:[#allocation5 + $0x160] sm:$0xff]
  %v9219 = vld [vmem:[#allocation5 + $0x168] sm:$0xff]
  %v9220 = vld [vmem:[#allocation5 + $0x170] sm:$0xff]
  %v9221 = vld [vmem:[#allocation5 + $0x178] sm:$0xff]
  %v9222 = vld [vmem:[#allocation5 + $0x180] sm:$0xff]
  %v9223 = vld [vmem:[#allocation5 + $0x188] sm:$0xff]
  %v9224 = vld [vmem:[#allocation5 + $0x190] sm:$0xff]
  %v9225 = vld [vmem:[#allocation5 + $0x198] sm:$0xff]
  %v9226 = vld [vmem:[#allocation5 + $0x1a0] sm:$0xff]
  %v9227 = vld [vmem:[#allocation5 + $0x1a8] sm:$0xff]
  %v9228 = vld [vmem:[#allocation5 + $0x1b0] sm:$0xff]
  %v9229 = vld [vmem:[#allocation5 + $0x1b8] sm:$0xff]
  %v9230 = vld [vmem:[#allocation5 + $0x1c0] sm:$0xff]
  %v9231 = vld [vmem:[#allocation5 + $0x1c8] sm:$0xff]
  %v9232 = vld [vmem:[#allocation5 + $0x1d0] sm:$0xff]
  %v9233 = vld [vmem:[#allocation5 + $0x1d8] sm:$0xff]
  %v9234 = vld [vmem:[#allocation5 + $0x1e0] sm:$0xff]
  %v9235 = vld [vmem:[#allocation5 + $0x1e8] sm:$0xff]
  %v9236 = vld [vmem:[#allocation5 + $0x1f0] sm:$0xff]
  %v9237 = vld [vmem:[#allocation5 + $0x1f8] sm:$0xff]
  %v9302 = vunpack.c.l.b16 %v9174
  %v9303 = vunpack.c.h.b16 %v9174
  %v9304 = vunpack.c.l.b16 %v9175
  %v9305 = vunpack.c.h.b16 %v9175
  %v9306 = vunpack.c.l.b16 %v9176
  %v9307 = vunpack.c.h.b16 %v9176
  %v9308 = vunpack.c.l.b16 %v9177
  %v9309 = vunpack.c.h.b16 %v9177
  %v9310 = vunpack.c.l.b16 %v9178
  %v9311 = vunpack.c.h.b16 %v9178
  %v9312 = vunpack.c.l.b16 %v9179
  %v9313 = vunpack.c.h.b16 %v9179
  %v9314 = vunpack.c.l.b16 %v9180
  %v9315 = vunpack.c.h.b16 %v9180
  %v9316 = vunpack.c.l.b16 %v9181
  %v9317 = vunpack.c.h.b16 %v9181
  %v9318 = vunpack.c.l.b16 %v9182
  %v9319 = vunpack.c.h.b16 %v9182
  %v9320 = vunpack.c.l.b16 %v9183
  %v9321 = vunpack.c.h.b16 %v9183
  %v9322 = vunpack.c.l.b16 %v9184
  %v9323 = vunpack.c.h.b16 %v9184
  %v9324 = vunpack.c.l.b16 %v9185
  %v9325 = vunpack.c.h.b16 %v9185
  %v9326 = vunpack.c.l.b16 %v9186
  %v9327 = vunpack.c.h.b16 %v9186
  %v9328 = vunpack.c.l.b16 %v9187
  %v9329 = vunpack.c.h.b16 %v9187
  %v9330 = vunpack.c.l.b16 %v9188
  %v9331 = vunpack.c.h.b16 %v9188
  %v9332 = vunpack.c.l.b16 %v9189
  %v9333 = vunpack.c.h.b16 %v9189
  %v9334 = vunpack.c.l.b16 %v9190
  %v9335 = vunpack.c.h.b16 %v9190
  %v9336 = vunpack.c.l.b16 %v9191
  %v9337 = vunpack.c.h.b16 %v9191
  %v9338 = vunpack.c.l.b16 %v9192
  %v9339 = vunpack.c.h.b16 %v9192
  %v9340 = vunpack.c.l.b16 %v9193
  %v9341 = vunpack.c.h.b16 %v9193
  %v9342 = vunpack.c.l.b16 %v9194
  %v9343 = vunpack.c.h.b16 %v9194
  %v9344 = vunpack.c.l.b16 %v9195
  %v9345 = vunpack.c.h.b16 %v9195
  %v9346 = vunpack.c.l.b16 %v9196
  %v9347 = vunpack.c.h.b16 %v9196
  %v9348 = vunpack.c.l.b16 %v9197
  %v9349 = vunpack.c.h.b16 %v9197
  %v9350 = vunpack.c.l.b16 %v9198
  %v9351 = vunpack.c.h.b16 %v9198
  %v9352 = vunpack.c.l.b16 %v9199
  %v9353 = vunpack.c.h.b16 %v9199
  %v9354 = vunpack.c.l.b16 %v9200
  %v9355 = vunpack.c.h.b16 %v9200
  %v9356 = vunpack.c.l.b16 %v9201
  %v9357 = vunpack.c.h.b16 %v9201
  %v9358 = vunpack.c.l.b16 %v9202
  %v9359 = vunpack.c.h.b16 %v9202
  %v9360 = vunpack.c.l.b16 %v9203
  %v9361 = vunpack.c.h.b16 %v9203
  %v9362 = vunpack.c.l.b16 %v9204
  %v9363 = vunpack.c.h.b16 %v9204
  %v9364 = vunpack.c.l.b16 %v9205
  %v9365 = vunpack.c.h.b16 %v9205
  %v9366 = vunpack.c.l.b16 %v9206
  %v9367 = vunpack.c.h.b16 %v9206
  %v9368 = vunpack.c.l.b16 %v9207
  %v9369 = vunpack.c.h.b16 %v9207
  %v9370 = vunpack.c.l.b16 %v9208
  %v9371 = vunpack.c.h.b16 %v9208
  %v9372 = vunpack.c.l.b16 %v9209
  %v9373 = vunpack.c.h.b16 %v9209
  %v9374 = vunpack.c.l.b16 %v9210
  %v9375 = vunpack.c.h.b16 %v9210
  %v9376 = vunpack.c.l.b16 %v9211
  %v9377 = vunpack.c.h.b16 %v9211
  %v9378 = vunpack.c.l.b16 %v9212
  %v9379 = vunpack.c.h.b16 %v9212
  %v9380 = vunpack.c.l.b16 %v9213
  %v9381 = vunpack.c.h.b16 %v9213
  %v9382 = vunpack.c.l.b16 %v9214
  %v9383 = vunpack.c.h.b16 %v9214
  %v9384 = vunpack.c.l.b16 %v9215
  %v9385 = vunpack.c.h.b16 %v9215
  %v9386 = vunpack.c.l.b16 %v9216
  %v9387 = vunpack.c.h.b16 %v9216
  %v9388 = vunpack.c.l.b16 %v9217
  %v9389 = vunpack.c.h.b16 %v9217
  %v9390 = vunpack.c.l.b16 %v9218
  %v9391 = vunpack.c.h.b16 %v9218
  %v9392 = vunpack.c.l.b16 %v9219
  %v9393 = vunpack.c.h.b16 %v9219
  %v9394 = vunpack.c.l.b16 %v9220
  %v9395 = vunpack.c.h.b16 %v9220
  %v9396 = vunpack.c.l.b16 %v9221
  %v9397 = vunpack.c.h.b16 %v9221
  %v9398 = vunpack.c.l.b16 %v9222
  %v9399 = vunpack.c.h.b16 %v9222
  %v9400 = vunpack.c.l.b16 %v9223
  %v9401 = vunpack.c.h.b16 %v9223
  %v9402 = vunpack.c.l.b16 %v9224
  %v9403 = vunpack.c.h.b16 %v9224
  %v9404 = vunpack.c.l.b16 %v9225
  %v9405 = vunpack.c.h.b16 %v9225
  %v9406 = vunpack.c.l.b16 %v9226
  %v9407 = vunpack.c.h.b16 %v9226
  %v9408 = vunpack.c.l.b16 %v9227
  %v9409 = vunpack.c.h.b16 %v9227
  %v9410 = vunpack.c.l.b16 %v9228
  %v9411 = vunpack.c.h.b16 %v9228
  %v9412 = vunpack.c.l.b16 %v9229
  %v9413 = vunpack.c.h.b16 %v9229
  %v9414 = vunpack.c.l.b16 %v9230
  %v9415 = vunpack.c.h.b16 %v9230
  %v9416 = vunpack.c.l.b16 %v9231
  %v9417 = vunpack.c.h.b16 %v9231
  %v9418 = vunpack.c.l.b16 %v9232
  %v9419 = vunpack.c.h.b16 %v9232
  %v9420 = vunpack.c.l.b16 %v9233
  %v9421 = vunpack.c.h.b16 %v9233
  %v9422 = vunpack.c.l.b16 %v9234
  %v9423 = vunpack.c.h.b16 %v9234
  %v9424 = vunpack.c.l.b16 %v9235
  %v9425 = vunpack.c.h.b16 %v9235
  %v9426 = vunpack.c.l.b16 %v9236
  %v9427 = vunpack.c.h.b16 %v9236
  %v9428 = vunpack.c.l.b16 %v9237
  %v9429 = vunpack.c.h.b16 %v9237
  %v9430 = vpack.c.b16 %v9304, %v9302
  %v9431 = vpack.c.b16 %v9305, %v9303
  %v9432 = vpack.c.b16 %v9308, %v9306
  %v9433 = vpack.c.b16 %v9309, %v9307
  %v9434 = vpack.c.b16 %v9312, %v9310
  %v9435 = vpack.c.b16 %v9313, %v9311
  %v9436 = vpack.c.b16 %v9316, %v9314
  %v9437 = vpack.c.b16 %v9317, %v9315
  %v9438 = vpack.c.b16 %v9320, %v9318
  %v9439 = vpack.c.b16 %v9321, %v9319
  %v9440 = vpack.c.b16 %v9324, %v9322
  %v9441 = vpack.c.b16 %v9325, %v9323
  %v9442 = vpack.c.b16 %v9328, %v9326
  %v9443 = vpack.c.b16 %v9329, %v9327
  %v9444 = vpack.c.b16 %v9332, %v9330
  %v9445 = vpack.c.b16 %v9333, %v9331
  %v9446 = vpack.c.b16 %v9336, %v9334
  %v9447 = vpack.c.b16 %v9337, %v9335
  %v9448 = vpack.c.b16 %v9340, %v9338
  %v9449 = vpack.c.b16 %v9341, %v9339
  %v9450 = vpack.c.b16 %v9344, %v9342
  %v9451 = vpack.c.b16 %v9345, %v9343
  %v9452 = vpack.c.b16 %v9348, %v9346
  %v9453 = vpack.c.b16 %v9349, %v9347
  %v9454 = vpack.c.b16 %v9352, %v9350
  %v9455 = vpack.c.b16 %v9353, %v9351
  %v9456 = vpack.c.b16 %v9356, %v9354
  %v9457 = vpack.c.b16 %v9357, %v9355
  %v9458 = vpack.c.b16 %v9360, %v9358
  %v9459 = vpack.c.b16 %v9361, %v9359
  %v9460 = vpack.c.b16 %v9364, %v9362
  %v9461 = vpack.c.b16 %v9365, %v9363
  %v9462 = vpack.c.b16 %v9368, %v9366
  %v9463 = vpack.c.b16 %v9369, %v9367
  %v9464 = vpack.c.b16 %v9372, %v9370
  %v9465 = vpack.c.b16 %v9373, %v9371
  %v9466 = vpack.c.b16 %v9376, %v9374
  %v9467 = vpack.c.b16 %v9377, %v9375
  %v9468 = vpack.c.b16 %v9380, %v9378
  %v9469 = vpack.c.b16 %v9381, %v9379
  %v9470 = vpack.c.b16 %v9384, %v9382
  %v9471 = vpack.c.b16 %v9385, %v9383
  %v9472 = vpack.c.b16 %v9388, %v9386
  %v9473 = vpack.c.b16 %v9389, %v9387
  %v9474 = vpack.c.b16 %v9392, %v9390
  %v9475 = vpack.c.b16 %v9393, %v9391
  %v9476 = vpack.c.b16 %v9396, %v9394
  %v9477 = vpack.c.b16 %v9397, %v9395
  %v9478 = vpack.c.b16 %v9400, %v9398
  %v9479 = vpack.c.b16 %v9401, %v9399
  %v9480 = vpack.c.b16 %v9404, %v9402
  %v9481 = vpack.c.b16 %v9405, %v9403
  %v9482 = vpack.c.b16 %v9408, %v9406
  %v9483 = vpack.c.b16 %v9409, %v9407
  %v9484 = vpack.c.b16 %v9412, %v9410
  %v9485 = vpack.c.b16 %v9413, %v9411
  %v9486 = vpack.c.b16 %v9416, %v9414
  %v9487 = vpack.c.b16 %v9417, %v9415
  %v9488 = vpack.c.b16 %v9420, %v9418
  %v9489 = vpack.c.b16 %v9421, %v9419
  %v9490 = vpack.c.b16 %v9424, %v9422
  %v9491 = vpack.c.b16 %v9425, %v9423
  %v9492 = vpack.c.b16 %v9428, %v9426
  %v9493 = vpack.c.b16 %v9429, %v9427
  %9558 = vmatpush.bf16.msra.mxu0 %v9444
  %9559 = vmatpush.bf16.msra.mxu0 %v9442
  %9560 = vmatpush.bf16.msra.mxu0 %v9440
  %9561 = vmatpush.bf16.msra.mxu0 %v9438
  %9562 = vmatpush.bf16.msra.mxu0 %v9436
  %9563 = vmatpush.bf16.msra.mxu0 %v9434
  %9564 = vmatpush.bf16.msra.mxu0 %v9432
  %9565 = vmatpush.bf16.msra.mxu0 %v9430
  %9566 = vmatmul.bf16.gmra.mxu0 %v9139
  %v9567 = vpop.f32.mrf.mxu0
  %v9568 = vadd.f32 0.0, %v9567
  %v9569 = vpop.f32.mrf.mxu0
  %v9570 = vadd.f32 0.0, %v9569
  %9571 = vmatmul.bf16.gmra.mxu0 %v9143
  %v9572 = vpop.f32.mrf.mxu0
  %v9573 = vadd.f32 0.0, %v9572
  %v9574 = vpop.f32.mrf.mxu0
  %v9575 = vadd.f32 0.0, %v9574
  %9576 = vmatmul.bf16.gmra.mxu0 %v9147
  %v9577 = vpop.f32.mrf.mxu0
  %v9578 = vadd.f32 0.0, %v9577
  %v9579 = vpop.f32.mrf.mxu0
  %v9580 = vadd.f32 0.0, %v9579
  %9581 = vmatmul.bf16.gmra.mxu0 %v9151
  %v9582 = vpop.f32.mrf.mxu0
  %v9583 = vadd.f32 0.0, %v9582
  %v9584 = vpop.f32.mrf.mxu0
  %v9585 = vadd.f32 0.0, %v9584
  %9586 = vmatmul.bf16.gmra.mxu0 %v9155
  %v9587 = vpop.f32.mrf.mxu0
  %v9588 = vadd.f32 0.0, %v9587
  %v9589 = vpop.f32.mrf.mxu0
  %v9590 = vadd.f32 0.0, %v9589
  %9591 = vmatmul.bf16.gmra.mxu0 %v9159
  %v9592 = vpop.f32.mrf.mxu0
  %v9593 = vadd.f32 0.0, %v9592
  %v9594 = vpop.f32.mrf.mxu0
  %v9595 = vadd.f32 0.0, %v9594
  %9596 = vmatmul.bf16.gmra.mxu0 %v9163
  %v9597 = vpop.f32.mrf.mxu0
  %v9598 = vadd.f32 0.0, %v9597
  %v9599 = vpop.f32.mrf.mxu0
  %v9600 = vadd.f32 0.0, %v9599
  %9601 = vmatmul.bf16.gmra.mxu0 %v9167
  %v9602 = vpop.f32.mrf.mxu0
  %v9603 = vadd.f32 0.0, %v9602
  %v9604 = vpop.f32.mrf.mxu0
  %v9605 = vadd.f32 0.0, %v9604
  %9606 = vdwg.mxu0
  %9607 = vmatpush.bf16.msra.mxu0 %v9460
  %9608 = vmatpush.bf16.msra.mxu0 %v9458
  %9609 = vmatpush.bf16.msra.mxu0 %v9456
  %9610 = vmatpush.bf16.msra.mxu0 %v9454
  %9611 = vmatpush.bf16.msra.mxu0 %v9452
  %9612 = vmatpush.bf16.msra.mxu0 %v9450
  %9613 = vmatpush.bf16.msra.mxu0 %v9448
  %9614 = vmatpush.bf16.msra.mxu0 %v9446
  %9615 = vmatmul.bf16.gmra.mxu0 %v9140
  %v9616 = vpop.f32.mrf.mxu0
  %v9617 = vadd.f32 %v9568, %v9616
  %v9618 = vpop.f32.mrf.mxu0
  %v9619 = vadd.f32 %v9570, %v9618
  %9620 = vmatmul.bf16.gmra.mxu0 %v9144
  %v9621 = vpop.f32.mrf.mxu0
  %v9622 = vadd.f32 %v9573, %v9621
  %v9623 = vpop.f32.mrf.mxu0
  %v9624 = vadd.f32 %v9575, %v9623
  %9625 = vmatmul.bf16.gmra.mxu0 %v9148
  %v9626 = vpop.f32.mrf.mxu0
  %v9627 = vadd.f32 %v9578, %v9626
  %v9628 = vpop.f32.mrf.mxu0
  %v9629 = vadd.f32 %v9580, %v9628
  %9630 = vmatmul.bf16.gmra.mxu0 %v9152
  %v9631 = vpop.f32.mrf.mxu0
  %v9632 = vadd.f32 %v9583, %v9631
  %v9633 = vpop.f32.mrf.mxu0
  %v9634 = vadd.f32 %v9585, %v9633
  %9635 = vmatmul.bf16.gmra.mxu0 %v9156
  %v9636 = vpop.f32.mrf.mxu0
  %v9637 = vadd.f32 %v9588, %v9636
  %v9638 = vpop.f32.mrf.mxu0
  %v9639 = vadd.f32 %v9590, %v9638
  %9640 = vmatmul.bf16.gmra.mxu0 %v9160
  %v9641 = vpop.f32.mrf.mxu0
  %v9642 = vadd.f32 %v9593, %v9641
  %v9643 = vpop.f32.mrf.mxu0
  %v9644 = vadd.f32 %v9595, %v9643
  %9645 = vmatmul.bf16.gmra.mxu0 %v9164
  %v9646 = vpop.f32.mrf.mxu0
  %v9647 = vadd.f32 %v9598, %v9646
  %v9648 = vpop.f32.mrf.mxu0
  %v9649 = vadd.f32 %v9600, %v9648
  %9650 = vmatmul.bf16.gmra.mxu0 %v9168
  %v9651 = vpop.f32.mrf.mxu0
  %v9652 = vadd.f32 %v9603, %v9651
  %v9653 = vpop.f32.mrf.mxu0
  %v9654 = vadd.f32 %v9605, %v9653
  %9655 = vdwg.mxu0
  %9656 = vmatpush.bf16.msra.mxu0 %v9476
  %9657 = vmatpush.bf16.msra.mxu0 %v9474
  %9658 = vmatpush.bf16.msra.mxu0 %v9472
  %9659 = vmatpush.bf16.msra.mxu0 %v9470
  %9660 = vmatpush.bf16.msra.mxu0 %v9468
  %9661 = vmatpush.bf16.msra.mxu0 %v9466
  %9662 = vmatpush.bf16.msra.mxu0 %v9464
  %9663 = vmatpush.bf16.msra.mxu0 %v9462
  %9664 = vmatmul.bf16.gmra.mxu0 %v9141
  %v9665 = vpop.f32.mrf.mxu0
  %v9666 = vadd.f32 %v9617, %v9665
  %v9667 = vpop.f32.mrf.mxu0
  %v9668 = vadd.f32 %v9619, %v9667
  %9669 = vmatmul.bf16.gmra.mxu0 %v9145
  %v9670 = vpop.f32.mrf.mxu0
  %v9671 = vadd.f32 %v9622, %v9670
  %v9672 = vpop.f32.mrf.mxu0
  %v9673 = vadd.f32 %v9624, %v9672
  %9674 = vmatmul.bf16.gmra.mxu0 %v9149
  %v9675 = vpop.f32.mrf.mxu0
  %v9676 = vadd.f32 %v9627, %v9675
  %v9677 = vpop.f32.mrf.mxu0
  %v9678 = vadd.f32 %v9629, %v9677
  %9679 = vmatmul.bf16.gmra.mxu0 %v9153
  %v9680 = vpop.f32.mrf.mxu0
  %v9681 = vadd.f32 %v9632, %v9680
  %v9682 = vpop.f32.mrf.mxu0
  %v9683 = vadd.f32 %v9634, %v9682
  %9684 = vmatmul.bf16.gmra.mxu0 %v9157
  %v9685 = vpop.f32.mrf.mxu0
  %v9686 = vadd.f32 %v9637, %v9685
  %v9687 = vpop.f32.mrf.mxu0
  %v9688 = vadd.f32 %v9639, %v9687
  %9689 = vmatmul.bf16.gmra.mxu0 %v9161
  %v9690 = vpop.f32.mrf.mxu0
  %v9691 = vadd.f32 %v9642, %v9690
  %v9692 = vpop.f32.mrf.mxu0
  %v9693 = vadd.f32 %v9644, %v9692
  %9694 = vmatmul.bf16.gmra.mxu0 %v9165
  %v9695 = vpop.f32.mrf.mxu0
  %v9696 = vadd.f32 %v9647, %v9695
  %v9697 = vpop.f32.mrf.mxu0
  %v9698 = vadd.f32 %v9649, %v9697
  %9699 = vmatmul.bf16.gmra.mxu0 %v9169
  %v9700 = vpop.f32.mrf.mxu0
  %v9701 = vadd.f32 %v9652, %v9700
  %v9702 = vpop.f32.mrf.mxu0
  %v9703 = vadd.f32 %v9654, %v9702
  %9704 = vdwg.mxu0
  %9705 = vmatpush.bf16.msra.mxu0 %v9492
  %9706 = vmatpush.bf16.msra.mxu0 %v9490
  %9707 = vmatpush.bf16.msra.mxu0 %v9488
  %9708 = vmatpush.bf16.msra.mxu0 %v9486
  %9709 = vmatpush.bf16.msra.mxu0 %v9484
  %9710 = vmatpush.bf16.msra.mxu0 %v9482
  %9711 = vmatpush.bf16.msra.mxu0 %v9480
  %9712 = vmatpush.bf16.msra.mxu0 %v9478
  %9713 = vmatmul.bf16.gmra.mxu0 %v9142
  %v9714 = vpop.f32.mrf.mxu0
  %v9715 = vadd.f32 %v9666, %v9714
  %v9716 = vpop.f32.mrf.mxu0
  %v9717 = vadd.f32 %v9668, %v9716
  %9718 = vmatmul.bf16.gmra.mxu0 %v9146
  %v9719 = vpop.f32.mrf.mxu0
  %v9720 = vadd.f32 %v9671, %v9719
  %v9721 = vpop.f32.mrf.mxu0
  %v9722 = vadd.f32 %v9673, %v9721
  %9723 = vmatmul.bf16.gmra.mxu0 %v9150
  %v9724 = vpop.f32.mrf.mxu0
  %v9725 = vadd.f32 %v9676, %v9724
  %v9726 = vpop.f32.mrf.mxu0
  %v9727 = vadd.f32 %v9678, %v9726
  %9728 = vmatmul.bf16.gmra.mxu0 %v9154
  %v9729 = vpop.f32.mrf.mxu0
  %v9730 = vadd.f32 %v9681, %v9729
  %v9731 = vpop.f32.mrf.mxu0
  %v9732 = vadd.f32 %v9683, %v9731
  %9733 = vmatmul.bf16.gmra.mxu0 %v9158
  %v9734 = vpop.f32.mrf.mxu0
  %v9735 = vadd.f32 %v9686, %v9734
  %v9736 = vpop.f32.mrf.mxu0
  %v9737 = vadd.f32 %v9688, %v9736
  %9738 = vmatmul.bf16.gmra.mxu0 %v9162
  %v9739 = vpop.f32.mrf.mxu0
  %v9740 = vadd.f32 %v9691, %v9739
  %v9741 = vpop.f32.mrf.mxu0
  %v9742 = vadd.f32 %v9693, %v9741
  %9743 = vmatmul.bf16.gmra.mxu0 %v9166
  %v9744 = vpop.f32.mrf.mxu0
  %v9745 = vadd.f32 %v9696, %v9744
  %v9746 = vpop.f32.mrf.mxu0
  %v9747 = vadd.f32 %v9698, %v9746
  %9748 = vmatmul.bf16.gmra.mxu0 %v9170
  %v9749 = vpop.f32.mrf.mxu0
  %v9750 = vadd.f32 %v9701, %v9749
  %v9751 = vpop.f32.mrf.mxu0
  %v9752 = vadd.f32 %v9703, %v9751
  %9753 = vdwg.mxu0
  %9754 = vmatpush.bf16.msra.mxu0 %v9445
  %9755 = vmatpush.bf16.msra.mxu0 %v9443
  %9756 = vmatpush.bf16.msra.mxu0 %v9441
  %9757 = vmatpush.bf16.msra.mxu0 %v9439
  %9758 = vmatpush.bf16.msra.mxu0 %v9437
  %9759 = vmatpush.bf16.msra.mxu0 %v9435
  %9760 = vmatpush.bf16.msra.mxu0 %v9433
  %9761 = vmatpush.bf16.msra.mxu0 %v9431
  %9762 = vmatmul.bf16.gmra.mxu0 %v9139
  %v9763 = vpop.f32.mrf.mxu0
  %v9764 = vadd.f32 0.0, %v9763
  %v9765 = vpop.f32.mrf.mxu0
  %v9766 = vadd.f32 0.0, %v9765
  %9767 = vmatmul.bf16.gmra.mxu0 %v9143
  %v9768 = vpop.f32.mrf.mxu0
  %v9769 = vadd.f32 0.0, %v9768
  %v9770 = vpop.f32.mrf.mxu0
  %v9771 = vadd.f32 0.0, %v9770
  %9772 = vmatmul.bf16.gmra.mxu0 %v9147
  %v9773 = vpop.f32.mrf.mxu0
  %v9774 = vadd.f32 0.0, %v9773
  %v9775 = vpop.f32.mrf.mxu0
  %v9776 = vadd.f32 0.0, %v9775
  %9777 = vmatmul.bf16.gmra.mxu0 %v9151
  %v9778 = vpop.f32.mrf.mxu0
  %v9779 = vadd.f32 0.0, %v9778
  %v9780 = vpop.f32.mrf.mxu0
  %v9781 = vadd.f32 0.0, %v9780
  %9782 = vmatmul.bf16.gmra.mxu0 %v9155
  %v9783 = vpop.f32.mrf.mxu0
  %v9784 = vadd.f32 0.0, %v9783
  %v9785 = vpop.f32.mrf.mxu0
  %v9786 = vadd.f32 0.0, %v9785
  %9787 = vmatmul.bf16.gmra.mxu0 %v9159
  %v9788 = vpop.f32.mrf.mxu0
  %v9789 = vadd.f32 0.0, %v9788
  %v9790 = vpop.f32.mrf.mxu0
  %v9791 = vadd.f32 0.0, %v9790
  %9792 = vmatmul.bf16.gmra.mxu0 %v9163
  %v9793 = vpop.f32.mrf.mxu0
  %v9794 = vadd.f32 0.0, %v9793
  %v9795 = vpop.f32.mrf.mxu0
  %v9796 = vadd.f32 0.0, %v9795
  %9797 = vmatmul.bf16.gmra.mxu0 %v9167
  %v9798 = vpop.f32.mrf.mxu0
  %v9799 = vadd.f32 0.0, %v9798
  %v9800 = vpop.f32.mrf.mxu0
  %v9801 = vadd.f32 0.0, %v9800
  %9802 = vdwg.mxu0
  %9803 = vmatpush.bf16.msra.mxu0 %v9461
  %9804 = vmatpush.bf16.msra.mxu0 %v9459
  %9805 = vmatpush.bf16.msra.mxu0 %v9457
  %9806 = vmatpush.bf16.msra.mxu0 %v9455
  %9807 = vmatpush.bf16.msra.mxu0 %v9453
  %9808 = vmatpush.bf16.msra.mxu0 %v9451
  %9809 = vmatpush.bf16.msra.mxu0 %v9449
  %9810 = vmatpush.bf16.msra.mxu0 %v9447
  %9811 = vmatmul.bf16.gmra.mxu0 %v9140
  %v9812 = vpop.f32.mrf.mxu0
  %v9813 = vadd.f32 %v9764, %v9812
  %v9814 = vpop.f32.mrf.mxu0
  %v9815 = vadd.f32 %v9766, %v9814
  %9816 = vmatmul.bf16.gmra.mxu0 %v9144
  %v9817 = vpop.f32.mrf.mxu0
  %v9818 = vadd.f32 %v9769, %v9817
  %v9819 = vpop.f32.mrf.mxu0
  %v9820 = vadd.f32 %v9771, %v9819
  %9821 = vmatmul.bf16.gmra.mxu0 %v9148
  %v9822 = vpop.f32.mrf.mxu0
  %v9823 = vadd.f32 %v9774, %v9822
  %v9824 = vpop.f32.mrf.mxu0
  %v9825 = vadd.f32 %v9776, %v9824
  %9826 = vmatmul.bf16.gmra.mxu0 %v9152
  %v9827 = vpop.f32.mrf.mxu0
  %v9828 = vadd.f32 %v9779, %v9827
  %v9829 = vpop.f32.mrf.mxu0
  %v9830 = vadd.f32 %v9781, %v9829
  %9831 = vmatmul.bf16.gmra.mxu0 %v9156
  %v9832 = vpop.f32.mrf.mxu0
  %v9833 = vadd.f32 %v9784, %v9832
  %v9834 = vpop.f32.mrf.mxu0
  %v9835 = vadd.f32 %v9786, %v9834
  %9836 = vmatmul.bf16.gmra.mxu0 %v9160
  %v9837 = vpop.f32.mrf.mxu0
  %v9838 = vadd.f32 %v9789, %v9837
  %v9839 = vpop.f32.mrf.mxu0
  %v9840 = vadd.f32 %v9791, %v9839
  %9841 = vmatmul.bf16.gmra.mxu0 %v9164
  %v9842 = vpop.f32.mrf.mxu0
  %v9843 = vadd.f32 %v9794, %v9842
  %v9844 = vpop.f32.mrf.mxu0
  %v9845 = vadd.f32 %v9796, %v9844
  %9846 = vmatmul.bf16.gmra.mxu0 %v9168
  %v9847 = vpop.f32.mrf.mxu0
  %v9848 = vadd.f32 %v9799, %v9847
  %v9849 = vpop.f32.mrf.mxu0
  %v9850 = vadd.f32 %v9801, %v9849
  %9851 = vdwg.mxu0
  %9852 = vmatpush.bf16.msra.mxu0 %v9477
  %9853 = vmatpush.bf16.msra.mxu0 %v9475
  %9854 = vmatpush.bf16.msra.mxu0 %v9473
  %9855 = vmatpush.bf16.msra.mxu0 %v9471
  %9856 = vmatpush.bf16.msra.mxu0 %v9469
  %9857 = vmatpush.bf16.msra.mxu0 %v9467
  %9858 = vmatpush.bf16.msra.mxu0 %v9465
  %9859 = vmatpush.bf16.msra.mxu0 %v9463
  %9860 = vmatmul.bf16.gmra.mxu0 %v9141
  %v9861 = vpop.f32.mrf.mxu0
  %v9862 = vadd.f32 %v9813, %v9861
  %v9863 = vpop.f32.mrf.mxu0
  %v9864 = vadd.f32 %v9815, %v9863
  %9865 = vmatmul.bf16.gmra.mxu0 %v9145
  %v9866 = vpop.f32.mrf.mxu0
  %v9867 = vadd.f32 %v9818, %v9866
  %v9868 = vpop.f32.mrf.mxu0
  %v9869 = vadd.f32 %v9820, %v9868
  %9870 = vmatmul.bf16.gmra.mxu0 %v9149
  %v9871 = vpop.f32.mrf.mxu0
  %v9872 = vadd.f32 %v9823, %v9871
  %v9873 = vpop.f32.mrf.mxu0
  %v9874 = vadd.f32 %v9825, %v9873
  %9875 = vmatmul.bf16.gmra.mxu0 %v9153
  %v9876 = vpop.f32.mrf.mxu0
  %v9877 = vadd.f32 %v9828, %v9876
  %v9878 = vpop.f32.mrf.mxu0
  %v9879 = vadd.f32 %v9830, %v9878
  %9880 = vmatmul.bf16.gmra.mxu0 %v9157
  %v9881 = vpop.f32.mrf.mxu0
  %v9882 = vadd.f32 %v9833, %v9881
  %v9883 = vpop.f32.mrf.mxu0
  %v9884 = vadd.f32 %v9835, %v9883
  %9885 = vmatmul.bf16.gmra.mxu0 %v9161
  %v9886 = vpop.f32.mrf.mxu0
  %v9887 = vadd.f32 %v9838, %v9886
  %v9888 = vpop.f32.mrf.mxu0
  %v9889 = vadd.f32 %v9840, %v9888
  %9890 = vmatmul.bf16.gmra.mxu0 %v9165
  %v9891 = vpop.f32.mrf.mxu0
  %v9892 = vadd.f32 %v9843, %v9891
  %v9893 = vpop.f32.mrf.mxu0
  %v9894 = vadd.f32 %v9845, %v9893
  %9895 = vmatmul.bf16.gmra.mxu0 %v9169
  %v9896 = vpop.f32.mrf.mxu0
  %v9897 = vadd.f32 %v9848, %v9896
  %v9898 = vpop.f32.mrf.mxu0
  %v9899 = vadd.f32 %v9850, %v9898
  %9900 = vdwg.mxu0
  %9901 = vmatpush.bf16.msra.mxu0 %v9493
  %9902 = vmatpush.bf16.msra.mxu0 %v9491
  %9903 = vmatpush.bf16.msra.mxu0 %v9489
  %9904 = vmatpush.bf16.msra.mxu0 %v9487
  %9905 = vmatpush.bf16.msra.mxu0 %v9485
  %9906 = vmatpush.bf16.msra.mxu0 %v9483
  %9907 = vmatpush.bf16.msra.mxu0 %v9481
  %9908 = vmatpush.bf16.msra.mxu0 %v9479
  %9909 = vmatmul.bf16.gmra.mxu0 %v9142
  %v9910 = vpop.f32.mrf.mxu0
  %v9911 = vadd.f32 %v9862, %v9910
  %v9912 = vpop.f32.mrf.mxu0
  %v9913 = vadd.f32 %v9864, %v9912
  %9914 = vmatmul.bf16.gmra.mxu0 %v9146
  %v9915 = vpop.f32.mrf.mxu0
  %v9916 = vadd.f32 %v9867, %v9915
  %v9917 = vpop.f32.mrf.mxu0
  %v9918 = vadd.f32 %v9869, %v9917
  %9919 = vmatmul.bf16.gmra.mxu0 %v9150
  %v9920 = vpop.f32.mrf.mxu0
  %v9921 = vadd.f32 %v9872, %v9920
  %v9922 = vpop.f32.mrf.mxu0
  %v9923 = vadd.f32 %v9874, %v9922
  %9924 = vmatmul.bf16.gmra.mxu0 %v9154
  %v9925 = vpop.f32.mrf.mxu0
  %v9926 = vadd.f32 %v9877, %v9925
  %v9927 = vpop.f32.mrf.mxu0
  %v9928 = vadd.f32 %v9879, %v9927
  %9929 = vmatmul.bf16.gmra.mxu0 %v9158
  %v9930 = vpop.f32.mrf.mxu0
  %v9931 = vadd.f32 %v9882, %v9930
  %v9932 = vpop.f32.mrf.mxu0
  %v9933 = vadd.f32 %v9884, %v9932
  %9934 = vmatmul.bf16.gmra.mxu0 %v9162
  %v9935 = vpop.f32.mrf.mxu0
  %v9936 = vadd.f32 %v9887, %v9935
  %v9937 = vpop.f32.mrf.mxu0
  %v9938 = vadd.f32 %v9889, %v9937
  %9939 = vmatmul.bf16.gmra.mxu0 %v9166
  %v9940 = vpop.f32.mrf.mxu0
  %v9941 = vadd.f32 %v9892, %v9940
  %v9942 = vpop.f32.mrf.mxu0
  %v9943 = vadd.f32 %v9894, %v9942
  %9944 = vmatmul.bf16.gmra.mxu0 %v9170
  %v9945 = vpop.f32.mrf.mxu0
  %v9946 = vadd.f32 %v9897, %v9945
  %v9947 = vpop.f32.mrf.mxu0
  %v9948 = vadd.f32 %v9899, %v9947
  %9949 = vdwg.mxu0
  %v9950 = vadd.f32 %v9715, %v9717
  %v9951 = vadd.f32 %v9950, %v9720
  %v9952 = vadd.f32 %v9951, %v9722
  %v9953 = vadd.f32 %v9952, %v9725
  %v9954 = vadd.f32 %v9953, %v9727
  %v9955 = vadd.f32 %v9954, %v9730
  %v9956 = vadd.f32 %v9955, %v9732
  %v9957 = vadd.f32 %v9956, %v9735
  %v9958 = vadd.f32 %v9957, %v9737
  %v9959 = vadd.f32 %v9958, %v9740
  %v9960 = vadd.f32 %v9959, %v9742
  %v9961 = vadd.f32 %v9960, %v9745
  %v9962 = vadd.f32 %v9961, %v9747
  %v9963 = vadd.f32 %v9962, %v9750
  %v9964 = vadd.f32 %v9963, %v9752
  %v9965 = vrot.slane %v9964, 4
  %v9966 = vadd.f32 %v9964, %v9965
  %v9967 = vrot.slane %v9966, 2
  %v9968 = vadd.f32 %v9966, %v9967
  %v9969 = vrot.slane %v9968, 1
  %v9970 = vadd.f32 %v9968, %v9969
  %v9971 = vadd.f32 %v9911, %v9913
  %v9972 = vadd.f32 %v9971, %v9916
  %v9973 = vadd.f32 %v9972, %v9918
  %v9974 = vadd.f32 %v9973, %v9921
  %v9975 = vadd.f32 %v9974, %v9923
  %v9976 = vadd.f32 %v9975, %v9926
  %v9977 = vadd.f32 %v9976, %v9928
  %v9978 = vadd.f32 %v9977, %v9931
  %v9979 = vadd.f32 %v9978, %v9933
  %v9980 = vadd.f32 %v9979, %v9936
  %v9981 = vadd.f32 %v9980, %v9938
  %v9982 = vadd.f32 %v9981, %v9941
  %v9983 = vadd.f32 %v9982, %v9943
  %v9984 = vadd.f32 %v9983, %v9946
  %v9985 = vadd.f32 %v9984, %v9948
  %v9986 = vrot.slane %v9985, 4
  %v9987 = vadd.f32 %v9985, %v9986
  %v9988 = vrot.slane %v9987, 2
  %v9989 = vadd.f32 %v9987, %v9988
  %v9990 = vrot.slane %v9989, 1
  %v9991 = vadd.f32 %v9989, %v9990
  %v9992 = vmul.f32 %v9970, %v555
  %v9993 = vmul.f32 %v9991, %v555
  %v9994 = vsub.f32 %v9715, %v9992
  %v9995 = vsub.f32 %v9911, %v9993
  %v9996 = vsub.f32 %v9717, %v9992
  %v9997 = vsub.f32 %v9913, %v9993
  %v9998 = vsub.f32 %v9720, %v9992
  %v9999 = vsub.f32 %v9916, %v9993
  %v10000 = vsub.f32 %v9722, %v9992
  %v10001 = vsub.f32 %v9918, %v9993
  %v10002 = vsub.f32 %v9725, %v9992
  %v10003 = vsub.f32 %v9921, %v9993
  %v10004 = vsub.f32 %v9727, %v9992
  %v10005 = vsub.f32 %v9923, %v9993
  %v10006 = vsub.f32 %v9730, %v9992
  %v10007 = vsub.f32 %v9926, %v9993
  %v10008 = vsub.f32 %v9732, %v9992
  %v10009 = vsub.f32 %v9928, %v9993
  %v10010 = vsub.f32 %v9735, %v9992
  %v10011 = vsub.f32 %v9931, %v9993
  %v10012 = vsub.f32 %v9737, %v9992
  %v10013 = vsub.f32 %v9933, %v9993
  %v10014 = vsub.f32 %v9740, %v9992
  %v10015 = vsub.f32 %v9936, %v9993
  %v10016 = vsub.f32 %v9742, %v9992
  %v10017 = vsub.f32 %v9938, %v9993
  %v10018 = vsub.f32 %v9745, %v9992
  %v10019 = vsub.f32 %v9941, %v9993
  %v10020 = vsub.f32 %v9747, %v9992
  %v10021 = vsub.f32 %v9943, %v9993
  %v10022 = vsub.f32 %v9750, %v9992
  %v10023 = vsub.f32 %v9946, %v9993
  %v10024 = vsub.f32 %v9752, %v9992
  %v10025 = vsub.f32 %v9948, %v9993
  %v10026 = vmul.f32 %v9994, %v9994
  %v10027 = vmul.f32 %v9995, %v9995
  %v10028 = vmul.f32 %v9996, %v9996
  %v10029 = vmul.f32 %v9997, %v9997
  %v10030 = vmul.f32 %v9998, %v9998
  %v10031 = vmul.f32 %v9999, %v9999
  %v10032 = vmul.f32 %v10000, %v10000
  %v10033 = vmul.f32 %v10001, %v10001
  %v10034 = vmul.f32 %v10002, %v10002
  %v10035 = vmul.f32 %v10003, %v10003
  %v10036 = vmul.f32 %v10004, %v10004
  %v10037 = vmul.f32 %v10005, %v10005
  %v10038 = vmul.f32 %v10006, %v10006
  %v10039 = vmul.f32 %v10007, %v10007
  %v10040 = vmul.f32 %v10008, %v10008
  %v10041 = vmul.f32 %v10009, %v10009
  %v10042 = vmul.f32 %v10010, %v10010
  %v10043 = vmul.f32 %v10011, %v10011
  %v10044 = vmul.f32 %v10012, %v10012
  %v10045 = vmul.f32 %v10013, %v10013
  %v10046 = vmul.f32 %v10014, %v10014
  %v10047 = vmul.f32 %v10015, %v10015
  %v10048 = vmul.f32 %v10016, %v10016
  %v10049 = vmul.f32 %v10017, %v10017
  %v10050 = vmul.f32 %v10018, %v10018
  %v10051 = vmul.f32 %v10019, %v10019
  %v10052 = vmul.f32 %v10020, %v10020
  %v10053 = vmul.f32 %v10021, %v10021
  %v10054 = vmul.f32 %v10022, %v10022
  %v10055 = vmul.f32 %v10023, %v10023
  %v10056 = vmul.f32 %v10024, %v10024
  %v10057 = vmul.f32 %v10025, %v10025
  %v10058 = vadd.f32 %v10026, %v10028
  %v10059 = vadd.f32 %v10058, %v10030
  %v10060 = vadd.f32 %v10059, %v10032
  %v10061 = vadd.f32 %v10060, %v10034
  %v10062 = vadd.f32 %v10061, %v10036
  %v10063 = vadd.f32 %v10062, %v10038
  %v10064 = vadd.f32 %v10063, %v10040
  %v10065 = vadd.f32 %v10064, %v10042
  %v10066 = vadd.f32 %v10065, %v10044
  %v10067 = vadd.f32 %v10066, %v10046
  %v10068 = vadd.f32 %v10067, %v10048
  %v10069 = vadd.f32 %v10068, %v10050
  %v10070 = vadd.f32 %v10069, %v10052
  %v10071 = vadd.f32 %v10070, %v10054
  %v10072 = vadd.f32 %v10071, %v10056
  %v10073 = vrot.slane %v10072, 4
  %v10074 = vadd.f32 %v10072, %v10073
  %v10075 = vrot.slane %v10074, 2
  %v10076 = vadd.f32 %v10074, %v10075
  %v10077 = vrot.slane %v10076, 1
  %v10078 = vadd.f32 %v10076, %v10077
  %v10079 = vadd.f32 %v10027, %v10029
  %v10080 = vadd.f32 %v10079, %v10031
  %v10081 = vadd.f32 %v10080, %v10033
  %v10082 = vadd.f32 %v10081, %v10035
  %v10083 = vadd.f32 %v10082, %v10037
  %v10084 = vadd.f32 %v10083, %v10039
  %v10085 = vadd.f32 %v10084, %v10041
  %v10086 = vadd.f32 %v10085, %v10043
  %v10087 = vadd.f32 %v10086, %v10045
  %v10088 = vadd.f32 %v10087, %v10047
  %v10089 = vadd.f32 %v10088, %v10049
  %v10090 = vadd.f32 %v10089, %v10051
  %v10091 = vadd.f32 %v10090, %v10053
  %v10092 = vadd.f32 %v10091, %v10055
  %v10093 = vadd.f32 %v10092, %v10057
  %v10094 = vrot.slane %v10093, 4
  %v10095 = vadd.f32 %v10093, %v10094
  %v10096 = vrot.slane %v10095, 2
  %v10097 = vadd.f32 %v10095, %v10096
  %v10098 = vrot.slane %v10097, 1
  %v10099 = vadd.f32 %v10097, %v10098
  %v10100 = vmul.f32 %v10078, %v555
  %v10101 = vmul.f32 %v10099, %v555
  %v10102 = vld [vmem:[%s12] sm:$0x3]
  %v10103 = vadd.f32 %v10100, 1e-05
  %v10104 = vadd.f32 %v10101, 1e-05
  %v10105 = vrsqrt.pop %v10103
  %v10106 = vmul.f32 %v10105, %v10103
  %v10107 = vmul.f32 %v10106, %v10105
  %v10108 = vmul.f32 0.5, %v10107
  %v10109 = vsub.f32 1.5, %v10108
  %v10110 = vmul.f32 %v10105, %v10109
  %vm10111 = vweird.f32 %v10103
  %vm10112 = vweird.f32 %v10105
  %vm10113 = vmor %vm10111, %vm10112
  %v10114 = vsel %vm10113, %v10105, %v10110
  %v10115 = vrsqrt.pop %v10104
  %v10116 = vmul.f32 %v10115, %v10104
  %v10117 = vmul.f32 %v10116, %v10115
  %v10118 = vmul.f32 0.5, %v10117
  %v10119 = vsub.f32 1.5, %v10118
  %v10120 = vmul.f32 %v10115, %v10119
  %vm10121 = vweird.f32 %v10104
  %vm10122 = vweird.f32 %v10115
  %vm10123 = vmor %vm10121, %vm10122
  %v10124 = vsel %vm10123, %v10115, %v10120
  %v10127 = vrot.slane %v10124, 7
  %v10128 = vsel %vm828, %v10114, %v10127
  %v10130 = vmul.f32 %v10102, %v10128
  %v10131 = vld [vmem:[%s13] sm:$0x3]
  %v10133 = vperm.slane %v10130, 0
  %v10134 = vperm.slane %v10130, 1
  %v10137 = vmul.f32 %v9992, %v10133
  %v10138 = vmul.f32 %v9993, %v10134
  %v10141 = vrot.slane %v10138, 7
  %v10142 = vsel %vm828, %v10137, %v10141
  %v10144 = vsub.f32 %v10131, %v10142
  %v10145 = vmul.f32 %v9715, %v10133
  %v10146 = vmul.f32 %v9911, %v10134
  %v10147 = vmul.f32 %v9717, %v10133
  %v10148 = vmul.f32 %v9913, %v10134
  %v10149 = vmul.f32 %v9720, %v10133
  %v10150 = vmul.f32 %v9916, %v10134
  %v10151 = vmul.f32 %v9722, %v10133
  %v10152 = vmul.f32 %v9918, %v10134
  %v10153 = vmul.f32 %v9725, %v10133
  %v10154 = vmul.f32 %v9921, %v10134
  %v10155 = vmul.f32 %v9727, %v10133
  %v10156 = vmul.f32 %v9923, %v10134
  %v10157 = vmul.f32 %v9730, %v10133
  %v10158 = vmul.f32 %v9926, %v10134
  %v10159 = vmul.f32 %v9732, %v10133
  %v10160 = vmul.f32 %v9928, %v10134
  %v10161 = vmul.f32 %v9735, %v10133
  %v10162 = vmul.f32 %v9931, %v10134
  %v10163 = vmul.f32 %v9737, %v10133
  %v10164 = vmul.f32 %v9933, %v10134
  %v10165 = vmul.f32 %v9740, %v10133
  %v10166 = vmul.f32 %v9936, %v10134
  %v10167 = vmul.f32 %v9742, %v10133
  %v10168 = vmul.f32 %v9938, %v10134
  %v10169 = vmul.f32 %v9745, %v10133
  %v10170 = vmul.f32 %v9941, %v10134
  %v10171 = vmul.f32 %v9747, %v10133
  %v10172 = vmul.f32 %v9943, %v10134
  %v10173 = vmul.f32 %v9750, %v10133
  %v10174 = vmul.f32 %v9946, %v10134
  %v10175 = vmul.f32 %v9752, %v10133
  %v10176 = vmul.f32 %v9948, %v10134
  %v10178 = vperm.slane %v10144, 0
  %v10179 = vperm.slane %v10144, 1
  %v10182 = vadd.f32 %v10145, %v10178
  %v10183 = vadd.f32 %v10146, %v10179
  %v10184 = vadd.f32 %v10147, %v10178
  %v10185 = vadd.f32 %v10148, %v10179
  %v10186 = vadd.f32 %v10149, %v10178
  %v10187 = vadd.f32 %v10150, %v10179
  %v10188 = vadd.f32 %v10151, %v10178
  %v10189 = vadd.f32 %v10152, %v10179
  %v10190 = vadd.f32 %v10153, %v10178
  %v10191 = vadd.f32 %v10154, %v10179
  %v10192 = vadd.f32 %v10155, %v10178
  %v10193 = vadd.f32 %v10156, %v10179
  %v10194 = vadd.f32 %v10157, %v10178
  %v10195 = vadd.f32 %v10158, %v10179
  %v10196 = vadd.f32 %v10159, %v10178
  %v10197 = vadd.f32 %v10160, %v10179
  %v10198 = vadd.f32 %v10161, %v10178
  %v10199 = vadd.f32 %v10162, %v10179
  %v10200 = vadd.f32 %v10163, %v10178
  %v10201 = vadd.f32 %v10164, %v10179
  %v10202 = vadd.f32 %v10165, %v10178
  %v10203 = vadd.f32 %v10166, %v10179
  %v10204 = vadd.f32 %v10167, %v10178
  %v10205 = vadd.f32 %v10168, %v10179
  %v10206 = vadd.f32 %v10169, %v10178
  %v10207 = vadd.f32 %v10170, %v10179
  %v10208 = vadd.f32 %v10171, %v10178
  %v10209 = vadd.f32 %v10172, %v10179
  %v10210 = vadd.f32 %v10173, %v10178
  %v10211 = vadd.f32 %v10174, %v10179
  %v10212 = vadd.f32 %v10175, %v10178
  %v10213 = vadd.f32 %v10176, %v10179
  %v10214 = vmax.f32 %v10182, 0.0
  %v10215 = vmax.f32 %v10183, 0.0
  %v10216 = vmax.f32 %v10184, 0.0
  %v10217 = vmax.f32 %v10185, 0.0
  %v10218 = vmax.f32 %v10186, 0.0
  %v10219 = vmax.f32 %v10187, 0.0
  %v10220 = vmax.f32 %v10188, 0.0
  %v10221 = vmax.f32 %v10189, 0.0
  %v10222 = vmax.f32 %v10190, 0.0
  %v10223 = vmax.f32 %v10191, 0.0
  %v10224 = vmax.f32 %v10192, 0.0
  %v10225 = vmax.f32 %v10193, 0.0
  %v10226 = vmax.f32 %v10194, 0.0
  %v10227 = vmax.f32 %v10195, 0.0
  %v10228 = vmax.f32 %v10196, 0.0
  %v10229 = vmax.f32 %v10197, 0.0
  %v10230 = vmax.f32 %v10198, 0.0
  %v10231 = vmax.f32 %v10199, 0.0
  %v10232 = vmax.f32 %v10200, 0.0
  %v10233 = vmax.f32 %v10201, 0.0
  %v10234 = vmax.f32 %v10202, 0.0
  %v10235 = vmax.f32 %v10203, 0.0
  %v10236 = vmax.f32 %v10204, 0.0
  %v10237 = vmax.f32 %v10205, 0.0
  %v10238 = vmax.f32 %v10206, 0.0
  %v10239 = vmax.f32 %v10207, 0.0
  %v10240 = vmax.f32 %v10208, 0.0
  %v10241 = vmax.f32 %v10209, 0.0
  %v10242 = vmax.f32 %v10210, 0.0
  %v10243 = vmax.f32 %v10211, 0.0
  %v10244 = vmax.f32 %v10212, 0.0
  %v10245 = vmax.f32 %v10213, 0.0
  %v10246 = vpack.c.bf16 %v10216, %v10214
  %v10247 = vpack.c.bf16 %v10217, %v10215
  %v10248 = vpack.c.bf16 %v10220, %v10218
  %v10249 = vpack.c.bf16 %v10221, %v10219
  %v10250 = vpack.c.bf16 %v10224, %v10222
  %v10251 = vpack.c.bf16 %v10225, %v10223
  %v10252 = vpack.c.bf16 %v10228, %v10226
  %v10253 = vpack.c.bf16 %v10229, %v10227
  %v10254 = vpack.c.bf16 %v10232, %v10230
  %v10255 = vpack.c.bf16 %v10233, %v10231
  %v10256 = vpack.c.bf16 %v10236, %v10234
  %v10257 = vpack.c.bf16 %v10237, %v10235
  %v10258 = vpack.c.bf16 %v10240, %v10238
  %v10259 = vpack.c.bf16 %v10241, %v10239
  %v10260 = vpack.c.bf16 %v10244, %v10242
  %v10261 = vpack.c.bf16 %v10245, %v10243
  %s10262 = smul.u32 4, 32
  %s10263 = smul.u32 %s10262, 1
  %s10264 = sshll.u32 %s10263, 4
  %10265 = dma.done %s119, %s10264
  %v10266 = vld [vmem:[#allocation6] sm:$0xf]
  %v10267 = vld [vmem:[#allocation6 + $0x4] sm:$0xf]
  %v10268 = vld [vmem:[#allocation6 + $0x8] sm:$0xf]
  %v10269 = vld [vmem:[#allocation6 + $0xc] sm:$0xf]
  %v10270 = vld [vmem:[#allocation6 + $0x10] sm:$0xf]
  %v10271 = vld [vmem:[#allocation6 + $0x14] sm:$0xf]
  %v10272 = vld [vmem:[#allocation6 + $0x18] sm:$0xf]
  %v10273 = vld [vmem:[#allocation6 + $0x1c] sm:$0xf]
  %v10274 = vld [vmem:[#allocation6 + $0x20] sm:$0xf]
  %v10275 = vld [vmem:[#allocation6 + $0x24] sm:$0xf]
  %v10276 = vld [vmem:[#allocation6 + $0x28] sm:$0xf]
  %v10277 = vld [vmem:[#allocation6 + $0x2c] sm:$0xf]
  %v10278 = vld [vmem:[#allocation6 + $0x30] sm:$0xf]
  %v10279 = vld [vmem:[#allocation6 + $0x34] sm:$0xf]
  %v10280 = vld [vmem:[#allocation6 + $0x38] sm:$0xf]
  %v10281 = vld [vmem:[#allocation6 + $0x3c] sm:$0xf]
  %v10282 = vld [vmem:[#allocation6 + $0x40] sm:$0xf]
  %v10283 = vld [vmem:[#allocation6 + $0x44] sm:$0xf]
  %v10284 = vld [vmem:[#allocation6 + $0x48] sm:$0xf]
  %v10285 = vld [vmem:[#allocation6 + $0x4c] sm:$0xf]
  %v10286 = vld [vmem:[#allocation6 + $0x50] sm:$0xf]
  %v10287 = vld [vmem:[#allocation6 + $0x54] sm:$0xf]
  %v10288 = vld [vmem:[#allocation6 + $0x58] sm:$0xf]
  %v10289 = vld [vmem:[#allocation6 + $0x5c] sm:$0xf]
  %v10290 = vld [vmem:[#allocation6 + $0x60] sm:$0xf]
  %v10291 = vld [vmem:[#allocation6 + $0x64] sm:$0xf]
  %v10292 = vld [vmem:[#allocation6 + $0x68] sm:$0xf]
  %v10293 = vld [vmem:[#allocation6 + $0x6c] sm:$0xf]
  %v10294 = vld [vmem:[#allocation6 + $0x70] sm:$0xf]
  %v10295 = vld [vmem:[#allocation6 + $0x74] sm:$0xf]
  %v10296 = vld [vmem:[#allocation6 + $0x78] sm:$0xf]
  %v10297 = vld [vmem:[#allocation6 + $0x7c] sm:$0xf]
  %v10298 = vld [vmem:[%s14] sm:$0x1]
  %v10300 = vperm.slane %v10298, 0
  %v10334 = vunpack.c.l.b16 %v10266
  %v10335 = vunpack.c.l.b16 %v10267
  %v10336 = vunpack.c.l.b16 %v10268
  %v10337 = vunpack.c.l.b16 %v10269
  %v10338 = vunpack.c.l.b16 %v10270
  %v10339 = vunpack.c.l.b16 %v10271
  %v10340 = vunpack.c.l.b16 %v10272
  %v10341 = vunpack.c.l.b16 %v10273
  %v10342 = vunpack.c.l.b16 %v10274
  %v10343 = vunpack.c.l.b16 %v10275
  %v10344 = vunpack.c.l.b16 %v10276
  %v10345 = vunpack.c.l.b16 %v10277
  %v10346 = vunpack.c.l.b16 %v10278
  %v10347 = vunpack.c.l.b16 %v10279
  %v10348 = vunpack.c.l.b16 %v10280
  %v10349 = vunpack.c.l.b16 %v10281
  %v10350 = vunpack.c.l.b16 %v10282
  %v10351 = vunpack.c.l.b16 %v10283
  %v10352 = vunpack.c.l.b16 %v10284
  %v10353 = vunpack.c.l.b16 %v10285
  %v10354 = vunpack.c.l.b16 %v10286
  %v10355 = vunpack.c.l.b16 %v10287
  %v10356 = vunpack.c.l.b16 %v10288
  %v10357 = vunpack.c.l.b16 %v10289
  %v10358 = vunpack.c.l.b16 %v10290
  %v10359 = vunpack.c.l.b16 %v10291
  %v10360 = vunpack.c.l.b16 %v10292
  %v10361 = vunpack.c.l.b16 %v10293
  %v10362 = vunpack.c.l.b16 %v10294
  %v10363 = vunpack.c.l.b16 %v10295
  %v10364 = vunpack.c.l.b16 %v10296
  %v10365 = vunpack.c.l.b16 %v10297
  %v10366 = vpack.c.b16 %v10335, %v10334
  %v10367 = vpack.c.b16 %v10337, %v10336
  %v10368 = vpack.c.b16 %v10339, %v10338
  %v10369 = vpack.c.b16 %v10341, %v10340
  %v10370 = vpack.c.b16 %v10343, %v10342
  %v10371 = vpack.c.b16 %v10345, %v10344
  %v10372 = vpack.c.b16 %v10347, %v10346
  %v10373 = vpack.c.b16 %v10349, %v10348
  %v10374 = vpack.c.b16 %v10351, %v10350
  %v10375 = vpack.c.b16 %v10353, %v10352
  %v10376 = vpack.c.b16 %v10355, %v10354
  %v10377 = vpack.c.b16 %v10357, %v10356
  %v10378 = vpack.c.b16 %v10359, %v10358
  %v10379 = vpack.c.b16 %v10361, %v10360
  %v10380 = vpack.c.b16 %v10363, %v10362
  %v10381 = vpack.c.b16 %v10365, %v10364
  %10398 = vmatpush.bf16.msra.mxu0 %v10373
  %10399 = vmatpush.bf16.msra.mxu0 %v10372
  %10400 = vmatpush.bf16.msra.mxu0 %v10371
  %10401 = vmatpush.bf16.msra.mxu0 %v10370
  %10402 = vmatpush.bf16.msra.mxu0 %v10369
  %10403 = vmatpush.bf16.msra.mxu0 %v10368
  %10404 = vmatpush.bf16.msra.mxu0 %v10367
  %10405 = vmatpush.bf16.msra.mxu0 %v10366
  %10406 = vmatmul.bf16.gmra.mxu0 %v10246
  %v10407 = vpop.f32.mrf.mxu0
  %v10408 = vadd.f32 %v10300, %v10407
  %v10409 = vpop.f32.mrf.mxu0
  %v10410 = vadd.f32 %v10300, %v10409
  %10411 = vmatmul.bf16.gmra.mxu0 %v10248
  %v10412 = vpop.f32.mrf.mxu0
  %v10413 = vadd.f32 %v10300, %v10412
  %v10414 = vpop.f32.mrf.mxu0
  %v10415 = vadd.f32 %v10300, %v10414
  %10416 = vmatmul.bf16.gmra.mxu0 %v10250
  %v10417 = vpop.f32.mrf.mxu0
  %v10418 = vadd.f32 %v10300, %v10417
  %v10419 = vpop.f32.mrf.mxu0
  %v10420 = vadd.f32 %v10300, %v10419
  %10421 = vmatmul.bf16.gmra.mxu0 %v10252
  %v10422 = vpop.f32.mrf.mxu0
  %v10423 = vadd.f32 %v10300, %v10422
  %v10424 = vpop.f32.mrf.mxu0
  %v10425 = vadd.f32 %v10300, %v10424
  %10426 = vmatmul.bf16.gmra.mxu0 %v10254
  %v10427 = vpop.f32.mrf.mxu0
  %v10428 = vadd.f32 %v10300, %v10427
  %v10429 = vpop.f32.mrf.mxu0
  %v10430 = vadd.f32 %v10300, %v10429
  %10431 = vmatmul.bf16.gmra.mxu0 %v10256
  %v10432 = vpop.f32.mrf.mxu0
  %v10433 = vadd.f32 %v10300, %v10432
  %v10434 = vpop.f32.mrf.mxu0
  %v10435 = vadd.f32 %v10300, %v10434
  %10436 = vmatmul.bf16.gmra.mxu0 %v10258
  %v10437 = vpop.f32.mrf.mxu0
  %v10438 = vadd.f32 %v10300, %v10437
  %v10439 = vpop.f32.mrf.mxu0
  %v10440 = vadd.f32 %v10300, %v10439
  %10441 = vmatmul.bf16.gmra.mxu0 %v10260
  %v10442 = vpop.f32.mrf.mxu0
  %v10443 = vadd.f32 %v10300, %v10442
  %v10444 = vpop.f32.mrf.mxu0
  %v10445 = vadd.f32 %v10300, %v10444
  %10446 = vdwg.mxu0
  %10447 = vmatpush.bf16.msra.mxu0 %v10381
  %10448 = vmatpush.bf16.msra.mxu0 %v10380
  %10449 = vmatpush.bf16.msra.mxu0 %v10379
  %10450 = vmatpush.bf16.msra.mxu0 %v10378
  %10451 = vmatpush.bf16.msra.mxu0 %v10377
  %10452 = vmatpush.bf16.msra.mxu0 %v10376
  %10453 = vmatpush.bf16.msra.mxu0 %v10375
  %10454 = vmatpush.bf16.msra.mxu0 %v10374
  %10455 = vmatmul.bf16.gmra.mxu0 %v10247
  %v10456 = vpop.f32.mrf.mxu0
  %v10457 = vadd.f32 %v10408, %v10456
  %v10458 = vpop.f32.mrf.mxu0
  %v10459 = vadd.f32 %v10410, %v10458
  %10460 = vmatmul.bf16.gmra.mxu0 %v10249
  %v10461 = vpop.f32.mrf.mxu0
  %v10462 = vadd.f32 %v10413, %v10461
  %v10463 = vpop.f32.mrf.mxu0
  %v10464 = vadd.f32 %v10415, %v10463
  %10465 = vmatmul.bf16.gmra.mxu0 %v10251
  %v10466 = vpop.f32.mrf.mxu0
  %v10467 = vadd.f32 %v10418, %v10466
  %v10468 = vpop.f32.mrf.mxu0
  %v10469 = vadd.f32 %v10420, %v10468
  %10470 = vmatmul.bf16.gmra.mxu0 %v10253
  %v10471 = vpop.f32.mrf.mxu0
  %v10472 = vadd.f32 %v10423, %v10471
  %v10473 = vpop.f32.mrf.mxu0
  %v10474 = vadd.f32 %v10425, %v10473
  %10475 = vmatmul.bf16.gmra.mxu0 %v10255
  %v10476 = vpop.f32.mrf.mxu0
  %v10477 = vadd.f32 %v10428, %v10476
  %v10478 = vpop.f32.mrf.mxu0
  %v10479 = vadd.f32 %v10430, %v10478
  %10480 = vmatmul.bf16.gmra.mxu0 %v10257
  %v10481 = vpop.f32.mrf.mxu0
  %v10482 = vadd.f32 %v10433, %v10481
  %v10483 = vpop.f32.mrf.mxu0
  %v10484 = vadd.f32 %v10435, %v10483
  %10485 = vmatmul.bf16.gmra.mxu0 %v10259
  %v10486 = vpop.f32.mrf.mxu0
  %v10487 = vadd.f32 %v10438, %v10486
  %v10488 = vpop.f32.mrf.mxu0
  %v10489 = vadd.f32 %v10440, %v10488
  %10490 = vmatmul.bf16.gmra.mxu0 %v10261
  %v10491 = vpop.f32.mrf.mxu0
  %v10492 = vadd.f32 %v10443, %v10491
  %v10493 = vpop.f32.mrf.mxu0
  %v10494 = vadd.f32 %v10445, %v10493
  %10495 = vdwg.mxu0
  %s10496 = sld [smem:[#allocation8]]
  %v10497 = vstv %s10496
  %v10498 = vmul.f32 %v10457, %v10497
  %v10499 = vmul.f32 %v10459, %v10497
  %v10500 = vmul.f32 %v10462, %v10497
  %v10501 = vmul.f32 %v10464, %v10497
  %v10502 = vmul.f32 %v10467, %v10497
  %v10503 = vmul.f32 %v10469, %v10497
  %v10504 = vmul.f32 %v10472, %v10497
  %v10505 = vmul.f32 %v10474, %v10497
  %v10506 = vmul.f32 %v10477, %v10497
  %v10507 = vmul.f32 %v10479, %v10497
  %v10508 = vmul.f32 %v10482, %v10497
  %v10509 = vmul.f32 %v10484, %v10497
  %v10510 = vmul.f32 %v10487, %v10497
  %v10511 = vmul.f32 %v10489, %v10497
  %v10512 = vmul.f32 %v10492, %v10497
  %v10513 = vmul.f32 %v10494, %v10497
  %vm10514 = vcmask 64512
  %10515 = vst.msk [vmem:[%s16] sm:$0xff] %vm10514, %v10498
  %10516 = vst.msk [vmem:[%s16 + $0x8] sm:$0xff] %vm10514, %v10499
  %10517 = vst.msk [vmem:[%s16 + $0x10] sm:$0xff] %vm10514, %v10500
  %10518 = vst.msk [vmem:[%s16 + $0x18] sm:$0xff] %vm10514, %v10501
  %10519 = vst.msk [vmem:[%s16 + $0x20] sm:$0xff] %vm10514, %v10502
  %10520 = vst.msk [vmem:[%s16 + $0x28] sm:$0xff] %vm10514, %v10503
  %10521 = vst.msk [vmem:[%s16 + $0x30] sm:$0xff] %vm10514, %v10504
  %10522 = vst.msk [vmem:[%s16 + $0x38] sm:$0xff] %vm10514, %v10505
  %10523 = vst.msk [vmem:[%s16 + $0x40] sm:$0xff] %vm10514, %v10506
  %10524 = vst.msk [vmem:[%s16 + $0x48] sm:$0xff] %vm10514, %v10507
  %10525 = vst.msk [vmem:[%s16 + $0x50] sm:$0xff] %vm10514, %v10508
  %10526 = vst.msk [vmem:[%s16 + $0x58] sm:$0xff] %vm10514, %v10509
  %10527 = vst.msk [vmem:[%s16 + $0x60] sm:$0xff] %vm10514, %v10510
  %10528 = vst.msk [vmem:[%s16 + $0x68] sm:$0xff] %vm10514, %v10511
  %10529 = vst.msk [vmem:[%s16 + $0x70] sm:$0xff] %vm10514, %v10512
  %10530 = vst.msk [vmem:[%s16 + $0x78] sm:$0xff] %vm10514, %v10513
  // Predicated region
  $region96: #{tpu_custom_call.1} parent=0 // pred_check
    _
  $region97: #{tpu_custom_call.1} parent=0 // pred_check_branch
    %10532 = sbr.rel (0) target = $region99
  $region98: #{tpu_custom_call.1} parent=0 // pred_region
    _
  $region99: #{tpu_custom_call.1} parent=0 // pred_fallthru
    _
  // Predicated region
  $region100: #{tpu_custom_call.1} parent=0 // pred_check
    _
  $region101: #{tpu_custom_call.1} parent=0 // pred_check_branch
    %10534 = sbr.rel (0) target = $region103
  $region102: #{tpu_custom_call.1} parent=0 // pred_region
    _
  $region103: #{tpu_custom_call.1} parent=0 // pred_fallthru
    _
  %10535 = vsyncmov [#allocation7]
  %s10536 = vpop.sfrf %10535
  %p10537 = scmp.eq.s32.totalorder %s10536, 0
  %p10538 = pneg %p10537
  %10540 = shalt.err (%p10538)
  %s10541 = scalar_lea.sflag [#allocation7], 1
  %10542 = vsyncmov %s10541
  %s10543 = vpop.sfrf %10542
  %p10544 = scmp.eq.s32.totalorder %s10543, 0
  %p10545 = pneg %p10544
  %10547 = shalt.err (%p10545)
  %s10548 = scalar_lea.sflag [#allocation7], 2
  %10549 = vsyncmov %s10548
  %s10550 = vpop.sfrf %10549
  %p10551 = scmp.eq.s32.totalorder %s10550, 0
  %p10552 = pneg %p10551
  %10554 = shalt.err (%p10552)
  %s10555 = scalar_lea.sflag [#allocation7], 3
  %10556 = vsyncmov %s10555
  %s10557 = vpop.sfrf %10556
  %p10558 = scmp.eq.s32.totalorder %s10557, 0
  %p10559 = pneg %p10558
  %10561 = shalt.err (%p10559)
  %s10562 = scalar_lea.sflag [#allocation7], 4
  %10563 = vsyncmov %s10562
  %s10564 = vpop.sfrf %10563
  %p10565 = scmp.eq.s32.totalorder %s10564, 0
  %p10566 = pneg %p10565
  %10568 = shalt.err (%p10566)

</llo_original>
